<compile_context>
chip_gen: v7x
topology: tpu7x:2x2x1
jax: 0.10.0
libtpu: 0.0.40
codegen_flags: <defaults>
</compile_context>

<pallas_src>
import jax
import jax.numpy as jnp
from jax import lax
from jax.experimental import pallas as pl
from jax.experimental.pallas import tpu as pltpu

PAD = 3  # max halo (7x7 conv, pad 3); also covers 3x3 (pad 1) and 5x5 (pad 2)


def fdoc_relu_kernel(x_ref, w1_ref, w2_ref, w3_ref, o_ref):
    # x_ref : (1, TC, H+2*PAD, W+2*PAD)  padded input tile (one batch, TC channels)
    # wK_ref: (TC, k, k)                 depthwise taps for this channel tile
    # o_ref : (1, 4, TC, H, W)           four result slabs res1..res4
    TC = o_ref.shape[2]
    H = o_ref.shape[3]
    W = o_ref.shape[4]

    xf = x_ref[0].astype(jnp.float32)                              # (TC, Hp, Wp)
    # Hoist the 7 lane (dx) shifts once; every tap below reuses these views and
    # only differs in the row (dy) offset.
    cols = [xf[:, :, dx:dx + W] for dx in range(2 * PAD + 1)]      # each (TC, Hp, W)

    def dw_conv_relu(w_ref, k):
        off = PAD - (k // 2)
        acc = jnp.zeros((TC, H, W), jnp.float32)
        for dy in range(k):
            r0 = off + dy
            for dx in range(k):
                patch = cols[off + dx][:, r0:r0 + H, :]            # (TC, H, W)
                tap = w_ref[:, dy:dy + 1, dx:dx + 1].astype(jnp.float32)  # (TC,1,1)
                acc = acc + patch * tap
        return jnp.maximum(acc, 0.0)

    out0 = cols[PAD][:, PAD:PAD + H, :]                            # stride=1 identity
    out1 = dw_conv_relu(w1_ref, 3)
    o_ref[0, 0] = (out0 - out1).astype(o_ref.dtype)                # res1
    out2 = dw_conv_relu(w2_ref, 5)
    o_ref[0, 1] = (out1 - out2).astype(o_ref.dtype)                # res2
    out3 = dw_conv_relu(w3_ref, 7)
    o_ref[0, 2] = (out2 - out3).astype(o_ref.dtype)                # res3
    o_ref[0, 3] = out3.astype(o_ref.dtype)                         # res4


def _choose_channel_tile(C, H, W, budget_bytes=4 * 1024 * 1024):
    """Largest divisor of C whose per-step f32 working set fits the budget."""
    Hp, Wp = H + 2 * PAD, W + 2 * PAD
    # input tile + 7 shifted col views + acc + 2 live conv results + 4 out slabs
    per_ch_f32 = Hp * Wp + 7 * Hp * W + 3 * H * W + 4 * H * W
    best = 1
    for tc in range(1, C + 1):
        if C % tc == 0 and tc * per_ch_f32 * 4 <= budget_bytes:
            best = tc
    return best


def fdoc_relu(x_nchw, w1, w2, w3):
    """x_nchw: (N, C, H, W); w{1,2,3}: PyTorch depthwise weights (C, 1, k, k)."""
    N, C, H, W = x_nchw.shape
    Hp, Wp = H + 2 * PAD, W + 2 * PAD

    # Single pad (handles all three convs); NO layout transposes needed.
    xp = jnp.pad(x_nchw, ((0, 0), (0, 0), (PAD, PAD), (PAD, PAD)))
    w1k = w1[:, 0]  # (C, 3, 3)
    w2k = w2[:, 0]  # (C, 5, 5)
    w3k = w3[:, 0]  # (C, 7, 7)

    TC = _choose_channel_tile(C, H, W)
    grid = (N, C // TC)

    out = pl.pallas_call(
        fdoc_relu_kernel,
        out_shape=jax.ShapeDtypeStruct((N, 4, C, H, W), x_nchw.dtype),
        grid=grid,
        in_specs=[
            pl.BlockSpec((1, TC, Hp, Wp), lambda n, c: (n, c, 0, 0)),
            pl.BlockSpec((TC, 3, 3), lambda n, c: (c, 0, 0)),
            pl.BlockSpec((TC, 5, 5), lambda n, c: (c, 0, 0)),
            pl.BlockSpec((TC, 7, 7), lambda n, c: (c, 0, 0)),
        ],
        out_specs=pl.BlockSpec((1, 4, TC, H, W), lambda n, c: (n, 0, c, 0, 0)),
        compiler_params=pltpu.CompilerParams(
            dimension_semantics=("parallel", "parallel")),
    )(xp, w1k, w2k, w3k)

    # (N, 4, C, H, W) -> (N, 4C, H, W): exactly torch.cat((res1..res4), dim=1),
    # and a pure metadata reshape (no transpose / data movement).
    return out.reshape(N, 4 * C, H, W)


def ref_forward(x, w1, w2, w3):
    """Pure-JAX reference replicating the PyTorch forward (stride=1)."""
    def dwconv(inp, w, k):
        return lax.conv_general_dilated(
            inp, w, window_strides=(1, 1),
            padding=[(k // 2, k // 2), (k // 2, k // 2)],
            dimension_numbers=("NCHW", "OIHW", "NCHW"),
            feature_group_count=inp.shape[1])
    out0 = x
    out1 = jnp.maximum(dwconv(x, w1, 3), 0.0)
    out2 = jnp.maximum(dwconv(x, w2, 5), 0.0)
    out3 = jnp.maximum(dwconv(x, w3, 7), 0.0)
    return jnp.concatenate([out0 - out1, out1 - out2, out2 - out3, out3], axis=1)


if __name__ == "__main__":
    N, C, H, W = 2, 4, 16, 16

    key = jax.random.PRNGKey(0)
    kx, k1, k2, k3 = jax.random.split(key, 4)
    x = jax.random.normal(kx, (N, C, H, W), dtype=jnp.float32)
    # Deterministic Kaiming-uniform-ish init for depthwise conv weights (C, 1, k, k).
    w1 = jax.random.uniform(k1, (C, 1, 3, 3), minval=-1.0 / 3.0, maxval=1.0 / 3.0)
    w2 = jax.random.uniform(k2, (C, 1, 5, 5), minval=-1.0 / 5.0, maxval=1.0 / 5.0)
    w3 = jax.random.uniform(k3, (C, 1, 7, 7), minval=-1.0 / 7.0, maxval=1.0 / 7.0)

    out = jax.block_until_ready(fdoc_relu(x, w1, w2, w3))
    ref = jax.block_until_ready(ref_forward(x, w1, w2, w3))

    assert out.shape == (N, 4 * C, H, W), out.shape
    assert jnp.allclose(out, ref, atol=1e-5, rtol=1e-5), float(jnp.max(jnp.abs(out - ref)))
    print("KERNEL_OK")
</pallas_src>

<mosaic_0001>
module attributes {stable_mosaic.version = 11 : i64} {
  func.func @fdoc_relu_kernel(%arg0: i32, %arg1: i32, %arg2: memref<1x4x22x22xf32, #tpu.memory_space<vmem>>, %arg3: memref<4x3x3xf32, #tpu.memory_space<vmem>>, %arg4: memref<4x5x5xf32, #tpu.memory_space<vmem>>, %arg5: memref<4x7x7xf32, #tpu.memory_space<vmem>>, %arg6: memref<1x4x4x16x16xf32, #tpu.memory_space<vmem>>) attributes {dimension_semantics = [#tpu.dimension_semantics<parallel>, #tpu.dimension_semantics<parallel>], iteration_bounds = array<i64: 2, 1>, scalar_prefetch = 0 : i64, scratch_operands = 0 : i64, tpu.core_type = #tpu.core_type<tc>, window_params = [{transform_indices = @transform_0, window_bounds = array<i64: 1, 4, 22, 22>}, {transform_indices = @transform_1, window_bounds = array<i64: 4, 3, 3>}, {transform_indices = @transform_2, window_bounds = array<i64: 4, 5, 5>}, {transform_indices = @transform_3, window_bounds = array<i64: 4, 7, 7>}, {transform_indices = @transform_4, window_bounds = array<i64: 1, 4, 4, 16, 16>}]} {
    %c0 = arith.constant 0 : index
    %c0_0 = arith.constant 0 : index
    %c0_1 = arith.constant 0 : index
    %c0_2 = arith.constant 0 : index
    %0 = vector.load %arg2[%c0, %c0_0, %c0_1, %c0_2] : memref<1x4x22x22xf32, #tpu.memory_space<vmem>>, vector<1x4x22x22xf32>
    %1 = vector.shape_cast %0 : vector<1x4x22x22xf32> to vector<4x22x22xf32>
    %2 = vector.extract_strided_slice %1 {offsets = [0, 0, 0], sizes = [4, 22, 16], strides = [1, 1, 1]} : vector<4x22x22xf32> to vector<4x22x16xf32>
    %3 = vector.extract_strided_slice %1 {offsets = [0, 0, 1], sizes = [4, 22, 16], strides = [1, 1, 1]} : vector<4x22x22xf32> to vector<4x22x16xf32>
    %4 = vector.extract_strided_slice %1 {offsets = [0, 0, 2], sizes = [4, 22, 16], strides = [1, 1, 1]} : vector<4x22x22xf32> to vector<4x22x16xf32>
    %5 = vector.extract_strided_slice %1 {offsets = [0, 0, 3], sizes = [4, 22, 16], strides = [1, 1, 1]} : vector<4x22x22xf32> to vector<4x22x16xf32>
    %6 = vector.extract_strided_slice %1 {offsets = [0, 0, 4], sizes = [4, 22, 16], strides = [1, 1, 1]} : vector<4x22x22xf32> to vector<4x22x16xf32>
    %7 = vector.extract_strided_slice %1 {offsets = [0, 0, 5], sizes = [4, 22, 16], strides = [1, 1, 1]} : vector<4x22x22xf32> to vector<4x22x16xf32>
    %8 = vector.extract_strided_slice %1 {offsets = [0, 0, 6], sizes = [4, 22, 16], strides = [1, 1, 1]} : vector<4x22x22xf32> to vector<4x22x16xf32>
    %9 = vector.extract_strided_slice %5 {offsets = [0, 3, 0], sizes = [4, 16, 16], strides = [1, 1, 1]} : vector<4x22x16xf32> to vector<4x16x16xf32>
    %cst = arith.constant 0.000000e+00 : f32
    %10 = vector.broadcast %cst : f32 to vector<4x16x16xf32>
    %11 = vector.extract_strided_slice %4 {offsets = [0, 2, 0], sizes = [4, 16, 16], strides = [1, 1, 1]} : vector<4x22x16xf32> to vector<4x16x16xf32>
    %c0_3 = arith.constant 0 : index
    %c0_4 = arith.constant 0 : index
    %c0_5 = arith.constant 0 : index
    %12 = vector.load %arg3[%c0_3, %c0_4, %c0_5] : memref<4x3x3xf32, #tpu.memory_space<vmem>>, vector<4x1x1xf32>
    %13 = vector.broadcast %12 : vector<4x1x1xf32> to vector<4x16x16xf32>
    %14 = arith.mulf %11, %13 : vector<4x16x16xf32>
    %15 = arith.addf %10, %14 : vector<4x16x16xf32>
    %16 = vector.extract_strided_slice %5 {offsets = [0, 2, 0], sizes = [4, 16, 16], strides = [1, 1, 1]} : vector<4x22x16xf32> to vector<4x16x16xf32>
    %c0_6 = arith.constant 0 : index
    %c0_7 = arith.constant 0 : index
    %c1 = arith.constant 1 : index
    %17 = vector.load %arg3[%c0_6, %c0_7, %c1] : memref<4x3x3xf32, #tpu.memory_space<vmem>>, vector<4x1x1xf32>
    %18 = vector.broadcast %17 : vector<4x1x1xf32> to vector<4x16x16xf32>
    %19 = arith.mulf %16, %18 : vector<4x16x16xf32>
    %20 = arith.addf %15, %19 : vector<4x16x16xf32>
    %21 = vector.extract_strided_slice %6 {offsets = [0, 2, 0], sizes = [4, 16, 16], strides = [1, 1, 1]} : vector<4x22x16xf32> to vector<4x16x16xf32>
    %c0_8 = arith.constant 0 : index
    %c0_9 = arith.constant 0 : index
    %c2 = arith.constant 2 : index
    %22 = vector.load %arg3[%c0_8, %c0_9, %c2] : memref<4x3x3xf32, #tpu.memory_space<vmem>>, vector<4x1x1xf32>
    %23 = vector.broadcast %22 : vector<4x1x1xf32> to vector<4x16x16xf32>
    %24 = arith.mulf %21, %23 : vector<4x16x16xf32>
    %25 = arith.addf %20, %24 : vector<4x16x16xf32>
    %26 = vector.extract_strided_slice %4 {offsets = [0, 3, 0], sizes = [4, 16, 16], strides = [1, 1, 1]} : vector<4x22x16xf32> to vector<4x16x16xf32>
    %c0_10 = arith.constant 0 : index
    %c1_11 = arith.constant 1 : index
    %c0_12 = arith.constant 0 : index
    %27 = vector.load %arg3[%c0_10, %c1_11, %c0_12] : memref<4x3x3xf32, #tpu.memory_space<vmem>>, vector<4x1x1xf32>
    %28 = vector.broadcast %27 : vector<4x1x1xf32> to vector<4x16x16xf32>
    %29 = arith.mulf %26, %28 : vector<4x16x16xf32>
    %30 = arith.addf %25, %29 : vector<4x16x16xf32>
    %31 = vector.extract_strided_slice %5 {offsets = [0, 3, 0], sizes = [4, 16, 16], strides = [1, 1, 1]} : vector<4x22x16xf32> to vector<4x16x16xf32>
    %c0_13 = arith.constant 0 : index
    %c1_14 = arith.constant 1 : index
    %c1_15 = arith.constant 1 : index
    %32 = vector.load %arg3[%c0_13, %c1_14, %c1_15] : memref<4x3x3xf32, #tpu.memory_space<vmem>>, vector<4x1x1xf32>
    %33 = vector.broadcast %32 : vector<4x1x1xf32> to vector<4x16x16xf32>
    %34 = arith.mulf %31, %33 : vector<4x16x16xf32>
    %35 = arith.addf %30, %34 : vector<4x16x16xf32>
    %36 = vector.extract_strided_slice %6 {offsets = [0, 3, 0], sizes = [4, 16, 16], strides = [1, 1, 1]} : vector<4x22x16xf32> to vector<4x16x16xf32>
    %c0_16 = arith.constant 0 : index
    %c1_17 = arith.constant 1 : index
    %c2_18 = arith.constant 2 : index
    %37 = vector.load %arg3[%c0_16, %c1_17, %c2_18] : memref<4x3x3xf32, #tpu.memory_space<vmem>>, vector<4x1x1xf32>
    %38 = vector.broadcast %37 : vector<4x1x1xf32> to vector<4x16x16xf32>
    %39 = arith.mulf %36, %38 : vector<4x16x16xf32>
    %40 = arith.addf %35, %39 : vector<4x16x16xf32>
    %41 = vector.extract_strided_slice %4 {offsets = [0, 4, 0], sizes = [4, 16, 16], strides = [1, 1, 1]} : vector<4x22x16xf32> to vector<4x16x16xf32>
    %c0_19 = arith.constant 0 : index
    %c2_20 = arith.constant 2 : index
    %c0_21 = arith.constant 0 : index
    %42 = vector.load %arg3[%c0_19, %c2_20, %c0_21] : memref<4x3x3xf32, #tpu.memory_space<vmem>>, vector<4x1x1xf32>
    %43 = vector.broadcast %42 : vector<4x1x1xf32> to vector<4x16x16xf32>
    %44 = arith.mulf %41, %43 : vector<4x16x16xf32>
    %45 = arith.addf %40, %44 : vector<4x16x16xf32>
    %46 = vector.extract_strided_slice %5 {offsets = [0, 4, 0], sizes = [4, 16, 16], strides = [1, 1, 1]} : vector<4x22x16xf32> to vector<4x16x16xf32>
    %c0_22 = arith.constant 0 : index
    %c2_23 = arith.constant 2 : index
    %c1_24 = arith.constant 1 : index
    %47 = vector.load %arg3[%c0_22, %c2_23, %c1_24] : memref<4x3x3xf32, #tpu.memory_space<vmem>>, vector<4x1x1xf32>
    %48 = vector.broadcast %47 : vector<4x1x1xf32> to vector<4x16x16xf32>
    %49 = arith.mulf %46, %48 : vector<4x16x16xf32>
    %50 = arith.addf %45, %49 : vector<4x16x16xf32>
    %51 = vector.extract_strided_slice %6 {offsets = [0, 4, 0], sizes = [4, 16, 16], strides = [1, 1, 1]} : vector<4x22x16xf32> to vector<4x16x16xf32>
    %c0_25 = arith.constant 0 : index
    %c2_26 = arith.constant 2 : index
    %c2_27 = arith.constant 2 : index
    %52 = vector.load %arg3[%c0_25, %c2_26, %c2_27] : memref<4x3x3xf32, #tpu.memory_space<vmem>>, vector<4x1x1xf32>
    %53 = vector.broadcast %52 : vector<4x1x1xf32> to vector<4x16x16xf32>
    %54 = arith.mulf %51, %53 : vector<4x16x16xf32>
    %55 = arith.addf %50, %54 : vector<4x16x16xf32>
    %cst_28 = arith.constant 0.000000e+00 : f32
    %56 = vector.broadcast %cst_28 : f32 to vector<4x16x16xf32>
    %57 = arith.maximumf %55, %56 : vector<4x16x16xf32>
    %58 = arith.subf %9, %57 : vector<4x16x16xf32>
    %c0_29 = arith.constant 0 : index
    %c0_30 = arith.constant 0 : index
    %c0_31 = arith.constant 0 : index
    %c0_32 = arith.constant 0 : index
    %c0_33 = arith.constant 0 : index
    %59 = vector.load %arg6[%c0_29, %c0_30, %c0_31, %c0_32, %c0_33] : memref<1x4x4x16x16xf32, #tpu.memory_space<vmem>>, vector<1x1x4x16x16xf32>
    %60 = vector.shape_cast %59 : vector<1x1x4x16x16xf32> to vector<4x16x16xf32>
    %61 = vector.shape_cast %58 : vector<4x16x16xf32> to vector<1x1x4x16x16xf32>
    tpu.vector_store %arg6[%c0_29, %c0_30, %c0_31, %c0_32, %c0_33], %61 {strides = array<i32>} : memref<1x4x4x16x16xf32, #tpu.memory_space<vmem>>, vector<1x1x4x16x16xf32>,
    %cst_34 = arith.constant 0.000000e+00 : f32
    %62 = vector.broadcast %cst_34 : f32 to vector<4x16x16xf32>
    %63 = vector.extract_strided_slice %3 {offsets = [0, 1, 0], sizes = [4, 16, 16], strides = [1, 1, 1]} : vector<4x22x16xf32> to vector<4x16x16xf32>
    %c0_35 = arith.constant 0 : index
    %c0_36 = arith.constant 0 : index
    %c0_37 = arith.constant 0 : index
    %64 = vector.load %arg4[%c0_35, %c0_36, %c0_37] : memref<4x5x5xf32, #tpu.memory_space<vmem>>, vector<4x1x1xf32>
    %65 = vector.broadcast %64 : vector<4x1x1xf32> to vector<4x16x16xf32>
    %66 = arith.mulf %63, %65 : vector<4x16x16xf32>
    %67 = arith.addf %62, %66 : vector<4x16x16xf32>
    %68 = vector.extract_strided_slice %4 {offsets = [0, 1, 0], sizes = [4, 16, 16], strides = [1, 1, 1]} : vector<4x22x16xf32> to vector<4x16x16xf32>
    %c0_38 = arith.constant 0 : index
    %c0_39 = arith.constant 0 : index
    %c1_40 = arith.constant 1 : index
    %69 = vector.load %arg4[%c0_38, %c0_39, %c1_40] : memref<4x5x5xf32, #tpu.memory_space<vmem>>, vector<4x1x1xf32>
    %70 = vector.broadcast %69 : vector<4x1x1xf32> to vector<4x16x16xf32>
    %71 = arith.mulf %68, %70 : vector<4x16x16xf32>
    %72 = arith.addf %67, %71 : vector<4x16x16xf32>
    %73 = vector.extract_strided_slice %5 {offsets = [0, 1, 0], sizes = [4, 16, 16], strides = [1, 1, 1]} : vector<4x22x16xf32> to vector<4x16x16xf32>
    %c0_41 = arith.constant 0 : index
    %c0_42 = arith.constant 0 : index
    %c2_43 = arith.constant 2 : index
    %74 = vector.load %arg4[%c0_41, %c0_42, %c2_43] : memref<4x5x5xf32, #tpu.memory_space<vmem>>, vector<4x1x1xf32>
    %75 = vector.broadcast %74 : vector<4x1x1xf32> to vector<4x16x16xf32>
    %76 = arith.mulf %73, %75 : vector<4x16x16xf32>
    %77 = arith.addf %72, %76 : vector<4x16x16xf32>
    %78 = vector.extract_strided_slice %6 {offsets = [0, 1, 0], sizes = [4, 16, 16], strides = [1, 1, 1]} : vector<4x22x16xf32> to vector<4x16x16xf32>
    %c0_44 = arith.constant 0 : index
    %c0_45 = arith.constant 0 : index
    %c3 = arith.constant 3 : index
    %79 = vector.load %arg4[%c0_44, %c0_45, %c3] : memref<4x5x5xf32, #tpu.memory_space<vmem>>, vector<4x1x1xf32>
    %80 = vector.broadcast %79 : vector<4x1x1xf32> to vector<4x16x16xf32>
    %81 = arith.mulf %78, %80 : vector<4x16x16xf32>
    %82 = arith.addf %77, %81 : vector<4x16x16xf32>
    %83 = vector.extract_strided_slice %7 {offsets = [0, 1, 0], sizes = [4, 16, 16], strides = [1, 1, 1]} : vector<4x22x16xf32> to vector<4x16x16xf32>
    %c0_46 = arith.constant 0 : index
    %c0_47 = arith.constant 0 : index
    %c4 = arith.constant 4 : index
    %84 = vector.load %arg4[%c0_46, %c0_47, %c4] : memref<4x5x5xf32, #tpu.memory_space<vmem>>, vector<4x1x1xf32>
    %85 = vector.broadcast %84 : vector<4x1x1xf32> to vector<4x16x16xf32>
    %86 = arith.mulf %83, %85 : vector<4x16x16xf32>
    %87 = arith.addf %82, %86 : vector<4x16x16xf32>
    %88 = vector.extract_strided_slice %3 {offsets = [0, 2, 0], sizes = [4, 16, 16], strides = [1, 1, 1]} : vector<4x22x16xf32> to vector<4x16x16xf32>
    %c0_48 = arith.constant 0 : index
    %c1_49 = arith.constant 1 : index
    %c0_50 = arith.constant 0 : index
    %89 = vector.load %arg4[%c0_48, %c1_49, %c0_50] : memref<4x5x5xf32, #tpu.memory_space<vmem>>, vector<4x1x1xf32>
    %90 = vector.broadcast %89 : vector<4x1x1xf32> to vector<4x16x16xf32>
    %91 = arith.mulf %88, %90 : vector<4x16x16xf32>
    %92 = arith.addf %87, %91 : vector<4x16x16xf32>
    %93 = vector.extract_strided_slice %4 {offsets = [0, 2, 0], sizes = [4, 16, 16], strides = [1, 1, 1]} : vector<4x22x16xf32> to vector<4x16x16xf32>
    %c0_51 = arith.constant 0 : index
    %c1_52 = arith.constant 1 : index
    %c1_53 = arith.constant 1 : index
    %94 = vector.load %arg4[%c0_51, %c1_52, %c1_53] : memref<4x5x5xf32, #tpu.memory_space<vmem>>, vector<4x1x1xf32>
    %95 = vector.broadcast %94 : vector<4x1x1xf32> to vector<4x16x16xf32>
    %96 = arith.mulf %93, %95 : vector<4x16x16xf32>
    %97 = arith.addf %92, %96 : vector<4x16x16xf32>
    %98 = vector.extract_strided_slice %5 {offsets = [0, 2, 0], sizes = [4, 16, 16], strides = [1, 1, 1]} : vector<4x22x16xf32> to vector<4x16x16xf32>
    %c0_54 = arith.constant 0 : index
    %c1_55 = arith.constant 1 : index
    %c2_56 = arith.constant 2 : index
    %99 = vector.load %arg4[%c0_54, %c1_55, %c2_56] : memref<4x5x5xf32, #tpu.memory_space<vmem>>, vector<4x1x1xf32>
    %100 = vector.broadcast %99 : vector<4x1x1xf32> to vector<4x16x16xf32>
    %101 = arith.mulf %98, %100 : vector<4x16x16xf32>
    %102 = arith.addf %97, %101 : vector<4x16x16xf32>
    %103 = vector.extract_strided_slice %6 {offsets = [0, 2, 0], sizes = [4, 16, 16], strides = [1, 1, 1]} : vector<4x22x16xf32> to vector<4x16x16xf32>
    %c0_57 = arith.constant 0 : index
    %c1_58 = arith.constant 1 : index
    %c3_59 = arith.constant 3 : index
    %104 = vector.load %arg4[%c0_57, %c1_58, %c3_59] : memref<4x5x5xf32, #tpu.memory_space<vmem>>, vector<4x1x1xf32>
    %105 = vector.broadcast %104 : vector<4x1x1xf32> to vector<4x16x16xf32>
    %106 = arith.mulf %103, %105 : vector<4x16x16xf32>
    %107 = arith.addf %102, %106 : vector<4x16x16xf32>
    %108 = vector.extract_strided_slice %7 {offsets = [0, 2, 0], sizes = [4, 16, 16], strides = [1, 1, 1]} : vector<4x22x16xf32> to vector<4x16x16xf32>
    %c0_60 = arith.constant 0 : index
    %c1_61 = arith.constant 1 : index
    %c4_62 = arith.constant 4 : index
    %109 = vector.load %arg4[%c0_60, %c1_61, %c4_62] : memref<4x5x5xf32, #tpu.memory_space<vmem>>, vector<4x1x1xf32>
    %110 = vector.broadcast %109 : vector<4x1x1xf32> to vector<4x16x16xf32>
    %111 = arith.mulf %108, %110 : vector<4x16x16xf32>
    %112 = arith.addf %107, %111 : vector<4x16x16xf32>
    %113 = vector.extract_strided_slice %3 {offsets = [0, 3, 0], sizes = [4, 16, 16], strides = [1, 1, 1]} : vector<4x22x16xf32> to vector<4x16x16xf32>
    %c0_63 = arith.constant 0 : index
    %c2_64 = arith.constant 2 : index
    %c0_65 = arith.constant 0 : index
    %114 = vector.load %arg4[%c0_63, %c2_64, %c0_65] : memref<4x5x5xf32, #tpu.memory_space<vmem>>, vector<4x1x1xf32>
    %115 = vector.broadcast %114 : vector<4x1x1xf32> to vector<4x16x16xf32>
    %116 = arith.mulf %113, %115 : vector<4x16x16xf32>
    %117 = arith.addf %112, %116 : vector<4x16x16xf32>
    %118 = vector.extract_strided_slice %4 {offsets = [0, 3, 0], sizes = [4, 16, 16], strides = [1, 1, 1]} : vector<4x22x16xf32> to vector<4x16x16xf32>
    %c0_66 = arith.constant 0 : index
    %c2_67 = arith.constant 2 : index
    %c1_68 = arith.constant 1 : index
    %119 = vector.load %arg4[%c0_66, %c2_67, %c1_68] : memref<4x5x5xf32, #tpu.memory_space<vmem>>, vector<4x1x1xf32>
    %120 = vector.broadcast %119 : vector<4x1x1xf32> to vector<4x16x16xf32>
    %121 = arith.mulf %118, %120 : vector<4x16x16xf32>
    %122 = arith.addf %117, %121 : vector<4x16x16xf32>
    %123 = vector.extract_strided_slice %5 {offsets = [0, 3, 0], sizes = [4, 16, 16], strides = [1, 1, 1]} : vector<4x22x16xf32> to vector<4x16x16xf32>
    %c0_69 = arith.constant 0 : index
    %c2_70 = arith.constant 2 : index
    %c2_71 = arith.constant 2 : index
    %124 = vector.load %arg4[%c0_69, %c2_70, %c2_71] : memref<4x5x5xf32, #tpu.memory_space<vmem>>, vector<4x1x1xf32>
    %125 = vector.broadcast %124 : vector<4x1x1xf32> to vector<4x16x16xf32>
    %126 = arith.mulf %123, %125 : vector<4x16x16xf32>
    %127 = arith.addf %122, %126 : vector<4x16x16xf32>
    %128 = vector.extract_strided_slice %6 {offsets = [0, 3, 0], sizes = [4, 16, 16], strides = [1, 1, 1]} : vector<4x22x16xf32> to vector<4x16x16xf32>
    %c0_72 = arith.constant 0 : index
    %c2_73 = arith.constant 2 : index
    %c3_74 = arith.constant 3 : index
    %129 = vector.load %arg4[%c0_72, %c2_73, %c3_74] : memref<4x5x5xf32, #tpu.memory_space<vmem>>, vector<4x1x1xf32>
    %130 = vector.broadcast %129 : vector<4x1x1xf32> to vector<4x16x16xf32>
    %131 = arith.mulf %128, %130 : vector<4x16x16xf32>
    %132 = arith.addf %127, %131 : vector<4x16x16xf32>
    %133 = vector.extract_strided_slice %7 {offsets = [0, 3, 0], sizes = [4, 16, 16], strides = [1, 1, 1]} : vector<4x22x16xf32> to vector<4x16x16xf32>
    %c0_75 = arith.constant 0 : index
    %c2_76 = arith.constant 2 : index
    %c4_77 = arith.constant 4 : index
    %134 = vector.load %arg4[%c0_75, %c2_76, %c4_77] : memref<4x5x5xf32, #tpu.memory_space<vmem>>, vector<4x1x1xf32>
    %135 = vector.broadcast %134 : vector<4x1x1xf32> to vector<4x16x16xf32>
    %136 = arith.mulf %133, %135 : vector<4x16x16xf32>
    %137 = arith.addf %132, %136 : vector<4x16x16xf32>
    %138 = vector.extract_strided_slice %3 {offsets = [0, 4, 0], sizes = [4, 16, 16], strides = [1, 1, 1]} : vector<4x22x16xf32> to vector<4x16x16xf32>
    %c0_78 = arith.constant 0 : index
    %c3_79 = arith.constant 3 : index
    %c0_80 = arith.constant 0 : index
    %139 = vector.load %arg4[%c0_78, %c3_79, %c0_80] : memref<4x5x5xf32, #tpu.memory_space<vmem>>, vector<4x1x1xf32>
    %140 = vector.broadcast %139 : vector<4x1x1xf32> to vector<4x16x16xf32>
    %141 = arith.mulf %138, %140 : vector<4x16x16xf32>
    %142 = arith.addf %137, %141 : vector<4x16x16xf32>
    %143 = vector.extract_strided_slice %4 {offsets = [0, 4, 0], sizes = [4, 16, 16], strides = [1, 1, 1]} : vector<4x22x16xf32> to vector<4x16x16xf32>
    %c0_81 = arith.constant 0 : index
    %c3_82 = arith.constant 3 : index
    %c1_83 = arith.constant 1 : index
    %144 = vector.load %arg4[%c0_81, %c3_82, %c1_83] : memref<4x5x5xf32, #tpu.memory_space<vmem>>, vector<4x1x1xf32>
    %145 = vector.broadcast %144 : vector<4x1x1xf32> to vector<4x16x16xf32>
    %146 = arith.mulf %143, %145 : vector<4x16x16xf32>
    %147 = arith.addf %142, %146 : vector<4x16x16xf32>
    %148 = vector.extract_strided_slice %5 {offsets = [0, 4, 0], sizes = [4, 16, 16], strides = [1, 1, 1]} : vector<4x22x16xf32> to vector<4x16x16xf32>
    %c0_84 = arith.constant 0 : index
    %c3_85 = arith.constant 3 : index
    %c2_86 = arith.constant 2 : index
    %149 = vector.load %arg4[%c0_84, %c3_85, %c2_86] : memref<4x5x5xf32, #tpu.memory_space<vmem>>, vector<4x1x1xf32>
    %150 = vector.broadcast %149 : vector<4x1x1xf32> to vector<4x16x16xf32>
    %151 = arith.mulf %148, %150 : vector<4x16x16xf32>
    %152 = arith.addf %147, %151 : vector<4x16x16xf32>
    %153 = vector.extract_strided_slice %6 {offsets = [0, 4, 0], sizes = [4, 16, 16], strides = [1, 1, 1]} : vector<4x22x16xf32> to vector<4x16x16xf32>
    %c0_87 = arith.constant 0 : index
    %c3_88 = arith.constant 3 : index
    %c3_89 = arith.constant 3 : index
    %154 = vector.load %arg4[%c0_87, %c3_88, %c3_89] : memref<4x5x5xf32, #tpu.memory_space<vmem>>, vector<4x1x1xf32>
    %155 = vector.broadcast %154 : vector<4x1x1xf32> to vector<4x16x16xf32>
    %156 = arith.mulf %153, %155 : vector<4x16x16xf32>
    %157 = arith.addf %152, %156 : vector<4x16x16xf32>
    %158 = vector.extract_strided_slice %7 {offsets = [0, 4, 0], sizes = [4, 16, 16], strides = [1, 1, 1]} : vector<4x22x16xf32> to vector<4x16x16xf32>
    %c0_90 = arith.constant 0 : index
    %c3_91 = arith.constant 3 : index
    %c4_92 = arith.constant 4 : index
    %159 = vector.load %arg4[%c0_90, %c3_91, %c4_92] : memref<4x5x5xf32, #tpu.memory_space<vmem>>, vector<4x1x1xf32>
    %160 = vector.broadcast %159 : vector<4x1x1xf32> to vector<4x16x16xf32>
    %161 = arith.mulf %158, %160 : vector<4x16x16xf32>
    %162 = arith.addf %157, %161 : vector<4x16x16xf32>
    %163 = vector.extract_strided_slice %3 {offsets = [0, 5, 0], sizes = [4, 16, 16], strides = [1, 1, 1]} : vector<4x22x16xf32> to vector<4x16x16xf32>
    %c0_93 = arith.constant 0 : index
    %c4_94 = arith.constant 4 : index
    %c0_95 = arith.constant 0 : index
    %164 = vector.load %arg4[%c0_93, %c4_94, %c0_95] : memref<4x5x5xf32, #tpu.memory_space<vmem>>, vector<4x1x1xf32>
    %165 = vector.broadcast %164 : vector<4x1x1xf32> to vector<4x16x16xf32>
    %166 = arith.mulf %163, %165 : vector<4x16x16xf32>
    %167 = arith.addf %162, %166 : vector<4x16x16xf32>
    %168 = vector.extract_strided_slice %4 {offsets = [0, 5, 0], sizes = [4, 16, 16], strides = [1, 1, 1]} : vector<4x22x16xf32> to vector<4x16x16xf32>
    %c0_96 = arith.constant 0 : index
    %c4_97 = arith.constant 4 : index
    %c1_98 = arith.constant 1 : index
    %169 = vector.load %arg4[%c0_96, %c4_97, %c1_98] : memref<4x5x5xf32, #tpu.memory_space<vmem>>, vector<4x1x1xf32>
    %170 = vector.broadcast %169 : vector<4x1x1xf32> to vector<4x16x16xf32>
    %171 = arith.mulf %168, %170 : vector<4x16x16xf32>
    %172 = arith.addf %167, %171 : vector<4x16x16xf32>
    %173 = vector.extract_strided_slice %5 {offsets = [0, 5, 0], sizes = [4, 16, 16], strides = [1, 1, 1]} : vector<4x22x16xf32> to vector<4x16x16xf32>
    %c0_99 = arith.constant 0 : index
    %c4_100 = arith.constant 4 : index
    %c2_101 = arith.constant 2 : index
    %174 = vector.load %arg4[%c0_99, %c4_100, %c2_101] : memref<4x5x5xf32, #tpu.memory_space<vmem>>, vector<4x1x1xf32>
    %175 = vector.broadcast %174 : vector<4x1x1xf32> to vector<4x16x16xf32>
    %176 = arith.mulf %173, %175 : vector<4x16x16xf32>
    %177 = arith.addf %172, %176 : vector<4x16x16xf32>
    %178 = vector.extract_strided_slice %6 {offsets = [0, 5, 0], sizes = [4, 16, 16], strides = [1, 1, 1]} : vector<4x22x16xf32> to vector<4x16x16xf32>
    %c0_102 = arith.constant 0 : index
    %c4_103 = arith.constant 4 : index
    %c3_104 = arith.constant 3 : index
    %179 = vector.load %arg4[%c0_102, %c4_103, %c3_104] : memref<4x5x5xf32, #tpu.memory_space<vmem>>, vector<4x1x1xf32>
    %180 = vector.broadcast %179 : vector<4x1x1xf32> to vector<4x16x16xf32>
    %181 = arith.mulf %178, %180 : vector<4x16x16xf32>
    %182 = arith.addf %177, %181 : vector<4x16x16xf32>
    %183 = vector.extract_strided_slice %7 {offsets = [0, 5, 0], sizes = [4, 16, 16], strides = [1, 1, 1]} : vector<4x22x16xf32> to vector<4x16x16xf32>
    %c0_105 = arith.constant 0 : index
    %c4_106 = arith.constant 4 : index
    %c4_107 = arith.constant 4 : index
    %184 = vector.load %arg4[%c0_105, %c4_106, %c4_107] : memref<4x5x5xf32, #tpu.memory_space<vmem>>, vector<4x1x1xf32>
    %185 = vector.broadcast %184 : vector<4x1x1xf32> to vector<4x16x16xf32>
    %186 = arith.mulf %183, %185 : vector<4x16x16xf32>
    %187 = arith.addf %182, %186 : vector<4x16x16xf32>
    %cst_108 = arith.constant 0.000000e+00 : f32
    %188 = vector.broadcast %cst_108 : f32 to vector<4x16x16xf32>
    %189 = arith.maximumf %187, %188 : vector<4x16x16xf32>
    %190 = arith.subf %57, %189 : vector<4x16x16xf32>
    %c0_109 = arith.constant 0 : index
    %c1_110 = arith.constant 1 : index
    %c0_111 = arith.constant 0 : index
    %c0_112 = arith.constant 0 : index
    %c0_113 = arith.constant 0 : index
    %191 = vector.load %arg6[%c0_109, %c1_110, %c0_111, %c0_112, %c0_113] : memref<1x4x4x16x16xf32, #tpu.memory_space<vmem>>, vector<1x1x4x16x16xf32>
    %192 = vector.shape_cast %191 : vector<1x1x4x16x16xf32> to vector<4x16x16xf32>
    %193 = vector.shape_cast %190 : vector<4x16x16xf32> to vector<1x1x4x16x16xf32>
    tpu.vector_store %arg6[%c0_109, %c1_110, %c0_111, %c0_112, %c0_113], %193 {strides = array<i32>} : memref<1x4x4x16x16xf32, #tpu.memory_space<vmem>>, vector<1x1x4x16x16xf32>,
    %cst_114 = arith.constant 0.000000e+00 : f32
    %194 = vector.broadcast %cst_114 : f32 to vector<4x16x16xf32>
    %195 = vector.extract_strided_slice %2 {offsets = [0, 0, 0], sizes = [4, 16, 16], strides = [1, 1, 1]} : vector<4x22x16xf32> to vector<4x16x16xf32>
    %c0_115 = arith.constant 0 : index
    %c0_116 = arith.constant 0 : index
    %c0_117 = arith.constant 0 : index
    %196 = vector.load %arg5[%c0_115, %c0_116, %c0_117] : memref<4x7x7xf32, #tpu.memory_space<vmem>>, vector<4x1x1xf32>
    %197 = vector.broadcast %196 : vector<4x1x1xf32> to vector<4x16x16xf32>
    %198 = arith.mulf %195, %197 : vector<4x16x16xf32>
    %199 = arith.addf %194, %198 : vector<4x16x16xf32>
    %200 = vector.extract_strided_slice %3 {offsets = [0, 0, 0], sizes = [4, 16, 16], strides = [1, 1, 1]} : vector<4x22x16xf32> to vector<4x16x16xf32>
    %c0_118 = arith.constant 0 : index
    %c0_119 = arith.constant 0 : index
    %c1_120 = arith.constant 1 : index
    %201 = vector.load %arg5[%c0_118, %c0_119, %c1_120] : memref<4x7x7xf32, #tpu.memory_space<vmem>>, vector<4x1x1xf32>
    %202 = vector.broadcast %201 : vector<4x1x1xf32> to vector<4x16x16xf32>
    %203 = arith.mulf %200, %202 : vector<4x16x16xf32>
    %204 = arith.addf %199, %203 : vector<4x16x16xf32>
    %205 = vector.extract_strided_slice %4 {offsets = [0, 0, 0], sizes = [4, 16, 16], strides = [1, 1, 1]} : vector<4x22x16xf32> to vector<4x16x16xf32>
    %c0_121 = arith.constant 0 : index
    %c0_122 = arith.constant 0 : index
    %c2_123 = arith.constant 2 : index
    %206 = vector.load %arg5[%c0_121, %c0_122, %c2_123] : memref<4x7x7xf32, #tpu.memory_space<vmem>>, vector<4x1x1xf32>
    %207 = vector.broadcast %206 : vector<4x1x1xf32> to vector<4x16x16xf32>
    %208 = arith.mulf %205, %207 : vector<4x16x16xf32>
    %209 = arith.addf %204, %208 : vector<4x16x16xf32>
    %210 = vector.extract_strided_slice %5 {offsets = [0, 0, 0], sizes = [4, 16, 16], strides = [1, 1, 1]} : vector<4x22x16xf32> to vector<4x16x16xf32>
    %c0_124 = arith.constant 0 : index
    %c0_125 = arith.constant 0 : index
    %c3_126 = arith.constant 3 : index
    %211 = vector.load %arg5[%c0_124, %c0_125, %c3_126] : memref<4x7x7xf32, #tpu.memory_space<vmem>>, vector<4x1x1xf32>
    %212 = vector.broadcast %211 : vector<4x1x1xf32> to vector<4x16x16xf32>
    %213 = arith.mulf %210, %212 : vector<4x16x16xf32>
    %214 = arith.addf %209, %213 : vector<4x16x16xf32>
    %215 = vector.extract_strided_slice %6 {offsets = [0, 0, 0], sizes = [4, 16, 16], strides = [1, 1, 1]} : vector<4x22x16xf32> to vector<4x16x16xf32>
    %c0_127 = arith.constant 0 : index
    %c0_128 = arith.constant 0 : index
    %c4_129 = arith.constant 4 : index
    %216 = vector.load %arg5[%c0_127, %c0_128, %c4_129] : memref<4x7x7xf32, #tpu.memory_space<vmem>>, vector<4x1x1xf32>
    %217 = vector.broadcast %216 : vector<4x1x1xf32> to vector<4x16x16xf32>
    %218 = arith.mulf %215, %217 : vector<4x16x16xf32>
    %219 = arith.addf %214, %218 : vector<4x16x16xf32>
    %220 = vector.extract_strided_slice %7 {offsets = [0, 0, 0], sizes = [4, 16, 16], strides = [1, 1, 1]} : vector<4x22x16xf32> to vector<4x16x16xf32>
    %c0_130 = arith.constant 0 : index
    %c0_131 = arith.constant 0 : index
    %c5 = arith.constant 5 : index
    %221 = vector.load %arg5[%c0_130, %c0_131, %c5] : memref<4x7x7xf32, #tpu.memory_space<vmem>>, vector<4x1x1xf32>
    %222 = vector.broadcast %221 : vector<4x1x1xf32> to vector<4x16x16xf32>
    %223 = arith.mulf %220, %222 : vector<4x16x16xf32>
    %224 = arith.addf %219, %223 : vector<4x16x16xf32>
    %225 = vector.extract_strided_slice %8 {offsets = [0, 0, 0], sizes = [4, 16, 16], strides = [1, 1, 1]} : vector<4x22x16xf32> to vector<4x16x16xf32>
    %c0_132 = arith.constant 0 : index
    %c0_133 = arith.constant 0 : index
    %c6 = arith.constant 6 : index
    %226 = vector.load %arg5[%c0_132, %c0_133, %c6] : memref<4x7x7xf32, #tpu.memory_space<vmem>>, vector<4x1x1xf32>
    %227 = vector.broadcast %226 : vector<4x1x1xf32> to vector<4x16x16xf32>
    %228 = arith.mulf %225, %227 : vector<4x16x16xf32>
    %229 = arith.addf %224, %228 : vector<4x16x16xf32>
    %230 = vector.extract_strided_slice %2 {offsets = [0, 1, 0], sizes = [4, 16, 16], strides = [1, 1, 1]} : vector<4x22x16xf32> to vector<4x16x16xf32>
    %c0_134 = arith.constant 0 : index
    %c1_135 = arith.constant 1 : index
    %c0_136 = arith.constant 0 : index
    %231 = vector.load %arg5[%c0_134, %c1_135, %c0_136] : memref<4x7x7xf32, #tpu.memory_space<vmem>>, vector<4x1x1xf32>
    %232 = vector.broadcast %231 : vector<4x1x1xf32> to vector<4x16x16xf32>
    %233 = arith.mulf %230, %232 : vector<4x16x16xf32>
    %234 = arith.addf %229, %233 : vector<4x16x16xf32>
    %235 = vector.extract_strided_slice %3 {offsets = [0, 1, 0], sizes = [4, 16, 16], strides = [1, 1, 1]} : vector<4x22x16xf32> to vector<4x16x16xf32>
    %c0_137 = arith.constant 0 : index
    %c1_138 = arith.constant 1 : index
    %c1_139 = arith.constant 1 : index
    %236 = vector.load %arg5[%c0_137, %c1_138, %c1_139] : memref<4x7x7xf32, #tpu.memory_space<vmem>>, vector<4x1x1xf32>
    %237 = vector.broadcast %236 : vector<4x1x1xf32> to vector<4x16x16xf32>
    %238 = arith.mulf %235, %237 : vector<4x16x16xf32>
    %239 = arith.addf %234, %238 : vector<4x16x16xf32>
    %240 = vector.extract_strided_slice %4 {offsets = [0, 1, 0], sizes = [4, 16, 16], strides = [1, 1, 1]} : vector<4x22x16xf32> to vector<4x16x16xf32>
    %c0_140 = arith.constant 0 : index
    %c1_141 = arith.constant 1 : index
    %c2_142 = arith.constant 2 : index
    %241 = vector.load %arg5[%c0_140, %c1_141, %c2_142] : memref<4x7x7xf32, #tpu.memory_space<vmem>>, vector<4x1x1xf32>
    %242 = vector.broadcast %241 : vector<4x1x1xf32> to vector<4x16x16xf32>
    %243 = arith.mulf %240, %242 : vector<4x16x16xf32>
    %244 = arith.addf %239, %243 : vector<4x16x16xf32>
    %245 = vector.extract_strided_slice %5 {offsets = [0, 1, 0], sizes = [4, 16, 16], strides = [1, 1, 1]} : vector<4x22x16xf32> to vector<4x16x16xf32>
    %c0_143 = arith.constant 0 : index
    %c1_144 = arith.constant 1 : index
    %c3_145 = arith.constant 3 : index
    %246 = vector.load %arg5[%c0_143, %c1_144, %c3_145] : memref<4x7x7xf32, #tpu.memory_space<vmem>>, vector<4x1x1xf32>
    %247 = vector.broadcast %246 : vector<4x1x1xf32> to vector<4x16x16xf32>
    %248 = arith.mulf %245, %247 : vector<4x16x16xf32>
    %249 = arith.addf %244, %248 : vector<4x16x16xf32>
    %250 = vector.extract_strided_slice %6 {offsets = [0, 1, 0], sizes = [4, 16, 16], strides = [1, 1, 1]} : vector<4x22x16xf32> to vector<4x16x16xf32>
    %c0_146 = arith.constant 0 : index
    %c1_147 = arith.constant 1 : index
    %c4_148 = arith.constant 4 : index
    %251 = vector.load %arg5[%c0_146, %c1_147, %c4_148] : memref<4x7x7xf32, #tpu.memory_space<vmem>>, vector<4x1x1xf32>
    %252 = vector.broadcast %251 : vector<4x1x1xf32> to vector<4x16x16xf32>
    %253 = arith.mulf %250, %252 : vector<4x16x16xf32>
    %254 = arith.addf %249, %253 : vector<4x16x16xf32>
    %255 = vector.extract_strided_slice %7 {offsets = [0, 1, 0], sizes = [4, 16, 16], strides = [1, 1, 1]} : vector<4x22x16xf32> to vector<4x16x16xf32>
    %c0_149 = arith.constant 0 : index
    %c1_150 = arith.constant 1 : index
    %c5_151 = arith.constant 5 : index
    %256 = vector.load %arg5[%c0_149, %c1_150, %c5_151] : memref<4x7x7xf32, #tpu.memory_space<vmem>>, vector<4x1x1xf32>
    %257 = vector.broadcast %256 : vector<4x1x1xf32> to vector<4x16x16xf32>
    %258 = arith.mulf %255, %257 : vector<4x16x16xf32>
    %259 = arith.addf %254, %258 : vector<4x16x16xf32>
    %260 = vector.extract_strided_slice %8 {offsets = [0, 1, 0], sizes = [4, 16, 16], strides = [1, 1, 1]} : vector<4x22x16xf32> to vector<4x16x16xf32>
    %c0_152 = arith.constant 0 : index
    %c1_153 = arith.constant 1 : index
    %c6_154 = arith.constant 6 : index
    %261 = vector.load %arg5[%c0_152, %c1_153, %c6_154] : memref<4x7x7xf32, #tpu.memory_space<vmem>>, vector<4x1x1xf32>
    %262 = vector.broadcast %261 : vector<4x1x1xf32> to vector<4x16x16xf32>
    %263 = arith.mulf %260, %262 : vector<4x16x16xf32>
    %264 = arith.addf %259, %263 : vector<4x16x16xf32>
    %265 = vector.extract_strided_slice %2 {offsets = [0, 2, 0], sizes = [4, 16, 16], strides = [1, 1, 1]} : vector<4x22x16xf32> to vector<4x16x16xf32>
    %c0_155 = arith.constant 0 : index
    %c2_156 = arith.constant 2 : index
    %c0_157 = arith.constant 0 : index
    %266 = vector.load %arg5[%c0_155, %c2_156, %c0_157] : memref<4x7x7xf32, #tpu.memory_space<vmem>>, vector<4x1x1xf32>
    %267 = vector.broadcast %266 : vector<4x1x1xf32> to vector<4x16x16xf32>
    %268 = arith.mulf %265, %267 : vector<4x16x16xf32>
    %269 = arith.addf %264, %268 : vector<4x16x16xf32>
    %270 = vector.extract_strided_slice %3 {offsets = [0, 2, 0], sizes = [4, 16, 16], strides = [1, 1, 1]} : vector<4x22x16xf32> to vector<4x16x16xf32>
    %c0_158 = arith.constant 0 : index
    %c2_159 = arith.constant 2 : index
    %c1_160 = arith.constant 1 : index
    %271 = vector.load %arg5[%c0_158, %c2_159, %c1_160] : memref<4x7x7xf32, #tpu.memory_space<vmem>>, vector<4x1x1xf32>
    %272 = vector.broadcast %271 : vector<4x1x1xf32> to vector<4x16x16xf32>
    %273 = arith.mulf %270, %272 : vector<4x16x16xf32>
    %274 = arith.addf %269, %273 : vector<4x16x16xf32>
    %275 = vector.extract_strided_slice %4 {offsets = [0, 2, 0], sizes = [4, 16, 16], strides = [1, 1, 1]} : vector<4x22x16xf32> to vector<4x16x16xf32>
    %c0_161 = arith.constant 0 : index
    %c2_162 = arith.constant 2 : index
    %c2_163 = arith.constant 2 : index
    %276 = vector.load %arg5[%c0_161, %c2_162, %c2_163] : memref<4x7x7xf32, #tpu.memory_space<vmem>>, vector<4x1x1xf32>
    %277 = vector.broadcast %276 : vector<4x1x1xf32> to vector<4x16x16xf32>
    %278 = arith.mulf %275, %277 : vector<4x16x16xf32>
    %279 = arith.addf %274, %278 : vector<4x16x16xf32>
    %280 = vector.extract_strided_slice %5 {offsets = [0, 2, 0], sizes = [4, 16, 16], strides = [1, 1, 1]} : vector<4x22x16xf32> to vector<4x16x16xf32>
    %c0_164 = arith.constant 0 : index
    %c2_165 = arith.constant 2 : index
    %c3_166 = arith.constant 3 : index
    %281 = vector.load %arg5[%c0_164, %c2_165, %c3_166] : memref<4x7x7xf32, #tpu.memory_space<vmem>>, vector<4x1x1xf32>
    %282 = vector.broadcast %281 : vector<4x1x1xf32> to vector<4x16x16xf32>
    %283 = arith.mulf %280, %282 : vector<4x16x16xf32>
    %284 = arith.addf %279, %283 : vector<4x16x16xf32>
    %285 = vector.extract_strided_slice %6 {offsets = [0, 2, 0], sizes = [4, 16, 16], strides = [1, 1, 1]} : vector<4x22x16xf32> to vector<4x16x16xf32>
    %c0_167 = arith.constant 0 : index
    %c2_168 = arith.constant 2 : index
    %c4_169 = arith.constant 4 : index
    %286 = vector.load %arg5[%c0_167, %c2_168, %c4_169] : memref<4x7x7xf32, #tpu.memory_space<vmem>>, vector<4x1x1xf32>
    %287 = vector.broadcast %286 : vector<4x1x1xf32> to vector<4x16x16xf32>
    %288 = arith.mulf %285, %287 : vector<4x16x16xf32>
    %289 = arith.addf %284, %288 : vector<4x16x16xf32>
    %290 = vector.extract_strided_slice %7 {offsets = [0, 2, 0], sizes = [4, 16, 16], strides = [1, 1, 1]} : vector<4x22x16xf32> to vector<4x16x16xf32>
    %c0_170 = arith.constant 0 : index
    %c2_171 = arith.constant 2 : index
    %c5_172 = arith.constant 5 : index
    %291 = vector.load %arg5[%c0_170, %c2_171, %c5_172] : memref<4x7x7xf32, #tpu.memory_space<vmem>>, vector<4x1x1xf32>
    %292 = vector.broadcast %291 : vector<4x1x1xf32> to vector<4x16x16xf32>
    %293 = arith.mulf %290, %292 : vector<4x16x16xf32>
    %294 = arith.addf %289, %293 : vector<4x16x16xf32>
    %295 = vector.extract_strided_slice %8 {offsets = [0, 2, 0], sizes = [4, 16, 16], strides = [1, 1, 1]} : vector<4x22x16xf32> to vector<4x16x16xf32>
    %c0_173 = arith.constant 0 : index
    %c2_174 = arith.constant 2 : index
    %c6_175 = arith.constant 6 : index
    %296 = vector.load %arg5[%c0_173, %c2_174, %c6_175] : memref<4x7x7xf32, #tpu.memory_space<vmem>>, vector<4x1x1xf32>
    %297 = vector.broadcast %296 : vector<4x1x1xf32> to vector<4x16x16xf32>
    %298 = arith.mulf %295, %297 : vector<4x16x16xf32>
    %299 = arith.addf %294, %298 : vector<4x16x16xf32>
    %300 = vector.extract_strided_slice %2 {offsets = [0, 3, 0], sizes = [4, 16, 16], strides = [1, 1, 1]} : vector<4x22x16xf32> to vector<4x16x16xf32>
    %c0_176 = arith.constant 0 : index
    %c3_177 = arith.constant 3 : index
    %c0_178 = arith.constant 0 : index
    %301 = vector.load %arg5[%c0_176, %c3_177, %c0_178] : memref<4x7x7xf32, #tpu.memory_space<vmem>>, vector<4x1x1xf32>
    %302 = vector.broadcast %301 : vector<4x1x1xf32> to vector<4x16x16xf32>
    %303 = arith.mulf %300, %302 : vector<4x16x16xf32>
    %304 = arith.addf %299, %303 : vector<4x16x16xf32>
    %305 = vector.extract_strided_slice %3 {offsets = [0, 3, 0], sizes = [4, 16, 16], strides = [1, 1, 1]} : vector<4x22x16xf32> to vector<4x16x16xf32>
    %c0_179 = arith.constant 0 : index
    %c3_180 = arith.constant 3 : index
    %c1_181 = arith.constant 1 : index
    %306 = vector.load %arg5[%c0_179, %c3_180, %c1_181] : memref<4x7x7xf32, #tpu.memory_space<vmem>>, vector<4x1x1xf32>
    %307 = vector.broadcast %306 : vector<4x1x1xf32> to vector<4x16x16xf32>
    %308 = arith.mulf %305, %307 : vector<4x16x16xf32>
    %309 = arith.addf %304, %308 : vector<4x16x16xf32>
    %310 = vector.extract_strided_slice %4 {offsets = [0, 3, 0], sizes = [4, 16, 16], strides = [1, 1, 1]} : vector<4x22x16xf32> to vector<4x16x16xf32>
    %c0_182 = arith.constant 0 : index
    %c3_183 = arith.constant 3 : index
    %c2_184 = arith.constant 2 : index
    %311 = vector.load %arg5[%c0_182, %c3_183, %c2_184] : memref<4x7x7xf32, #tpu.memory_space<vmem>>, vector<4x1x1xf32>
    %312 = vector.broadcast %311 : vector<4x1x1xf32> to vector<4x16x16xf32>
    %313 = arith.mulf %310, %312 : vector<4x16x16xf32>
    %314 = arith.addf %309, %313 : vector<4x16x16xf32>
    %315 = vector.extract_strided_slice %5 {offsets = [0, 3, 0], sizes = [4, 16, 16], strides = [1, 1, 1]} : vector<4x22x16xf32> to vector<4x16x16xf32>
    %c0_185 = arith.constant 0 : index
    %c3_186 = arith.constant 3 : index
    %c3_187 = arith.constant 3 : index
    %316 = vector.load %arg5[%c0_185, %c3_186, %c3_187] : memref<4x7x7xf32, #tpu.memory_space<vmem>>, vector<4x1x1xf32>
    %317 = vector.broadcast %316 : vector<4x1x1xf32> to vector<4x16x16xf32>
    %318 = arith.mulf %315, %317 : vector<4x16x16xf32>
    %319 = arith.addf %314, %318 : vector<4x16x16xf32>
    %320 = vector.extract_strided_slice %6 {offsets = [0, 3, 0], sizes = [4, 16, 16], strides = [1, 1, 1]} : vector<4x22x16xf32> to vector<4x16x16xf32>
    %c0_188 = arith.constant 0 : index
    %c3_189 = arith.constant 3 : index
    %c4_190 = arith.constant 4 : index
    %321 = vector.load %arg5[%c0_188, %c3_189, %c4_190] : memref<4x7x7xf32, #tpu.memory_space<vmem>>, vector<4x1x1xf32>
    %322 = vector.broadcast %321 : vector<4x1x1xf32> to vector<4x16x16xf32>
    %323 = arith.mulf %320, %322 : vector<4x16x16xf32>
    %324 = arith.addf %319, %323 : vector<4x16x16xf32>
    %325 = vector.extract_strided_slice %7 {offsets = [0, 3, 0], sizes = [4, 16, 16], strides = [1, 1, 1]} : vector<4x22x16xf32> to vector<4x16x16xf32>
    %c0_191 = arith.constant 0 : index
    %c3_192 = arith.constant 3 : index
    %c5_193 = arith.constant 5 : index
    %326 = vector.load %arg5[%c0_191, %c3_192, %c5_193] : memref<4x7x7xf32, #tpu.memory_space<vmem>>, vector<4x1x1xf32>
    %327 = vector.broadcast %326 : vector<4x1x1xf32> to vector<4x16x16xf32>
    %328 = arith.mulf %325, %327 : vector<4x16x16xf32>
    %329 = arith.addf %324, %328 : vector<4x16x16xf32>
    %330 = vector.extract_strided_slice %8 {offsets = [0, 3, 0], sizes = [4, 16, 16], strides = [1, 1, 1]} : vector<4x22x16xf32> to vector<4x16x16xf32>
    %c0_194 = arith.constant 0 : index
    %c3_195 = arith.constant 3 : index
    %c6_196 = arith.constant 6 : index
    %331 = vector.load %arg5[%c0_194, %c3_195, %c6_196] : memref<4x7x7xf32, #tpu.memory_space<vmem>>, vector<4x1x1xf32>
    %332 = vector.broadcast %331 : vector<4x1x1xf32> to vector<4x16x16xf32>
    %333 = arith.mulf %330, %332 : vector<4x16x16xf32>
    %334 = arith.addf %329, %333 : vector<4x16x16xf32>
    %335 = vector.extract_strided_slice %2 {offsets = [0, 4, 0], sizes = [4, 16, 16], strides = [1, 1, 1]} : vector<4x22x16xf32> to vector<4x16x16xf32>
    %c0_197 = arith.constant 0 : index
    %c4_198 = arith.constant 4 : index
    %c0_199 = arith.constant 0 : index
    %336 = vector.load %arg5[%c0_197, %c4_198, %c0_199] : memref<4x7x7xf32, #tpu.memory_space<vmem>>, vector<4x1x1xf32>
    %337 = vector.broadcast %336 : vector<4x1x1xf32> to vector<4x16x16xf32>
    %338 = arith.mulf %335, %337 : vector<4x16x16xf32>
    %339 = arith.addf %334, %338 : vector<4x16x16xf32>
    %340 = vector.extract_strided_slice %3 {offsets = [0, 4, 0], sizes = [4, 16, 16], strides = [1, 1, 1]} : vector<4x22x16xf32> to vector<4x16x16xf32>
    %c0_200 = arith.constant 0 : index
    %c4_201 = arith.constant 4 : index
    %c1_202 = arith.constant 1 : index
    %341 = vector.load %arg5[%c0_200, %c4_201, %c1_202] : memref<4x7x7xf32, #tpu.memory_space<vmem>>, vector<4x1x1xf32>
    %342 = vector.broadcast %341 : vector<4x1x1xf32> to vector<4x16x16xf32>
    %343 = arith.mulf %340, %342 : vector<4x16x16xf32>
    %344 = arith.addf %339, %343 : vector<4x16x16xf32>
    %345 = vector.extract_strided_slice %4 {offsets = [0, 4, 0], sizes = [4, 16, 16], strides = [1, 1, 1]} : vector<4x22x16xf32> to vector<4x16x16xf32>
    %c0_203 = arith.constant 0 : index
    %c4_204 = arith.constant 4 : index
    %c2_205 = arith.constant 2 : index
    %346 = vector.load %arg5[%c0_203, %c4_204, %c2_205] : memref<4x7x7xf32, #tpu.memory_space<vmem>>, vector<4x1x1xf32>
    %347 = vector.broadcast %346 : vector<4x1x1xf32> to vector<4x16x16xf32>
    %348 = arith.mulf %345, %347 : vector<4x16x16xf32>
    %349 = arith.addf %344, %348 : vector<4x16x16xf32>
    %350 = vector.extract_strided_slice %5 {offsets = [0, 4, 0], sizes = [4, 16, 16], strides = [1, 1, 1]} : vector<4x22x16xf32> to vector<4x16x16xf32>
    %c0_206 = arith.constant 0 : index
    %c4_207 = arith.constant 4 : index
    %c3_208 = arith.constant 3 : index
    %351 = vector.load %arg5[%c0_206, %c4_207, %c3_208] : memref<4x7x7xf32, #tpu.memory_space<vmem>>, vector<4x1x1xf32>
    %352 = vector.broadcast %351 : vector<4x1x1xf32> to vector<4x16x16xf32>
    %353 = arith.mulf %350, %352 : vector<4x16x16xf32>
    %354 = arith.addf %349, %353 : vector<4x16x16xf32>
    %355 = vector.extract_strided_slice %6 {offsets = [0, 4, 0], sizes = [4, 16, 16], strides = [1, 1, 1]} : vector<4x22x16xf32> to vector<4x16x16xf32>
    %c0_209 = arith.constant 0 : index
    %c4_210 = arith.constant 4 : index
    %c4_211 = arith.constant 4 : index
    %356 = vector.load %arg5[%c0_209, %c4_210, %c4_211] : memref<4x7x7xf32, #tpu.memory_space<vmem>>, vector<4x1x1xf32>
    %357 = vector.broadcast %356 : vector<4x1x1xf32> to vector<4x16x16xf32>
    %358 = arith.mulf %355, %357 : vector<4x16x16xf32>
    %359 = arith.addf %354, %358 : vector<4x16x16xf32>
    %360 = vector.extract_strided_slice %7 {offsets = [0, 4, 0], sizes = [4, 16, 16], strides = [1, 1, 1]} : vector<4x22x16xf32> to vector<4x16x16xf32>
    %c0_212 = arith.constant 0 : index
    %c4_213 = arith.constant 4 : index
    %c5_214 = arith.constant 5 : index
    %361 = vector.load %arg5[%c0_212, %c4_213, %c5_214] : memref<4x7x7xf32, #tpu.memory_space<vmem>>, vector<4x1x1xf32>
    %362 = vector.broadcast %361 : vector<4x1x1xf32> to vector<4x16x16xf32>
    %363 = arith.mulf %360, %362 : vector<4x16x16xf32>
    %364 = arith.addf %359, %363 : vector<4x16x16xf32>
    %365 = vector.extract_strided_slice %8 {offsets = [0, 4, 0], sizes = [4, 16, 16], strides = [1, 1, 1]} : vector<4x22x16xf32> to vector<4x16x16xf32>
    %c0_215 = arith.constant 0 : index
    %c4_216 = arith.constant 4 : index
    %c6_217 = arith.constant 6 : index
    %366 = vector.load %arg5[%c0_215, %c4_216, %c6_217] : memref<4x7x7xf32, #tpu.memory_space<vmem>>, vector<4x1x1xf32>
    %367 = vector.broadcast %366 : vector<4x1x1xf32> to vector<4x16x16xf32>
    %368 = arith.mulf %365, %367 : vector<4x16x16xf32>
    %369 = arith.addf %364, %368 : vector<4x16x16xf32>
    %370 = vector.extract_strided_slice %2 {offsets = [0, 5, 0], sizes = [4, 16, 16], strides = [1, 1, 1]} : vector<4x22x16xf32> to vector<4x16x16xf32>
    %c0_218 = arith.constant 0 : index
    %c5_219 = arith.constant 5 : index
    %c0_220 = arith.constant 0 : index
    %371 = vector.load %arg5[%c0_218, %c5_219, %c0_220] : memref<4x7x7xf32, #tpu.memory_space<vmem>>, vector<4x1x1xf32>
    %372 = vector.broadcast %371 : vector<4x1x1xf32> to vector<4x16x16xf32>
    %373 = arith.mulf %370, %372 : vector<4x16x16xf32>
    %374 = arith.addf %369, %373 : vector<4x16x16xf32>
    %375 = vector.extract_strided_slice %3 {offsets = [0, 5, 0], sizes = [4, 16, 16], strides = [1, 1, 1]} : vector<4x22x16xf32> to vector<4x16x16xf32>
    %c0_221 = arith.constant 0 : index
    %c5_222 = arith.constant 5 : index
    %c1_223 = arith.constant 1 : index
    %376 = vector.load %arg5[%c0_221, %c5_222, %c1_223] : memref<4x7x7xf32, #tpu.memory_space<vmem>>, vector<4x1x1xf32>
    %377 = vector.broadcast %376 : vector<4x1x1xf32> to vector<4x16x16xf32>
    %378 = arith.mulf %375, %377 : vector<4x16x16xf32>
    %379 = arith.addf %374, %378 : vector<4x16x16xf32>
    %380 = vector.extract_strided_slice %4 {offsets = [0, 5, 0], sizes = [4, 16, 16], strides = [1, 1, 1]} : vector<4x22x16xf32> to vector<4x16x16xf32>
    %c0_224 = arith.constant 0 : index
    %c5_225 = arith.constant 5 : index
    %c2_226 = arith.constant 2 : index
    %381 = vector.load %arg5[%c0_224, %c5_225, %c2_226] : memref<4x7x7xf32, #tpu.memory_space<vmem>>, vector<4x1x1xf32>
    %382 = vector.broadcast %381 : vector<4x1x1xf32> to vector<4x16x16xf32>
    %383 = arith.mulf %380, %382 : vector<4x16x16xf32>
    %384 = arith.addf %379, %383 : vector<4x16x16xf32>
    %385 = vector.extract_strided_slice %5 {offsets = [0, 5, 0], sizes = [4, 16, 16], strides = [1, 1, 1]} : vector<4x22x16xf32> to vector<4x16x16xf32>
    %c0_227 = arith.constant 0 : index
    %c5_228 = arith.constant 5 : index
    %c3_229 = arith.constant 3 : index
    %386 = vector.load %arg5[%c0_227, %c5_228, %c3_229] : memref<4x7x7xf32, #tpu.memory_space<vmem>>, vector<4x1x1xf32>
    %387 = vector.broadcast %386 : vector<4x1x1xf32> to vector<4x16x16xf32>
    %388 = arith.mulf %385, %387 : vector<4x16x16xf32>
    %389 = arith.addf %384, %388 : vector<4x16x16xf32>
    %390 = vector.extract_strided_slice %6 {offsets = [0, 5, 0], sizes = [4, 16, 16], strides = [1, 1, 1]} : vector<4x22x16xf32> to vector<4x16x16xf32>
    %c0_230 = arith.constant 0 : index
    %c5_231 = arith.constant 5 : index
    %c4_232 = arith.constant 4 : index
    %391 = vector.load %arg5[%c0_230, %c5_231, %c4_232] : memref<4x7x7xf32, #tpu.memory_space<vmem>>, vector<4x1x1xf32>
    %392 = vector.broadcast %391 : vector<4x1x1xf32> to vector<4x16x16xf32>
    %393 = arith.mulf %390, %392 : vector<4x16x16xf32>
    %394 = arith.addf %389, %393 : vector<4x16x16xf32>
    %395 = vector.extract_strided_slice %7 {offsets = [0, 5, 0], sizes = [4, 16, 16], strides = [1, 1, 1]} : vector<4x22x16xf32> to vector<4x16x16xf32>
    %c0_233 = arith.constant 0 : index
    %c5_234 = arith.constant 5 : index
    %c5_235 = arith.constant 5 : index
    %396 = vector.load %arg5[%c0_233, %c5_234, %c5_235] : memref<4x7x7xf32, #tpu.memory_space<vmem>>, vector<4x1x1xf32>
    %397 = vector.broadcast %396 : vector<4x1x1xf32> to vector<4x16x16xf32>
    %398 = arith.mulf %395, %397 : vector<4x16x16xf32>
    %399 = arith.addf %394, %398 : vector<4x16x16xf32>
    %400 = vector.extract_strided_slice %8 {offsets = [0, 5, 0], sizes = [4, 16, 16], strides = [1, 1, 1]} : vector<4x22x16xf32> to vector<4x16x16xf32>
    %c0_236 = arith.constant 0 : index
    %c5_237 = arith.constant 5 : index
    %c6_238 = arith.constant 6 : index
    %401 = vector.load %arg5[%c0_236, %c5_237, %c6_238] : memref<4x7x7xf32, #tpu.memory_space<vmem>>, vector<4x1x1xf32>
    %402 = vector.broadcast %401 : vector<4x1x1xf32> to vector<4x16x16xf32>
    %403 = arith.mulf %400, %402 : vector<4x16x16xf32>
    %404 = arith.addf %399, %403 : vector<4x16x16xf32>
    %405 = vector.extract_strided_slice %2 {offsets = [0, 6, 0], sizes = [4, 16, 16], strides = [1, 1, 1]} : vector<4x22x16xf32> to vector<4x16x16xf32>
    %c0_239 = arith.constant 0 : index
    %c6_240 = arith.constant 6 : index
    %c0_241 = arith.constant 0 : index
    %406 = vector.load %arg5[%c0_239, %c6_240, %c0_241] : memref<4x7x7xf32, #tpu.memory_space<vmem>>, vector<4x1x1xf32>
    %407 = vector.broadcast %406 : vector<4x1x1xf32> to vector<4x16x16xf32>
    %408 = arith.mulf %405, %407 : vector<4x16x16xf32>
    %409 = arith.addf %404, %408 : vector<4x16x16xf32>
    %410 = vector.extract_strided_slice %3 {offsets = [0, 6, 0], sizes = [4, 16, 16], strides = [1, 1, 1]} : vector<4x22x16xf32> to vector<4x16x16xf32>
    %c0_242 = arith.constant 0 : index
    %c6_243 = arith.constant 6 : index
    %c1_244 = arith.constant 1 : index
    %411 = vector.load %arg5[%c0_242, %c6_243, %c1_244] : memref<4x7x7xf32, #tpu.memory_space<vmem>>, vector<4x1x1xf32>
    %412 = vector.broadcast %411 : vector<4x1x1xf32> to vector<4x16x16xf32>
    %413 = arith.mulf %410, %412 : vector<4x16x16xf32>
    %414 = arith.addf %409, %413 : vector<4x16x16xf32>
    %415 = vector.extract_strided_slice %4 {offsets = [0, 6, 0], sizes = [4, 16, 16], strides = [1, 1, 1]} : vector<4x22x16xf32> to vector<4x16x16xf32>
    %c0_245 = arith.constant 0 : index
    %c6_246 = arith.constant 6 : index
    %c2_247 = arith.constant 2 : index
    %416 = vector.load %arg5[%c0_245, %c6_246, %c2_247] : memref<4x7x7xf32, #tpu.memory_space<vmem>>, vector<4x1x1xf32>
    %417 = vector.broadcast %416 : vector<4x1x1xf32> to vector<4x16x16xf32>
    %418 = arith.mulf %415, %417 : vector<4x16x16xf32>
    %419 = arith.addf %414, %418 : vector<4x16x16xf32>
    %420 = vector.extract_strided_slice %5 {offsets = [0, 6, 0], sizes = [4, 16, 16], strides = [1, 1, 1]} : vector<4x22x16xf32> to vector<4x16x16xf32>
    %c0_248 = arith.constant 0 : index
    %c6_249 = arith.constant 6 : index
    %c3_250 = arith.constant 3 : index
    %421 = vector.load %arg5[%c0_248, %c6_249, %c3_250] : memref<4x7x7xf32, #tpu.memory_space<vmem>>, vector<4x1x1xf32>
    %422 = vector.broadcast %421 : vector<4x1x1xf32> to vector<4x16x16xf32>
    %423 = arith.mulf %420, %422 : vector<4x16x16xf32>
    %424 = arith.addf %419, %423 : vector<4x16x16xf32>
    %425 = vector.extract_strided_slice %6 {offsets = [0, 6, 0], sizes = [4, 16, 16], strides = [1, 1, 1]} : vector<4x22x16xf32> to vector<4x16x16xf32>
    %c0_251 = arith.constant 0 : index
    %c6_252 = arith.constant 6 : index
    %c4_253 = arith.constant 4 : index
    %426 = vector.load %arg5[%c0_251, %c6_252, %c4_253] : memref<4x7x7xf32, #tpu.memory_space<vmem>>, vector<4x1x1xf32>
    %427 = vector.broadcast %426 : vector<4x1x1xf32> to vector<4x16x16xf32>
    %428 = arith.mulf %425, %427 : vector<4x16x16xf32>
    %429 = arith.addf %424, %428 : vector<4x16x16xf32>
    %430 = vector.extract_strided_slice %7 {offsets = [0, 6, 0], sizes = [4, 16, 16], strides = [1, 1, 1]} : vector<4x22x16xf32> to vector<4x16x16xf32>
    %c0_254 = arith.constant 0 : index
    %c6_255 = arith.constant 6 : index
    %c5_256 = arith.constant 5 : index
    %431 = vector.load %arg5[%c0_254, %c6_255, %c5_256] : memref<4x7x7xf32, #tpu.memory_space<vmem>>, vector<4x1x1xf32>
    %432 = vector.broadcast %431 : vector<4x1x1xf32> to vector<4x16x16xf32>
    %433 = arith.mulf %430, %432 : vector<4x16x16xf32>
    %434 = arith.addf %429, %433 : vector<4x16x16xf32>
    %435 = vector.extract_strided_slice %8 {offsets = [0, 6, 0], sizes = [4, 16, 16], strides = [1, 1, 1]} : vector<4x22x16xf32> to vector<4x16x16xf32>
    %c0_257 = arith.constant 0 : index
    %c6_258 = arith.constant 6 : index
    %c6_259 = arith.constant 6 : index
    %436 = vector.load %arg5[%c0_257, %c6_258, %c6_259] : memref<4x7x7xf32, #tpu.memory_space<vmem>>, vector<4x1x1xf32>
    %437 = vector.broadcast %436 : vector<4x1x1xf32> to vector<4x16x16xf32>
    %438 = arith.mulf %435, %437 : vector<4x16x16xf32>
    %439 = arith.addf %434, %438 : vector<4x16x16xf32>
    %cst_260 = arith.constant 0.000000e+00 : f32
    %440 = vector.broadcast %cst_260 : f32 to vector<4x16x16xf32>
    %441 = arith.maximumf %439, %440 : vector<4x16x16xf32>
    %442 = arith.subf %189, %441 : vector<4x16x16xf32>
    %c0_261 = arith.constant 0 : index
    %c2_262 = arith.constant 2 : index
    %c0_263 = arith.constant 0 : index
    %c0_264 = arith.constant 0 : index
    %c0_265 = arith.constant 0 : index
    %443 = vector.load %arg6[%c0_261, %c2_262, %c0_263, %c0_264, %c0_265] : memref<1x4x4x16x16xf32, #tpu.memory_space<vmem>>, vector<1x1x4x16x16xf32>
    %444 = vector.shape_cast %443 : vector<1x1x4x16x16xf32> to vector<4x16x16xf32>
    %445 = vector.shape_cast %442 : vector<4x16x16xf32> to vector<1x1x4x16x16xf32>
    tpu.vector_store %arg6[%c0_261, %c2_262, %c0_263, %c0_264, %c0_265], %445 {strides = array<i32>} : memref<1x4x4x16x16xf32, #tpu.memory_space<vmem>>, vector<1x1x4x16x16xf32>,
    %c0_266 = arith.constant 0 : index
    %c3_267 = arith.constant 3 : index
    %c0_268 = arith.constant 0 : index
    %c0_269 = arith.constant 0 : index
    %c0_270 = arith.constant 0 : index
    %446 = vector.load %arg6[%c0_266, %c3_267, %c0_268, %c0_269, %c0_270] : memref<1x4x4x16x16xf32, #tpu.memory_space<vmem>>, vector<1x1x4x16x16xf32>
    %447 = vector.shape_cast %446 : vector<1x1x4x16x16xf32> to vector<4x16x16xf32>
    %448 = vector.shape_cast %441 : vector<4x16x16xf32> to vector<1x1x4x16x16xf32>
    tpu.vector_store %arg6[%c0_266, %c3_267, %c0_268, %c0_269, %c0_270], %448 {strides = array<i32>} : memref<1x4x4x16x16xf32, #tpu.memory_space<vmem>>, vector<1x1x4x16x16xf32>,
    return
  }
  func.func @transform_0(%arg0: i32, %arg1: i32) -> (i32, i32, i32, i32) {
    %c0_i32 = arith.constant 0 : i32
    %c0_i32_0 = arith.constant 0 : i32
    %c0_i32_1 = arith.constant 0 : i32
    return %arg0, %arg1, %c0_i32, %c0_i32_0 : i32, i32, i32, i32
  }
  func.func @transform_1(%arg0: i32, %arg1: i32) -> (i32, i32, i32) {
    %c0_i32 = arith.constant 0 : i32
    %c0_i32_0 = arith.constant 0 : i32
    %c0_i32_1 = arith.constant 0 : i32
    return %arg1, %c0_i32, %c0_i32_0 : i32, i32, i32
  }
  func.func @transform_2(%arg0: i32, %arg1: i32) -> (i32, i32, i32) {
    %c0_i32 = arith.constant 0 : i32
    %c0_i32_0 = arith.constant 0 : i32
    %c0_i32_1 = arith.constant 0 : i32
    return %arg1, %c0_i32, %c0_i32_0 : i32, i32, i32
  }
  func.func @transform_3(%arg0: i32, %arg1: i32) -> (i32, i32, i32) {
    %c0_i32 = arith.constant 0 : i32
    %c0_i32_0 = arith.constant 0 : i32
    %c0_i32_1 = arith.constant 0 : i32
    return %arg1, %c0_i32, %c0_i32_0 : i32, i32, i32
  }
  func.func @transform_4(%arg0: i32, %arg1: i32) -> (i32, i32, i32, i32, i32) {
    %c0_i32 = arith.constant 0 : i32
    %c0_i32_0 = arith.constant 0 : i32
    %c0_i32_1 = arith.constant 0 : i32
    %c0_i32_2 = arith.constant 0 : i32
    return %arg0, %c0_i32, %arg1, %c0_i32_0, %c0_i32_1 : i32, i32, i32, i32, i32
  }
}

</mosaic_0001>

<llo_original>
// kernel: tpu_custom_call.1
$region0: #{tpu_custom_call.1}
  #allocation0 [shape = 'u32[]', space=smem, size = 0x4, offset = 0x4, fixed_abs, tag = 'smem constant byte address 0x4 - core index']
  #allocation1 [shape = 'u32[144,128]{1,0:T(1,128)}', space=vmem, size = 0x12000, scoped, tag = 'internal scratch']
  %s0 = inlined_call_operand.vmem [shape: f32[2,4,22,22], index: 0, kind: input, shape index: {}]
  %s1 = inlined_call_operand.vmem [shape: f32[4,3,3], index: 1, kind: input, shape index: {}]
  %s2 = inlined_call_operand.vmem [shape: f32[4,5,5], index: 2, kind: input, shape index: {}]
  %s3 = inlined_call_operand.vmem [shape: f32[4,7,7], index: 3, kind: input, shape index: {}]
  %s4 = inlined_call_operand.hbm [shape: f32[2,4,4,16,16], index: 4, kind: output, shape index: {}]
  %s5 = sld [smem:[#allocation0]]
  $region49: #{tpu_custom_call.1} parent=0
    _
  %s7 = ssub.s32 1, %s5
  %s8 = scalar_select 0, %s7, %s5
  $region1: #{tpu_custom_call.1} parent=0
    #allocation2 [shape = 'u8[262144]{0}', space=vmem, size = 0x40000, scoped, tag = 'output window, operand 0']
    #allocation3 [shape = 's32[2]{0}', space=sflag, size = 0x8, scoped, tag = 'scoped memory for tpu_custom_call.1']
    %9 = vsyncpa [#allocation3], 0
    %s10 = scalar_lea.sflag [#allocation3], 1
    %11 = vsyncpa %s10, 0
    loop: start=0, step=1, limit=4
    $region2: #{tpu_custom_call.1} parent=1 // loop_pre_header
      _
    $region3: #{tpu_custom_call.1} parent=1 // loop_header
      %s13 = sphi 0, %s17
      %p14 = scmp.ge.s32.totalorder %s13, 4
      %s20 = sphi 0, %s32
      %s21 = sphi 0, %s28
      %s22 = sphi 0, %s20
      %s23 = sphi 0, %s21
      %s24 = sphi 0, %s22
      %s25 = sphi 0, %s23
      %s37 = sphi 0, %s39
      %s40 = sphi 0, %s37
      %s41 = sphi 0, %s40
      %s57 = sphi 0, %s41
      %s63 = sphi 0, %s65
      %s66 = sphi 0, %s63
      %s67 = sphi 0, %s66
      %s83 = sphi 0, %s67
      %s89 = sphi 0, %s91
      %s92 = sphi 0, %s89
      %s93 = sphi 0, %s92
      %s109 = sphi 0, %s93
      %s115 = sphi 0, %s117
      %s118 = sphi 0, %s115
      %s119 = sphi 0, %s118
      %s135 = sphi 0, %s119
      %s143 = sphi 0, %s145
      %s146 = sphi 0, %s143
      %s147 = sphi 0, %s146
      %s163 = sphi 0, %s147
    $region4: #{tpu_custom_call.1} parent=1 // loop_header_branch
      %16 = sbr.rel (%p14) target = $region8
    $region5: #{tpu_custom_call.1} parent=1 // loop_body
      %s18 = ssub.s32 %s13, 1
      %s19 = ssub.s32 %s13, 2
      %s26 = sadd.s32 1, %s21
      %p27 = scmp.ge.s32.totalorder %s26, 1
      %s28 = scalar_select %p27, 0, %s26
      %s29 = sadd.s32 1, %s20
      %s30 = scalar_select %p27, %s29, %s20
      %p31 = scmp.ge.s32.totalorder %s30, 2
      %s32 = scalar_select %p31, 0, %s30
      %s33 = ssub.s32 %s20, %s32
      %s34 = ssub.s32 %s21, %s28
      %s35 = sor.u32 %s33, %s34
      %p36 = scmp.eq.s32.totalorder %s35, 0
      %s38 = sadd.s32 %s37, 1
      %s39 = scalar_select %p36, %s37, %s38
      %p42 = pneg %p36
      %p43 = scmp.eq.s32.totalorder %s13, 1
      %p44 = por %p42, %p43
      %p45 = scmp.ne.s32.totalorder %s37, %s40
      %p46 = scmp.eq.s32.totalorder %s13, 0
      %p47 = por %p45, %p46
      %p48 = scmp.ne.s32.totalorder %s37, %s40
      %p49 = scmp.eq.s32.totalorder %s18, 1
      %p50 = por %p48, %p49
      %p51 = scmp.ne.s32.totalorder %s40, %s41
      %p52 = scmp.eq.s32.totalorder %s18, 0
      %p53 = por %p51, %p52
      %p54 = scmp.ne.s32.totalorder %s40, %s41
      %p55 = scmp.eq.s32.totalorder %s19, 1
      %p56 = por %p54, %p55
      %p58 = scmp.ne.s32.totalorder %s41, %s57
      %p59 = scmp.eq.s32.totalorder %s19, 0
      %p60 = por %p58, %p59
      %s61 = ssub.s32 %s21, %s28
      %p62 = scmp.eq.s32.totalorder %s61, 0
      %s64 = sadd.s32 %s63, 1
      %s65 = scalar_select %p62, %s63, %s64
      %p68 = pneg %p62
      %p69 = scmp.eq.s32.totalorder %s13, 1
      %p70 = por %p68, %p69
      %p71 = scmp.ne.s32.totalorder %s63, %s66
      %p72 = scmp.eq.s32.totalorder %s13, 0
      %p73 = por %p71, %p72
      %p74 = scmp.ne.s32.totalorder %s63, %s66
      %p75 = scmp.eq.s32.totalorder %s18, 1
      %p76 = por %p74, %p75
      %p77 = scmp.ne.s32.totalorder %s66, %s67
      %p78 = scmp.eq.s32.totalorder %s18, 0
      %p79 = por %p77, %p78
      %p80 = scmp.ne.s32.totalorder %s66, %s67
      %p81 = scmp.eq.s32.totalorder %s19, 1
      %p82 = por %p80, %p81
      %p84 = scmp.ne.s32.totalorder %s67, %s83
      %p85 = scmp.eq.s32.totalorder %s19, 0
      %p86 = por %p84, %p85
      %s87 = ssub.s32 %s21, %s28
      %p88 = scmp.eq.s32.totalorder %s87, 0
      %s90 = sadd.s32 %s89, 1
      %s91 = scalar_select %p88, %s89, %s90
      %p94 = pneg %p88
      %p95 = scmp.eq.s32.totalorder %s13, 1
      %p96 = por %p94, %p95
      %p97 = scmp.ne.s32.totalorder %s89, %s92
      %p98 = scmp.eq.s32.totalorder %s13, 0
      %p99 = por %p97, %p98
      %p100 = scmp.ne.s32.totalorder %s89, %s92
      %p101 = scmp.eq.s32.totalorder %s18, 1
      %p102 = por %p100, %p101
      %p103 = scmp.ne.s32.totalorder %s92, %s93
      %p104 = scmp.eq.s32.totalorder %s18, 0
      %p105 = por %p103, %p104
      %p106 = scmp.ne.s32.totalorder %s92, %s93
      %p107 = scmp.eq.s32.totalorder %s19, 1
      %p108 = por %p106, %p107
      %p110 = scmp.ne.s32.totalorder %s93, %s109
      %p111 = scmp.eq.s32.totalorder %s19, 0
      %p112 = por %p110, %p111
      %s113 = ssub.s32 %s21, %s28
      %p114 = scmp.eq.s32.totalorder %s113, 0
      %s116 = sadd.s32 %s115, 1
      %s117 = scalar_select %p114, %s115, %s116
      %p120 = pneg %p114
      %p121 = scmp.eq.s32.totalorder %s13, 1
      %p122 = por %p120, %p121
      %p123 = scmp.ne.s32.totalorder %s115, %s118
      %p124 = scmp.eq.s32.totalorder %s13, 0
      %p125 = por %p123, %p124
      %p126 = scmp.ne.s32.totalorder %s115, %s118
      %p127 = scmp.eq.s32.totalorder %s18, 1
      %p128 = por %p126, %p127
      %p129 = scmp.ne.s32.totalorder %s118, %s119
      %p130 = scmp.eq.s32.totalorder %s18, 0
      %p131 = por %p129, %p130
      %p132 = scmp.ne.s32.totalorder %s118, %s119
      %p133 = scmp.eq.s32.totalorder %s19, 1
      %p134 = por %p132, %p133
      %p136 = scmp.ne.s32.totalorder %s119, %s135
      %p137 = scmp.eq.s32.totalorder %s19, 0
      %p138 = por %p136, %p137
      %s139 = ssub.s32 %s20, %s32
      %s140 = ssub.s32 %s21, %s28
      %s141 = sor.u32 %s139, %s140
      %p142 = scmp.eq.s32.totalorder %s141, 0
      %s144 = sadd.s32 %s143, 1
      %s145 = scalar_select %p142, %s143, %s144
      %p148 = pneg %p142
      %p149 = scmp.eq.s32.totalorder %s13, 1
      %p150 = por %p148, %p149
      %p151 = scmp.ne.s32.totalorder %s143, %s146
      %p152 = scmp.eq.s32.totalorder %s13, 0
      %p153 = por %p151, %p152
      %p154 = scmp.ne.s32.totalorder %s143, %s146
      %p155 = scmp.eq.s32.totalorder %s18, 1
      %p156 = por %p154, %p155
      %p157 = scmp.ne.s32.totalorder %s146, %s147
      %p158 = scmp.eq.s32.totalorder %s18, 0
      %p159 = por %p157, %p158
      %p160 = scmp.ne.s32.totalorder %s146, %s147
      %p161 = scmp.eq.s32.totalorder %s19, 1
      %p162 = por %p160, %p161
      %p164 = scmp.ne.s32.totalorder %s147, %s163
      %p165 = scmp.eq.s32.totalorder %s19, 0
      %p166 = por %p164, %p165
      %p167 = scmp.le.s32.totalorder 1, %s13
      %p168 = scmp.lt.s32.totalorder %s13, 3
      %p169 = pnand %p167, %p168
      %p170 = pneg %p169
      // Predicated region
      $region9: #{tpu_custom_call.1} parent=5 // pred_check
        _
      $region10: #{tpu_custom_call.1} parent=5 // pred_check_branch
        %172 = sbr.rel (%p169) target = $region12
      $region11: #{tpu_custom_call.1} parent=5 // pred_region
        %s173 = ssub.s32 %s13, 1
        // Predicated region
        $region13: #{tpu_custom_call.1} parent=11 // pred_check
          %p174 = pneg %p79
        $region14: #{tpu_custom_call.1} parent=11 // pred_check_branch
          %176 = sbr.rel (%p174) target = $region16
        $region15: #{tpu_custom_call.1} parent=11 // pred_region
          %s177 = smul.u32 4, %s23
          %p178 = scmp.lt.s32.totalorder %s177, 3
          %s179 = scalar_select %p178, %s177, 3
          %s180 = smul.addr %s179, 4
          %s181 = scalar_lea.vmem %s1, %s180
          %s182 = smul.u32 4, %s23
        $region16: #{tpu_custom_call.1} parent=11 // pred_fallthru
          _
        // Predicated region
        $region17: #{tpu_custom_call.1} parent=11 // pred_check
          %p183 = pneg %p105
        $region18: #{tpu_custom_call.1} parent=11 // pred_check_branch
          %185 = sbr.rel (%p183) target = $region20
        $region19: #{tpu_custom_call.1} parent=11 // pred_region
          %s186 = smul.u32 4, %s23
          %p187 = scmp.lt.s32.totalorder %s186, 3
          %s188 = scalar_select %p187, %s186, 3
          %s189 = smul.addr %s188, 8
          %s190 = scalar_lea.vmem %s2, %s189
          %s191 = smul.u32 4, %s23
        $region20: #{tpu_custom_call.1} parent=11 // pred_fallthru
          _
        // Predicated region
        $region21: #{tpu_custom_call.1} parent=11 // pred_check
          %p192 = pneg %p131
        $region22: #{tpu_custom_call.1} parent=11 // pred_check_branch
          %194 = sbr.rel (%p192) target = $region24
        $region23: #{tpu_custom_call.1} parent=11 // pred_region
          %s195 = smul.u32 4, %s23
          %p196 = scmp.lt.s32.totalorder %s195, 3
          %s197 = scalar_select %p196, %s195, 3
          %s198 = smul.addr %s197, 8
          %s199 = scalar_lea.vmem %s3, %s198
          %s200 = smul.u32 4, %s23
        $region24: #{tpu_custom_call.1} parent=11 // pred_fallthru
          _
      $region12: #{tpu_custom_call.1} parent=5 // pred_fallthru
        _
      %p201 = scmp.lt.s32.totalorder %s13, 2
      // Predicated region
      $region25: #{tpu_custom_call.1} parent=5 // pred_check
        %p202 = pneg %p201
      $region26: #{tpu_custom_call.1} parent=5 // pred_check_branch
        %204 = sbr.rel (%p202) target = $region28
      $region27: #{tpu_custom_call.1} parent=5 // pred_region
        // Predicated region
        $region29: #{tpu_custom_call.1} parent=27 // pred_check
          %p205 = pneg %p47
        $region30: #{tpu_custom_call.1} parent=27 // pred_check_branch
          %207 = sbr.rel (%p205) target = $region32
        $region31: #{tpu_custom_call.1} parent=27 // pred_region
          %s208 = smul.u32 4, %s21
          %p209 = scmp.lt.s32.totalorder %s20, 1
          %s210 = scalar_select %p209, %s20, 1
          %p211 = scmp.lt.s32.totalorder %s208, 3
          %s212 = scalar_select %p211, %s208, 3
          %s213 = smul.addr %s212, 3
          %s214 = smul.addr %s210, 12
          %s215 = sadd.s32 %s213, %s214
          %s216 = smul.addr %s215, 8
          %s217 = scalar_lea.vmem %s0, %s216
          %s218 = smul.u32 4, %s21
        $region32: #{tpu_custom_call.1} parent=27 // pred_fallthru
          _
      $region28: #{tpu_custom_call.1} parent=5 // pred_fallthru
        _
      %p219 = scmp.le.s32.totalorder 1, %s13
      %p220 = scmp.lt.s32.totalorder %s13, 3
      %p221 = pnand %p219, %p220
      %p222 = pneg %p221
      // Predicated region
      $region33: #{tpu_custom_call.1} parent=5 // pred_check
        _
      $region34: #{tpu_custom_call.1} parent=5 // pred_check_branch
        %224 = sbr.rel (%p221) target = $region36
      $region35: #{tpu_custom_call.1} parent=5 // pred_region
        %s225 = ssub.s32 %s13, 1
        %s226 = smul.u32 4, %s23
        %p227 = scmp.lt.s32.totalorder %s22, 1
        %s228 = scalar_select %p227, %s22, 1
        %p229 = scmp.lt.s32.totalorder %s226, 3
        %s230 = scalar_select %p229, %s226, 3
        %s231 = smul.addr %s230, 3
        %s232 = smul.addr %s228, 12
        %s233 = sadd.s32 %s231, %s232
        %s234 = smul.addr %s233, 8
        %s235 = scalar_lea.vmem %s0, %s234
        %p236 = pneg %p53
        %p237 = pneg %p50
        %s238 = smul.u32 4, %s23
        %p239 = scmp.lt.s32.totalorder %s238, 3
        %s240 = scalar_select %p239, %s238, 3
        %s241 = smul.addr %s240, 4
        %s242 = scalar_lea.vmem %s1, %s241
        %p243 = pneg %p79
        %p244 = pneg %p76
        %s245 = smul.u32 4, %s23
        %p246 = scmp.lt.s32.totalorder %s245, 3
        %s247 = scalar_select %p246, %s245, 3
        %s248 = smul.addr %s247, 8
        %s249 = scalar_lea.vmem %s2, %s248
        %p250 = pneg %p105
        %p251 = pneg %p102
        %s252 = smul.u32 4, %s23
        %p253 = scmp.lt.s32.totalorder %s252, 3
        %s254 = scalar_select %p253, %s252, 3
        %s255 = smul.addr %s254, 8
        %s256 = scalar_lea.vmem %s3, %s255
        %p257 = pneg %p131
        %p258 = pneg %p128
        %p259 = pneg %p159
        %p260 = pneg %p156
        %s261 = sand.u32 %s146, 1
        %s262 = scalar_lea.sflag [#allocation3], %s261
        %s263 = sand.u32 %s146, 1
        %s264 = smul.addr %s263, 256
        %s265 = scalar_lea.vmem [#allocation2], %s264
        %s266 = smul.u32 4, %s23
        %p267 = scmp.lt.s32.totalorder %s22, 1
        %s268 = scalar_select %p267, %s22, 1
        %p269 = scmp.lt.s32.totalorder %s266, 3
        %s270 = scalar_select %p269, %s266, 3
        %s271 = smul.addr %s270, 3
        %s272 = smul.addr %s268, 12
        %s273 = sadd.s32 %s271, %s272
        %s274 = smul.addr %s273, 8
        %s275 = scalar_lea.vmem %s0, %s274
        %s276 = smul.u32 4, %s23
        %s277 = smul.u32 4, %s23
        %p278 = scmp.lt.s32.totalorder %s277, 3
        %s279 = scalar_select %p278, %s277, 3
        %s280 = smul.addr %s279, 4
        %s281 = scalar_lea.vmem %s1, %s280
        %s282 = smul.u32 4, %s23
        %s283 = smul.u32 4, %s23
        %p284 = scmp.lt.s32.totalorder %s283, 3
        %s285 = scalar_select %p284, %s283, 3
        %s286 = smul.addr %s285, 8
        %s287 = scalar_lea.vmem %s2, %s286
        %s288 = smul.u32 4, %s23
        %s289 = smul.u32 4, %s23
        %p290 = scmp.lt.s32.totalorder %s289, 3
        %s291 = scalar_select %p290, %s289, 3
        %s292 = smul.addr %s291, 8
        %s293 = scalar_lea.vmem %s3, %s292
        %s294 = smul.u32 4, %s23
        %s295 = smul.u32 4, %s23
        %v296 = vld [vmem:[%s275] sm:$0xff]
        %v297 = vld [vmem:[%s275 + $0x8] sm:$0xff]
        %v298 = vld [vmem:[%s275 + $0x10] sm:$0x3f]
        %v299 = vld [vmem:[%s275 + $0x18] sm:$0xff]
        %v300 = vld [vmem:[%s275 + $0x20] sm:$0xff]
        %v301 = vld [vmem:[%s275 + $0x28] sm:$0x3f]
        %v302 = vld [vmem:[%s275 + $0x30] sm:$0xff]
        %v303 = vld [vmem:[%s275 + $0x38] sm:$0xff]
        %v304 = vld [vmem:[%s275 + $0x40] sm:$0x3f]
        %v305 = vld [vmem:[%s275 + $0x48] sm:$0xff]
        %v306 = vld [vmem:[%s275 + $0x50] sm:$0xff]
        %v307 = vld [vmem:[%s275 + $0x58] sm:$0x3f]
        %v308 = vld [vmem:[%s281] sm:$0x1]
        %v309 = vld [vmem:[%s281 + $0x4] sm:$0x1]
        %v310 = vld [vmem:[%s281 + $0x8] sm:$0x1]
        %v311 = vld [vmem:[%s281 + $0xc] sm:$0x1]
        %s313 = vtos %v308
        %v314 = vstv %s313
        %s317 = vtos %v309
        %v318 = vstv %s317
        %s321 = vtos %v310
        %v322 = vstv %s321
        %s325 = vtos %v311
        %v326 = vstv %s325
        %v328 = vmul.f32 %v296, %v314
        %v329 = vmul.f32 %v297, %v314
        %v330 = vmul.f32 %v298, %v314
        %v331 = vmul.f32 %v299, %v318
        %v332 = vmul.f32 %v300, %v318
        %v333 = vmul.f32 %v301, %v318
        %v334 = vmul.f32 %v302, %v322
        %v335 = vmul.f32 %v303, %v322
        %v336 = vmul.f32 %v304, %v322
        %v337 = vmul.f32 %v305, %v326
        %v338 = vmul.f32 %v306, %v326
        %v339 = vmul.f32 %v307, %v326
        %v340 = vadd.f32 %v328, 0.0
        %v341 = vadd.f32 %v329, 0.0
        %v342 = vadd.f32 %v330, 0.0
        %v343 = vadd.f32 %v331, 0.0
        %v344 = vadd.f32 %v332, 0.0
        %v345 = vadd.f32 %v333, 0.0
        %v346 = vadd.f32 %v334, 0.0
        %v347 = vadd.f32 %v335, 0.0
        %v348 = vadd.f32 %v336, 0.0
        %v349 = vadd.f32 %v337, 0.0
        %v350 = vadd.f32 %v338, 0.0
        %v351 = vadd.f32 %v339, 0.0
        %352 = vrot.lane.b32.xlu0 %v308, 127
        %v353 = vpop.permute.xlu0 %352
        %354 = vrot.lane.b32.xlu0 %v309, 127
        %v355 = vpop.permute.xlu0 %354
        %356 = vrot.lane.b32.xlu0 %v310, 127
        %v357 = vpop.permute.xlu0 %356
        %358 = vrot.lane.b32.xlu0 %v311, 127
        %v359 = vpop.permute.xlu0 %358
        %s360 = vtos %v353
        %v361 = vstv %s360
        %s363 = vtos %v355
        %v364 = vstv %s363
        %s366 = vtos %v357
        %v367 = vstv %s366
        %s369 = vtos %v359
        %v370 = vstv %s369
        %v372 = vmul.f32 %v296, %v361
        %v373 = vmul.f32 %v297, %v361
        %v374 = vmul.f32 %v298, %v361
        %v375 = vmul.f32 %v299, %v364
        %v376 = vmul.f32 %v300, %v364
        %v377 = vmul.f32 %v301, %v364
        %v378 = vmul.f32 %v302, %v367
        %v379 = vmul.f32 %v303, %v367
        %v380 = vmul.f32 %v304, %v367
        %v381 = vmul.f32 %v305, %v370
        %v382 = vmul.f32 %v306, %v370
        %v383 = vmul.f32 %v307, %v370
        %396 = vrot.lane.b32.xlu0 %v372, 127
        %v397 = vpop.permute.xlu0 %396
        %398 = vrot.lane.b32.xlu0 %v373, 127
        %v399 = vpop.permute.xlu0 %398
        %400 = vrot.lane.b32.xlu0 %v374, 127
        %v401 = vpop.permute.xlu0 %400
        %402 = vrot.lane.b32.xlu0 %v375, 127
        %v403 = vpop.permute.xlu0 %402
        %404 = vrot.lane.b32.xlu0 %v376, 127
        %v405 = vpop.permute.xlu0 %404
        %406 = vrot.lane.b32.xlu0 %v377, 127
        %v407 = vpop.permute.xlu0 %406
        %408 = vrot.lane.b32.xlu0 %v378, 127
        %v409 = vpop.permute.xlu0 %408
        %410 = vrot.lane.b32.xlu0 %v379, 127
        %v411 = vpop.permute.xlu0 %410
        %412 = vrot.lane.b32.xlu0 %v380, 127
        %v413 = vpop.permute.xlu0 %412
        %414 = vrot.lane.b32.xlu0 %v381, 127
        %v415 = vpop.permute.xlu0 %414
        %416 = vrot.lane.b32.xlu0 %v382, 127
        %v417 = vpop.permute.xlu0 %416
        %418 = vrot.lane.b32.xlu0 %v383, 127
        %v419 = vpop.permute.xlu0 %418
        %v432 = vadd.f32 %v340, %v397
        %v433 = vadd.f32 %v341, %v399
        %v434 = vadd.f32 %v342, %v401
        %v435 = vadd.f32 %v343, %v403
        %v436 = vadd.f32 %v344, %v405
        %v437 = vadd.f32 %v345, %v407
        %v438 = vadd.f32 %v346, %v409
        %v439 = vadd.f32 %v347, %v411
        %v440 = vadd.f32 %v348, %v413
        %v441 = vadd.f32 %v349, %v415
        %v442 = vadd.f32 %v350, %v417
        %v443 = vadd.f32 %v351, %v419
        %444 = vrot.lane.b32.xlu0 %v308, 126
        %v445 = vpop.permute.xlu0 %444
        %446 = vrot.lane.b32.xlu0 %v309, 126
        %v447 = vpop.permute.xlu0 %446
        %448 = vrot.lane.b32.xlu0 %v310, 126
        %v449 = vpop.permute.xlu0 %448
        %450 = vrot.lane.b32.xlu0 %v311, 126
        %v451 = vpop.permute.xlu0 %450
        %s452 = vtos %v445
        %v453 = vstv %s452
        %s455 = vtos %v447
        %v456 = vstv %s455
        %s458 = vtos %v449
        %v459 = vstv %s458
        %s461 = vtos %v451
        %v462 = vstv %s461
        %v464 = vmul.f32 %v296, %v453
        %v465 = vmul.f32 %v297, %v453
        %v466 = vmul.f32 %v298, %v453
        %v467 = vmul.f32 %v299, %v456
        %v468 = vmul.f32 %v300, %v456
        %v469 = vmul.f32 %v301, %v456
        %v470 = vmul.f32 %v302, %v459
        %v471 = vmul.f32 %v303, %v459
        %v472 = vmul.f32 %v304, %v459
        %v473 = vmul.f32 %v305, %v462
        %v474 = vmul.f32 %v306, %v462
        %v475 = vmul.f32 %v307, %v462
        %488 = vrot.lane.b32.xlu0 %v464, 126
        %v489 = vpop.permute.xlu0 %488
        %490 = vrot.lane.b32.xlu0 %v465, 126
        %v491 = vpop.permute.xlu0 %490
        %492 = vrot.lane.b32.xlu0 %v466, 126
        %v493 = vpop.permute.xlu0 %492
        %494 = vrot.lane.b32.xlu0 %v467, 126
        %v495 = vpop.permute.xlu0 %494
        %496 = vrot.lane.b32.xlu0 %v468, 126
        %v497 = vpop.permute.xlu0 %496
        %498 = vrot.lane.b32.xlu0 %v469, 126
        %v499 = vpop.permute.xlu0 %498
        %500 = vrot.lane.b32.xlu0 %v470, 126
        %v501 = vpop.permute.xlu0 %500
        %502 = vrot.lane.b32.xlu0 %v471, 126
        %v503 = vpop.permute.xlu0 %502
        %504 = vrot.lane.b32.xlu0 %v472, 126
        %v505 = vpop.permute.xlu0 %504
        %506 = vrot.lane.b32.xlu0 %v473, 126
        %v507 = vpop.permute.xlu0 %506
        %508 = vrot.lane.b32.xlu0 %v474, 126
        %v509 = vpop.permute.xlu0 %508
        %510 = vrot.lane.b32.xlu0 %v475, 126
        %v511 = vpop.permute.xlu0 %510
        %v524 = vadd.f32 %v432, %v489
        %v525 = vadd.f32 %v433, %v491
        %v526 = vadd.f32 %v434, %v493
        %v527 = vadd.f32 %v435, %v495
        %v528 = vadd.f32 %v436, %v497
        %v529 = vadd.f32 %v437, %v499
        %v530 = vadd.f32 %v438, %v501
        %v531 = vadd.f32 %v439, %v503
        %v532 = vadd.f32 %v440, %v505
        %v533 = vadd.f32 %v441, %v507
        %v534 = vadd.f32 %v442, %v509
        %v535 = vadd.f32 %v443, %v511
        %v536 = vld [vmem:[%s281 + $0x1] sm:$0x1]
        %v537 = vld [vmem:[%s281 + $0x5] sm:$0x1]
        %v538 = vld [vmem:[%s281 + $0x9] sm:$0x1]
        %v539 = vld [vmem:[%s281 + $0xd] sm:$0x1]
        %s541 = vtos %v536
        %v542 = vstv %s541
        %s545 = vtos %v537
        %v546 = vstv %s545
        %s549 = vtos %v538
        %v550 = vstv %s549
        %s553 = vtos %v539
        %v554 = vstv %s553
        %v556 = vmul.f32 %v296, %v542
        %v557 = vmul.f32 %v297, %v542
        %v558 = vmul.f32 %v298, %v542
        %v559 = vmul.f32 %v299, %v546
        %v560 = vmul.f32 %v300, %v546
        %v561 = vmul.f32 %v301, %v546
        %v562 = vmul.f32 %v302, %v550
        %v563 = vmul.f32 %v303, %v550
        %v564 = vmul.f32 %v304, %v550
        %v565 = vmul.f32 %v305, %v554
        %v566 = vmul.f32 %v306, %v554
        %v567 = vmul.f32 %v307, %v554
        %vm580 = vcmask 1046528
        %v581 = vrot.slane %v556, 1
        %v582 = vrot.slane %v557, 1
        %v583 = vsel %vm580, %v581, %v582
        %v584 = vrot.slane %v558, 1
        %v585 = vsel %vm580, %v582, %v584
        %v586 = vrot.slane %v559, 1
        %v587 = vrot.slane %v560, 1
        %v588 = vsel %vm580, %v586, %v587
        %v589 = vrot.slane %v561, 1
        %v590 = vsel %vm580, %v587, %v589
        %v591 = vrot.slane %v562, 1
        %v592 = vrot.slane %v563, 1
        %v593 = vsel %vm580, %v591, %v592
        %v594 = vrot.slane %v564, 1
        %v595 = vsel %vm580, %v592, %v594
        %v596 = vrot.slane %v565, 1
        %v597 = vrot.slane %v566, 1
        %v598 = vsel %vm580, %v596, %v597
        %v599 = vrot.slane %v567, 1
        %v600 = vsel %vm580, %v597, %v599
        %v613 = vadd.f32 %v524, %v583
        %v614 = vadd.f32 %v525, %v585
        %v615 = vadd.f32 %v526, %v584
        %v616 = vadd.f32 %v527, %v588
        %v617 = vadd.f32 %v528, %v590
        %v618 = vadd.f32 %v529, %v589
        %v619 = vadd.f32 %v530, %v593
        %v620 = vadd.f32 %v531, %v595
        %v621 = vadd.f32 %v532, %v594
        %v622 = vadd.f32 %v533, %v598
        %v623 = vadd.f32 %v534, %v600
        %v624 = vadd.f32 %v535, %v599
        %625 = vrot.lane.b32.xlu0 %v536, 127
        %v626 = vpop.permute.xlu0 %625
        %627 = vrot.lane.b32.xlu0 %v537, 127
        %v628 = vpop.permute.xlu0 %627
        %629 = vrot.lane.b32.xlu0 %v538, 127
        %v630 = vpop.permute.xlu0 %629
        %631 = vrot.lane.b32.xlu0 %v539, 127
        %v632 = vpop.permute.xlu0 %631
        %s633 = vtos %v626
        %v634 = vstv %s633
        %s636 = vtos %v628
        %v637 = vstv %s636
        %s639 = vtos %v630
        %v640 = vstv %s639
        %s642 = vtos %v632
        %v643 = vstv %s642
        %v645 = vmul.f32 %v296, %v634
        %v646 = vmul.f32 %v297, %v634
        %v647 = vmul.f32 %v298, %v634
        %v648 = vmul.f32 %v299, %v637
        %v649 = vmul.f32 %v300, %v637
        %v650 = vmul.f32 %v301, %v637
        %v651 = vmul.f32 %v302, %v640
        %v652 = vmul.f32 %v303, %v640
        %v653 = vmul.f32 %v304, %v640
        %v654 = vmul.f32 %v305, %v643
        %v655 = vmul.f32 %v306, %v643
        %v656 = vmul.f32 %v307, %v643
        %v669 = vrot.slane %v645, 1
        %v670 = vrot.slane %v646, 1
        %v671 = vsel %vm580, %v669, %v670
        %v672 = vrot.slane %v647, 1
        %v673 = vsel %vm580, %v670, %v672
        %v674 = vrot.slane %v648, 1
        %v675 = vrot.slane %v649, 1
        %v676 = vsel %vm580, %v674, %v675
        %v677 = vrot.slane %v650, 1
        %v678 = vsel %vm580, %v675, %v677
        %v679 = vrot.slane %v651, 1
        %v680 = vrot.slane %v652, 1
        %v681 = vsel %vm580, %v679, %v680
        %v682 = vrot.slane %v653, 1
        %v683 = vsel %vm580, %v680, %v682
        %v684 = vrot.slane %v654, 1
        %v685 = vrot.slane %v655, 1
        %v686 = vsel %vm580, %v684, %v685
        %v687 = vrot.slane %v656, 1
        %v688 = vsel %vm580, %v685, %v687
        %689 = vrot.lane.b32.xlu0 %v671, 127
        %v690 = vpop.permute.xlu0 %689
        %691 = vrot.lane.b32.xlu0 %v673, 127
        %v692 = vpop.permute.xlu0 %691
        %693 = vrot.lane.b32.xlu0 %v672, 127
        %v694 = vpop.permute.xlu0 %693
        %695 = vrot.lane.b32.xlu0 %v676, 127
        %v696 = vpop.permute.xlu0 %695
        %697 = vrot.lane.b32.xlu0 %v678, 127
        %v698 = vpop.permute.xlu0 %697
        %699 = vrot.lane.b32.xlu0 %v677, 127
        %v700 = vpop.permute.xlu0 %699
        %701 = vrot.lane.b32.xlu0 %v681, 127
        %v702 = vpop.permute.xlu0 %701
        %703 = vrot.lane.b32.xlu0 %v683, 127
        %v704 = vpop.permute.xlu0 %703
        %705 = vrot.lane.b32.xlu0 %v682, 127
        %v706 = vpop.permute.xlu0 %705
        %707 = vrot.lane.b32.xlu0 %v686, 127
        %v708 = vpop.permute.xlu0 %707
        %709 = vrot.lane.b32.xlu0 %v688, 127
        %v710 = vpop.permute.xlu0 %709
        %711 = vrot.lane.b32.xlu0 %v687, 127
        %v712 = vpop.permute.xlu0 %711
        %v725 = vadd.f32 %v613, %v690
        %v726 = vadd.f32 %v614, %v692
        %v727 = vadd.f32 %v615, %v694
        %v728 = vadd.f32 %v616, %v696
        %v729 = vadd.f32 %v617, %v698
        %v730 = vadd.f32 %v618, %v700
        %v731 = vadd.f32 %v619, %v702
        %v732 = vadd.f32 %v620, %v704
        %v733 = vadd.f32 %v621, %v706
        %v734 = vadd.f32 %v622, %v708
        %v735 = vadd.f32 %v623, %v710
        %v736 = vadd.f32 %v624, %v712
        %737 = vrot.lane.b32.xlu0 %v536, 126
        %v738 = vpop.permute.xlu0 %737
        %739 = vrot.lane.b32.xlu0 %v537, 126
        %v740 = vpop.permute.xlu0 %739
        %741 = vrot.lane.b32.xlu0 %v538, 126
        %v742 = vpop.permute.xlu0 %741
        %743 = vrot.lane.b32.xlu0 %v539, 126
        %v744 = vpop.permute.xlu0 %743
        %s745 = vtos %v738
        %v746 = vstv %s745
        %s748 = vtos %v740
        %v749 = vstv %s748
        %s751 = vtos %v742
        %v752 = vstv %s751
        %s754 = vtos %v744
        %v755 = vstv %s754
        %v757 = vmul.f32 %v296, %v746
        %v758 = vmul.f32 %v297, %v746
        %v759 = vmul.f32 %v298, %v746
        %v760 = vmul.f32 %v299, %v749
        %v761 = vmul.f32 %v300, %v749
        %v762 = vmul.f32 %v301, %v749
        %v763 = vmul.f32 %v302, %v752
        %v764 = vmul.f32 %v303, %v752
        %v765 = vmul.f32 %v304, %v752
        %v766 = vmul.f32 %v305, %v755
        %v767 = vmul.f32 %v306, %v755
        %v768 = vmul.f32 %v307, %v755
        %v781 = vrot.slane %v757, 1
        %v782 = vrot.slane %v758, 1
        %v783 = vsel %vm580, %v781, %v782
        %v784 = vrot.slane %v759, 1
        %v785 = vsel %vm580, %v782, %v784
        %v786 = vrot.slane %v760, 1
        %v787 = vrot.slane %v761, 1
        %v788 = vsel %vm580, %v786, %v787
        %v789 = vrot.slane %v762, 1
        %v790 = vsel %vm580, %v787, %v789
        %v791 = vrot.slane %v763, 1
        %v792 = vrot.slane %v764, 1
        %v793 = vsel %vm580, %v791, %v792
        %v794 = vrot.slane %v765, 1
        %v795 = vsel %vm580, %v792, %v794
        %v796 = vrot.slane %v766, 1
        %v797 = vrot.slane %v767, 1
        %v798 = vsel %vm580, %v796, %v797
        %v799 = vrot.slane %v768, 1
        %v800 = vsel %vm580, %v797, %v799
        %801 = vrot.lane.b32.xlu0 %v783, 126
        %v802 = vpop.permute.xlu0 %801
        %803 = vrot.lane.b32.xlu0 %v785, 126
        %v804 = vpop.permute.xlu0 %803
        %805 = vrot.lane.b32.xlu0 %v784, 126
        %v806 = vpop.permute.xlu0 %805
        %807 = vrot.lane.b32.xlu0 %v788, 126
        %v808 = vpop.permute.xlu0 %807
        %809 = vrot.lane.b32.xlu0 %v790, 126
        %v810 = vpop.permute.xlu0 %809
        %811 = vrot.lane.b32.xlu0 %v789, 126
        %v812 = vpop.permute.xlu0 %811
        %813 = vrot.lane.b32.xlu0 %v793, 126
        %v814 = vpop.permute.xlu0 %813
        %815 = vrot.lane.b32.xlu0 %v795, 126
        %v816 = vpop.permute.xlu0 %815
        %817 = vrot.lane.b32.xlu0 %v794, 126
        %v818 = vpop.permute.xlu0 %817
        %819 = vrot.lane.b32.xlu0 %v798, 126
        %v820 = vpop.permute.xlu0 %819
        %821 = vrot.lane.b32.xlu0 %v800, 126
        %v822 = vpop.permute.xlu0 %821
        %823 = vrot.lane.b32.xlu0 %v799, 126
        %v824 = vpop.permute.xlu0 %823
        %v837 = vadd.f32 %v725, %v802
        %v838 = vadd.f32 %v726, %v804
        %v839 = vadd.f32 %v727, %v806
        %v840 = vadd.f32 %v728, %v808
        %v841 = vadd.f32 %v729, %v810
        %v842 = vadd.f32 %v730, %v812
        %v843 = vadd.f32 %v731, %v814
        %v844 = vadd.f32 %v732, %v816
        %v845 = vadd.f32 %v733, %v818
        %v846 = vadd.f32 %v734, %v820
        %v847 = vadd.f32 %v735, %v822
        %v848 = vadd.f32 %v736, %v824
        %v849 = vld [vmem:[%s281 + $0x2] sm:$0x1]
        %v850 = vld [vmem:[%s281 + $0x6] sm:$0x1]
        %v851 = vld [vmem:[%s281 + $0xa] sm:$0x1]
        %v852 = vld [vmem:[%s281 + $0xe] sm:$0x1]
        %s854 = vtos %v849
        %v855 = vstv %s854
        %s858 = vtos %v850
        %v859 = vstv %s858
        %s862 = vtos %v851
        %v863 = vstv %s862
        %s866 = vtos %v852
        %v867 = vstv %s866
        %v869 = vmul.f32 %v296, %v855
        %v870 = vmul.f32 %v297, %v855
        %v871 = vmul.f32 %v298, %v855
        %v872 = vmul.f32 %v299, %v859
        %v873 = vmul.f32 %v300, %v859
        %v874 = vmul.f32 %v301, %v859
        %v875 = vmul.f32 %v302, %v863
        %v876 = vmul.f32 %v303, %v863
        %v877 = vmul.f32 %v304, %v863
        %v878 = vmul.f32 %v305, %v867
        %v879 = vmul.f32 %v306, %v867
        %v880 = vmul.f32 %v307, %v867
        %vm893 = vcmask 1045504
        %v894 = vrot.slane %v869, 2
        %v895 = vrot.slane %v870, 2
        %v896 = vsel %vm893, %v894, %v895
        %v897 = vrot.slane %v871, 2
        %v898 = vsel %vm893, %v895, %v897
        %v899 = vrot.slane %v872, 2
        %v900 = vrot.slane %v873, 2
        %v901 = vsel %vm893, %v899, %v900
        %v902 = vrot.slane %v874, 2
        %v903 = vsel %vm893, %v900, %v902
        %v904 = vrot.slane %v875, 2
        %v905 = vrot.slane %v876, 2
        %v906 = vsel %vm893, %v904, %v905
        %v907 = vrot.slane %v877, 2
        %v908 = vsel %vm893, %v905, %v907
        %v909 = vrot.slane %v878, 2
        %v910 = vrot.slane %v879, 2
        %v911 = vsel %vm893, %v909, %v910
        %v912 = vrot.slane %v880, 2
        %v913 = vsel %vm893, %v910, %v912
        %v926 = vadd.f32 %v837, %v896
        %v927 = vadd.f32 %v838, %v898
        %v928 = vadd.f32 %v839, %v897
        %v929 = vadd.f32 %v840, %v901
        %v930 = vadd.f32 %v841, %v903
        %v931 = vadd.f32 %v842, %v902
        %v932 = vadd.f32 %v843, %v906
        %v933 = vadd.f32 %v844, %v908
        %v934 = vadd.f32 %v845, %v907
        %v935 = vadd.f32 %v846, %v911
        %v936 = vadd.f32 %v847, %v913
        %v937 = vadd.f32 %v848, %v912
        %938 = vrot.lane.b32.xlu0 %v849, 127
        %v939 = vpop.permute.xlu0 %938
        %940 = vrot.lane.b32.xlu0 %v850, 127
        %v941 = vpop.permute.xlu0 %940
        %942 = vrot.lane.b32.xlu0 %v851, 127
        %v943 = vpop.permute.xlu0 %942
        %944 = vrot.lane.b32.xlu0 %v852, 127
        %v945 = vpop.permute.xlu0 %944
        %s946 = vtos %v939
        %v947 = vstv %s946
        %s949 = vtos %v941
        %v950 = vstv %s949
        %s952 = vtos %v943
        %v953 = vstv %s952
        %s955 = vtos %v945
        %v956 = vstv %s955
        %v958 = vmul.f32 %v296, %v947
        %v959 = vmul.f32 %v297, %v947
        %v960 = vmul.f32 %v298, %v947
        %v961 = vmul.f32 %v299, %v950
        %v962 = vmul.f32 %v300, %v950
        %v963 = vmul.f32 %v301, %v950
        %v964 = vmul.f32 %v302, %v953
        %v965 = vmul.f32 %v303, %v953
        %v966 = vmul.f32 %v304, %v953
        %v967 = vmul.f32 %v305, %v956
        %v968 = vmul.f32 %v306, %v956
        %v969 = vmul.f32 %v307, %v956
        %v982 = vrot.slane %v958, 2
        %v983 = vrot.slane %v959, 2
        %v984 = vsel %vm893, %v982, %v983
        %v985 = vrot.slane %v960, 2
        %v986 = vsel %vm893, %v983, %v985
        %v987 = vrot.slane %v961, 2
        %v988 = vrot.slane %v962, 2
        %v989 = vsel %vm893, %v987, %v988
        %v990 = vrot.slane %v963, 2
        %v991 = vsel %vm893, %v988, %v990
        %v992 = vrot.slane %v964, 2
        %v993 = vrot.slane %v965, 2
        %v994 = vsel %vm893, %v992, %v993
        %v995 = vrot.slane %v966, 2
        %v996 = vsel %vm893, %v993, %v995
        %v997 = vrot.slane %v967, 2
        %v998 = vrot.slane %v968, 2
        %v999 = vsel %vm893, %v997, %v998
        %v1000 = vrot.slane %v969, 2
        %v1001 = vsel %vm893, %v998, %v1000
        %1002 = vrot.lane.b32.xlu0 %v984, 127
        %v1003 = vpop.permute.xlu0 %1002
        %1004 = vrot.lane.b32.xlu0 %v986, 127
        %v1005 = vpop.permute.xlu0 %1004
        %1006 = vrot.lane.b32.xlu0 %v985, 127
        %v1007 = vpop.permute.xlu0 %1006
        %1008 = vrot.lane.b32.xlu0 %v989, 127
        %v1009 = vpop.permute.xlu0 %1008
        %1010 = vrot.lane.b32.xlu0 %v991, 127
        %v1011 = vpop.permute.xlu0 %1010
        %1012 = vrot.lane.b32.xlu0 %v990, 127
        %v1013 = vpop.permute.xlu0 %1012
        %1014 = vrot.lane.b32.xlu0 %v994, 127
        %v1015 = vpop.permute.xlu0 %1014
        %1016 = vrot.lane.b32.xlu0 %v996, 127
        %v1017 = vpop.permute.xlu0 %1016
        %1018 = vrot.lane.b32.xlu0 %v995, 127
        %v1019 = vpop.permute.xlu0 %1018
        %1020 = vrot.lane.b32.xlu0 %v999, 127
        %v1021 = vpop.permute.xlu0 %1020
        %1022 = vrot.lane.b32.xlu0 %v1001, 127
        %v1023 = vpop.permute.xlu0 %1022
        %1024 = vrot.lane.b32.xlu0 %v1000, 127
        %v1025 = vpop.permute.xlu0 %1024
        %v1038 = vadd.f32 %v926, %v1003
        %v1039 = vadd.f32 %v927, %v1005
        %v1040 = vadd.f32 %v928, %v1007
        %v1041 = vadd.f32 %v929, %v1009
        %v1042 = vadd.f32 %v930, %v1011
        %v1043 = vadd.f32 %v931, %v1013
        %v1044 = vadd.f32 %v932, %v1015
        %v1045 = vadd.f32 %v933, %v1017
        %v1046 = vadd.f32 %v934, %v1019
        %v1047 = vadd.f32 %v935, %v1021
        %v1048 = vadd.f32 %v936, %v1023
        %v1049 = vadd.f32 %v937, %v1025
        %1050 = vrot.lane.b32.xlu0 %v849, 126
        %v1051 = vpop.permute.xlu0 %1050
        %1052 = vrot.lane.b32.xlu0 %v850, 126
        %v1053 = vpop.permute.xlu0 %1052
        %1054 = vrot.lane.b32.xlu0 %v851, 126
        %v1055 = vpop.permute.xlu0 %1054
        %1056 = vrot.lane.b32.xlu0 %v852, 126
        %v1057 = vpop.permute.xlu0 %1056
        %s1058 = vtos %v1051
        %v1059 = vstv %s1058
        %s1061 = vtos %v1053
        %v1062 = vstv %s1061
        %s1064 = vtos %v1055
        %v1065 = vstv %s1064
        %s1067 = vtos %v1057
        %v1068 = vstv %s1067
        %v1070 = vmul.f32 %v296, %v1059
        %v1071 = vmul.f32 %v297, %v1059
        %v1072 = vmul.f32 %v298, %v1059
        %v1073 = vmul.f32 %v299, %v1062
        %v1074 = vmul.f32 %v300, %v1062
        %v1075 = vmul.f32 %v301, %v1062
        %v1076 = vmul.f32 %v302, %v1065
        %v1077 = vmul.f32 %v303, %v1065
        %v1078 = vmul.f32 %v304, %v1065
        %v1079 = vmul.f32 %v305, %v1068
        %v1080 = vmul.f32 %v306, %v1068
        %v1081 = vmul.f32 %v307, %v1068
        %v1094 = vrot.slane %v1070, 2
        %v1095 = vrot.slane %v1071, 2
        %v1096 = vsel %vm893, %v1094, %v1095
        %v1097 = vrot.slane %v1072, 2
        %v1098 = vsel %vm893, %v1095, %v1097
        %v1099 = vrot.slane %v1073, 2
        %v1100 = vrot.slane %v1074, 2
        %v1101 = vsel %vm893, %v1099, %v1100
        %v1102 = vrot.slane %v1075, 2
        %v1103 = vsel %vm893, %v1100, %v1102
        %v1104 = vrot.slane %v1076, 2
        %v1105 = vrot.slane %v1077, 2
        %v1106 = vsel %vm893, %v1104, %v1105
        %v1107 = vrot.slane %v1078, 2
        %v1108 = vsel %vm893, %v1105, %v1107
        %v1109 = vrot.slane %v1079, 2
        %v1110 = vrot.slane %v1080, 2
        %v1111 = vsel %vm893, %v1109, %v1110
        %v1112 = vrot.slane %v1081, 2
        %v1113 = vsel %vm893, %v1110, %v1112
        %1114 = vrot.lane.b32.xlu0 %v1096, 126
        %v1115 = vpop.permute.xlu0 %1114
        %1116 = vrot.lane.b32.xlu0 %v1098, 126
        %v1117 = vpop.permute.xlu0 %1116
        %1118 = vrot.lane.b32.xlu0 %v1097, 126
        %v1119 = vpop.permute.xlu0 %1118
        %1120 = vrot.lane.b32.xlu0 %v1101, 126
        %v1121 = vpop.permute.xlu0 %1120
        %1122 = vrot.lane.b32.xlu0 %v1103, 126
        %v1123 = vpop.permute.xlu0 %1122
        %1124 = vrot.lane.b32.xlu0 %v1102, 126
        %v1125 = vpop.permute.xlu0 %1124
        %1126 = vrot.lane.b32.xlu0 %v1106, 126
        %v1127 = vpop.permute.xlu0 %1126
        %1128 = vrot.lane.b32.xlu0 %v1108, 126
        %v1129 = vpop.permute.xlu0 %1128
        %1130 = vrot.lane.b32.xlu0 %v1107, 126
        %v1131 = vpop.permute.xlu0 %1130
        %1132 = vrot.lane.b32.xlu0 %v1111, 126
        %v1133 = vpop.permute.xlu0 %1132
        %1134 = vrot.lane.b32.xlu0 %v1113, 126
        %v1135 = vpop.permute.xlu0 %1134
        %1136 = vrot.lane.b32.xlu0 %v1112, 126
        %v1137 = vpop.permute.xlu0 %1136
        %v1150 = vadd.f32 %v1038, %v1115
        %v1151 = vadd.f32 %v1039, %v1117
        %v1152 = vadd.f32 %v1040, %v1119
        %v1153 = vadd.f32 %v1041, %v1121
        %v1154 = vadd.f32 %v1042, %v1123
        %v1155 = vadd.f32 %v1043, %v1125
        %v1156 = vadd.f32 %v1044, %v1127
        %v1157 = vadd.f32 %v1045, %v1129
        %v1158 = vadd.f32 %v1046, %v1131
        %v1159 = vadd.f32 %v1047, %v1133
        %v1160 = vadd.f32 %v1048, %v1135
        %v1161 = vadd.f32 %v1049, %v1137
        %v1162 = vmax.f32 %v1150, 0.0
        %v1163 = vmax.f32 %v1151, 0.0
        %v1164 = vmax.f32 %v1152, 0.0
        %v1165 = vmax.f32 %v1153, 0.0
        %v1166 = vmax.f32 %v1154, 0.0
        %v1167 = vmax.f32 %v1155, 0.0
        %v1168 = vmax.f32 %v1156, 0.0
        %v1169 = vmax.f32 %v1157, 0.0
        %v1170 = vmax.f32 %v1158, 0.0
        %v1171 = vmax.f32 %v1159, 0.0
        %v1172 = vmax.f32 %v1160, 0.0
        %v1173 = vmax.f32 %v1161, 0.0
        %vm1186 = vcmask 1040384
        %v1187 = vrot.slane %v1162, 7
        %v1188 = vrot.slane %v1163, 7
        %v1189 = vsel %vm1186, %v1187, %v1188
        %v1190 = vrot.slane %v1164, 7
        %v1191 = vsel %vm1186, %v1188, %v1190
        %v1192 = vrot.slane %v1165, 7
        %v1193 = vrot.slane %v1166, 7
        %v1194 = vsel %vm1186, %v1192, %v1193
        %v1195 = vrot.slane %v1167, 7
        %v1196 = vsel %vm1186, %v1193, %v1195
        %v1197 = vrot.slane %v1168, 7
        %v1198 = vrot.slane %v1169, 7
        %v1199 = vsel %vm1186, %v1197, %v1198
        %v1200 = vrot.slane %v1170, 7
        %v1201 = vsel %vm1186, %v1198, %v1200
        %v1202 = vrot.slane %v1171, 7
        %v1203 = vrot.slane %v1172, 7
        %v1204 = vsel %vm1186, %v1202, %v1203
        %v1205 = vrot.slane %v1173, 7
        %v1206 = vsel %vm1186, %v1203, %v1205
        %1207 = vrot.lane.b32.xlu0 %v1187, 1
        %v1208 = vpop.permute.xlu0 %1207
        %1209 = vrot.lane.b32.xlu0 %v1189, 1
        %v1210 = vpop.permute.xlu0 %1209
        %1211 = vrot.lane.b32.xlu0 %v1191, 1
        %v1212 = vpop.permute.xlu0 %1211
        %1213 = vrot.lane.b32.xlu0 %v1192, 1
        %v1214 = vpop.permute.xlu0 %1213
        %1215 = vrot.lane.b32.xlu0 %v1194, 1
        %v1216 = vpop.permute.xlu0 %1215
        %1217 = vrot.lane.b32.xlu0 %v1196, 1
        %v1218 = vpop.permute.xlu0 %1217
        %1219 = vrot.lane.b32.xlu0 %v1197, 1
        %v1220 = vpop.permute.xlu0 %1219
        %1221 = vrot.lane.b32.xlu0 %v1199, 1
        %v1222 = vpop.permute.xlu0 %1221
        %1223 = vrot.lane.b32.xlu0 %v1201, 1
        %v1224 = vpop.permute.xlu0 %1223
        %1225 = vrot.lane.b32.xlu0 %v1202, 1
        %v1226 = vpop.permute.xlu0 %1225
        %1227 = vrot.lane.b32.xlu0 %v1204, 1
        %v1228 = vpop.permute.xlu0 %1227
        %1229 = vrot.lane.b32.xlu0 %v1206, 1
        %v1230 = vpop.permute.xlu0 %1229
        %v1243 = vsub.f32 %v296, %v1208
        %v1244 = vsub.f32 %v297, %v1210
        %v1245 = vsub.f32 %v298, %v1212
        %v1246 = vsub.f32 %v299, %v1214
        %v1247 = vsub.f32 %v300, %v1216
        %v1248 = vsub.f32 %v301, %v1218
        %v1249 = vsub.f32 %v302, %v1220
        %v1250 = vsub.f32 %v303, %v1222
        %v1251 = vsub.f32 %v304, %v1224
        %v1252 = vsub.f32 %v305, %v1226
        %v1253 = vsub.f32 %v306, %v1228
        %v1254 = vsub.f32 %v307, %v1230
        %1267 = vrot.lane.b32.xlu0 %v1243, 125
        %v1268 = vpop.permute.xlu0 %1267
        %1269 = vrot.lane.b32.xlu0 %v1244, 125
        %v1270 = vpop.permute.xlu0 %1269
        %1271 = vrot.lane.b32.xlu0 %v1245, 125
        %v1272 = vpop.permute.xlu0 %1271
        %1273 = vrot.lane.b32.xlu0 %v1246, 125
        %v1274 = vpop.permute.xlu0 %1273
        %1275 = vrot.lane.b32.xlu0 %v1247, 125
        %v1276 = vpop.permute.xlu0 %1275
        %1277 = vrot.lane.b32.xlu0 %v1248, 125
        %v1278 = vpop.permute.xlu0 %1277
        %1279 = vrot.lane.b32.xlu0 %v1249, 125
        %v1280 = vpop.permute.xlu0 %1279
        %1281 = vrot.lane.b32.xlu0 %v1250, 125
        %v1282 = vpop.permute.xlu0 %1281
        %1283 = vrot.lane.b32.xlu0 %v1251, 125
        %v1284 = vpop.permute.xlu0 %1283
        %1285 = vrot.lane.b32.xlu0 %v1252, 125
        %v1286 = vpop.permute.xlu0 %1285
        %1287 = vrot.lane.b32.xlu0 %v1253, 125
        %v1288 = vpop.permute.xlu0 %1287
        %1289 = vrot.lane.b32.xlu0 %v1254, 125
        %v1290 = vpop.permute.xlu0 %1289
        %vm1303 = vcmask 130051
        %1304 = vst.msk [vmem:[%s265 - $0x3] sm:$0xf8] %vm1303, %v1268
        %vm1305 = vcmask 130048
        %1306 = vst.msk [vmem:[%s265 + $0x5] sm:$0xff] %vm1305, %v1270
        %vm1307 = vcmask 124928
        %1308 = vst.msk [vmem:[%s265 + $0xd] sm:$0x7] %vm1307, %v1272
        %1309 = vst.msk [vmem:[%s265 + $0xd] sm:$0xf8] %vm1303, %v1274
        %1310 = vst.msk [vmem:[%s265 + $0x15] sm:$0xff] %vm1305, %v1276
        %1311 = vst.msk [vmem:[%s265 + $0x1d] sm:$0x7] %vm1307, %v1278
        %1312 = vst.msk [vmem:[%s265 + $0x1d] sm:$0xf8] %vm1303, %v1280
        %1313 = vst.msk [vmem:[%s265 + $0x25] sm:$0xff] %vm1305, %v1282
        %1314 = vst.msk [vmem:[%s265 + $0x2d] sm:$0x7] %vm1307, %v1284
        %1315 = vst.msk [vmem:[%s265 + $0x2d] sm:$0xf8] %vm1303, %v1286
        %1316 = vst.msk [vmem:[%s265 + $0x35] sm:$0xff] %vm1305, %v1288
        %1317 = vst.msk [vmem:[%s265 + $0x3d] sm:$0x7] %vm1307, %v1290
        %v1318 = vld [vmem:[%s287] sm:$0x1]
        %v1319 = vld [vmem:[%s287 + $0x8] sm:$0x1]
        %v1320 = vld [vmem:[%s287 + $0x10] sm:$0x1]
        %v1321 = vld [vmem:[%s287 + $0x18] sm:$0x1]
        %s1323 = vtos %v1318
        %v1324 = vstv %s1323
        %s1327 = vtos %v1319
        %v1328 = vstv %s1327
        %s1331 = vtos %v1320
        %v1332 = vstv %s1331
        %s1335 = vtos %v1321
        %v1336 = vstv %s1335
        %v1338 = vmul.f32 %v296, %v1324
        %v1339 = vmul.f32 %v297, %v1324
        %v1340 = vmul.f32 %v298, %v1324
        %v1341 = vmul.f32 %v299, %v1328
        %v1342 = vmul.f32 %v300, %v1328
        %v1343 = vmul.f32 %v301, %v1328
        %v1344 = vmul.f32 %v302, %v1332
        %v1345 = vmul.f32 %v303, %v1332
        %v1346 = vmul.f32 %v304, %v1332
        %v1347 = vmul.f32 %v305, %v1336
        %v1348 = vmul.f32 %v306, %v1336
        %v1349 = vmul.f32 %v307, %v1336
        %v1350 = vadd.f32 %v1338, 0.0
        %v1351 = vadd.f32 %v1339, 0.0
        %v1352 = vadd.f32 %v1340, 0.0
        %v1353 = vadd.f32 %v1341, 0.0
        %v1354 = vadd.f32 %v1342, 0.0
        %v1355 = vadd.f32 %v1343, 0.0
        %v1356 = vadd.f32 %v1344, 0.0
        %v1357 = vadd.f32 %v1345, 0.0
        %v1358 = vadd.f32 %v1346, 0.0
        %v1359 = vadd.f32 %v1347, 0.0
        %v1360 = vadd.f32 %v1348, 0.0
        %v1361 = vadd.f32 %v1349, 0.0
        %1362 = vrot.lane.b32.xlu0 %v1318, 127
        %v1363 = vpop.permute.xlu0 %1362
        %1364 = vrot.lane.b32.xlu0 %v1319, 127
        %v1365 = vpop.permute.xlu0 %1364
        %1366 = vrot.lane.b32.xlu0 %v1320, 127
        %v1367 = vpop.permute.xlu0 %1366
        %1368 = vrot.lane.b32.xlu0 %v1321, 127
        %v1369 = vpop.permute.xlu0 %1368
        %s1370 = vtos %v1363
        %v1371 = vstv %s1370
        %s1373 = vtos %v1365
        %v1374 = vstv %s1373
        %s1376 = vtos %v1367
        %v1377 = vstv %s1376
        %s1379 = vtos %v1369
        %v1380 = vstv %s1379
        %v1382 = vmul.f32 %v296, %v1371
        %v1383 = vmul.f32 %v297, %v1371
        %v1384 = vmul.f32 %v298, %v1371
        %v1385 = vmul.f32 %v299, %v1374
        %v1386 = vmul.f32 %v300, %v1374
        %v1387 = vmul.f32 %v301, %v1374
        %v1388 = vmul.f32 %v302, %v1377
        %v1389 = vmul.f32 %v303, %v1377
        %v1390 = vmul.f32 %v304, %v1377
        %v1391 = vmul.f32 %v305, %v1380
        %v1392 = vmul.f32 %v306, %v1380
        %v1393 = vmul.f32 %v307, %v1380
        %1406 = vrot.lane.b32.xlu0 %v1382, 127
        %v1407 = vpop.permute.xlu0 %1406
        %1408 = vrot.lane.b32.xlu0 %v1383, 127
        %v1409 = vpop.permute.xlu0 %1408
        %1410 = vrot.lane.b32.xlu0 %v1384, 127
        %v1411 = vpop.permute.xlu0 %1410
        %1412 = vrot.lane.b32.xlu0 %v1385, 127
        %v1413 = vpop.permute.xlu0 %1412
        %1414 = vrot.lane.b32.xlu0 %v1386, 127
        %v1415 = vpop.permute.xlu0 %1414
        %1416 = vrot.lane.b32.xlu0 %v1387, 127
        %v1417 = vpop.permute.xlu0 %1416
        %1418 = vrot.lane.b32.xlu0 %v1388, 127
        %v1419 = vpop.permute.xlu0 %1418
        %1420 = vrot.lane.b32.xlu0 %v1389, 127
        %v1421 = vpop.permute.xlu0 %1420
        %1422 = vrot.lane.b32.xlu0 %v1390, 127
        %v1423 = vpop.permute.xlu0 %1422
        %1424 = vrot.lane.b32.xlu0 %v1391, 127
        %v1425 = vpop.permute.xlu0 %1424
        %1426 = vrot.lane.b32.xlu0 %v1392, 127
        %v1427 = vpop.permute.xlu0 %1426
        %1428 = vrot.lane.b32.xlu0 %v1393, 127
        %v1429 = vpop.permute.xlu0 %1428
        %v1442 = vadd.f32 %v1350, %v1407
        %v1443 = vadd.f32 %v1351, %v1409
        %v1444 = vadd.f32 %v1352, %v1411
        %v1445 = vadd.f32 %v1353, %v1413
        %v1446 = vadd.f32 %v1354, %v1415
        %v1447 = vadd.f32 %v1355, %v1417
        %v1448 = vadd.f32 %v1356, %v1419
        %v1449 = vadd.f32 %v1357, %v1421
        %v1450 = vadd.f32 %v1358, %v1423
        %v1451 = vadd.f32 %v1359, %v1425
        %v1452 = vadd.f32 %v1360, %v1427
        %v1453 = vadd.f32 %v1361, %v1429
        %1454 = vrot.lane.b32.xlu0 %v1318, 126
        %v1455 = vpop.permute.xlu0 %1454
        %1456 = vrot.lane.b32.xlu0 %v1319, 126
        %v1457 = vpop.permute.xlu0 %1456
        %1458 = vrot.lane.b32.xlu0 %v1320, 126
        %v1459 = vpop.permute.xlu0 %1458
        %1460 = vrot.lane.b32.xlu0 %v1321, 126
        %v1461 = vpop.permute.xlu0 %1460
        %s1462 = vtos %v1455
        %v1463 = vstv %s1462
        %s1465 = vtos %v1457
        %v1466 = vstv %s1465
        %s1468 = vtos %v1459
        %v1469 = vstv %s1468
        %s1471 = vtos %v1461
        %v1472 = vstv %s1471
        %v1474 = vmul.f32 %v296, %v1463
        %v1475 = vmul.f32 %v297, %v1463
        %v1476 = vmul.f32 %v298, %v1463
        %v1477 = vmul.f32 %v299, %v1466
        %v1478 = vmul.f32 %v300, %v1466
        %v1479 = vmul.f32 %v301, %v1466
        %v1480 = vmul.f32 %v302, %v1469
        %v1481 = vmul.f32 %v303, %v1469
        %v1482 = vmul.f32 %v304, %v1469
        %v1483 = vmul.f32 %v305, %v1472
        %v1484 = vmul.f32 %v306, %v1472
        %v1485 = vmul.f32 %v307, %v1472
        %1498 = vrot.lane.b32.xlu0 %v1474, 126
        %v1499 = vpop.permute.xlu0 %1498
        %1500 = vrot.lane.b32.xlu0 %v1475, 126
        %v1501 = vpop.permute.xlu0 %1500
        %1502 = vrot.lane.b32.xlu0 %v1476, 126
        %v1503 = vpop.permute.xlu0 %1502
        %1504 = vrot.lane.b32.xlu0 %v1477, 126
        %v1505 = vpop.permute.xlu0 %1504
        %1506 = vrot.lane.b32.xlu0 %v1478, 126
        %v1507 = vpop.permute.xlu0 %1506
        %1508 = vrot.lane.b32.xlu0 %v1479, 126
        %v1509 = vpop.permute.xlu0 %1508
        %1510 = vrot.lane.b32.xlu0 %v1480, 126
        %v1511 = vpop.permute.xlu0 %1510
        %1512 = vrot.lane.b32.xlu0 %v1481, 126
        %v1513 = vpop.permute.xlu0 %1512
        %1514 = vrot.lane.b32.xlu0 %v1482, 126
        %v1515 = vpop.permute.xlu0 %1514
        %1516 = vrot.lane.b32.xlu0 %v1483, 126
        %v1517 = vpop.permute.xlu0 %1516
        %1518 = vrot.lane.b32.xlu0 %v1484, 126
        %v1519 = vpop.permute.xlu0 %1518
        %1520 = vrot.lane.b32.xlu0 %v1485, 126
        %v1521 = vpop.permute.xlu0 %1520
        %v1534 = vadd.f32 %v1442, %v1499
        %v1535 = vadd.f32 %v1443, %v1501
        %v1536 = vadd.f32 %v1444, %v1503
        %v1537 = vadd.f32 %v1445, %v1505
        %v1538 = vadd.f32 %v1446, %v1507
        %v1539 = vadd.f32 %v1447, %v1509
        %v1540 = vadd.f32 %v1448, %v1511
        %v1541 = vadd.f32 %v1449, %v1513
        %v1542 = vadd.f32 %v1450, %v1515
        %v1543 = vadd.f32 %v1451, %v1517
        %v1544 = vadd.f32 %v1452, %v1519
        %v1545 = vadd.f32 %v1453, %v1521
        %1546 = vrot.lane.b32.xlu0 %v1318, 125
        %v1547 = vpop.permute.xlu0 %1546
        %1548 = vrot.lane.b32.xlu0 %v1319, 125
        %v1549 = vpop.permute.xlu0 %1548
        %1550 = vrot.lane.b32.xlu0 %v1320, 125
        %v1551 = vpop.permute.xlu0 %1550
        %1552 = vrot.lane.b32.xlu0 %v1321, 125
        %v1553 = vpop.permute.xlu0 %1552
        %s1554 = vtos %v1547
        %v1555 = vstv %s1554
        %s1557 = vtos %v1549
        %v1558 = vstv %s1557
        %s1560 = vtos %v1551
        %v1561 = vstv %s1560
        %s1563 = vtos %v1553
        %v1564 = vstv %s1563
        %v1566 = vmul.f32 %v296, %v1555
        %v1567 = vmul.f32 %v297, %v1555
        %v1568 = vmul.f32 %v298, %v1555
        %v1569 = vmul.f32 %v299, %v1558
        %v1570 = vmul.f32 %v300, %v1558
        %v1571 = vmul.f32 %v301, %v1558
        %v1572 = vmul.f32 %v302, %v1561
        %v1573 = vmul.f32 %v303, %v1561
        %v1574 = vmul.f32 %v304, %v1561
        %v1575 = vmul.f32 %v305, %v1564
        %v1576 = vmul.f32 %v306, %v1564
        %v1577 = vmul.f32 %v307, %v1564
        %1590 = vrot.lane.b32.xlu0 %v1566, 125
        %v1591 = vpop.permute.xlu0 %1590
        %1592 = vrot.lane.b32.xlu0 %v1567, 125
        %v1593 = vpop.permute.xlu0 %1592
        %1594 = vrot.lane.b32.xlu0 %v1568, 125
        %v1595 = vpop.permute.xlu0 %1594
        %1596 = vrot.lane.b32.xlu0 %v1569, 125
        %v1597 = vpop.permute.xlu0 %1596
        %1598 = vrot.lane.b32.xlu0 %v1570, 125
        %v1599 = vpop.permute.xlu0 %1598
        %1600 = vrot.lane.b32.xlu0 %v1571, 125
        %v1601 = vpop.permute.xlu0 %1600
        %1602 = vrot.lane.b32.xlu0 %v1572, 125
        %v1603 = vpop.permute.xlu0 %1602
        %1604 = vrot.lane.b32.xlu0 %v1573, 125
        %v1605 = vpop.permute.xlu0 %1604
        %1606 = vrot.lane.b32.xlu0 %v1574, 125
        %v1607 = vpop.permute.xlu0 %1606
        %1608 = vrot.lane.b32.xlu0 %v1575, 125
        %v1609 = vpop.permute.xlu0 %1608
        %1610 = vrot.lane.b32.xlu0 %v1576, 125
        %v1611 = vpop.permute.xlu0 %1610
        %1612 = vrot.lane.b32.xlu0 %v1577, 125
        %v1613 = vpop.permute.xlu0 %1612
        %v1626 = vadd.f32 %v1534, %v1591
        %v1627 = vadd.f32 %v1535, %v1593
        %v1628 = vadd.f32 %v1536, %v1595
        %v1629 = vadd.f32 %v1537, %v1597
        %v1630 = vadd.f32 %v1538, %v1599
        %v1631 = vadd.f32 %v1539, %v1601
        %v1632 = vadd.f32 %v1540, %v1603
        %v1633 = vadd.f32 %v1541, %v1605
        %v1634 = vadd.f32 %v1542, %v1607
        %v1635 = vadd.f32 %v1543, %v1609
        %v1636 = vadd.f32 %v1544, %v1611
        %v1637 = vadd.f32 %v1545, %v1613
        %1638 = vrot.lane.b32.xlu0 %v1318, 124
        %v1639 = vpop.permute.xlu0 %1638
        %1640 = vrot.lane.b32.xlu0 %v1319, 124
        %v1641 = vpop.permute.xlu0 %1640
        %1642 = vrot.lane.b32.xlu0 %v1320, 124
        %v1643 = vpop.permute.xlu0 %1642
        %1644 = vrot.lane.b32.xlu0 %v1321, 124
        %v1645 = vpop.permute.xlu0 %1644
        %s1646 = vtos %v1639
        %v1647 = vstv %s1646
        %s1649 = vtos %v1641
        %v1650 = vstv %s1649
        %s1652 = vtos %v1643
        %v1653 = vstv %s1652
        %s1655 = vtos %v1645
        %v1656 = vstv %s1655
        %v1658 = vmul.f32 %v296, %v1647
        %v1659 = vmul.f32 %v297, %v1647
        %v1660 = vmul.f32 %v298, %v1647
        %v1661 = vmul.f32 %v299, %v1650
        %v1662 = vmul.f32 %v300, %v1650
        %v1663 = vmul.f32 %v301, %v1650
        %v1664 = vmul.f32 %v302, %v1653
        %v1665 = vmul.f32 %v303, %v1653
        %v1666 = vmul.f32 %v304, %v1653
        %v1667 = vmul.f32 %v305, %v1656
        %v1668 = vmul.f32 %v306, %v1656
        %v1669 = vmul.f32 %v307, %v1656
        %1682 = vrot.lane.b32.xlu0 %v1658, 124
        %v1683 = vpop.permute.xlu0 %1682
        %1684 = vrot.lane.b32.xlu0 %v1659, 124
        %v1685 = vpop.permute.xlu0 %1684
        %1686 = vrot.lane.b32.xlu0 %v1660, 124
        %v1687 = vpop.permute.xlu0 %1686
        %1688 = vrot.lane.b32.xlu0 %v1661, 124
        %v1689 = vpop.permute.xlu0 %1688
        %1690 = vrot.lane.b32.xlu0 %v1662, 124
        %v1691 = vpop.permute.xlu0 %1690
        %1692 = vrot.lane.b32.xlu0 %v1663, 124
        %v1693 = vpop.permute.xlu0 %1692
        %1694 = vrot.lane.b32.xlu0 %v1664, 124
        %v1695 = vpop.permute.xlu0 %1694
        %1696 = vrot.lane.b32.xlu0 %v1665, 124
        %v1697 = vpop.permute.xlu0 %1696
        %1698 = vrot.lane.b32.xlu0 %v1666, 124
        %v1699 = vpop.permute.xlu0 %1698
        %1700 = vrot.lane.b32.xlu0 %v1667, 124
        %v1701 = vpop.permute.xlu0 %1700
        %1702 = vrot.lane.b32.xlu0 %v1668, 124
        %v1703 = vpop.permute.xlu0 %1702
        %1704 = vrot.lane.b32.xlu0 %v1669, 124
        %v1705 = vpop.permute.xlu0 %1704
        %v1718 = vadd.f32 %v1626, %v1683
        %v1719 = vadd.f32 %v1627, %v1685
        %v1720 = vadd.f32 %v1628, %v1687
        %v1721 = vadd.f32 %v1629, %v1689
        %v1722 = vadd.f32 %v1630, %v1691
        %v1723 = vadd.f32 %v1631, %v1693
        %v1724 = vadd.f32 %v1632, %v1695
        %v1725 = vadd.f32 %v1633, %v1697
        %v1726 = vadd.f32 %v1634, %v1699
        %v1727 = vadd.f32 %v1635, %v1701
        %v1728 = vadd.f32 %v1636, %v1703
        %v1729 = vadd.f32 %v1637, %v1705
        %v1730 = vld [vmem:[%s287 + $0x1] sm:$0x1]
        %v1731 = vld [vmem:[%s287 + $0x9] sm:$0x1]
        %v1732 = vld [vmem:[%s287 + $0x11] sm:$0x1]
        %v1733 = vld [vmem:[%s287 + $0x19] sm:$0x1]
        %s1735 = vtos %v1730
        %v1736 = vstv %s1735
        %s1739 = vtos %v1731
        %v1740 = vstv %s1739
        %s1743 = vtos %v1732
        %v1744 = vstv %s1743
        %s1747 = vtos %v1733
        %v1748 = vstv %s1747
        %v1750 = vmul.f32 %v296, %v1736
        %v1751 = vmul.f32 %v297, %v1736
        %v1752 = vmul.f32 %v298, %v1736
        %v1753 = vmul.f32 %v299, %v1740
        %v1754 = vmul.f32 %v300, %v1740
        %v1755 = vmul.f32 %v301, %v1740
        %v1756 = vmul.f32 %v302, %v1744
        %v1757 = vmul.f32 %v303, %v1744
        %v1758 = vmul.f32 %v304, %v1744
        %v1759 = vmul.f32 %v305, %v1748
        %v1760 = vmul.f32 %v306, %v1748
        %v1761 = vmul.f32 %v307, %v1748
        %v1774 = vrot.slane %v1750, 1
        %v1775 = vrot.slane %v1751, 1
        %v1776 = vsel %vm580, %v1774, %v1775
        %v1777 = vrot.slane %v1752, 1
        %v1778 = vsel %vm580, %v1775, %v1777
        %v1779 = vrot.slane %v1753, 1
        %v1780 = vrot.slane %v1754, 1
        %v1781 = vsel %vm580, %v1779, %v1780
        %v1782 = vrot.slane %v1755, 1
        %v1783 = vsel %vm580, %v1780, %v1782
        %v1784 = vrot.slane %v1756, 1
        %v1785 = vrot.slane %v1757, 1
        %v1786 = vsel %vm580, %v1784, %v1785
        %v1787 = vrot.slane %v1758, 1
        %v1788 = vsel %vm580, %v1785, %v1787
        %v1789 = vrot.slane %v1759, 1
        %v1790 = vrot.slane %v1760, 1
        %v1791 = vsel %vm580, %v1789, %v1790
        %v1792 = vrot.slane %v1761, 1
        %v1793 = vsel %vm580, %v1790, %v1792
        %v1806 = vadd.f32 %v1718, %v1776
        %v1807 = vadd.f32 %v1719, %v1778
        %v1808 = vadd.f32 %v1720, %v1777
        %v1809 = vadd.f32 %v1721, %v1781
        %v1810 = vadd.f32 %v1722, %v1783
        %v1811 = vadd.f32 %v1723, %v1782
        %v1812 = vadd.f32 %v1724, %v1786
        %v1813 = vadd.f32 %v1725, %v1788
        %v1814 = vadd.f32 %v1726, %v1787
        %v1815 = vadd.f32 %v1727, %v1791
        %v1816 = vadd.f32 %v1728, %v1793
        %v1817 = vadd.f32 %v1729, %v1792
        %1818 = vrot.lane.b32.xlu0 %v1730, 127
        %v1819 = vpop.permute.xlu0 %1818
        %1820 = vrot.lane.b32.xlu0 %v1731, 127
        %v1821 = vpop.permute.xlu0 %1820
        %1822 = vrot.lane.b32.xlu0 %v1732, 127
        %v1823 = vpop.permute.xlu0 %1822
        %1824 = vrot.lane.b32.xlu0 %v1733, 127
        %v1825 = vpop.permute.xlu0 %1824
        %s1826 = vtos %v1819
        %v1827 = vstv %s1826
        %s1829 = vtos %v1821
        %v1830 = vstv %s1829
        %s1832 = vtos %v1823
        %v1833 = vstv %s1832
        %s1835 = vtos %v1825
        %v1836 = vstv %s1835
        %v1838 = vmul.f32 %v296, %v1827
        %v1839 = vmul.f32 %v297, %v1827
        %v1840 = vmul.f32 %v298, %v1827
        %v1841 = vmul.f32 %v299, %v1830
        %v1842 = vmul.f32 %v300, %v1830
        %v1843 = vmul.f32 %v301, %v1830
        %v1844 = vmul.f32 %v302, %v1833
        %v1845 = vmul.f32 %v303, %v1833
        %v1846 = vmul.f32 %v304, %v1833
        %v1847 = vmul.f32 %v305, %v1836
        %v1848 = vmul.f32 %v306, %v1836
        %v1849 = vmul.f32 %v307, %v1836
        %v1862 = vrot.slane %v1838, 1
        %v1863 = vrot.slane %v1839, 1
        %v1864 = vsel %vm580, %v1862, %v1863
        %v1865 = vrot.slane %v1840, 1
        %v1866 = vsel %vm580, %v1863, %v1865
        %v1867 = vrot.slane %v1841, 1
        %v1868 = vrot.slane %v1842, 1
        %v1869 = vsel %vm580, %v1867, %v1868
        %v1870 = vrot.slane %v1843, 1
        %v1871 = vsel %vm580, %v1868, %v1870
        %v1872 = vrot.slane %v1844, 1
        %v1873 = vrot.slane %v1845, 1
        %v1874 = vsel %vm580, %v1872, %v1873
        %v1875 = vrot.slane %v1846, 1
        %v1876 = vsel %vm580, %v1873, %v1875
        %v1877 = vrot.slane %v1847, 1
        %v1878 = vrot.slane %v1848, 1
        %v1879 = vsel %vm580, %v1877, %v1878
        %v1880 = vrot.slane %v1849, 1
        %v1881 = vsel %vm580, %v1878, %v1880
        %1882 = vrot.lane.b32.xlu0 %v1864, 127
        %v1883 = vpop.permute.xlu0 %1882
        %1884 = vrot.lane.b32.xlu0 %v1866, 127
        %v1885 = vpop.permute.xlu0 %1884
        %1886 = vrot.lane.b32.xlu0 %v1865, 127
        %v1887 = vpop.permute.xlu0 %1886
        %1888 = vrot.lane.b32.xlu0 %v1869, 127
        %v1889 = vpop.permute.xlu0 %1888
        %1890 = vrot.lane.b32.xlu0 %v1871, 127
        %v1891 = vpop.permute.xlu0 %1890
        %1892 = vrot.lane.b32.xlu0 %v1870, 127
        %v1893 = vpop.permute.xlu0 %1892
        %1894 = vrot.lane.b32.xlu0 %v1874, 127
        %v1895 = vpop.permute.xlu0 %1894
        %1896 = vrot.lane.b32.xlu0 %v1876, 127
        %v1897 = vpop.permute.xlu0 %1896
        %1898 = vrot.lane.b32.xlu0 %v1875, 127
        %v1899 = vpop.permute.xlu0 %1898
        %1900 = vrot.lane.b32.xlu0 %v1879, 127
        %v1901 = vpop.permute.xlu0 %1900
        %1902 = vrot.lane.b32.xlu0 %v1881, 127
        %v1903 = vpop.permute.xlu0 %1902
        %1904 = vrot.lane.b32.xlu0 %v1880, 127
        %v1905 = vpop.permute.xlu0 %1904
        %v1918 = vadd.f32 %v1806, %v1883
        %v1919 = vadd.f32 %v1807, %v1885
        %v1920 = vadd.f32 %v1808, %v1887
        %v1921 = vadd.f32 %v1809, %v1889
        %v1922 = vadd.f32 %v1810, %v1891
        %v1923 = vadd.f32 %v1811, %v1893
        %v1924 = vadd.f32 %v1812, %v1895
        %v1925 = vadd.f32 %v1813, %v1897
        %v1926 = vadd.f32 %v1814, %v1899
        %v1927 = vadd.f32 %v1815, %v1901
        %v1928 = vadd.f32 %v1816, %v1903
        %v1929 = vadd.f32 %v1817, %v1905
        %1930 = vrot.lane.b32.xlu0 %v1730, 126
        %v1931 = vpop.permute.xlu0 %1930
        %1932 = vrot.lane.b32.xlu0 %v1731, 126
        %v1933 = vpop.permute.xlu0 %1932
        %1934 = vrot.lane.b32.xlu0 %v1732, 126
        %v1935 = vpop.permute.xlu0 %1934
        %1936 = vrot.lane.b32.xlu0 %v1733, 126
        %v1937 = vpop.permute.xlu0 %1936
        %s1938 = vtos %v1931
        %v1939 = vstv %s1938
        %s1941 = vtos %v1933
        %v1942 = vstv %s1941
        %s1944 = vtos %v1935
        %v1945 = vstv %s1944
        %s1947 = vtos %v1937
        %v1948 = vstv %s1947
        %v1950 = vmul.f32 %v296, %v1939
        %v1951 = vmul.f32 %v297, %v1939
        %v1952 = vmul.f32 %v298, %v1939
        %v1953 = vmul.f32 %v299, %v1942
        %v1954 = vmul.f32 %v300, %v1942
        %v1955 = vmul.f32 %v301, %v1942
        %v1956 = vmul.f32 %v302, %v1945
        %v1957 = vmul.f32 %v303, %v1945
        %v1958 = vmul.f32 %v304, %v1945
        %v1959 = vmul.f32 %v305, %v1948
        %v1960 = vmul.f32 %v306, %v1948
        %v1961 = vmul.f32 %v307, %v1948
        %v1974 = vrot.slane %v1950, 1
        %v1975 = vrot.slane %v1951, 1
        %v1976 = vsel %vm580, %v1974, %v1975
        %v1977 = vrot.slane %v1952, 1
        %v1978 = vsel %vm580, %v1975, %v1977
        %v1979 = vrot.slane %v1953, 1
        %v1980 = vrot.slane %v1954, 1
        %v1981 = vsel %vm580, %v1979, %v1980
        %v1982 = vrot.slane %v1955, 1
        %v1983 = vsel %vm580, %v1980, %v1982
        %v1984 = vrot.slane %v1956, 1
        %v1985 = vrot.slane %v1957, 1
        %v1986 = vsel %vm580, %v1984, %v1985
        %v1987 = vrot.slane %v1958, 1
        %v1988 = vsel %vm580, %v1985, %v1987
        %v1989 = vrot.slane %v1959, 1
        %v1990 = vrot.slane %v1960, 1
        %v1991 = vsel %vm580, %v1989, %v1990
        %v1992 = vrot.slane %v1961, 1
        %v1993 = vsel %vm580, %v1990, %v1992
        %1994 = vrot.lane.b32.xlu0 %v1976, 126
        %v1995 = vpop.permute.xlu0 %1994
        %1996 = vrot.lane.b32.xlu0 %v1978, 126
        %v1997 = vpop.permute.xlu0 %1996
        %1998 = vrot.lane.b32.xlu0 %v1977, 126
        %v1999 = vpop.permute.xlu0 %1998
        %2000 = vrot.lane.b32.xlu0 %v1981, 126
        %v2001 = vpop.permute.xlu0 %2000
        %2002 = vrot.lane.b32.xlu0 %v1983, 126
        %v2003 = vpop.permute.xlu0 %2002
        %2004 = vrot.lane.b32.xlu0 %v1982, 126
        %v2005 = vpop.permute.xlu0 %2004
        %2006 = vrot.lane.b32.xlu0 %v1986, 126
        %v2007 = vpop.permute.xlu0 %2006
        %2008 = vrot.lane.b32.xlu0 %v1988, 126
        %v2009 = vpop.permute.xlu0 %2008
        %2010 = vrot.lane.b32.xlu0 %v1987, 126
        %v2011 = vpop.permute.xlu0 %2010
        %2012 = vrot.lane.b32.xlu0 %v1991, 126
        %v2013 = vpop.permute.xlu0 %2012
        %2014 = vrot.lane.b32.xlu0 %v1993, 126
        %v2015 = vpop.permute.xlu0 %2014
        %2016 = vrot.lane.b32.xlu0 %v1992, 126
        %v2017 = vpop.permute.xlu0 %2016
        %v2030 = vadd.f32 %v1918, %v1995
        %v2031 = vadd.f32 %v1919, %v1997
        %v2032 = vadd.f32 %v1920, %v1999
        %v2033 = vadd.f32 %v1921, %v2001
        %v2034 = vadd.f32 %v1922, %v2003
        %v2035 = vadd.f32 %v1923, %v2005
        %v2036 = vadd.f32 %v1924, %v2007
        %v2037 = vadd.f32 %v1925, %v2009
        %v2038 = vadd.f32 %v1926, %v2011
        %v2039 = vadd.f32 %v1927, %v2013
        %v2040 = vadd.f32 %v1928, %v2015
        %v2041 = vadd.f32 %v1929, %v2017
        %2042 = vrot.lane.b32.xlu0 %v1730, 125
        %v2043 = vpop.permute.xlu0 %2042
        %2044 = vrot.lane.b32.xlu0 %v1731, 125
        %v2045 = vpop.permute.xlu0 %2044
        %2046 = vrot.lane.b32.xlu0 %v1732, 125
        %v2047 = vpop.permute.xlu0 %2046
        %2048 = vrot.lane.b32.xlu0 %v1733, 125
        %v2049 = vpop.permute.xlu0 %2048
        %s2050 = vtos %v2043
        %v2051 = vstv %s2050
        %s2053 = vtos %v2045
        %v2054 = vstv %s2053
        %s2056 = vtos %v2047
        %v2057 = vstv %s2056
        %s2059 = vtos %v2049
        %v2060 = vstv %s2059
        %v2062 = vmul.f32 %v296, %v2051
        %v2063 = vmul.f32 %v297, %v2051
        %v2064 = vmul.f32 %v298, %v2051
        %v2065 = vmul.f32 %v299, %v2054
        %v2066 = vmul.f32 %v300, %v2054
        %v2067 = vmul.f32 %v301, %v2054
        %v2068 = vmul.f32 %v302, %v2057
        %v2069 = vmul.f32 %v303, %v2057
        %v2070 = vmul.f32 %v304, %v2057
        %v2071 = vmul.f32 %v305, %v2060
        %v2072 = vmul.f32 %v306, %v2060
        %v2073 = vmul.f32 %v307, %v2060
        %v2086 = vrot.slane %v2062, 1
        %v2087 = vrot.slane %v2063, 1
        %v2088 = vsel %vm580, %v2086, %v2087
        %v2089 = vrot.slane %v2064, 1
        %v2090 = vsel %vm580, %v2087, %v2089
        %v2091 = vrot.slane %v2065, 1
        %v2092 = vrot.slane %v2066, 1
        %v2093 = vsel %vm580, %v2091, %v2092
        %v2094 = vrot.slane %v2067, 1
        %v2095 = vsel %vm580, %v2092, %v2094
        %v2096 = vrot.slane %v2068, 1
        %v2097 = vrot.slane %v2069, 1
        %v2098 = vsel %vm580, %v2096, %v2097
        %v2099 = vrot.slane %v2070, 1
        %v2100 = vsel %vm580, %v2097, %v2099
        %v2101 = vrot.slane %v2071, 1
        %v2102 = vrot.slane %v2072, 1
        %v2103 = vsel %vm580, %v2101, %v2102
        %v2104 = vrot.slane %v2073, 1
        %v2105 = vsel %vm580, %v2102, %v2104
        %2106 = vrot.lane.b32.xlu0 %v2088, 125
        %v2107 = vpop.permute.xlu0 %2106
        %2108 = vrot.lane.b32.xlu0 %v2090, 125
        %v2109 = vpop.permute.xlu0 %2108
        %2110 = vrot.lane.b32.xlu0 %v2089, 125
        %v2111 = vpop.permute.xlu0 %2110
        %2112 = vrot.lane.b32.xlu0 %v2093, 125
        %v2113 = vpop.permute.xlu0 %2112
        %2114 = vrot.lane.b32.xlu0 %v2095, 125
        %v2115 = vpop.permute.xlu0 %2114
        %2116 = vrot.lane.b32.xlu0 %v2094, 125
        %v2117 = vpop.permute.xlu0 %2116
        %2118 = vrot.lane.b32.xlu0 %v2098, 125
        %v2119 = vpop.permute.xlu0 %2118
        %2120 = vrot.lane.b32.xlu0 %v2100, 125
        %v2121 = vpop.permute.xlu0 %2120
        %2122 = vrot.lane.b32.xlu0 %v2099, 125
        %v2123 = vpop.permute.xlu0 %2122
        %2124 = vrot.lane.b32.xlu0 %v2103, 125
        %v2125 = vpop.permute.xlu0 %2124
        %2126 = vrot.lane.b32.xlu0 %v2105, 125
        %v2127 = vpop.permute.xlu0 %2126
        %2128 = vrot.lane.b32.xlu0 %v2104, 125
        %v2129 = vpop.permute.xlu0 %2128
        %v2142 = vadd.f32 %v2030, %v2107
        %v2143 = vadd.f32 %v2031, %v2109
        %v2144 = vadd.f32 %v2032, %v2111
        %v2145 = vadd.f32 %v2033, %v2113
        %v2146 = vadd.f32 %v2034, %v2115
        %v2147 = vadd.f32 %v2035, %v2117
        %v2148 = vadd.f32 %v2036, %v2119
        %v2149 = vadd.f32 %v2037, %v2121
        %v2150 = vadd.f32 %v2038, %v2123
        %v2151 = vadd.f32 %v2039, %v2125
        %v2152 = vadd.f32 %v2040, %v2127
        %v2153 = vadd.f32 %v2041, %v2129
        %2154 = vrot.lane.b32.xlu0 %v1730, 124
        %v2155 = vpop.permute.xlu0 %2154
        %2156 = vrot.lane.b32.xlu0 %v1731, 124
        %v2157 = vpop.permute.xlu0 %2156
        %2158 = vrot.lane.b32.xlu0 %v1732, 124
        %v2159 = vpop.permute.xlu0 %2158
        %2160 = vrot.lane.b32.xlu0 %v1733, 124
        %v2161 = vpop.permute.xlu0 %2160
        %s2162 = vtos %v2155
        %v2163 = vstv %s2162
        %s2165 = vtos %v2157
        %v2166 = vstv %s2165
        %s2168 = vtos %v2159
        %v2169 = vstv %s2168
        %s2171 = vtos %v2161
        %v2172 = vstv %s2171
        %v2174 = vmul.f32 %v296, %v2163
        %v2175 = vmul.f32 %v297, %v2163
        %v2176 = vmul.f32 %v298, %v2163
        %v2177 = vmul.f32 %v299, %v2166
        %v2178 = vmul.f32 %v300, %v2166
        %v2179 = vmul.f32 %v301, %v2166
        %v2180 = vmul.f32 %v302, %v2169
        %v2181 = vmul.f32 %v303, %v2169
        %v2182 = vmul.f32 %v304, %v2169
        %v2183 = vmul.f32 %v305, %v2172
        %v2184 = vmul.f32 %v306, %v2172
        %v2185 = vmul.f32 %v307, %v2172
        %v2198 = vrot.slane %v2174, 1
        %v2199 = vrot.slane %v2175, 1
        %v2200 = vsel %vm580, %v2198, %v2199
        %v2201 = vrot.slane %v2176, 1
        %v2202 = vsel %vm580, %v2199, %v2201
        %v2203 = vrot.slane %v2177, 1
        %v2204 = vrot.slane %v2178, 1
        %v2205 = vsel %vm580, %v2203, %v2204
        %v2206 = vrot.slane %v2179, 1
        %v2207 = vsel %vm580, %v2204, %v2206
        %v2208 = vrot.slane %v2180, 1
        %v2209 = vrot.slane %v2181, 1
        %v2210 = vsel %vm580, %v2208, %v2209
        %v2211 = vrot.slane %v2182, 1
        %v2212 = vsel %vm580, %v2209, %v2211
        %v2213 = vrot.slane %v2183, 1
        %v2214 = vrot.slane %v2184, 1
        %v2215 = vsel %vm580, %v2213, %v2214
        %v2216 = vrot.slane %v2185, 1
        %v2217 = vsel %vm580, %v2214, %v2216
        %2218 = vrot.lane.b32.xlu0 %v2200, 124
        %v2219 = vpop.permute.xlu0 %2218
        %2220 = vrot.lane.b32.xlu0 %v2202, 124
        %v2221 = vpop.permute.xlu0 %2220
        %2222 = vrot.lane.b32.xlu0 %v2201, 124
        %v2223 = vpop.permute.xlu0 %2222
        %2224 = vrot.lane.b32.xlu0 %v2205, 124
        %v2225 = vpop.permute.xlu0 %2224
        %2226 = vrot.lane.b32.xlu0 %v2207, 124
        %v2227 = vpop.permute.xlu0 %2226
        %2228 = vrot.lane.b32.xlu0 %v2206, 124
        %v2229 = vpop.permute.xlu0 %2228
        %2230 = vrot.lane.b32.xlu0 %v2210, 124
        %v2231 = vpop.permute.xlu0 %2230
        %2232 = vrot.lane.b32.xlu0 %v2212, 124
        %v2233 = vpop.permute.xlu0 %2232
        %2234 = vrot.lane.b32.xlu0 %v2211, 124
        %v2235 = vpop.permute.xlu0 %2234
        %2236 = vrot.lane.b32.xlu0 %v2215, 124
        %v2237 = vpop.permute.xlu0 %2236
        %2238 = vrot.lane.b32.xlu0 %v2217, 124
        %v2239 = vpop.permute.xlu0 %2238
        %2240 = vrot.lane.b32.xlu0 %v2216, 124
        %v2241 = vpop.permute.xlu0 %2240
        %v2254 = vadd.f32 %v2142, %v2219
        %v2255 = vadd.f32 %v2143, %v2221
        %v2256 = vadd.f32 %v2144, %v2223
        %v2257 = vadd.f32 %v2145, %v2225
        %v2258 = vadd.f32 %v2146, %v2227
        %v2259 = vadd.f32 %v2147, %v2229
        %v2260 = vadd.f32 %v2148, %v2231
        %v2261 = vadd.f32 %v2149, %v2233
        %v2262 = vadd.f32 %v2150, %v2235
        %v2263 = vadd.f32 %v2151, %v2237
        %v2264 = vadd.f32 %v2152, %v2239
        %v2265 = vadd.f32 %v2153, %v2241
        %v2266 = vld [vmem:[%s287 + $0x2] sm:$0x1]
        %v2267 = vld [vmem:[%s287 + $0xa] sm:$0x1]
        %v2268 = vld [vmem:[%s287 + $0x12] sm:$0x1]
        %v2269 = vld [vmem:[%s287 + $0x1a] sm:$0x1]
        %s2271 = vtos %v2266
        %v2272 = vstv %s2271
        %s2275 = vtos %v2267
        %v2276 = vstv %s2275
        %s2279 = vtos %v2268
        %v2280 = vstv %s2279
        %s2283 = vtos %v2269
        %v2284 = vstv %s2283
        %v2286 = vmul.f32 %v296, %v2272
        %v2287 = vmul.f32 %v297, %v2272
        %v2288 = vmul.f32 %v298, %v2272
        %v2289 = vmul.f32 %v299, %v2276
        %v2290 = vmul.f32 %v300, %v2276
        %v2291 = vmul.f32 %v301, %v2276
        %v2292 = vmul.f32 %v302, %v2280
        %v2293 = vmul.f32 %v303, %v2280
        %v2294 = vmul.f32 %v304, %v2280
        %v2295 = vmul.f32 %v305, %v2284
        %v2296 = vmul.f32 %v306, %v2284
        %v2297 = vmul.f32 %v307, %v2284
        %v2310 = vrot.slane %v2286, 2
        %v2311 = vrot.slane %v2287, 2
        %v2312 = vsel %vm893, %v2310, %v2311
        %v2313 = vrot.slane %v2288, 2
        %v2314 = vsel %vm893, %v2311, %v2313
        %v2315 = vrot.slane %v2289, 2
        %v2316 = vrot.slane %v2290, 2
        %v2317 = vsel %vm893, %v2315, %v2316
        %v2318 = vrot.slane %v2291, 2
        %v2319 = vsel %vm893, %v2316, %v2318
        %v2320 = vrot.slane %v2292, 2
        %v2321 = vrot.slane %v2293, 2
        %v2322 = vsel %vm893, %v2320, %v2321
        %v2323 = vrot.slane %v2294, 2
        %v2324 = vsel %vm893, %v2321, %v2323
        %v2325 = vrot.slane %v2295, 2
        %v2326 = vrot.slane %v2296, 2
        %v2327 = vsel %vm893, %v2325, %v2326
        %v2328 = vrot.slane %v2297, 2
        %v2329 = vsel %vm893, %v2326, %v2328
        %v2342 = vadd.f32 %v2254, %v2312
        %v2343 = vadd.f32 %v2255, %v2314
        %v2344 = vadd.f32 %v2256, %v2313
        %v2345 = vadd.f32 %v2257, %v2317
        %v2346 = vadd.f32 %v2258, %v2319
        %v2347 = vadd.f32 %v2259, %v2318
        %v2348 = vadd.f32 %v2260, %v2322
        %v2349 = vadd.f32 %v2261, %v2324
        %v2350 = vadd.f32 %v2262, %v2323
        %v2351 = vadd.f32 %v2263, %v2327
        %v2352 = vadd.f32 %v2264, %v2329
        %v2353 = vadd.f32 %v2265, %v2328
        %2354 = vrot.lane.b32.xlu0 %v2266, 127
        %v2355 = vpop.permute.xlu0 %2354
        %2356 = vrot.lane.b32.xlu0 %v2267, 127
        %v2357 = vpop.permute.xlu0 %2356
        %2358 = vrot.lane.b32.xlu0 %v2268, 127
        %v2359 = vpop.permute.xlu0 %2358
        %2360 = vrot.lane.b32.xlu0 %v2269, 127
        %v2361 = vpop.permute.xlu0 %2360
        %s2362 = vtos %v2355
        %v2363 = vstv %s2362
        %s2365 = vtos %v2357
        %v2366 = vstv %s2365
        %s2368 = vtos %v2359
        %v2369 = vstv %s2368
        %s2371 = vtos %v2361
        %v2372 = vstv %s2371
        %v2374 = vmul.f32 %v296, %v2363
        %v2375 = vmul.f32 %v297, %v2363
        %v2376 = vmul.f32 %v298, %v2363
        %v2377 = vmul.f32 %v299, %v2366
        %v2378 = vmul.f32 %v300, %v2366
        %v2379 = vmul.f32 %v301, %v2366
        %v2380 = vmul.f32 %v302, %v2369
        %v2381 = vmul.f32 %v303, %v2369
        %v2382 = vmul.f32 %v304, %v2369
        %v2383 = vmul.f32 %v305, %v2372
        %v2384 = vmul.f32 %v306, %v2372
        %v2385 = vmul.f32 %v307, %v2372
        %v2398 = vrot.slane %v2374, 2
        %v2399 = vrot.slane %v2375, 2
        %v2400 = vsel %vm893, %v2398, %v2399
        %v2401 = vrot.slane %v2376, 2
        %v2402 = vsel %vm893, %v2399, %v2401
        %v2403 = vrot.slane %v2377, 2
        %v2404 = vrot.slane %v2378, 2
        %v2405 = vsel %vm893, %v2403, %v2404
        %v2406 = vrot.slane %v2379, 2
        %v2407 = vsel %vm893, %v2404, %v2406
        %v2408 = vrot.slane %v2380, 2
        %v2409 = vrot.slane %v2381, 2
        %v2410 = vsel %vm893, %v2408, %v2409
        %v2411 = vrot.slane %v2382, 2
        %v2412 = vsel %vm893, %v2409, %v2411
        %v2413 = vrot.slane %v2383, 2
        %v2414 = vrot.slane %v2384, 2
        %v2415 = vsel %vm893, %v2413, %v2414
        %v2416 = vrot.slane %v2385, 2
        %v2417 = vsel %vm893, %v2414, %v2416
        %2418 = vrot.lane.b32.xlu0 %v2400, 127
        %v2419 = vpop.permute.xlu0 %2418
        %2420 = vrot.lane.b32.xlu0 %v2402, 127
        %v2421 = vpop.permute.xlu0 %2420
        %2422 = vrot.lane.b32.xlu0 %v2401, 127
        %v2423 = vpop.permute.xlu0 %2422
        %2424 = vrot.lane.b32.xlu0 %v2405, 127
        %v2425 = vpop.permute.xlu0 %2424
        %2426 = vrot.lane.b32.xlu0 %v2407, 127
        %v2427 = vpop.permute.xlu0 %2426
        %2428 = vrot.lane.b32.xlu0 %v2406, 127
        %v2429 = vpop.permute.xlu0 %2428
        %2430 = vrot.lane.b32.xlu0 %v2410, 127
        %v2431 = vpop.permute.xlu0 %2430
        %2432 = vrot.lane.b32.xlu0 %v2412, 127
        %v2433 = vpop.permute.xlu0 %2432
        %2434 = vrot.lane.b32.xlu0 %v2411, 127
        %v2435 = vpop.permute.xlu0 %2434
        %2436 = vrot.lane.b32.xlu0 %v2415, 127
        %v2437 = vpop.permute.xlu0 %2436
        %2438 = vrot.lane.b32.xlu0 %v2417, 127
        %v2439 = vpop.permute.xlu0 %2438
        %2440 = vrot.lane.b32.xlu0 %v2416, 127
        %v2441 = vpop.permute.xlu0 %2440
        %v2454 = vadd.f32 %v2342, %v2419
        %v2455 = vadd.f32 %v2343, %v2421
        %v2456 = vadd.f32 %v2344, %v2423
        %v2457 = vadd.f32 %v2345, %v2425
        %v2458 = vadd.f32 %v2346, %v2427
        %v2459 = vadd.f32 %v2347, %v2429
        %v2460 = vadd.f32 %v2348, %v2431
        %v2461 = vadd.f32 %v2349, %v2433
        %v2462 = vadd.f32 %v2350, %v2435
        %v2463 = vadd.f32 %v2351, %v2437
        %v2464 = vadd.f32 %v2352, %v2439
        %v2465 = vadd.f32 %v2353, %v2441
        %2466 = vrot.lane.b32.xlu0 %v2266, 126
        %v2467 = vpop.permute.xlu0 %2466
        %2468 = vrot.lane.b32.xlu0 %v2267, 126
        %v2469 = vpop.permute.xlu0 %2468
        %2470 = vrot.lane.b32.xlu0 %v2268, 126
        %v2471 = vpop.permute.xlu0 %2470
        %2472 = vrot.lane.b32.xlu0 %v2269, 126
        %v2473 = vpop.permute.xlu0 %2472
        %s2474 = vtos %v2467
        %v2475 = vstv %s2474
        %s2477 = vtos %v2469
        %v2478 = vstv %s2477
        %s2480 = vtos %v2471
        %v2481 = vstv %s2480
        %s2483 = vtos %v2473
        %v2484 = vstv %s2483
        %v2486 = vmul.f32 %v296, %v2475
        %v2487 = vmul.f32 %v297, %v2475
        %v2488 = vmul.f32 %v298, %v2475
        %v2489 = vmul.f32 %v299, %v2478
        %v2490 = vmul.f32 %v300, %v2478
        %v2491 = vmul.f32 %v301, %v2478
        %v2492 = vmul.f32 %v302, %v2481
        %v2493 = vmul.f32 %v303, %v2481
        %v2494 = vmul.f32 %v304, %v2481
        %v2495 = vmul.f32 %v305, %v2484
        %v2496 = vmul.f32 %v306, %v2484
        %v2497 = vmul.f32 %v307, %v2484
        %v2510 = vrot.slane %v2486, 2
        %v2511 = vrot.slane %v2487, 2
        %v2512 = vsel %vm893, %v2510, %v2511
        %v2513 = vrot.slane %v2488, 2
        %v2514 = vsel %vm893, %v2511, %v2513
        %v2515 = vrot.slane %v2489, 2
        %v2516 = vrot.slane %v2490, 2
        %v2517 = vsel %vm893, %v2515, %v2516
        %v2518 = vrot.slane %v2491, 2
        %v2519 = vsel %vm893, %v2516, %v2518
        %v2520 = vrot.slane %v2492, 2
        %v2521 = vrot.slane %v2493, 2
        %v2522 = vsel %vm893, %v2520, %v2521
        %v2523 = vrot.slane %v2494, 2
        %v2524 = vsel %vm893, %v2521, %v2523
        %v2525 = vrot.slane %v2495, 2
        %v2526 = vrot.slane %v2496, 2
        %v2527 = vsel %vm893, %v2525, %v2526
        %v2528 = vrot.slane %v2497, 2
        %v2529 = vsel %vm893, %v2526, %v2528
        %2530 = vrot.lane.b32.xlu0 %v2512, 126
        %v2531 = vpop.permute.xlu0 %2530
        %2532 = vrot.lane.b32.xlu0 %v2514, 126
        %v2533 = vpop.permute.xlu0 %2532
        %2534 = vrot.lane.b32.xlu0 %v2513, 126
        %v2535 = vpop.permute.xlu0 %2534
        %2536 = vrot.lane.b32.xlu0 %v2517, 126
        %v2537 = vpop.permute.xlu0 %2536
        %2538 = vrot.lane.b32.xlu0 %v2519, 126
        %v2539 = vpop.permute.xlu0 %2538
        %2540 = vrot.lane.b32.xlu0 %v2518, 126
        %v2541 = vpop.permute.xlu0 %2540
        %2542 = vrot.lane.b32.xlu0 %v2522, 126
        %v2543 = vpop.permute.xlu0 %2542
        %2544 = vrot.lane.b32.xlu0 %v2524, 126
        %v2545 = vpop.permute.xlu0 %2544
        %2546 = vrot.lane.b32.xlu0 %v2523, 126
        %v2547 = vpop.permute.xlu0 %2546
        %2548 = vrot.lane.b32.xlu0 %v2527, 126
        %v2549 = vpop.permute.xlu0 %2548
        %2550 = vrot.lane.b32.xlu0 %v2529, 126
        %v2551 = vpop.permute.xlu0 %2550
        %2552 = vrot.lane.b32.xlu0 %v2528, 126
        %v2553 = vpop.permute.xlu0 %2552
        %v2566 = vadd.f32 %v2454, %v2531
        %v2567 = vadd.f32 %v2455, %v2533
        %v2568 = vadd.f32 %v2456, %v2535
        %v2569 = vadd.f32 %v2457, %v2537
        %v2570 = vadd.f32 %v2458, %v2539
        %v2571 = vadd.f32 %v2459, %v2541
        %v2572 = vadd.f32 %v2460, %v2543
        %v2573 = vadd.f32 %v2461, %v2545
        %v2574 = vadd.f32 %v2462, %v2547
        %v2575 = vadd.f32 %v2463, %v2549
        %v2576 = vadd.f32 %v2464, %v2551
        %v2577 = vadd.f32 %v2465, %v2553
        %2578 = vrot.lane.b32.xlu0 %v2266, 125
        %v2579 = vpop.permute.xlu0 %2578
        %2580 = vrot.lane.b32.xlu0 %v2267, 125
        %v2581 = vpop.permute.xlu0 %2580
        %2582 = vrot.lane.b32.xlu0 %v2268, 125
        %v2583 = vpop.permute.xlu0 %2582
        %2584 = vrot.lane.b32.xlu0 %v2269, 125
        %v2585 = vpop.permute.xlu0 %2584
        %s2586 = vtos %v2579
        %v2587 = vstv %s2586
        %s2589 = vtos %v2581
        %v2590 = vstv %s2589
        %s2592 = vtos %v2583
        %v2593 = vstv %s2592
        %s2595 = vtos %v2585
        %v2596 = vstv %s2595
        %v2598 = vmul.f32 %v296, %v2587
        %v2599 = vmul.f32 %v297, %v2587
        %v2600 = vmul.f32 %v298, %v2587
        %v2601 = vmul.f32 %v299, %v2590
        %v2602 = vmul.f32 %v300, %v2590
        %v2603 = vmul.f32 %v301, %v2590
        %v2604 = vmul.f32 %v302, %v2593
        %v2605 = vmul.f32 %v303, %v2593
        %v2606 = vmul.f32 %v304, %v2593
        %v2607 = vmul.f32 %v305, %v2596
        %v2608 = vmul.f32 %v306, %v2596
        %v2609 = vmul.f32 %v307, %v2596
        %v2622 = vrot.slane %v2598, 2
        %v2623 = vrot.slane %v2599, 2
        %v2624 = vsel %vm893, %v2622, %v2623
        %v2625 = vrot.slane %v2600, 2
        %v2626 = vsel %vm893, %v2623, %v2625
        %v2627 = vrot.slane %v2601, 2
        %v2628 = vrot.slane %v2602, 2
        %v2629 = vsel %vm893, %v2627, %v2628
        %v2630 = vrot.slane %v2603, 2
        %v2631 = vsel %vm893, %v2628, %v2630
        %v2632 = vrot.slane %v2604, 2
        %v2633 = vrot.slane %v2605, 2
        %v2634 = vsel %vm893, %v2632, %v2633
        %v2635 = vrot.slane %v2606, 2
        %v2636 = vsel %vm893, %v2633, %v2635
        %v2637 = vrot.slane %v2607, 2
        %v2638 = vrot.slane %v2608, 2
        %v2639 = vsel %vm893, %v2637, %v2638
        %v2640 = vrot.slane %v2609, 2
        %v2641 = vsel %vm893, %v2638, %v2640
        %2642 = vrot.lane.b32.xlu0 %v2624, 125
        %v2643 = vpop.permute.xlu0 %2642
        %2644 = vrot.lane.b32.xlu0 %v2626, 125
        %v2645 = vpop.permute.xlu0 %2644
        %2646 = vrot.lane.b32.xlu0 %v2625, 125
        %v2647 = vpop.permute.xlu0 %2646
        %2648 = vrot.lane.b32.xlu0 %v2629, 125
        %v2649 = vpop.permute.xlu0 %2648
        %2650 = vrot.lane.b32.xlu0 %v2631, 125
        %v2651 = vpop.permute.xlu0 %2650
        %2652 = vrot.lane.b32.xlu0 %v2630, 125
        %v2653 = vpop.permute.xlu0 %2652
        %2654 = vrot.lane.b32.xlu0 %v2634, 125
        %v2655 = vpop.permute.xlu0 %2654
        %2656 = vrot.lane.b32.xlu0 %v2636, 125
        %v2657 = vpop.permute.xlu0 %2656
        %2658 = vrot.lane.b32.xlu0 %v2635, 125
        %v2659 = vpop.permute.xlu0 %2658
        %2660 = vrot.lane.b32.xlu0 %v2639, 125
        %v2661 = vpop.permute.xlu0 %2660
        %2662 = vrot.lane.b32.xlu0 %v2641, 125
        %v2663 = vpop.permute.xlu0 %2662
        %2664 = vrot.lane.b32.xlu0 %v2640, 125
        %v2665 = vpop.permute.xlu0 %2664
        %v2678 = vadd.f32 %v2566, %v2643
        %v2679 = vadd.f32 %v2567, %v2645
        %v2680 = vadd.f32 %v2568, %v2647
        %v2681 = vadd.f32 %v2569, %v2649
        %v2682 = vadd.f32 %v2570, %v2651
        %v2683 = vadd.f32 %v2571, %v2653
        %v2684 = vadd.f32 %v2572, %v2655
        %v2685 = vadd.f32 %v2573, %v2657
        %v2686 = vadd.f32 %v2574, %v2659
        %v2687 = vadd.f32 %v2575, %v2661
        %v2688 = vadd.f32 %v2576, %v2663
        %v2689 = vadd.f32 %v2577, %v2665
        %2690 = vrot.lane.b32.xlu0 %v2266, 124
        %v2691 = vpop.permute.xlu0 %2690
        %2692 = vrot.lane.b32.xlu0 %v2267, 124
        %v2693 = vpop.permute.xlu0 %2692
        %2694 = vrot.lane.b32.xlu0 %v2268, 124
        %v2695 = vpop.permute.xlu0 %2694
        %2696 = vrot.lane.b32.xlu0 %v2269, 124
        %v2697 = vpop.permute.xlu0 %2696
        %s2698 = vtos %v2691
        %v2699 = vstv %s2698
        %s2701 = vtos %v2693
        %v2702 = vstv %s2701
        %s2704 = vtos %v2695
        %v2705 = vstv %s2704
        %s2707 = vtos %v2697
        %v2708 = vstv %s2707
        %v2710 = vmul.f32 %v296, %v2699
        %v2711 = vmul.f32 %v297, %v2699
        %v2712 = vmul.f32 %v298, %v2699
        %v2713 = vmul.f32 %v299, %v2702
        %v2714 = vmul.f32 %v300, %v2702
        %v2715 = vmul.f32 %v301, %v2702
        %v2716 = vmul.f32 %v302, %v2705
        %v2717 = vmul.f32 %v303, %v2705
        %v2718 = vmul.f32 %v304, %v2705
        %v2719 = vmul.f32 %v305, %v2708
        %v2720 = vmul.f32 %v306, %v2708
        %v2721 = vmul.f32 %v307, %v2708
        %v2734 = vrot.slane %v2710, 2
        %v2735 = vrot.slane %v2711, 2
        %v2736 = vsel %vm893, %v2734, %v2735
        %v2737 = vrot.slane %v2712, 2
        %v2738 = vsel %vm893, %v2735, %v2737
        %v2739 = vrot.slane %v2713, 2
        %v2740 = vrot.slane %v2714, 2
        %v2741 = vsel %vm893, %v2739, %v2740
        %v2742 = vrot.slane %v2715, 2
        %v2743 = vsel %vm893, %v2740, %v2742
        %v2744 = vrot.slane %v2716, 2
        %v2745 = vrot.slane %v2717, 2
        %v2746 = vsel %vm893, %v2744, %v2745
        %v2747 = vrot.slane %v2718, 2
        %v2748 = vsel %vm893, %v2745, %v2747
        %v2749 = vrot.slane %v2719, 2
        %v2750 = vrot.slane %v2720, 2
        %v2751 = vsel %vm893, %v2749, %v2750
        %v2752 = vrot.slane %v2721, 2
        %v2753 = vsel %vm893, %v2750, %v2752
        %2754 = vrot.lane.b32.xlu0 %v2736, 124
        %v2755 = vpop.permute.xlu0 %2754
        %2756 = vrot.lane.b32.xlu0 %v2738, 124
        %v2757 = vpop.permute.xlu0 %2756
        %2758 = vrot.lane.b32.xlu0 %v2737, 124
        %v2759 = vpop.permute.xlu0 %2758
        %2760 = vrot.lane.b32.xlu0 %v2741, 124
        %v2761 = vpop.permute.xlu0 %2760
        %2762 = vrot.lane.b32.xlu0 %v2743, 124
        %v2763 = vpop.permute.xlu0 %2762
        %2764 = vrot.lane.b32.xlu0 %v2742, 124
        %v2765 = vpop.permute.xlu0 %2764
        %2766 = vrot.lane.b32.xlu0 %v2746, 124
        %v2767 = vpop.permute.xlu0 %2766
        %2768 = vrot.lane.b32.xlu0 %v2748, 124
        %v2769 = vpop.permute.xlu0 %2768
        %2770 = vrot.lane.b32.xlu0 %v2747, 124
        %v2771 = vpop.permute.xlu0 %2770
        %2772 = vrot.lane.b32.xlu0 %v2751, 124
        %v2773 = vpop.permute.xlu0 %2772
        %2774 = vrot.lane.b32.xlu0 %v2753, 124
        %v2775 = vpop.permute.xlu0 %2774
        %2776 = vrot.lane.b32.xlu0 %v2752, 124
        %v2777 = vpop.permute.xlu0 %2776
        %v2790 = vadd.f32 %v2678, %v2755
        %v2791 = vadd.f32 %v2679, %v2757
        %v2792 = vadd.f32 %v2680, %v2759
        %v2793 = vadd.f32 %v2681, %v2761
        %v2794 = vadd.f32 %v2682, %v2763
        %v2795 = vadd.f32 %v2683, %v2765
        %v2796 = vadd.f32 %v2684, %v2767
        %v2797 = vadd.f32 %v2685, %v2769
        %v2798 = vadd.f32 %v2686, %v2771
        %v2799 = vadd.f32 %v2687, %v2773
        %v2800 = vadd.f32 %v2688, %v2775
        %v2801 = vadd.f32 %v2689, %v2777
        %v2802 = vld [vmem:[%s287 + $0x3] sm:$0x1]
        %v2803 = vld [vmem:[%s287 + $0xb] sm:$0x1]
        %v2804 = vld [vmem:[%s287 + $0x13] sm:$0x1]
        %v2805 = vld [vmem:[%s287 + $0x1b] sm:$0x1]
        %s2807 = vtos %v2802
        %v2808 = vstv %s2807
        %s2811 = vtos %v2803
        %v2812 = vstv %s2811
        %s2815 = vtos %v2804
        %v2816 = vstv %s2815
        %s2819 = vtos %v2805
        %v2820 = vstv %s2819
        %v2822 = vmul.f32 %v296, %v2808
        %v2823 = vmul.f32 %v297, %v2808
        %v2824 = vmul.f32 %v298, %v2808
        %v2825 = vmul.f32 %v299, %v2812
        %v2826 = vmul.f32 %v300, %v2812
        %v2827 = vmul.f32 %v301, %v2812
        %v2828 = vmul.f32 %v302, %v2816
        %v2829 = vmul.f32 %v303, %v2816
        %v2830 = vmul.f32 %v304, %v2816
        %v2831 = vmul.f32 %v305, %v2820
        %v2832 = vmul.f32 %v306, %v2820
        %v2833 = vmul.f32 %v307, %v2820
        %vm2846 = vcmask 1044480
        %v2847 = vrot.slane %v2822, 3
        %v2848 = vrot.slane %v2823, 3
        %v2849 = vsel %vm2846, %v2847, %v2848
        %v2850 = vrot.slane %v2824, 3
        %v2851 = vsel %vm2846, %v2848, %v2850
        %v2852 = vrot.slane %v2825, 3
        %v2853 = vrot.slane %v2826, 3
        %v2854 = vsel %vm2846, %v2852, %v2853
        %v2855 = vrot.slane %v2827, 3
        %v2856 = vsel %vm2846, %v2853, %v2855
        %v2857 = vrot.slane %v2828, 3
        %v2858 = vrot.slane %v2829, 3
        %v2859 = vsel %vm2846, %v2857, %v2858
        %v2860 = vrot.slane %v2830, 3
        %v2861 = vsel %vm2846, %v2858, %v2860
        %v2862 = vrot.slane %v2831, 3
        %v2863 = vrot.slane %v2832, 3
        %v2864 = vsel %vm2846, %v2862, %v2863
        %v2865 = vrot.slane %v2833, 3
        %v2866 = vsel %vm2846, %v2863, %v2865
        %v2879 = vadd.f32 %v2790, %v2849
        %v2880 = vadd.f32 %v2791, %v2851
        %v2881 = vadd.f32 %v2792, %v2850
        %v2882 = vadd.f32 %v2793, %v2854
        %v2883 = vadd.f32 %v2794, %v2856
        %v2884 = vadd.f32 %v2795, %v2855
        %v2885 = vadd.f32 %v2796, %v2859
        %v2886 = vadd.f32 %v2797, %v2861
        %v2887 = vadd.f32 %v2798, %v2860
        %v2888 = vadd.f32 %v2799, %v2864
        %v2889 = vadd.f32 %v2800, %v2866
        %v2890 = vadd.f32 %v2801, %v2865
        %2891 = vrot.lane.b32.xlu0 %v2802, 127
        %v2892 = vpop.permute.xlu0 %2891
        %2893 = vrot.lane.b32.xlu0 %v2803, 127
        %v2894 = vpop.permute.xlu0 %2893
        %2895 = vrot.lane.b32.xlu0 %v2804, 127
        %v2896 = vpop.permute.xlu0 %2895
        %2897 = vrot.lane.b32.xlu0 %v2805, 127
        %v2898 = vpop.permute.xlu0 %2897
        %s2899 = vtos %v2892
        %v2900 = vstv %s2899
        %s2902 = vtos %v2894
        %v2903 = vstv %s2902
        %s2905 = vtos %v2896
        %v2906 = vstv %s2905
        %s2908 = vtos %v2898
        %v2909 = vstv %s2908
        %v2911 = vmul.f32 %v296, %v2900
        %v2912 = vmul.f32 %v297, %v2900
        %v2913 = vmul.f32 %v298, %v2900
        %v2914 = vmul.f32 %v299, %v2903
        %v2915 = vmul.f32 %v300, %v2903
        %v2916 = vmul.f32 %v301, %v2903
        %v2917 = vmul.f32 %v302, %v2906
        %v2918 = vmul.f32 %v303, %v2906
        %v2919 = vmul.f32 %v304, %v2906
        %v2920 = vmul.f32 %v305, %v2909
        %v2921 = vmul.f32 %v306, %v2909
        %v2922 = vmul.f32 %v307, %v2909
        %v2935 = vrot.slane %v2911, 3
        %v2936 = vrot.slane %v2912, 3
        %v2937 = vsel %vm2846, %v2935, %v2936
        %v2938 = vrot.slane %v2913, 3
        %v2939 = vsel %vm2846, %v2936, %v2938
        %v2940 = vrot.slane %v2914, 3
        %v2941 = vrot.slane %v2915, 3
        %v2942 = vsel %vm2846, %v2940, %v2941
        %v2943 = vrot.slane %v2916, 3
        %v2944 = vsel %vm2846, %v2941, %v2943
        %v2945 = vrot.slane %v2917, 3
        %v2946 = vrot.slane %v2918, 3
        %v2947 = vsel %vm2846, %v2945, %v2946
        %v2948 = vrot.slane %v2919, 3
        %v2949 = vsel %vm2846, %v2946, %v2948
        %v2950 = vrot.slane %v2920, 3
        %v2951 = vrot.slane %v2921, 3
        %v2952 = vsel %vm2846, %v2950, %v2951
        %v2953 = vrot.slane %v2922, 3
        %v2954 = vsel %vm2846, %v2951, %v2953
        %2955 = vrot.lane.b32.xlu0 %v2937, 127
        %v2956 = vpop.permute.xlu0 %2955
        %2957 = vrot.lane.b32.xlu0 %v2939, 127
        %v2958 = vpop.permute.xlu0 %2957
        %2959 = vrot.lane.b32.xlu0 %v2938, 127
        %v2960 = vpop.permute.xlu0 %2959
        %2961 = vrot.lane.b32.xlu0 %v2942, 127
        %v2962 = vpop.permute.xlu0 %2961
        %2963 = vrot.lane.b32.xlu0 %v2944, 127
        %v2964 = vpop.permute.xlu0 %2963
        %2965 = vrot.lane.b32.xlu0 %v2943, 127
        %v2966 = vpop.permute.xlu0 %2965
        %2967 = vrot.lane.b32.xlu0 %v2947, 127
        %v2968 = vpop.permute.xlu0 %2967
        %2969 = vrot.lane.b32.xlu0 %v2949, 127
        %v2970 = vpop.permute.xlu0 %2969
        %2971 = vrot.lane.b32.xlu0 %v2948, 127
        %v2972 = vpop.permute.xlu0 %2971
        %2973 = vrot.lane.b32.xlu0 %v2952, 127
        %v2974 = vpop.permute.xlu0 %2973
        %2975 = vrot.lane.b32.xlu0 %v2954, 127
        %v2976 = vpop.permute.xlu0 %2975
        %2977 = vrot.lane.b32.xlu0 %v2953, 127
        %v2978 = vpop.permute.xlu0 %2977
        %v2991 = vadd.f32 %v2879, %v2956
        %v2992 = vadd.f32 %v2880, %v2958
        %v2993 = vadd.f32 %v2881, %v2960
        %v2994 = vadd.f32 %v2882, %v2962
        %v2995 = vadd.f32 %v2883, %v2964
        %v2996 = vadd.f32 %v2884, %v2966
        %v2997 = vadd.f32 %v2885, %v2968
        %v2998 = vadd.f32 %v2886, %v2970
        %v2999 = vadd.f32 %v2887, %v2972
        %v3000 = vadd.f32 %v2888, %v2974
        %v3001 = vadd.f32 %v2889, %v2976
        %v3002 = vadd.f32 %v2890, %v2978
        %3003 = vrot.lane.b32.xlu0 %v2802, 126
        %v3004 = vpop.permute.xlu0 %3003
        %3005 = vrot.lane.b32.xlu0 %v2803, 126
        %v3006 = vpop.permute.xlu0 %3005
        %3007 = vrot.lane.b32.xlu0 %v2804, 126
        %v3008 = vpop.permute.xlu0 %3007
        %3009 = vrot.lane.b32.xlu0 %v2805, 126
        %v3010 = vpop.permute.xlu0 %3009
        %s3011 = vtos %v3004
        %v3012 = vstv %s3011
        %s3014 = vtos %v3006
        %v3015 = vstv %s3014
        %s3017 = vtos %v3008
        %v3018 = vstv %s3017
        %s3020 = vtos %v3010
        %v3021 = vstv %s3020
        %v3023 = vmul.f32 %v296, %v3012
        %v3024 = vmul.f32 %v297, %v3012
        %v3025 = vmul.f32 %v298, %v3012
        %v3026 = vmul.f32 %v299, %v3015
        %v3027 = vmul.f32 %v300, %v3015
        %v3028 = vmul.f32 %v301, %v3015
        %v3029 = vmul.f32 %v302, %v3018
        %v3030 = vmul.f32 %v303, %v3018
        %v3031 = vmul.f32 %v304, %v3018
        %v3032 = vmul.f32 %v305, %v3021
        %v3033 = vmul.f32 %v306, %v3021
        %v3034 = vmul.f32 %v307, %v3021
        %v3047 = vrot.slane %v3023, 3
        %v3048 = vrot.slane %v3024, 3
        %v3049 = vsel %vm2846, %v3047, %v3048
        %v3050 = vrot.slane %v3025, 3
        %v3051 = vsel %vm2846, %v3048, %v3050
        %v3052 = vrot.slane %v3026, 3
        %v3053 = vrot.slane %v3027, 3
        %v3054 = vsel %vm2846, %v3052, %v3053
        %v3055 = vrot.slane %v3028, 3
        %v3056 = vsel %vm2846, %v3053, %v3055
        %v3057 = vrot.slane %v3029, 3
        %v3058 = vrot.slane %v3030, 3
        %v3059 = vsel %vm2846, %v3057, %v3058
        %v3060 = vrot.slane %v3031, 3
        %v3061 = vsel %vm2846, %v3058, %v3060
        %v3062 = vrot.slane %v3032, 3
        %v3063 = vrot.slane %v3033, 3
        %v3064 = vsel %vm2846, %v3062, %v3063
        %v3065 = vrot.slane %v3034, 3
        %v3066 = vsel %vm2846, %v3063, %v3065
        %3067 = vrot.lane.b32.xlu0 %v3049, 126
        %v3068 = vpop.permute.xlu0 %3067
        %3069 = vrot.lane.b32.xlu0 %v3051, 126
        %v3070 = vpop.permute.xlu0 %3069
        %3071 = vrot.lane.b32.xlu0 %v3050, 126
        %v3072 = vpop.permute.xlu0 %3071
        %3073 = vrot.lane.b32.xlu0 %v3054, 126
        %v3074 = vpop.permute.xlu0 %3073
        %3075 = vrot.lane.b32.xlu0 %v3056, 126
        %v3076 = vpop.permute.xlu0 %3075
        %3077 = vrot.lane.b32.xlu0 %v3055, 126
        %v3078 = vpop.permute.xlu0 %3077
        %3079 = vrot.lane.b32.xlu0 %v3059, 126
        %v3080 = vpop.permute.xlu0 %3079
        %3081 = vrot.lane.b32.xlu0 %v3061, 126
        %v3082 = vpop.permute.xlu0 %3081
        %3083 = vrot.lane.b32.xlu0 %v3060, 126
        %v3084 = vpop.permute.xlu0 %3083
        %3085 = vrot.lane.b32.xlu0 %v3064, 126
        %v3086 = vpop.permute.xlu0 %3085
        %3087 = vrot.lane.b32.xlu0 %v3066, 126
        %v3088 = vpop.permute.xlu0 %3087
        %3089 = vrot.lane.b32.xlu0 %v3065, 126
        %v3090 = vpop.permute.xlu0 %3089
        %v3103 = vadd.f32 %v2991, %v3068
        %v3104 = vadd.f32 %v2992, %v3070
        %v3105 = vadd.f32 %v2993, %v3072
        %v3106 = vadd.f32 %v2994, %v3074
        %v3107 = vadd.f32 %v2995, %v3076
        %v3108 = vadd.f32 %v2996, %v3078
        %v3109 = vadd.f32 %v2997, %v3080
        %v3110 = vadd.f32 %v2998, %v3082
        %v3111 = vadd.f32 %v2999, %v3084
        %v3112 = vadd.f32 %v3000, %v3086
        %v3113 = vadd.f32 %v3001, %v3088
        %v3114 = vadd.f32 %v3002, %v3090
        %3115 = vrot.lane.b32.xlu0 %v2802, 125
        %v3116 = vpop.permute.xlu0 %3115
        %3117 = vrot.lane.b32.xlu0 %v2803, 125
        %v3118 = vpop.permute.xlu0 %3117
        %3119 = vrot.lane.b32.xlu0 %v2804, 125
        %v3120 = vpop.permute.xlu0 %3119
        %3121 = vrot.lane.b32.xlu0 %v2805, 125
        %v3122 = vpop.permute.xlu0 %3121
        %s3123 = vtos %v3116
        %v3124 = vstv %s3123
        %s3126 = vtos %v3118
        %v3127 = vstv %s3126
        %s3129 = vtos %v3120
        %v3130 = vstv %s3129
        %s3132 = vtos %v3122
        %v3133 = vstv %s3132
        %v3135 = vmul.f32 %v296, %v3124
        %v3136 = vmul.f32 %v297, %v3124
        %v3137 = vmul.f32 %v298, %v3124
        %v3138 = vmul.f32 %v299, %v3127
        %v3139 = vmul.f32 %v300, %v3127
        %v3140 = vmul.f32 %v301, %v3127
        %v3141 = vmul.f32 %v302, %v3130
        %v3142 = vmul.f32 %v303, %v3130
        %v3143 = vmul.f32 %v304, %v3130
        %v3144 = vmul.f32 %v305, %v3133
        %v3145 = vmul.f32 %v306, %v3133
        %v3146 = vmul.f32 %v307, %v3133
        %v3159 = vrot.slane %v3135, 3
        %v3160 = vrot.slane %v3136, 3
        %v3161 = vsel %vm2846, %v3159, %v3160
        %v3162 = vrot.slane %v3137, 3
        %v3163 = vsel %vm2846, %v3160, %v3162
        %v3164 = vrot.slane %v3138, 3
        %v3165 = vrot.slane %v3139, 3
        %v3166 = vsel %vm2846, %v3164, %v3165
        %v3167 = vrot.slane %v3140, 3
        %v3168 = vsel %vm2846, %v3165, %v3167
        %v3169 = vrot.slane %v3141, 3
        %v3170 = vrot.slane %v3142, 3
        %v3171 = vsel %vm2846, %v3169, %v3170
        %v3172 = vrot.slane %v3143, 3
        %v3173 = vsel %vm2846, %v3170, %v3172
        %v3174 = vrot.slane %v3144, 3
        %v3175 = vrot.slane %v3145, 3
        %v3176 = vsel %vm2846, %v3174, %v3175
        %v3177 = vrot.slane %v3146, 3
        %v3178 = vsel %vm2846, %v3175, %v3177
        %3179 = vrot.lane.b32.xlu0 %v3161, 125
        %v3180 = vpop.permute.xlu0 %3179
        %3181 = vrot.lane.b32.xlu0 %v3163, 125
        %v3182 = vpop.permute.xlu0 %3181
        %3183 = vrot.lane.b32.xlu0 %v3162, 125
        %v3184 = vpop.permute.xlu0 %3183
        %3185 = vrot.lane.b32.xlu0 %v3166, 125
        %v3186 = vpop.permute.xlu0 %3185
        %3187 = vrot.lane.b32.xlu0 %v3168, 125
        %v3188 = vpop.permute.xlu0 %3187
        %3189 = vrot.lane.b32.xlu0 %v3167, 125
        %v3190 = vpop.permute.xlu0 %3189
        %3191 = vrot.lane.b32.xlu0 %v3171, 125
        %v3192 = vpop.permute.xlu0 %3191
        %3193 = vrot.lane.b32.xlu0 %v3173, 125
        %v3194 = vpop.permute.xlu0 %3193
        %3195 = vrot.lane.b32.xlu0 %v3172, 125
        %v3196 = vpop.permute.xlu0 %3195
        %3197 = vrot.lane.b32.xlu0 %v3176, 125
        %v3198 = vpop.permute.xlu0 %3197
        %3199 = vrot.lane.b32.xlu0 %v3178, 125
        %v3200 = vpop.permute.xlu0 %3199
        %3201 = vrot.lane.b32.xlu0 %v3177, 125
        %v3202 = vpop.permute.xlu0 %3201
        %v3215 = vadd.f32 %v3103, %v3180
        %v3216 = vadd.f32 %v3104, %v3182
        %v3217 = vadd.f32 %v3105, %v3184
        %v3218 = vadd.f32 %v3106, %v3186
        %v3219 = vadd.f32 %v3107, %v3188
        %v3220 = vadd.f32 %v3108, %v3190
        %v3221 = vadd.f32 %v3109, %v3192
        %v3222 = vadd.f32 %v3110, %v3194
        %v3223 = vadd.f32 %v3111, %v3196
        %v3224 = vadd.f32 %v3112, %v3198
        %v3225 = vadd.f32 %v3113, %v3200
        %v3226 = vadd.f32 %v3114, %v3202
        %3227 = vrot.lane.b32.xlu0 %v2802, 124
        %v3228 = vpop.permute.xlu0 %3227
        %3229 = vrot.lane.b32.xlu0 %v2803, 124
        %v3230 = vpop.permute.xlu0 %3229
        %3231 = vrot.lane.b32.xlu0 %v2804, 124
        %v3232 = vpop.permute.xlu0 %3231
        %3233 = vrot.lane.b32.xlu0 %v2805, 124
        %v3234 = vpop.permute.xlu0 %3233
        %s3235 = vtos %v3228
        %v3236 = vstv %s3235
        %s3238 = vtos %v3230
        %v3239 = vstv %s3238
        %s3241 = vtos %v3232
        %v3242 = vstv %s3241
        %s3244 = vtos %v3234
        %v3245 = vstv %s3244
        %v3247 = vmul.f32 %v296, %v3236
        %v3248 = vmul.f32 %v297, %v3236
        %v3249 = vmul.f32 %v298, %v3236
        %v3250 = vmul.f32 %v299, %v3239
        %v3251 = vmul.f32 %v300, %v3239
        %v3252 = vmul.f32 %v301, %v3239
        %v3253 = vmul.f32 %v302, %v3242
        %v3254 = vmul.f32 %v303, %v3242
        %v3255 = vmul.f32 %v304, %v3242
        %v3256 = vmul.f32 %v305, %v3245
        %v3257 = vmul.f32 %v306, %v3245
        %v3258 = vmul.f32 %v307, %v3245
        %v3271 = vrot.slane %v3247, 3
        %v3272 = vrot.slane %v3248, 3
        %v3273 = vsel %vm2846, %v3271, %v3272
        %v3274 = vrot.slane %v3249, 3
        %v3275 = vsel %vm2846, %v3272, %v3274
        %v3276 = vrot.slane %v3250, 3
        %v3277 = vrot.slane %v3251, 3
        %v3278 = vsel %vm2846, %v3276, %v3277
        %v3279 = vrot.slane %v3252, 3
        %v3280 = vsel %vm2846, %v3277, %v3279
        %v3281 = vrot.slane %v3253, 3
        %v3282 = vrot.slane %v3254, 3
        %v3283 = vsel %vm2846, %v3281, %v3282
        %v3284 = vrot.slane %v3255, 3
        %v3285 = vsel %vm2846, %v3282, %v3284
        %v3286 = vrot.slane %v3256, 3
        %v3287 = vrot.slane %v3257, 3
        %v3288 = vsel %vm2846, %v3286, %v3287
        %v3289 = vrot.slane %v3258, 3
        %v3290 = vsel %vm2846, %v3287, %v3289
        %3291 = vrot.lane.b32.xlu0 %v3273, 124
        %v3292 = vpop.permute.xlu0 %3291
        %3293 = vrot.lane.b32.xlu0 %v3275, 124
        %v3294 = vpop.permute.xlu0 %3293
        %3295 = vrot.lane.b32.xlu0 %v3274, 124
        %v3296 = vpop.permute.xlu0 %3295
        %3297 = vrot.lane.b32.xlu0 %v3278, 124
        %v3298 = vpop.permute.xlu0 %3297
        %3299 = vrot.lane.b32.xlu0 %v3280, 124
        %v3300 = vpop.permute.xlu0 %3299
        %3301 = vrot.lane.b32.xlu0 %v3279, 124
        %v3302 = vpop.permute.xlu0 %3301
        %3303 = vrot.lane.b32.xlu0 %v3283, 124
        %v3304 = vpop.permute.xlu0 %3303
        %3305 = vrot.lane.b32.xlu0 %v3285, 124
        %v3306 = vpop.permute.xlu0 %3305
        %3307 = vrot.lane.b32.xlu0 %v3284, 124
        %v3308 = vpop.permute.xlu0 %3307
        %3309 = vrot.lane.b32.xlu0 %v3288, 124
        %v3310 = vpop.permute.xlu0 %3309
        %3311 = vrot.lane.b32.xlu0 %v3290, 124
        %v3312 = vpop.permute.xlu0 %3311
        %3313 = vrot.lane.b32.xlu0 %v3289, 124
        %v3314 = vpop.permute.xlu0 %3313
        %v3327 = vadd.f32 %v3215, %v3292
        %v3328 = vadd.f32 %v3216, %v3294
        %v3329 = vadd.f32 %v3217, %v3296
        %v3330 = vadd.f32 %v3218, %v3298
        %v3331 = vadd.f32 %v3219, %v3300
        %v3332 = vadd.f32 %v3220, %v3302
        %v3333 = vadd.f32 %v3221, %v3304
        %v3334 = vadd.f32 %v3222, %v3306
        %v3335 = vadd.f32 %v3223, %v3308
        %v3336 = vadd.f32 %v3224, %v3310
        %v3337 = vadd.f32 %v3225, %v3312
        %v3338 = vadd.f32 %v3226, %v3314
        %v3339 = vld [vmem:[%s287 + $0x4] sm:$0x1]
        %v3340 = vld [vmem:[%s287 + $0xc] sm:$0x1]
        %v3341 = vld [vmem:[%s287 + $0x14] sm:$0x1]
        %v3342 = vld [vmem:[%s287 + $0x1c] sm:$0x1]
        %s3344 = vtos %v3339
        %v3345 = vstv %s3344
        %s3348 = vtos %v3340
        %v3349 = vstv %s3348
        %s3352 = vtos %v3341
        %v3353 = vstv %s3352
        %s3356 = vtos %v3342
        %v3357 = vstv %s3356
        %v3359 = vmul.f32 %v296, %v3345
        %v3360 = vmul.f32 %v297, %v3345
        %v3361 = vmul.f32 %v298, %v3345
        %v3362 = vmul.f32 %v299, %v3349
        %v3363 = vmul.f32 %v300, %v3349
        %v3364 = vmul.f32 %v301, %v3349
        %v3365 = vmul.f32 %v302, %v3353
        %v3366 = vmul.f32 %v303, %v3353
        %v3367 = vmul.f32 %v304, %v3353
        %v3368 = vmul.f32 %v305, %v3357
        %v3369 = vmul.f32 %v306, %v3357
        %v3370 = vmul.f32 %v307, %v3357
        %vm3383 = vcmask 1043456
        %v3384 = vrot.slane %v3359, 4
        %v3385 = vrot.slane %v3360, 4
        %v3386 = vsel %vm3383, %v3384, %v3385
        %v3387 = vrot.slane %v3361, 4
        %v3388 = vsel %vm3383, %v3385, %v3387
        %v3389 = vrot.slane %v3362, 4
        %v3390 = vrot.slane %v3363, 4
        %v3391 = vsel %vm3383, %v3389, %v3390
        %v3392 = vrot.slane %v3364, 4
        %v3393 = vsel %vm3383, %v3390, %v3392
        %v3394 = vrot.slane %v3365, 4
        %v3395 = vrot.slane %v3366, 4
        %v3396 = vsel %vm3383, %v3394, %v3395
        %v3397 = vrot.slane %v3367, 4
        %v3398 = vsel %vm3383, %v3395, %v3397
        %v3399 = vrot.slane %v3368, 4
        %v3400 = vrot.slane %v3369, 4
        %v3401 = vsel %vm3383, %v3399, %v3400
        %v3402 = vrot.slane %v3370, 4
        %v3403 = vsel %vm3383, %v3400, %v3402
        %v3416 = vadd.f32 %v3327, %v3386
        %v3417 = vadd.f32 %v3328, %v3388
        %v3418 = vadd.f32 %v3329, %v3387
        %v3419 = vadd.f32 %v3330, %v3391
        %v3420 = vadd.f32 %v3331, %v3393
        %v3421 = vadd.f32 %v3332, %v3392
        %v3422 = vadd.f32 %v3333, %v3396
        %v3423 = vadd.f32 %v3334, %v3398
        %v3424 = vadd.f32 %v3335, %v3397
        %v3425 = vadd.f32 %v3336, %v3401
        %v3426 = vadd.f32 %v3337, %v3403
        %v3427 = vadd.f32 %v3338, %v3402
        %3428 = vrot.lane.b32.xlu0 %v3339, 127
        %v3429 = vpop.permute.xlu0 %3428
        %3430 = vrot.lane.b32.xlu0 %v3340, 127
        %v3431 = vpop.permute.xlu0 %3430
        %3432 = vrot.lane.b32.xlu0 %v3341, 127
        %v3433 = vpop.permute.xlu0 %3432
        %3434 = vrot.lane.b32.xlu0 %v3342, 127
        %v3435 = vpop.permute.xlu0 %3434
        %s3436 = vtos %v3429
        %v3437 = vstv %s3436
        %s3439 = vtos %v3431
        %v3440 = vstv %s3439
        %s3442 = vtos %v3433
        %v3443 = vstv %s3442
        %s3445 = vtos %v3435
        %v3446 = vstv %s3445
        %v3448 = vmul.f32 %v296, %v3437
        %v3449 = vmul.f32 %v297, %v3437
        %v3450 = vmul.f32 %v298, %v3437
        %v3451 = vmul.f32 %v299, %v3440
        %v3452 = vmul.f32 %v300, %v3440
        %v3453 = vmul.f32 %v301, %v3440
        %v3454 = vmul.f32 %v302, %v3443
        %v3455 = vmul.f32 %v303, %v3443
        %v3456 = vmul.f32 %v304, %v3443
        %v3457 = vmul.f32 %v305, %v3446
        %v3458 = vmul.f32 %v306, %v3446
        %v3459 = vmul.f32 %v307, %v3446
        %v3472 = vrot.slane %v3448, 4
        %v3473 = vrot.slane %v3449, 4
        %v3474 = vsel %vm3383, %v3472, %v3473
        %v3475 = vrot.slane %v3450, 4
        %v3476 = vsel %vm3383, %v3473, %v3475
        %v3477 = vrot.slane %v3451, 4
        %v3478 = vrot.slane %v3452, 4
        %v3479 = vsel %vm3383, %v3477, %v3478
        %v3480 = vrot.slane %v3453, 4
        %v3481 = vsel %vm3383, %v3478, %v3480
        %v3482 = vrot.slane %v3454, 4
        %v3483 = vrot.slane %v3455, 4
        %v3484 = vsel %vm3383, %v3482, %v3483
        %v3485 = vrot.slane %v3456, 4
        %v3486 = vsel %vm3383, %v3483, %v3485
        %v3487 = vrot.slane %v3457, 4
        %v3488 = vrot.slane %v3458, 4
        %v3489 = vsel %vm3383, %v3487, %v3488
        %v3490 = vrot.slane %v3459, 4
        %v3491 = vsel %vm3383, %v3488, %v3490
        %3492 = vrot.lane.b32.xlu0 %v3474, 127
        %v3493 = vpop.permute.xlu0 %3492
        %3494 = vrot.lane.b32.xlu0 %v3476, 127
        %v3495 = vpop.permute.xlu0 %3494
        %3496 = vrot.lane.b32.xlu0 %v3475, 127
        %v3497 = vpop.permute.xlu0 %3496
        %3498 = vrot.lane.b32.xlu0 %v3479, 127
        %v3499 = vpop.permute.xlu0 %3498
        %3500 = vrot.lane.b32.xlu0 %v3481, 127
        %v3501 = vpop.permute.xlu0 %3500
        %3502 = vrot.lane.b32.xlu0 %v3480, 127
        %v3503 = vpop.permute.xlu0 %3502
        %3504 = vrot.lane.b32.xlu0 %v3484, 127
        %v3505 = vpop.permute.xlu0 %3504
        %3506 = vrot.lane.b32.xlu0 %v3486, 127
        %v3507 = vpop.permute.xlu0 %3506
        %3508 = vrot.lane.b32.xlu0 %v3485, 127
        %v3509 = vpop.permute.xlu0 %3508
        %3510 = vrot.lane.b32.xlu0 %v3489, 127
        %v3511 = vpop.permute.xlu0 %3510
        %3512 = vrot.lane.b32.xlu0 %v3491, 127
        %v3513 = vpop.permute.xlu0 %3512
        %3514 = vrot.lane.b32.xlu0 %v3490, 127
        %v3515 = vpop.permute.xlu0 %3514
        %v3528 = vadd.f32 %v3416, %v3493
        %v3529 = vadd.f32 %v3417, %v3495
        %v3530 = vadd.f32 %v3418, %v3497
        %v3531 = vadd.f32 %v3419, %v3499
        %v3532 = vadd.f32 %v3420, %v3501
        %v3533 = vadd.f32 %v3421, %v3503
        %v3534 = vadd.f32 %v3422, %v3505
        %v3535 = vadd.f32 %v3423, %v3507
        %v3536 = vadd.f32 %v3424, %v3509
        %v3537 = vadd.f32 %v3425, %v3511
        %v3538 = vadd.f32 %v3426, %v3513
        %v3539 = vadd.f32 %v3427, %v3515
        %3540 = vrot.lane.b32.xlu0 %v3339, 126
        %v3541 = vpop.permute.xlu0 %3540
        %3542 = vrot.lane.b32.xlu0 %v3340, 126
        %v3543 = vpop.permute.xlu0 %3542
        %3544 = vrot.lane.b32.xlu0 %v3341, 126
        %v3545 = vpop.permute.xlu0 %3544
        %3546 = vrot.lane.b32.xlu0 %v3342, 126
        %v3547 = vpop.permute.xlu0 %3546
        %s3548 = vtos %v3541
        %v3549 = vstv %s3548
        %s3551 = vtos %v3543
        %v3552 = vstv %s3551
        %s3554 = vtos %v3545
        %v3555 = vstv %s3554
        %s3557 = vtos %v3547
        %v3558 = vstv %s3557
        %v3560 = vmul.f32 %v296, %v3549
        %v3561 = vmul.f32 %v297, %v3549
        %v3562 = vmul.f32 %v298, %v3549
        %v3563 = vmul.f32 %v299, %v3552
        %v3564 = vmul.f32 %v300, %v3552
        %v3565 = vmul.f32 %v301, %v3552
        %v3566 = vmul.f32 %v302, %v3555
        %v3567 = vmul.f32 %v303, %v3555
        %v3568 = vmul.f32 %v304, %v3555
        %v3569 = vmul.f32 %v305, %v3558
        %v3570 = vmul.f32 %v306, %v3558
        %v3571 = vmul.f32 %v307, %v3558
        %v3584 = vrot.slane %v3560, 4
        %v3585 = vrot.slane %v3561, 4
        %v3586 = vsel %vm3383, %v3584, %v3585
        %v3587 = vrot.slane %v3562, 4
        %v3588 = vsel %vm3383, %v3585, %v3587
        %v3589 = vrot.slane %v3563, 4
        %v3590 = vrot.slane %v3564, 4
        %v3591 = vsel %vm3383, %v3589, %v3590
        %v3592 = vrot.slane %v3565, 4
        %v3593 = vsel %vm3383, %v3590, %v3592
        %v3594 = vrot.slane %v3566, 4
        %v3595 = vrot.slane %v3567, 4
        %v3596 = vsel %vm3383, %v3594, %v3595
        %v3597 = vrot.slane %v3568, 4
        %v3598 = vsel %vm3383, %v3595, %v3597
        %v3599 = vrot.slane %v3569, 4
        %v3600 = vrot.slane %v3570, 4
        %v3601 = vsel %vm3383, %v3599, %v3600
        %v3602 = vrot.slane %v3571, 4
        %v3603 = vsel %vm3383, %v3600, %v3602
        %3604 = vrot.lane.b32.xlu0 %v3586, 126
        %v3605 = vpop.permute.xlu0 %3604
        %3606 = vrot.lane.b32.xlu0 %v3588, 126
        %v3607 = vpop.permute.xlu0 %3606
        %3608 = vrot.lane.b32.xlu0 %v3587, 126
        %v3609 = vpop.permute.xlu0 %3608
        %3610 = vrot.lane.b32.xlu0 %v3591, 126
        %v3611 = vpop.permute.xlu0 %3610
        %3612 = vrot.lane.b32.xlu0 %v3593, 126
        %v3613 = vpop.permute.xlu0 %3612
        %3614 = vrot.lane.b32.xlu0 %v3592, 126
        %v3615 = vpop.permute.xlu0 %3614
        %3616 = vrot.lane.b32.xlu0 %v3596, 126
        %v3617 = vpop.permute.xlu0 %3616
        %3618 = vrot.lane.b32.xlu0 %v3598, 126
        %v3619 = vpop.permute.xlu0 %3618
        %3620 = vrot.lane.b32.xlu0 %v3597, 126
        %v3621 = vpop.permute.xlu0 %3620
        %3622 = vrot.lane.b32.xlu0 %v3601, 126
        %v3623 = vpop.permute.xlu0 %3622
        %3624 = vrot.lane.b32.xlu0 %v3603, 126
        %v3625 = vpop.permute.xlu0 %3624
        %3626 = vrot.lane.b32.xlu0 %v3602, 126
        %v3627 = vpop.permute.xlu0 %3626
        %v3640 = vadd.f32 %v3528, %v3605
        %v3641 = vadd.f32 %v3529, %v3607
        %v3642 = vadd.f32 %v3530, %v3609
        %v3643 = vadd.f32 %v3531, %v3611
        %v3644 = vadd.f32 %v3532, %v3613
        %v3645 = vadd.f32 %v3533, %v3615
        %v3646 = vadd.f32 %v3534, %v3617
        %v3647 = vadd.f32 %v3535, %v3619
        %v3648 = vadd.f32 %v3536, %v3621
        %v3649 = vadd.f32 %v3537, %v3623
        %v3650 = vadd.f32 %v3538, %v3625
        %v3651 = vadd.f32 %v3539, %v3627
        %3652 = vrot.lane.b32.xlu0 %v3339, 125
        %v3653 = vpop.permute.xlu0 %3652
        %3654 = vrot.lane.b32.xlu0 %v3340, 125
        %v3655 = vpop.permute.xlu0 %3654
        %3656 = vrot.lane.b32.xlu0 %v3341, 125
        %v3657 = vpop.permute.xlu0 %3656
        %3658 = vrot.lane.b32.xlu0 %v3342, 125
        %v3659 = vpop.permute.xlu0 %3658
        %s3660 = vtos %v3653
        %v3661 = vstv %s3660
        %s3663 = vtos %v3655
        %v3664 = vstv %s3663
        %s3666 = vtos %v3657
        %v3667 = vstv %s3666
        %s3669 = vtos %v3659
        %v3670 = vstv %s3669
        %v3672 = vmul.f32 %v296, %v3661
        %v3673 = vmul.f32 %v297, %v3661
        %v3674 = vmul.f32 %v298, %v3661
        %v3675 = vmul.f32 %v299, %v3664
        %v3676 = vmul.f32 %v300, %v3664
        %v3677 = vmul.f32 %v301, %v3664
        %v3678 = vmul.f32 %v302, %v3667
        %v3679 = vmul.f32 %v303, %v3667
        %v3680 = vmul.f32 %v304, %v3667
        %v3681 = vmul.f32 %v305, %v3670
        %v3682 = vmul.f32 %v306, %v3670
        %v3683 = vmul.f32 %v307, %v3670
        %v3696 = vrot.slane %v3672, 4
        %v3697 = vrot.slane %v3673, 4
        %v3698 = vsel %vm3383, %v3696, %v3697
        %v3699 = vrot.slane %v3674, 4
        %v3700 = vsel %vm3383, %v3697, %v3699
        %v3701 = vrot.slane %v3675, 4
        %v3702 = vrot.slane %v3676, 4
        %v3703 = vsel %vm3383, %v3701, %v3702
        %v3704 = vrot.slane %v3677, 4
        %v3705 = vsel %vm3383, %v3702, %v3704
        %v3706 = vrot.slane %v3678, 4
        %v3707 = vrot.slane %v3679, 4
        %v3708 = vsel %vm3383, %v3706, %v3707
        %v3709 = vrot.slane %v3680, 4
        %v3710 = vsel %vm3383, %v3707, %v3709
        %v3711 = vrot.slane %v3681, 4
        %v3712 = vrot.slane %v3682, 4
        %v3713 = vsel %vm3383, %v3711, %v3712
        %v3714 = vrot.slane %v3683, 4
        %v3715 = vsel %vm3383, %v3712, %v3714
        %3716 = vrot.lane.b32.xlu0 %v3698, 125
        %v3717 = vpop.permute.xlu0 %3716
        %3718 = vrot.lane.b32.xlu0 %v3700, 125
        %v3719 = vpop.permute.xlu0 %3718
        %3720 = vrot.lane.b32.xlu0 %v3699, 125
        %v3721 = vpop.permute.xlu0 %3720
        %3722 = vrot.lane.b32.xlu0 %v3703, 125
        %v3723 = vpop.permute.xlu0 %3722
        %3724 = vrot.lane.b32.xlu0 %v3705, 125
        %v3725 = vpop.permute.xlu0 %3724
        %3726 = vrot.lane.b32.xlu0 %v3704, 125
        %v3727 = vpop.permute.xlu0 %3726
        %3728 = vrot.lane.b32.xlu0 %v3708, 125
        %v3729 = vpop.permute.xlu0 %3728
        %3730 = vrot.lane.b32.xlu0 %v3710, 125
        %v3731 = vpop.permute.xlu0 %3730
        %3732 = vrot.lane.b32.xlu0 %v3709, 125
        %v3733 = vpop.permute.xlu0 %3732
        %3734 = vrot.lane.b32.xlu0 %v3713, 125
        %v3735 = vpop.permute.xlu0 %3734
        %3736 = vrot.lane.b32.xlu0 %v3715, 125
        %v3737 = vpop.permute.xlu0 %3736
        %3738 = vrot.lane.b32.xlu0 %v3714, 125
        %v3739 = vpop.permute.xlu0 %3738
        %v3752 = vadd.f32 %v3640, %v3717
        %v3753 = vadd.f32 %v3641, %v3719
        %v3754 = vadd.f32 %v3642, %v3721
        %v3755 = vadd.f32 %v3643, %v3723
        %v3756 = vadd.f32 %v3644, %v3725
        %v3757 = vadd.f32 %v3645, %v3727
        %v3758 = vadd.f32 %v3646, %v3729
        %v3759 = vadd.f32 %v3647, %v3731
        %v3760 = vadd.f32 %v3648, %v3733
        %v3761 = vadd.f32 %v3649, %v3735
        %v3762 = vadd.f32 %v3650, %v3737
        %v3763 = vadd.f32 %v3651, %v3739
        %3764 = vrot.lane.b32.xlu0 %v3339, 124
        %v3765 = vpop.permute.xlu0 %3764
        %3766 = vrot.lane.b32.xlu0 %v3340, 124
        %v3767 = vpop.permute.xlu0 %3766
        %3768 = vrot.lane.b32.xlu0 %v3341, 124
        %v3769 = vpop.permute.xlu0 %3768
        %3770 = vrot.lane.b32.xlu0 %v3342, 124
        %v3771 = vpop.permute.xlu0 %3770
        %s3772 = vtos %v3765
        %v3773 = vstv %s3772
        %s3775 = vtos %v3767
        %v3776 = vstv %s3775
        %s3778 = vtos %v3769
        %v3779 = vstv %s3778
        %s3781 = vtos %v3771
        %v3782 = vstv %s3781
        %v3784 = vmul.f32 %v296, %v3773
        %v3785 = vmul.f32 %v297, %v3773
        %v3786 = vmul.f32 %v298, %v3773
        %v3787 = vmul.f32 %v299, %v3776
        %v3788 = vmul.f32 %v300, %v3776
        %v3789 = vmul.f32 %v301, %v3776
        %v3790 = vmul.f32 %v302, %v3779
        %v3791 = vmul.f32 %v303, %v3779
        %v3792 = vmul.f32 %v304, %v3779
        %v3793 = vmul.f32 %v305, %v3782
        %v3794 = vmul.f32 %v306, %v3782
        %v3795 = vmul.f32 %v307, %v3782
        %v3808 = vrot.slane %v3784, 4
        %v3809 = vrot.slane %v3785, 4
        %v3810 = vsel %vm3383, %v3808, %v3809
        %v3811 = vrot.slane %v3786, 4
        %v3812 = vsel %vm3383, %v3809, %v3811
        %v3813 = vrot.slane %v3787, 4
        %v3814 = vrot.slane %v3788, 4
        %v3815 = vsel %vm3383, %v3813, %v3814
        %v3816 = vrot.slane %v3789, 4
        %v3817 = vsel %vm3383, %v3814, %v3816
        %v3818 = vrot.slane %v3790, 4
        %v3819 = vrot.slane %v3791, 4
        %v3820 = vsel %vm3383, %v3818, %v3819
        %v3821 = vrot.slane %v3792, 4
        %v3822 = vsel %vm3383, %v3819, %v3821
        %v3823 = vrot.slane %v3793, 4
        %v3824 = vrot.slane %v3794, 4
        %v3825 = vsel %vm3383, %v3823, %v3824
        %v3826 = vrot.slane %v3795, 4
        %v3827 = vsel %vm3383, %v3824, %v3826
        %3828 = vrot.lane.b32.xlu0 %v3810, 124
        %v3829 = vpop.permute.xlu0 %3828
        %3830 = vrot.lane.b32.xlu0 %v3812, 124
        %v3831 = vpop.permute.xlu0 %3830
        %3832 = vrot.lane.b32.xlu0 %v3811, 124
        %v3833 = vpop.permute.xlu0 %3832
        %3834 = vrot.lane.b32.xlu0 %v3815, 124
        %v3835 = vpop.permute.xlu0 %3834
        %3836 = vrot.lane.b32.xlu0 %v3817, 124
        %v3837 = vpop.permute.xlu0 %3836
        %3838 = vrot.lane.b32.xlu0 %v3816, 124
        %v3839 = vpop.permute.xlu0 %3838
        %3840 = vrot.lane.b32.xlu0 %v3820, 124
        %v3841 = vpop.permute.xlu0 %3840
        %3842 = vrot.lane.b32.xlu0 %v3822, 124
        %v3843 = vpop.permute.xlu0 %3842
        %3844 = vrot.lane.b32.xlu0 %v3821, 124
        %v3845 = vpop.permute.xlu0 %3844
        %3846 = vrot.lane.b32.xlu0 %v3825, 124
        %v3847 = vpop.permute.xlu0 %3846
        %3848 = vrot.lane.b32.xlu0 %v3827, 124
        %v3849 = vpop.permute.xlu0 %3848
        %3850 = vrot.lane.b32.xlu0 %v3826, 124
        %v3851 = vpop.permute.xlu0 %3850
        %v3864 = vadd.f32 %v3752, %v3829
        %v3865 = vadd.f32 %v3753, %v3831
        %v3866 = vadd.f32 %v3754, %v3833
        %v3867 = vadd.f32 %v3755, %v3835
        %v3868 = vadd.f32 %v3756, %v3837
        %v3869 = vadd.f32 %v3757, %v3839
        %v3870 = vadd.f32 %v3758, %v3841
        %v3871 = vadd.f32 %v3759, %v3843
        %v3872 = vadd.f32 %v3760, %v3845
        %v3873 = vadd.f32 %v3761, %v3847
        %v3874 = vadd.f32 %v3762, %v3849
        %v3875 = vadd.f32 %v3763, %v3851
        %v3876 = vmax.f32 %v3864, 0.0
        %v3877 = vmax.f32 %v3865, 0.0
        %v3878 = vmax.f32 %v3866, 0.0
        %v3879 = vmax.f32 %v3867, 0.0
        %v3880 = vmax.f32 %v3868, 0.0
        %v3881 = vmax.f32 %v3869, 0.0
        %v3882 = vmax.f32 %v3870, 0.0
        %v3883 = vmax.f32 %v3871, 0.0
        %v3884 = vmax.f32 %v3872, 0.0
        %v3885 = vmax.f32 %v3873, 0.0
        %v3886 = vmax.f32 %v3874, 0.0
        %v3887 = vmax.f32 %v3875, 0.0
        %v3900 = vrot.slane %v3876, 7
        %v3901 = vrot.slane %v3877, 7
        %v3902 = vsel %vm1186, %v3900, %v3901
        %v3903 = vrot.slane %v3878, 7
        %v3904 = vsel %vm1186, %v3901, %v3903
        %v3905 = vrot.slane %v3879, 7
        %v3906 = vrot.slane %v3880, 7
        %v3907 = vsel %vm1186, %v3905, %v3906
        %v3908 = vrot.slane %v3881, 7
        %v3909 = vsel %vm1186, %v3906, %v3908
        %v3910 = vrot.slane %v3882, 7
        %v3911 = vrot.slane %v3883, 7
        %v3912 = vsel %vm1186, %v3910, %v3911
        %v3913 = vrot.slane %v3884, 7
        %v3914 = vsel %vm1186, %v3911, %v3913
        %v3915 = vrot.slane %v3885, 7
        %v3916 = vrot.slane %v3886, 7
        %v3917 = vsel %vm1186, %v3915, %v3916
        %v3918 = vrot.slane %v3887, 7
        %v3919 = vsel %vm1186, %v3916, %v3918
        %3920 = vrot.lane.b32.xlu0 %v3900, 1
        %v3921 = vpop.permute.xlu0 %3920
        %3922 = vrot.lane.b32.xlu0 %v3902, 1
        %v3923 = vpop.permute.xlu0 %3922
        %3924 = vrot.lane.b32.xlu0 %v3904, 1
        %v3925 = vpop.permute.xlu0 %3924
        %3926 = vrot.lane.b32.xlu0 %v3905, 1
        %v3927 = vpop.permute.xlu0 %3926
        %3928 = vrot.lane.b32.xlu0 %v3907, 1
        %v3929 = vpop.permute.xlu0 %3928
        %3930 = vrot.lane.b32.xlu0 %v3909, 1
        %v3931 = vpop.permute.xlu0 %3930
        %3932 = vrot.lane.b32.xlu0 %v3910, 1
        %v3933 = vpop.permute.xlu0 %3932
        %3934 = vrot.lane.b32.xlu0 %v3912, 1
        %v3935 = vpop.permute.xlu0 %3934
        %3936 = vrot.lane.b32.xlu0 %v3914, 1
        %v3937 = vpop.permute.xlu0 %3936
        %3938 = vrot.lane.b32.xlu0 %v3915, 1
        %v3939 = vpop.permute.xlu0 %3938
        %3940 = vrot.lane.b32.xlu0 %v3917, 1
        %v3941 = vpop.permute.xlu0 %3940
        %3942 = vrot.lane.b32.xlu0 %v3919, 1
        %v3943 = vpop.permute.xlu0 %3942
        %v3956 = vsub.f32 %v1162, %v3921
        %v3957 = vsub.f32 %v1163, %v3923
        %v3958 = vsub.f32 %v1164, %v3925
        %v3959 = vsub.f32 %v1165, %v3927
        %v3960 = vsub.f32 %v1166, %v3929
        %v3961 = vsub.f32 %v1167, %v3931
        %v3962 = vsub.f32 %v1168, %v3933
        %v3963 = vsub.f32 %v1169, %v3935
        %v3964 = vsub.f32 %v1170, %v3937
        %v3965 = vsub.f32 %v1171, %v3939
        %v3966 = vsub.f32 %v1172, %v3941
        %v3967 = vsub.f32 %v1173, %v3943
        %3980 = vrot.lane.b32.xlu0 %v3956, 126
        %v3981 = vpop.permute.xlu0 %3980
        %3982 = vrot.lane.b32.xlu0 %v3957, 126
        %v3983 = vpop.permute.xlu0 %3982
        %3984 = vrot.lane.b32.xlu0 %v3958, 126
        %v3985 = vpop.permute.xlu0 %3984
        %3986 = vrot.lane.b32.xlu0 %v3959, 126
        %v3987 = vpop.permute.xlu0 %3986
        %3988 = vrot.lane.b32.xlu0 %v3960, 126
        %v3989 = vpop.permute.xlu0 %3988
        %3990 = vrot.lane.b32.xlu0 %v3961, 126
        %v3991 = vpop.permute.xlu0 %3990
        %3992 = vrot.lane.b32.xlu0 %v3962, 126
        %v3993 = vpop.permute.xlu0 %3992
        %3994 = vrot.lane.b32.xlu0 %v3963, 126
        %v3995 = vpop.permute.xlu0 %3994
        %3996 = vrot.lane.b32.xlu0 %v3964, 126
        %v3997 = vpop.permute.xlu0 %3996
        %3998 = vrot.lane.b32.xlu0 %v3965, 126
        %v3999 = vpop.permute.xlu0 %3998
        %4000 = vrot.lane.b32.xlu0 %v3966, 126
        %v4001 = vpop.permute.xlu0 %4000
        %4002 = vrot.lane.b32.xlu0 %v3967, 126
        %v4003 = vpop.permute.xlu0 %4002
        %s4016 = scalar_lea.vmem %s265, 64 [#allocation2]
        %vm4017 = vcmask 130050
        %4018 = vst.msk [vmem:[%s4016 - $0x2] sm:$0xfc] %vm4017, %v3981
        %4019 = vst.msk [vmem:[%s4016 + $0x6] sm:$0xff] %vm1305, %v3983
        %vm4020 = vcmask 123904
        %4021 = vst.msk [vmem:[%s4016 + $0xe] sm:$0x3] %vm4020, %v3985
        %4022 = vst.msk [vmem:[%s4016 + $0xe] sm:$0xfc] %vm4017, %v3987
        %4023 = vst.msk [vmem:[%s4016 + $0x16] sm:$0xff] %vm1305, %v3989
        %4024 = vst.msk [vmem:[%s4016 + $0x1e] sm:$0x3] %vm4020, %v3991
        %4025 = vst.msk [vmem:[%s4016 + $0x1e] sm:$0xfc] %vm4017, %v3993
        %4026 = vst.msk [vmem:[%s4016 + $0x26] sm:$0xff] %vm1305, %v3995
        %4027 = vst.msk [vmem:[%s4016 + $0x2e] sm:$0x3] %vm4020, %v3997
        %4028 = vst.msk [vmem:[%s4016 + $0x2e] sm:$0xfc] %vm4017, %v3999
        %4029 = vst.msk [vmem:[%s4016 + $0x36] sm:$0xff] %vm1305, %v4001
        %4030 = vst.msk [vmem:[%s4016 + $0x3e] sm:$0x3] %vm4020, %v4003
        %v4031 = vld [vmem:[%s293] sm:$0x1]
        %v4032 = vld [vmem:[%s293 + $0x8] sm:$0x1]
        %v4033 = vld [vmem:[%s293 + $0x10] sm:$0x1]
        %v4034 = vld [vmem:[%s293 + $0x18] sm:$0x1]
        %s4036 = vtos %v4031
        %v4037 = vstv %s4036
        %s4040 = vtos %v4032
        %v4041 = vstv %s4040
        %s4044 = vtos %v4033
        %v4045 = vstv %s4044
        %s4048 = vtos %v4034
        %v4049 = vstv %s4048
        %v4051 = vmul.f32 %v296, %v4037
        %v4052 = vmul.f32 %v297, %v4037
        %v4053 = vmul.f32 %v299, %v4041
        %v4054 = vmul.f32 %v300, %v4041
        %v4055 = vmul.f32 %v302, %v4045
        %v4056 = vmul.f32 %v303, %v4045
        %v4057 = vmul.f32 %v305, %v4049
        %v4058 = vmul.f32 %v306, %v4049
        %v4059 = vadd.f32 %v4051, 0.0
        %v4060 = vadd.f32 %v4052, 0.0
        %v4061 = vadd.f32 %v4053, 0.0
        %v4062 = vadd.f32 %v4054, 0.0
        %v4063 = vadd.f32 %v4055, 0.0
        %v4064 = vadd.f32 %v4056, 0.0
        %v4065 = vadd.f32 %v4057, 0.0
        %v4066 = vadd.f32 %v4058, 0.0
        %4067 = vrot.lane.b32.xlu0 %v4031, 127
        %v4068 = vpop.permute.xlu0 %4067
        %4069 = vrot.lane.b32.xlu0 %v4032, 127
        %v4070 = vpop.permute.xlu0 %4069
        %4071 = vrot.lane.b32.xlu0 %v4033, 127
        %v4072 = vpop.permute.xlu0 %4071
        %4073 = vrot.lane.b32.xlu0 %v4034, 127
        %v4074 = vpop.permute.xlu0 %4073
        %s4075 = vtos %v4068
        %v4076 = vstv %s4075
        %s4078 = vtos %v4070
        %v4079 = vstv %s4078
        %s4081 = vtos %v4072
        %v4082 = vstv %s4081
        %s4084 = vtos %v4074
        %v4085 = vstv %s4084
        %v4087 = vmul.f32 %v296, %v4076
        %v4088 = vmul.f32 %v297, %v4076
        %v4089 = vmul.f32 %v299, %v4079
        %v4090 = vmul.f32 %v300, %v4079
        %v4091 = vmul.f32 %v302, %v4082
        %v4092 = vmul.f32 %v303, %v4082
        %v4093 = vmul.f32 %v305, %v4085
        %v4094 = vmul.f32 %v306, %v4085
        %4103 = vrot.lane.b32.xlu0 %v4087, 127
        %v4104 = vpop.permute.xlu0 %4103
        %4105 = vrot.lane.b32.xlu0 %v4088, 127
        %v4106 = vpop.permute.xlu0 %4105
        %4107 = vrot.lane.b32.xlu0 %v4089, 127
        %v4108 = vpop.permute.xlu0 %4107
        %4109 = vrot.lane.b32.xlu0 %v4090, 127
        %v4110 = vpop.permute.xlu0 %4109
        %4111 = vrot.lane.b32.xlu0 %v4091, 127
        %v4112 = vpop.permute.xlu0 %4111
        %4113 = vrot.lane.b32.xlu0 %v4092, 127
        %v4114 = vpop.permute.xlu0 %4113
        %4115 = vrot.lane.b32.xlu0 %v4093, 127
        %v4116 = vpop.permute.xlu0 %4115
        %4117 = vrot.lane.b32.xlu0 %v4094, 127
        %v4118 = vpop.permute.xlu0 %4117
        %v4127 = vadd.f32 %v4059, %v4104
        %v4128 = vadd.f32 %v4060, %v4106
        %v4129 = vadd.f32 %v4061, %v4108
        %v4130 = vadd.f32 %v4062, %v4110
        %v4131 = vadd.f32 %v4063, %v4112
        %v4132 = vadd.f32 %v4064, %v4114
        %v4133 = vadd.f32 %v4065, %v4116
        %v4134 = vadd.f32 %v4066, %v4118
        %4135 = vrot.lane.b32.xlu0 %v4031, 126
        %v4136 = vpop.permute.xlu0 %4135
        %4137 = vrot.lane.b32.xlu0 %v4032, 126
        %v4138 = vpop.permute.xlu0 %4137
        %4139 = vrot.lane.b32.xlu0 %v4033, 126
        %v4140 = vpop.permute.xlu0 %4139
        %4141 = vrot.lane.b32.xlu0 %v4034, 126
        %v4142 = vpop.permute.xlu0 %4141
        %s4143 = vtos %v4136
        %v4144 = vstv %s4143
        %s4146 = vtos %v4138
        %v4147 = vstv %s4146
        %s4149 = vtos %v4140
        %v4150 = vstv %s4149
        %s4152 = vtos %v4142
        %v4153 = vstv %s4152
        %v4155 = vmul.f32 %v296, %v4144
        %v4156 = vmul.f32 %v297, %v4144
        %v4157 = vmul.f32 %v299, %v4147
        %v4158 = vmul.f32 %v300, %v4147
        %v4159 = vmul.f32 %v302, %v4150
        %v4160 = vmul.f32 %v303, %v4150
        %v4161 = vmul.f32 %v305, %v4153
        %v4162 = vmul.f32 %v306, %v4153
        %4171 = vrot.lane.b32.xlu0 %v4155, 126
        %v4172 = vpop.permute.xlu0 %4171
        %4173 = vrot.lane.b32.xlu0 %v4156, 126
        %v4174 = vpop.permute.xlu0 %4173
        %4175 = vrot.lane.b32.xlu0 %v4157, 126
        %v4176 = vpop.permute.xlu0 %4175
        %4177 = vrot.lane.b32.xlu0 %v4158, 126
        %v4178 = vpop.permute.xlu0 %4177
        %4179 = vrot.lane.b32.xlu0 %v4159, 126
        %v4180 = vpop.permute.xlu0 %4179
        %4181 = vrot.lane.b32.xlu0 %v4160, 126
        %v4182 = vpop.permute.xlu0 %4181
        %4183 = vrot.lane.b32.xlu0 %v4161, 126
        %v4184 = vpop.permute.xlu0 %4183
        %4185 = vrot.lane.b32.xlu0 %v4162, 126
        %v4186 = vpop.permute.xlu0 %4185
        %v4195 = vadd.f32 %v4127, %v4172
        %v4196 = vadd.f32 %v4128, %v4174
        %v4197 = vadd.f32 %v4129, %v4176
        %v4198 = vadd.f32 %v4130, %v4178
        %v4199 = vadd.f32 %v4131, %v4180
        %v4200 = vadd.f32 %v4132, %v4182
        %v4201 = vadd.f32 %v4133, %v4184
        %v4202 = vadd.f32 %v4134, %v4186
        %4203 = vrot.lane.b32.xlu0 %v4031, 125
        %v4204 = vpop.permute.xlu0 %4203
        %4205 = vrot.lane.b32.xlu0 %v4032, 125
        %v4206 = vpop.permute.xlu0 %4205
        %4207 = vrot.lane.b32.xlu0 %v4033, 125
        %v4208 = vpop.permute.xlu0 %4207
        %4209 = vrot.lane.b32.xlu0 %v4034, 125
        %v4210 = vpop.permute.xlu0 %4209
        %s4211 = vtos %v4204
        %v4212 = vstv %s4211
        %s4214 = vtos %v4206
        %v4215 = vstv %s4214
        %s4217 = vtos %v4208
        %v4218 = vstv %s4217
        %s4220 = vtos %v4210
        %v4221 = vstv %s4220
        %v4223 = vmul.f32 %v296, %v4212
        %v4224 = vmul.f32 %v297, %v4212
        %v4225 = vmul.f32 %v299, %v4215
        %v4226 = vmul.f32 %v300, %v4215
        %v4227 = vmul.f32 %v302, %v4218
        %v4228 = vmul.f32 %v303, %v4218
        %v4229 = vmul.f32 %v305, %v4221
        %v4230 = vmul.f32 %v306, %v4221
        %4239 = vrot.lane.b32.xlu0 %v4223, 125
        %v4240 = vpop.permute.xlu0 %4239
        %4241 = vrot.lane.b32.xlu0 %v4224, 125
        %v4242 = vpop.permute.xlu0 %4241
        %4243 = vrot.lane.b32.xlu0 %v4225, 125
        %v4244 = vpop.permute.xlu0 %4243
        %4245 = vrot.lane.b32.xlu0 %v4226, 125
        %v4246 = vpop.permute.xlu0 %4245
        %4247 = vrot.lane.b32.xlu0 %v4227, 125
        %v4248 = vpop.permute.xlu0 %4247
        %4249 = vrot.lane.b32.xlu0 %v4228, 125
        %v4250 = vpop.permute.xlu0 %4249
        %4251 = vrot.lane.b32.xlu0 %v4229, 125
        %v4252 = vpop.permute.xlu0 %4251
        %4253 = vrot.lane.b32.xlu0 %v4230, 125
        %v4254 = vpop.permute.xlu0 %4253
        %v4263 = vadd.f32 %v4195, %v4240
        %v4264 = vadd.f32 %v4196, %v4242
        %v4265 = vadd.f32 %v4197, %v4244
        %v4266 = vadd.f32 %v4198, %v4246
        %v4267 = vadd.f32 %v4199, %v4248
        %v4268 = vadd.f32 %v4200, %v4250
        %v4269 = vadd.f32 %v4201, %v4252
        %v4270 = vadd.f32 %v4202, %v4254
        %4271 = vrot.lane.b32.xlu0 %v4031, 124
        %v4272 = vpop.permute.xlu0 %4271
        %4273 = vrot.lane.b32.xlu0 %v4032, 124
        %v4274 = vpop.permute.xlu0 %4273
        %4275 = vrot.lane.b32.xlu0 %v4033, 124
        %v4276 = vpop.permute.xlu0 %4275
        %4277 = vrot.lane.b32.xlu0 %v4034, 124
        %v4278 = vpop.permute.xlu0 %4277
        %s4279 = vtos %v4272
        %v4280 = vstv %s4279
        %s4282 = vtos %v4274
        %v4283 = vstv %s4282
        %s4285 = vtos %v4276
        %v4286 = vstv %s4285
        %s4288 = vtos %v4278
        %v4289 = vstv %s4288
        %v4291 = vmul.f32 %v296, %v4280
        %v4292 = vmul.f32 %v297, %v4280
        %v4293 = vmul.f32 %v299, %v4283
        %v4294 = vmul.f32 %v300, %v4283
        %v4295 = vmul.f32 %v302, %v4286
        %v4296 = vmul.f32 %v303, %v4286
        %v4297 = vmul.f32 %v305, %v4289
        %v4298 = vmul.f32 %v306, %v4289
        %4307 = vrot.lane.b32.xlu0 %v4291, 124
        %v4308 = vpop.permute.xlu0 %4307
        %4309 = vrot.lane.b32.xlu0 %v4292, 124
        %v4310 = vpop.permute.xlu0 %4309
        %4311 = vrot.lane.b32.xlu0 %v4293, 124
        %v4312 = vpop.permute.xlu0 %4311
        %4313 = vrot.lane.b32.xlu0 %v4294, 124
        %v4314 = vpop.permute.xlu0 %4313
        %4315 = vrot.lane.b32.xlu0 %v4295, 124
        %v4316 = vpop.permute.xlu0 %4315
        %4317 = vrot.lane.b32.xlu0 %v4296, 124
        %v4318 = vpop.permute.xlu0 %4317
        %4319 = vrot.lane.b32.xlu0 %v4297, 124
        %v4320 = vpop.permute.xlu0 %4319
        %4321 = vrot.lane.b32.xlu0 %v4298, 124
        %v4322 = vpop.permute.xlu0 %4321
        %v4331 = vadd.f32 %v4263, %v4308
        %v4332 = vadd.f32 %v4264, %v4310
        %v4333 = vadd.f32 %v4265, %v4312
        %v4334 = vadd.f32 %v4266, %v4314
        %v4335 = vadd.f32 %v4267, %v4316
        %v4336 = vadd.f32 %v4268, %v4318
        %v4337 = vadd.f32 %v4269, %v4320
        %v4338 = vadd.f32 %v4270, %v4322
        %4339 = vrot.lane.b32.xlu0 %v4031, 123
        %v4340 = vpop.permute.xlu0 %4339
        %4341 = vrot.lane.b32.xlu0 %v4032, 123
        %v4342 = vpop.permute.xlu0 %4341
        %4343 = vrot.lane.b32.xlu0 %v4033, 123
        %v4344 = vpop.permute.xlu0 %4343
        %4345 = vrot.lane.b32.xlu0 %v4034, 123
        %v4346 = vpop.permute.xlu0 %4345
        %s4347 = vtos %v4340
        %v4348 = vstv %s4347
        %s4350 = vtos %v4342
        %v4351 = vstv %s4350
        %s4353 = vtos %v4344
        %v4354 = vstv %s4353
        %s4356 = vtos %v4346
        %v4357 = vstv %s4356
        %v4359 = vmul.f32 %v296, %v4348
        %v4360 = vmul.f32 %v297, %v4348
        %v4361 = vmul.f32 %v299, %v4351
        %v4362 = vmul.f32 %v300, %v4351
        %v4363 = vmul.f32 %v302, %v4354
        %v4364 = vmul.f32 %v303, %v4354
        %v4365 = vmul.f32 %v305, %v4357
        %v4366 = vmul.f32 %v306, %v4357
        %4375 = vrot.lane.b32.xlu0 %v4359, 123
        %v4376 = vpop.permute.xlu0 %4375
        %4377 = vrot.lane.b32.xlu0 %v4360, 123
        %v4378 = vpop.permute.xlu0 %4377
        %4379 = vrot.lane.b32.xlu0 %v4361, 123
        %v4380 = vpop.permute.xlu0 %4379
        %4381 = vrot.lane.b32.xlu0 %v4362, 123
        %v4382 = vpop.permute.xlu0 %4381
        %4383 = vrot.lane.b32.xlu0 %v4363, 123
        %v4384 = vpop.permute.xlu0 %4383
        %4385 = vrot.lane.b32.xlu0 %v4364, 123
        %v4386 = vpop.permute.xlu0 %4385
        %4387 = vrot.lane.b32.xlu0 %v4365, 123
        %v4388 = vpop.permute.xlu0 %4387
        %4389 = vrot.lane.b32.xlu0 %v4366, 123
        %v4390 = vpop.permute.xlu0 %4389
        %v4399 = vadd.f32 %v4331, %v4376
        %v4400 = vadd.f32 %v4332, %v4378
        %v4401 = vadd.f32 %v4333, %v4380
        %v4402 = vadd.f32 %v4334, %v4382
        %v4403 = vadd.f32 %v4335, %v4384
        %v4404 = vadd.f32 %v4336, %v4386
        %v4405 = vadd.f32 %v4337, %v4388
        %v4406 = vadd.f32 %v4338, %v4390
        %4407 = vrot.lane.b32.xlu0 %v4031, 122
        %v4408 = vpop.permute.xlu0 %4407
        %4409 = vrot.lane.b32.xlu0 %v4032, 122
        %v4410 = vpop.permute.xlu0 %4409
        %4411 = vrot.lane.b32.xlu0 %v4033, 122
        %v4412 = vpop.permute.xlu0 %4411
        %4413 = vrot.lane.b32.xlu0 %v4034, 122
        %v4414 = vpop.permute.xlu0 %4413
        %s4415 = vtos %v4408
        %v4416 = vstv %s4415
        %s4418 = vtos %v4410
        %v4419 = vstv %s4418
        %s4421 = vtos %v4412
        %v4422 = vstv %s4421
        %s4424 = vtos %v4414
        %v4425 = vstv %s4424
        %v4427 = vmul.f32 %v296, %v4416
        %v4428 = vmul.f32 %v297, %v4416
        %v4429 = vmul.f32 %v299, %v4419
        %v4430 = vmul.f32 %v300, %v4419
        %v4431 = vmul.f32 %v302, %v4422
        %v4432 = vmul.f32 %v303, %v4422
        %v4433 = vmul.f32 %v305, %v4425
        %v4434 = vmul.f32 %v306, %v4425
        %4443 = vrot.lane.b32.xlu0 %v4427, 122
        %v4444 = vpop.permute.xlu0 %4443
        %4445 = vrot.lane.b32.xlu0 %v4428, 122
        %v4446 = vpop.permute.xlu0 %4445
        %4447 = vrot.lane.b32.xlu0 %v4429, 122
        %v4448 = vpop.permute.xlu0 %4447
        %4449 = vrot.lane.b32.xlu0 %v4430, 122
        %v4450 = vpop.permute.xlu0 %4449
        %4451 = vrot.lane.b32.xlu0 %v4431, 122
        %v4452 = vpop.permute.xlu0 %4451
        %4453 = vrot.lane.b32.xlu0 %v4432, 122
        %v4454 = vpop.permute.xlu0 %4453
        %4455 = vrot.lane.b32.xlu0 %v4433, 122
        %v4456 = vpop.permute.xlu0 %4455
        %4457 = vrot.lane.b32.xlu0 %v4434, 122
        %v4458 = vpop.permute.xlu0 %4457
        %v4467 = vadd.f32 %v4399, %v4444
        %v4468 = vadd.f32 %v4400, %v4446
        %v4469 = vadd.f32 %v4401, %v4448
        %v4470 = vadd.f32 %v4402, %v4450
        %v4471 = vadd.f32 %v4403, %v4452
        %v4472 = vadd.f32 %v4404, %v4454
        %v4473 = vadd.f32 %v4405, %v4456
        %v4474 = vadd.f32 %v4406, %v4458
        %v4475 = vld [vmem:[%s293 + $0x1] sm:$0x1]
        %v4476 = vld [vmem:[%s293 + $0x9] sm:$0x1]
        %v4477 = vld [vmem:[%s293 + $0x11] sm:$0x1]
        %v4478 = vld [vmem:[%s293 + $0x19] sm:$0x1]
        %s4480 = vtos %v4475
        %v4481 = vstv %s4480
        %s4484 = vtos %v4476
        %v4485 = vstv %s4484
        %s4488 = vtos %v4477
        %v4489 = vstv %s4488
        %s4492 = vtos %v4478
        %v4493 = vstv %s4492
        %v4495 = vmul.f32 %v296, %v4481
        %v4496 = vmul.f32 %v297, %v4481
        %v4497 = vmul.f32 %v298, %v4481
        %v4498 = vmul.f32 %v299, %v4485
        %v4499 = vmul.f32 %v300, %v4485
        %v4500 = vmul.f32 %v301, %v4485
        %v4501 = vmul.f32 %v302, %v4489
        %v4502 = vmul.f32 %v303, %v4489
        %v4503 = vmul.f32 %v304, %v4489
        %v4504 = vmul.f32 %v305, %v4493
        %v4505 = vmul.f32 %v306, %v4493
        %v4506 = vmul.f32 %v307, %v4493
        %v4519 = vrot.slane %v4495, 1
        %v4520 = vrot.slane %v4496, 1
        %v4521 = vsel %vm580, %v4519, %v4520
        %v4522 = vrot.slane %v4497, 1
        %v4523 = vsel %vm580, %v4520, %v4522
        %v4524 = vrot.slane %v4498, 1
        %v4525 = vrot.slane %v4499, 1
        %v4526 = vsel %vm580, %v4524, %v4525
        %v4527 = vrot.slane %v4500, 1
        %v4528 = vsel %vm580, %v4525, %v4527
        %v4529 = vrot.slane %v4501, 1
        %v4530 = vrot.slane %v4502, 1
        %v4531 = vsel %vm580, %v4529, %v4530
        %v4532 = vrot.slane %v4503, 1
        %v4533 = vsel %vm580, %v4530, %v4532
        %v4534 = vrot.slane %v4504, 1
        %v4535 = vrot.slane %v4505, 1
        %v4536 = vsel %vm580, %v4534, %v4535
        %v4537 = vrot.slane %v4506, 1
        %v4538 = vsel %vm580, %v4535, %v4537
        %v4547 = vadd.f32 %v4467, %v4521
        %v4548 = vadd.f32 %v4468, %v4523
        %v4549 = vadd.f32 %v4469, %v4526
        %v4550 = vadd.f32 %v4470, %v4528
        %v4551 = vadd.f32 %v4471, %v4531
        %v4552 = vadd.f32 %v4472, %v4533
        %v4553 = vadd.f32 %v4473, %v4536
        %v4554 = vadd.f32 %v4474, %v4538
        %4555 = vrot.lane.b32.xlu0 %v4475, 127
        %v4556 = vpop.permute.xlu0 %4555
        %4557 = vrot.lane.b32.xlu0 %v4476, 127
        %v4558 = vpop.permute.xlu0 %4557
        %4559 = vrot.lane.b32.xlu0 %v4477, 127
        %v4560 = vpop.permute.xlu0 %4559
        %4561 = vrot.lane.b32.xlu0 %v4478, 127
        %v4562 = vpop.permute.xlu0 %4561
        %s4563 = vtos %v4556
        %v4564 = vstv %s4563
        %s4566 = vtos %v4558
        %v4567 = vstv %s4566
        %s4569 = vtos %v4560
        %v4570 = vstv %s4569
        %s4572 = vtos %v4562
        %v4573 = vstv %s4572
        %v4575 = vmul.f32 %v296, %v4564
        %v4576 = vmul.f32 %v297, %v4564
        %v4577 = vmul.f32 %v298, %v4564
        %v4578 = vmul.f32 %v299, %v4567
        %v4579 = vmul.f32 %v300, %v4567
        %v4580 = vmul.f32 %v301, %v4567
        %v4581 = vmul.f32 %v302, %v4570
        %v4582 = vmul.f32 %v303, %v4570
        %v4583 = vmul.f32 %v304, %v4570
        %v4584 = vmul.f32 %v305, %v4573
        %v4585 = vmul.f32 %v306, %v4573
        %v4586 = vmul.f32 %v307, %v4573
        %v4599 = vrot.slane %v4575, 1
        %v4600 = vrot.slane %v4576, 1
        %v4601 = vsel %vm580, %v4599, %v4600
        %v4602 = vrot.slane %v4577, 1
        %v4603 = vsel %vm580, %v4600, %v4602
        %v4604 = vrot.slane %v4578, 1
        %v4605 = vrot.slane %v4579, 1
        %v4606 = vsel %vm580, %v4604, %v4605
        %v4607 = vrot.slane %v4580, 1
        %v4608 = vsel %vm580, %v4605, %v4607
        %v4609 = vrot.slane %v4581, 1
        %v4610 = vrot.slane %v4582, 1
        %v4611 = vsel %vm580, %v4609, %v4610
        %v4612 = vrot.slane %v4583, 1
        %v4613 = vsel %vm580, %v4610, %v4612
        %v4614 = vrot.slane %v4584, 1
        %v4615 = vrot.slane %v4585, 1
        %v4616 = vsel %vm580, %v4614, %v4615
        %v4617 = vrot.slane %v4586, 1
        %v4618 = vsel %vm580, %v4615, %v4617
        %4619 = vrot.lane.b32.xlu0 %v4601, 127
        %v4620 = vpop.permute.xlu0 %4619
        %4621 = vrot.lane.b32.xlu0 %v4603, 127
        %v4622 = vpop.permute.xlu0 %4621
        %4623 = vrot.lane.b32.xlu0 %v4606, 127
        %v4624 = vpop.permute.xlu0 %4623
        %4625 = vrot.lane.b32.xlu0 %v4608, 127
        %v4626 = vpop.permute.xlu0 %4625
        %4627 = vrot.lane.b32.xlu0 %v4611, 127
        %v4628 = vpop.permute.xlu0 %4627
        %4629 = vrot.lane.b32.xlu0 %v4613, 127
        %v4630 = vpop.permute.xlu0 %4629
        %4631 = vrot.lane.b32.xlu0 %v4616, 127
        %v4632 = vpop.permute.xlu0 %4631
        %4633 = vrot.lane.b32.xlu0 %v4618, 127
        %v4634 = vpop.permute.xlu0 %4633
        %v4643 = vadd.f32 %v4547, %v4620
        %v4644 = vadd.f32 %v4548, %v4622
        %v4645 = vadd.f32 %v4549, %v4624
        %v4646 = vadd.f32 %v4550, %v4626
        %v4647 = vadd.f32 %v4551, %v4628
        %v4648 = vadd.f32 %v4552, %v4630
        %v4649 = vadd.f32 %v4553, %v4632
        %v4650 = vadd.f32 %v4554, %v4634
        %4651 = vrot.lane.b32.xlu0 %v4475, 126
        %v4652 = vpop.permute.xlu0 %4651
        %4653 = vrot.lane.b32.xlu0 %v4476, 126
        %v4654 = vpop.permute.xlu0 %4653
        %4655 = vrot.lane.b32.xlu0 %v4477, 126
        %v4656 = vpop.permute.xlu0 %4655
        %4657 = vrot.lane.b32.xlu0 %v4478, 126
        %v4658 = vpop.permute.xlu0 %4657
        %s4659 = vtos %v4652
        %v4660 = vstv %s4659
        %s4662 = vtos %v4654
        %v4663 = vstv %s4662
        %s4665 = vtos %v4656
        %v4666 = vstv %s4665
        %s4668 = vtos %v4658
        %v4669 = vstv %s4668
        %v4671 = vmul.f32 %v296, %v4660
        %v4672 = vmul.f32 %v297, %v4660
        %v4673 = vmul.f32 %v298, %v4660
        %v4674 = vmul.f32 %v299, %v4663
        %v4675 = vmul.f32 %v300, %v4663
        %v4676 = vmul.f32 %v301, %v4663
        %v4677 = vmul.f32 %v302, %v4666
        %v4678 = vmul.f32 %v303, %v4666
        %v4679 = vmul.f32 %v304, %v4666
        %v4680 = vmul.f32 %v305, %v4669
        %v4681 = vmul.f32 %v306, %v4669
        %v4682 = vmul.f32 %v307, %v4669
        %v4695 = vrot.slane %v4671, 1
        %v4696 = vrot.slane %v4672, 1
        %v4697 = vsel %vm580, %v4695, %v4696
        %v4698 = vrot.slane %v4673, 1
        %v4699 = vsel %vm580, %v4696, %v4698
        %v4700 = vrot.slane %v4674, 1
        %v4701 = vrot.slane %v4675, 1
        %v4702 = vsel %vm580, %v4700, %v4701
        %v4703 = vrot.slane %v4676, 1
        %v4704 = vsel %vm580, %v4701, %v4703
        %v4705 = vrot.slane %v4677, 1
        %v4706 = vrot.slane %v4678, 1
        %v4707 = vsel %vm580, %v4705, %v4706
        %v4708 = vrot.slane %v4679, 1
        %v4709 = vsel %vm580, %v4706, %v4708
        %v4710 = vrot.slane %v4680, 1
        %v4711 = vrot.slane %v4681, 1
        %v4712 = vsel %vm580, %v4710, %v4711
        %v4713 = vrot.slane %v4682, 1
        %v4714 = vsel %vm580, %v4711, %v4713
        %4715 = vrot.lane.b32.xlu0 %v4697, 126
        %v4716 = vpop.permute.xlu0 %4715
        %4717 = vrot.lane.b32.xlu0 %v4699, 126
        %v4718 = vpop.permute.xlu0 %4717
        %4719 = vrot.lane.b32.xlu0 %v4702, 126
        %v4720 = vpop.permute.xlu0 %4719
        %4721 = vrot.lane.b32.xlu0 %v4704, 126
        %v4722 = vpop.permute.xlu0 %4721
        %4723 = vrot.lane.b32.xlu0 %v4707, 126
        %v4724 = vpop.permute.xlu0 %4723
        %4725 = vrot.lane.b32.xlu0 %v4709, 126
        %v4726 = vpop.permute.xlu0 %4725
        %4727 = vrot.lane.b32.xlu0 %v4712, 126
        %v4728 = vpop.permute.xlu0 %4727
        %4729 = vrot.lane.b32.xlu0 %v4714, 126
        %v4730 = vpop.permute.xlu0 %4729
        %v4739 = vadd.f32 %v4643, %v4716
        %v4740 = vadd.f32 %v4644, %v4718
        %v4741 = vadd.f32 %v4645, %v4720
        %v4742 = vadd.f32 %v4646, %v4722
        %v4743 = vadd.f32 %v4647, %v4724
        %v4744 = vadd.f32 %v4648, %v4726
        %v4745 = vadd.f32 %v4649, %v4728
        %v4746 = vadd.f32 %v4650, %v4730
        %4747 = vrot.lane.b32.xlu0 %v4475, 125
        %v4748 = vpop.permute.xlu0 %4747
        %4749 = vrot.lane.b32.xlu0 %v4476, 125
        %v4750 = vpop.permute.xlu0 %4749
        %4751 = vrot.lane.b32.xlu0 %v4477, 125
        %v4752 = vpop.permute.xlu0 %4751
        %4753 = vrot.lane.b32.xlu0 %v4478, 125
        %v4754 = vpop.permute.xlu0 %4753
        %s4755 = vtos %v4748
        %v4756 = vstv %s4755
        %s4758 = vtos %v4750
        %v4759 = vstv %s4758
        %s4761 = vtos %v4752
        %v4762 = vstv %s4761
        %s4764 = vtos %v4754
        %v4765 = vstv %s4764
        %v4767 = vmul.f32 %v296, %v4756
        %v4768 = vmul.f32 %v297, %v4756
        %v4769 = vmul.f32 %v298, %v4756
        %v4770 = vmul.f32 %v299, %v4759
        %v4771 = vmul.f32 %v300, %v4759
        %v4772 = vmul.f32 %v301, %v4759
        %v4773 = vmul.f32 %v302, %v4762
        %v4774 = vmul.f32 %v303, %v4762
        %v4775 = vmul.f32 %v304, %v4762
        %v4776 = vmul.f32 %v305, %v4765
        %v4777 = vmul.f32 %v306, %v4765
        %v4778 = vmul.f32 %v307, %v4765
        %v4791 = vrot.slane %v4767, 1
        %v4792 = vrot.slane %v4768, 1
        %v4793 = vsel %vm580, %v4791, %v4792
        %v4794 = vrot.slane %v4769, 1
        %v4795 = vsel %vm580, %v4792, %v4794
        %v4796 = vrot.slane %v4770, 1
        %v4797 = vrot.slane %v4771, 1
        %v4798 = vsel %vm580, %v4796, %v4797
        %v4799 = vrot.slane %v4772, 1
        %v4800 = vsel %vm580, %v4797, %v4799
        %v4801 = vrot.slane %v4773, 1
        %v4802 = vrot.slane %v4774, 1
        %v4803 = vsel %vm580, %v4801, %v4802
        %v4804 = vrot.slane %v4775, 1
        %v4805 = vsel %vm580, %v4802, %v4804
        %v4806 = vrot.slane %v4776, 1
        %v4807 = vrot.slane %v4777, 1
        %v4808 = vsel %vm580, %v4806, %v4807
        %v4809 = vrot.slane %v4778, 1
        %v4810 = vsel %vm580, %v4807, %v4809
        %4811 = vrot.lane.b32.xlu0 %v4793, 125
        %v4812 = vpop.permute.xlu0 %4811
        %4813 = vrot.lane.b32.xlu0 %v4795, 125
        %v4814 = vpop.permute.xlu0 %4813
        %4815 = vrot.lane.b32.xlu0 %v4798, 125
        %v4816 = vpop.permute.xlu0 %4815
        %4817 = vrot.lane.b32.xlu0 %v4800, 125
        %v4818 = vpop.permute.xlu0 %4817
        %4819 = vrot.lane.b32.xlu0 %v4803, 125
        %v4820 = vpop.permute.xlu0 %4819
        %4821 = vrot.lane.b32.xlu0 %v4805, 125
        %v4822 = vpop.permute.xlu0 %4821
        %4823 = vrot.lane.b32.xlu0 %v4808, 125
        %v4824 = vpop.permute.xlu0 %4823
        %4825 = vrot.lane.b32.xlu0 %v4810, 125
        %v4826 = vpop.permute.xlu0 %4825
        %v4835 = vadd.f32 %v4739, %v4812
        %v4836 = vadd.f32 %v4740, %v4814
        %v4837 = vadd.f32 %v4741, %v4816
        %v4838 = vadd.f32 %v4742, %v4818
        %v4839 = vadd.f32 %v4743, %v4820
        %v4840 = vadd.f32 %v4744, %v4822
        %v4841 = vadd.f32 %v4745, %v4824
        %v4842 = vadd.f32 %v4746, %v4826
        %4843 = vrot.lane.b32.xlu0 %v4475, 124
        %v4844 = vpop.permute.xlu0 %4843
        %4845 = vrot.lane.b32.xlu0 %v4476, 124
        %v4846 = vpop.permute.xlu0 %4845
        %4847 = vrot.lane.b32.xlu0 %v4477, 124
        %v4848 = vpop.permute.xlu0 %4847
        %4849 = vrot.lane.b32.xlu0 %v4478, 124
        %v4850 = vpop.permute.xlu0 %4849
        %s4851 = vtos %v4844
        %v4852 = vstv %s4851
        %s4854 = vtos %v4846
        %v4855 = vstv %s4854
        %s4857 = vtos %v4848
        %v4858 = vstv %s4857
        %s4860 = vtos %v4850
        %v4861 = vstv %s4860
        %v4863 = vmul.f32 %v296, %v4852
        %v4864 = vmul.f32 %v297, %v4852
        %v4865 = vmul.f32 %v298, %v4852
        %v4866 = vmul.f32 %v299, %v4855
        %v4867 = vmul.f32 %v300, %v4855
        %v4868 = vmul.f32 %v301, %v4855
        %v4869 = vmul.f32 %v302, %v4858
        %v4870 = vmul.f32 %v303, %v4858
        %v4871 = vmul.f32 %v304, %v4858
        %v4872 = vmul.f32 %v305, %v4861
        %v4873 = vmul.f32 %v306, %v4861
        %v4874 = vmul.f32 %v307, %v4861
        %v4887 = vrot.slane %v4863, 1
        %v4888 = vrot.slane %v4864, 1
        %v4889 = vsel %vm580, %v4887, %v4888
        %v4890 = vrot.slane %v4865, 1
        %v4891 = vsel %vm580, %v4888, %v4890
        %v4892 = vrot.slane %v4866, 1
        %v4893 = vrot.slane %v4867, 1
        %v4894 = vsel %vm580, %v4892, %v4893
        %v4895 = vrot.slane %v4868, 1
        %v4896 = vsel %vm580, %v4893, %v4895
        %v4897 = vrot.slane %v4869, 1
        %v4898 = vrot.slane %v4870, 1
        %v4899 = vsel %vm580, %v4897, %v4898
        %v4900 = vrot.slane %v4871, 1
        %v4901 = vsel %vm580, %v4898, %v4900
        %v4902 = vrot.slane %v4872, 1
        %v4903 = vrot.slane %v4873, 1
        %v4904 = vsel %vm580, %v4902, %v4903
        %v4905 = vrot.slane %v4874, 1
        %v4906 = vsel %vm580, %v4903, %v4905
        %4907 = vrot.lane.b32.xlu0 %v4889, 124
        %v4908 = vpop.permute.xlu0 %4907
        %4909 = vrot.lane.b32.xlu0 %v4891, 124
        %v4910 = vpop.permute.xlu0 %4909
        %4911 = vrot.lane.b32.xlu0 %v4894, 124
        %v4912 = vpop.permute.xlu0 %4911
        %4913 = vrot.lane.b32.xlu0 %v4896, 124
        %v4914 = vpop.permute.xlu0 %4913
        %4915 = vrot.lane.b32.xlu0 %v4899, 124
        %v4916 = vpop.permute.xlu0 %4915
        %4917 = vrot.lane.b32.xlu0 %v4901, 124
        %v4918 = vpop.permute.xlu0 %4917
        %4919 = vrot.lane.b32.xlu0 %v4904, 124
        %v4920 = vpop.permute.xlu0 %4919
        %4921 = vrot.lane.b32.xlu0 %v4906, 124
        %v4922 = vpop.permute.xlu0 %4921
        %v4931 = vadd.f32 %v4835, %v4908
        %v4932 = vadd.f32 %v4836, %v4910
        %v4933 = vadd.f32 %v4837, %v4912
        %v4934 = vadd.f32 %v4838, %v4914
        %v4935 = vadd.f32 %v4839, %v4916
        %v4936 = vadd.f32 %v4840, %v4918
        %v4937 = vadd.f32 %v4841, %v4920
        %v4938 = vadd.f32 %v4842, %v4922
        %4939 = vrot.lane.b32.xlu0 %v4475, 123
        %v4940 = vpop.permute.xlu0 %4939
        %4941 = vrot.lane.b32.xlu0 %v4476, 123
        %v4942 = vpop.permute.xlu0 %4941
        %4943 = vrot.lane.b32.xlu0 %v4477, 123
        %v4944 = vpop.permute.xlu0 %4943
        %4945 = vrot.lane.b32.xlu0 %v4478, 123
        %v4946 = vpop.permute.xlu0 %4945
        %s4947 = vtos %v4940
        %v4948 = vstv %s4947
        %s4950 = vtos %v4942
        %v4951 = vstv %s4950
        %s4953 = vtos %v4944
        %v4954 = vstv %s4953
        %s4956 = vtos %v4946
        %v4957 = vstv %s4956
        %v4959 = vmul.f32 %v296, %v4948
        %v4960 = vmul.f32 %v297, %v4948
        %v4961 = vmul.f32 %v298, %v4948
        %v4962 = vmul.f32 %v299, %v4951
        %v4963 = vmul.f32 %v300, %v4951
        %v4964 = vmul.f32 %v301, %v4951
        %v4965 = vmul.f32 %v302, %v4954
        %v4966 = vmul.f32 %v303, %v4954
        %v4967 = vmul.f32 %v304, %v4954
        %v4968 = vmul.f32 %v305, %v4957
        %v4969 = vmul.f32 %v306, %v4957
        %v4970 = vmul.f32 %v307, %v4957
        %v4983 = vrot.slane %v4959, 1
        %v4984 = vrot.slane %v4960, 1
        %v4985 = vsel %vm580, %v4983, %v4984
        %v4986 = vrot.slane %v4961, 1
        %v4987 = vsel %vm580, %v4984, %v4986
        %v4988 = vrot.slane %v4962, 1
        %v4989 = vrot.slane %v4963, 1
        %v4990 = vsel %vm580, %v4988, %v4989
        %v4991 = vrot.slane %v4964, 1
        %v4992 = vsel %vm580, %v4989, %v4991
        %v4993 = vrot.slane %v4965, 1
        %v4994 = vrot.slane %v4966, 1
        %v4995 = vsel %vm580, %v4993, %v4994
        %v4996 = vrot.slane %v4967, 1
        %v4997 = vsel %vm580, %v4994, %v4996
        %v4998 = vrot.slane %v4968, 1
        %v4999 = vrot.slane %v4969, 1
        %v5000 = vsel %vm580, %v4998, %v4999
        %v5001 = vrot.slane %v4970, 1
        %v5002 = vsel %vm580, %v4999, %v5001
        %5003 = vrot.lane.b32.xlu0 %v4985, 123
        %v5004 = vpop.permute.xlu0 %5003
        %5005 = vrot.lane.b32.xlu0 %v4987, 123
        %v5006 = vpop.permute.xlu0 %5005
        %5007 = vrot.lane.b32.xlu0 %v4990, 123
        %v5008 = vpop.permute.xlu0 %5007
        %5009 = vrot.lane.b32.xlu0 %v4992, 123
        %v5010 = vpop.permute.xlu0 %5009
        %5011 = vrot.lane.b32.xlu0 %v4995, 123
        %v5012 = vpop.permute.xlu0 %5011
        %5013 = vrot.lane.b32.xlu0 %v4997, 123
        %v5014 = vpop.permute.xlu0 %5013
        %5015 = vrot.lane.b32.xlu0 %v5000, 123
        %v5016 = vpop.permute.xlu0 %5015
        %5017 = vrot.lane.b32.xlu0 %v5002, 123
        %v5018 = vpop.permute.xlu0 %5017
        %v5027 = vadd.f32 %v4931, %v5004
        %v5028 = vadd.f32 %v4932, %v5006
        %v5029 = vadd.f32 %v4933, %v5008
        %v5030 = vadd.f32 %v4934, %v5010
        %v5031 = vadd.f32 %v4935, %v5012
        %v5032 = vadd.f32 %v4936, %v5014
        %v5033 = vadd.f32 %v4937, %v5016
        %v5034 = vadd.f32 %v4938, %v5018
        %5035 = vrot.lane.b32.xlu0 %v4475, 122
        %v5036 = vpop.permute.xlu0 %5035
        %5037 = vrot.lane.b32.xlu0 %v4476, 122
        %v5038 = vpop.permute.xlu0 %5037
        %5039 = vrot.lane.b32.xlu0 %v4477, 122
        %v5040 = vpop.permute.xlu0 %5039
        %5041 = vrot.lane.b32.xlu0 %v4478, 122
        %v5042 = vpop.permute.xlu0 %5041
        %s5043 = vtos %v5036
        %v5044 = vstv %s5043
        %s5046 = vtos %v5038
        %v5047 = vstv %s5046
        %s5049 = vtos %v5040
        %v5050 = vstv %s5049
        %s5052 = vtos %v5042
        %v5053 = vstv %s5052
        %v5055 = vmul.f32 %v296, %v5044
        %v5056 = vmul.f32 %v297, %v5044
        %v5057 = vmul.f32 %v298, %v5044
        %v5058 = vmul.f32 %v299, %v5047
        %v5059 = vmul.f32 %v300, %v5047
        %v5060 = vmul.f32 %v301, %v5047
        %v5061 = vmul.f32 %v302, %v5050
        %v5062 = vmul.f32 %v303, %v5050
        %v5063 = vmul.f32 %v304, %v5050
        %v5064 = vmul.f32 %v305, %v5053
        %v5065 = vmul.f32 %v306, %v5053
        %v5066 = vmul.f32 %v307, %v5053
        %v5079 = vrot.slane %v5055, 1
        %v5080 = vrot.slane %v5056, 1
        %v5081 = vsel %vm580, %v5079, %v5080
        %v5082 = vrot.slane %v5057, 1
        %v5083 = vsel %vm580, %v5080, %v5082
        %v5084 = vrot.slane %v5058, 1
        %v5085 = vrot.slane %v5059, 1
        %v5086 = vsel %vm580, %v5084, %v5085
        %v5087 = vrot.slane %v5060, 1
        %v5088 = vsel %vm580, %v5085, %v5087
        %v5089 = vrot.slane %v5061, 1
        %v5090 = vrot.slane %v5062, 1
        %v5091 = vsel %vm580, %v5089, %v5090
        %v5092 = vrot.slane %v5063, 1
        %v5093 = vsel %vm580, %v5090, %v5092
        %v5094 = vrot.slane %v5064, 1
        %v5095 = vrot.slane %v5065, 1
        %v5096 = vsel %vm580, %v5094, %v5095
        %v5097 = vrot.slane %v5066, 1
        %v5098 = vsel %vm580, %v5095, %v5097
        %5099 = vrot.lane.b32.xlu0 %v5081, 122
        %v5100 = vpop.permute.xlu0 %5099
        %5101 = vrot.lane.b32.xlu0 %v5083, 122
        %v5102 = vpop.permute.xlu0 %5101
        %5103 = vrot.lane.b32.xlu0 %v5086, 122
        %v5104 = vpop.permute.xlu0 %5103
        %5105 = vrot.lane.b32.xlu0 %v5088, 122
        %v5106 = vpop.permute.xlu0 %5105
        %5107 = vrot.lane.b32.xlu0 %v5091, 122
        %v5108 = vpop.permute.xlu0 %5107
        %5109 = vrot.lane.b32.xlu0 %v5093, 122
        %v5110 = vpop.permute.xlu0 %5109
        %5111 = vrot.lane.b32.xlu0 %v5096, 122
        %v5112 = vpop.permute.xlu0 %5111
        %5113 = vrot.lane.b32.xlu0 %v5098, 122
        %v5114 = vpop.permute.xlu0 %5113
        %v5123 = vadd.f32 %v5027, %v5100
        %v5124 = vadd.f32 %v5028, %v5102
        %v5125 = vadd.f32 %v5029, %v5104
        %v5126 = vadd.f32 %v5030, %v5106
        %v5127 = vadd.f32 %v5031, %v5108
        %v5128 = vadd.f32 %v5032, %v5110
        %v5129 = vadd.f32 %v5033, %v5112
        %v5130 = vadd.f32 %v5034, %v5114
        %v5131 = vld [vmem:[%s293 + $0x2] sm:$0x1]
        %v5132 = vld [vmem:[%s293 + $0xa] sm:$0x1]
        %v5133 = vld [vmem:[%s293 + $0x12] sm:$0x1]
        %v5134 = vld [vmem:[%s293 + $0x1a] sm:$0x1]
        %s5136 = vtos %v5131
        %v5137 = vstv %s5136
        %s5140 = vtos %v5132
        %v5141 = vstv %s5140
        %s5144 = vtos %v5133
        %v5145 = vstv %s5144
        %s5148 = vtos %v5134
        %v5149 = vstv %s5148
        %v5151 = vmul.f32 %v296, %v5137
        %v5152 = vmul.f32 %v297, %v5137
        %v5153 = vmul.f32 %v298, %v5137
        %v5154 = vmul.f32 %v299, %v5141
        %v5155 = vmul.f32 %v300, %v5141
        %v5156 = vmul.f32 %v301, %v5141
        %v5157 = vmul.f32 %v302, %v5145
        %v5158 = vmul.f32 %v303, %v5145
        %v5159 = vmul.f32 %v304, %v5145
        %v5160 = vmul.f32 %v305, %v5149
        %v5161 = vmul.f32 %v306, %v5149
        %v5162 = vmul.f32 %v307, %v5149
        %v5175 = vrot.slane %v5151, 2
        %v5176 = vrot.slane %v5152, 2
        %v5177 = vsel %vm893, %v5175, %v5176
        %v5178 = vrot.slane %v5153, 2
        %v5179 = vsel %vm893, %v5176, %v5178
        %v5180 = vrot.slane %v5154, 2
        %v5181 = vrot.slane %v5155, 2
        %v5182 = vsel %vm893, %v5180, %v5181
        %v5183 = vrot.slane %v5156, 2
        %v5184 = vsel %vm893, %v5181, %v5183
        %v5185 = vrot.slane %v5157, 2
        %v5186 = vrot.slane %v5158, 2
        %v5187 = vsel %vm893, %v5185, %v5186
        %v5188 = vrot.slane %v5159, 2
        %v5189 = vsel %vm893, %v5186, %v5188
        %v5190 = vrot.slane %v5160, 2
        %v5191 = vrot.slane %v5161, 2
        %v5192 = vsel %vm893, %v5190, %v5191
        %v5193 = vrot.slane %v5162, 2
        %v5194 = vsel %vm893, %v5191, %v5193
        %v5203 = vadd.f32 %v5123, %v5177
        %v5204 = vadd.f32 %v5124, %v5179
        %v5205 = vadd.f32 %v5125, %v5182
        %v5206 = vadd.f32 %v5126, %v5184
        %v5207 = vadd.f32 %v5127, %v5187
        %v5208 = vadd.f32 %v5128, %v5189
        %v5209 = vadd.f32 %v5129, %v5192
        %v5210 = vadd.f32 %v5130, %v5194
        %5211 = vrot.lane.b32.xlu0 %v5131, 127
        %v5212 = vpop.permute.xlu0 %5211
        %5213 = vrot.lane.b32.xlu0 %v5132, 127
        %v5214 = vpop.permute.xlu0 %5213
        %5215 = vrot.lane.b32.xlu0 %v5133, 127
        %v5216 = vpop.permute.xlu0 %5215
        %5217 = vrot.lane.b32.xlu0 %v5134, 127
        %v5218 = vpop.permute.xlu0 %5217
        %s5219 = vtos %v5212
        %v5220 = vstv %s5219
        %s5222 = vtos %v5214
        %v5223 = vstv %s5222
        %s5225 = vtos %v5216
        %v5226 = vstv %s5225
        %s5228 = vtos %v5218
        %v5229 = vstv %s5228
        %v5231 = vmul.f32 %v296, %v5220
        %v5232 = vmul.f32 %v297, %v5220
        %v5233 = vmul.f32 %v298, %v5220
        %v5234 = vmul.f32 %v299, %v5223
        %v5235 = vmul.f32 %v300, %v5223
        %v5236 = vmul.f32 %v301, %v5223
        %v5237 = vmul.f32 %v302, %v5226
        %v5238 = vmul.f32 %v303, %v5226
        %v5239 = vmul.f32 %v304, %v5226
        %v5240 = vmul.f32 %v305, %v5229
        %v5241 = vmul.f32 %v306, %v5229
        %v5242 = vmul.f32 %v307, %v5229
        %v5255 = vrot.slane %v5231, 2
        %v5256 = vrot.slane %v5232, 2
        %v5257 = vsel %vm893, %v5255, %v5256
        %v5258 = vrot.slane %v5233, 2
        %v5259 = vsel %vm893, %v5256, %v5258
        %v5260 = vrot.slane %v5234, 2
        %v5261 = vrot.slane %v5235, 2
        %v5262 = vsel %vm893, %v5260, %v5261
        %v5263 = vrot.slane %v5236, 2
        %v5264 = vsel %vm893, %v5261, %v5263
        %v5265 = vrot.slane %v5237, 2
        %v5266 = vrot.slane %v5238, 2
        %v5267 = vsel %vm893, %v5265, %v5266
        %v5268 = vrot.slane %v5239, 2
        %v5269 = vsel %vm893, %v5266, %v5268
        %v5270 = vrot.slane %v5240, 2
        %v5271 = vrot.slane %v5241, 2
        %v5272 = vsel %vm893, %v5270, %v5271
        %v5273 = vrot.slane %v5242, 2
        %v5274 = vsel %vm893, %v5271, %v5273
        %5275 = vrot.lane.b32.xlu0 %v5257, 127
        %v5276 = vpop.permute.xlu0 %5275
        %5277 = vrot.lane.b32.xlu0 %v5259, 127
        %v5278 = vpop.permute.xlu0 %5277
        %5279 = vrot.lane.b32.xlu0 %v5262, 127
        %v5280 = vpop.permute.xlu0 %5279
        %5281 = vrot.lane.b32.xlu0 %v5264, 127
        %v5282 = vpop.permute.xlu0 %5281
        %5283 = vrot.lane.b32.xlu0 %v5267, 127
        %v5284 = vpop.permute.xlu0 %5283
        %5285 = vrot.lane.b32.xlu0 %v5269, 127
        %v5286 = vpop.permute.xlu0 %5285
        %5287 = vrot.lane.b32.xlu0 %v5272, 127
        %v5288 = vpop.permute.xlu0 %5287
        %5289 = vrot.lane.b32.xlu0 %v5274, 127
        %v5290 = vpop.permute.xlu0 %5289
        %v5299 = vadd.f32 %v5203, %v5276
        %v5300 = vadd.f32 %v5204, %v5278
        %v5301 = vadd.f32 %v5205, %v5280
        %v5302 = vadd.f32 %v5206, %v5282
        %v5303 = vadd.f32 %v5207, %v5284
        %v5304 = vadd.f32 %v5208, %v5286
        %v5305 = vadd.f32 %v5209, %v5288
        %v5306 = vadd.f32 %v5210, %v5290
        %5307 = vrot.lane.b32.xlu0 %v5131, 126
        %v5308 = vpop.permute.xlu0 %5307
        %5309 = vrot.lane.b32.xlu0 %v5132, 126
        %v5310 = vpop.permute.xlu0 %5309
        %5311 = vrot.lane.b32.xlu0 %v5133, 126
        %v5312 = vpop.permute.xlu0 %5311
        %5313 = vrot.lane.b32.xlu0 %v5134, 126
        %v5314 = vpop.permute.xlu0 %5313
        %s5315 = vtos %v5308
        %v5316 = vstv %s5315
        %s5318 = vtos %v5310
        %v5319 = vstv %s5318
        %s5321 = vtos %v5312
        %v5322 = vstv %s5321
        %s5324 = vtos %v5314
        %v5325 = vstv %s5324
        %v5327 = vmul.f32 %v296, %v5316
        %v5328 = vmul.f32 %v297, %v5316
        %v5329 = vmul.f32 %v298, %v5316
        %v5330 = vmul.f32 %v299, %v5319
        %v5331 = vmul.f32 %v300, %v5319
        %v5332 = vmul.f32 %v301, %v5319
        %v5333 = vmul.f32 %v302, %v5322
        %v5334 = vmul.f32 %v303, %v5322
        %v5335 = vmul.f32 %v304, %v5322
        %v5336 = vmul.f32 %v305, %v5325
        %v5337 = vmul.f32 %v306, %v5325
        %v5338 = vmul.f32 %v307, %v5325
        %v5351 = vrot.slane %v5327, 2
        %v5352 = vrot.slane %v5328, 2
        %v5353 = vsel %vm893, %v5351, %v5352
        %v5354 = vrot.slane %v5329, 2
        %v5355 = vsel %vm893, %v5352, %v5354
        %v5356 = vrot.slane %v5330, 2
        %v5357 = vrot.slane %v5331, 2
        %v5358 = vsel %vm893, %v5356, %v5357
        %v5359 = vrot.slane %v5332, 2
        %v5360 = vsel %vm893, %v5357, %v5359
        %v5361 = vrot.slane %v5333, 2
        %v5362 = vrot.slane %v5334, 2
        %v5363 = vsel %vm893, %v5361, %v5362
        %v5364 = vrot.slane %v5335, 2
        %v5365 = vsel %vm893, %v5362, %v5364
        %v5366 = vrot.slane %v5336, 2
        %v5367 = vrot.slane %v5337, 2
        %v5368 = vsel %vm893, %v5366, %v5367
        %v5369 = vrot.slane %v5338, 2
        %v5370 = vsel %vm893, %v5367, %v5369
        %5371 = vrot.lane.b32.xlu0 %v5353, 126
        %v5372 = vpop.permute.xlu0 %5371
        %5373 = vrot.lane.b32.xlu0 %v5355, 126
        %v5374 = vpop.permute.xlu0 %5373
        %5375 = vrot.lane.b32.xlu0 %v5358, 126
        %v5376 = vpop.permute.xlu0 %5375
        %5377 = vrot.lane.b32.xlu0 %v5360, 126
        %v5378 = vpop.permute.xlu0 %5377
        %5379 = vrot.lane.b32.xlu0 %v5363, 126
        %v5380 = vpop.permute.xlu0 %5379
        %5381 = vrot.lane.b32.xlu0 %v5365, 126
        %v5382 = vpop.permute.xlu0 %5381
        %5383 = vrot.lane.b32.xlu0 %v5368, 126
        %v5384 = vpop.permute.xlu0 %5383
        %5385 = vrot.lane.b32.xlu0 %v5370, 126
        %v5386 = vpop.permute.xlu0 %5385
        %v5395 = vadd.f32 %v5299, %v5372
        %v5396 = vadd.f32 %v5300, %v5374
        %v5397 = vadd.f32 %v5301, %v5376
        %v5398 = vadd.f32 %v5302, %v5378
        %v5399 = vadd.f32 %v5303, %v5380
        %v5400 = vadd.f32 %v5304, %v5382
        %v5401 = vadd.f32 %v5305, %v5384
        %v5402 = vadd.f32 %v5306, %v5386
        %5403 = vrot.lane.b32.xlu0 %v5131, 125
        %v5404 = vpop.permute.xlu0 %5403
        %5405 = vrot.lane.b32.xlu0 %v5132, 125
        %v5406 = vpop.permute.xlu0 %5405
        %5407 = vrot.lane.b32.xlu0 %v5133, 125
        %v5408 = vpop.permute.xlu0 %5407
        %5409 = vrot.lane.b32.xlu0 %v5134, 125
        %v5410 = vpop.permute.xlu0 %5409
        %s5411 = vtos %v5404
        %v5412 = vstv %s5411
        %s5414 = vtos %v5406
        %v5415 = vstv %s5414
        %s5417 = vtos %v5408
        %v5418 = vstv %s5417
        %s5420 = vtos %v5410
        %v5421 = vstv %s5420
        %v5423 = vmul.f32 %v296, %v5412
        %v5424 = vmul.f32 %v297, %v5412
        %v5425 = vmul.f32 %v298, %v5412
        %v5426 = vmul.f32 %v299, %v5415
        %v5427 = vmul.f32 %v300, %v5415
        %v5428 = vmul.f32 %v301, %v5415
        %v5429 = vmul.f32 %v302, %v5418
        %v5430 = vmul.f32 %v303, %v5418
        %v5431 = vmul.f32 %v304, %v5418
        %v5432 = vmul.f32 %v305, %v5421
        %v5433 = vmul.f32 %v306, %v5421
        %v5434 = vmul.f32 %v307, %v5421
        %v5447 = vrot.slane %v5423, 2
        %v5448 = vrot.slane %v5424, 2
        %v5449 = vsel %vm893, %v5447, %v5448
        %v5450 = vrot.slane %v5425, 2
        %v5451 = vsel %vm893, %v5448, %v5450
        %v5452 = vrot.slane %v5426, 2
        %v5453 = vrot.slane %v5427, 2
        %v5454 = vsel %vm893, %v5452, %v5453
        %v5455 = vrot.slane %v5428, 2
        %v5456 = vsel %vm893, %v5453, %v5455
        %v5457 = vrot.slane %v5429, 2
        %v5458 = vrot.slane %v5430, 2
        %v5459 = vsel %vm893, %v5457, %v5458
        %v5460 = vrot.slane %v5431, 2
        %v5461 = vsel %vm893, %v5458, %v5460
        %v5462 = vrot.slane %v5432, 2
        %v5463 = vrot.slane %v5433, 2
        %v5464 = vsel %vm893, %v5462, %v5463
        %v5465 = vrot.slane %v5434, 2
        %v5466 = vsel %vm893, %v5463, %v5465
        %5467 = vrot.lane.b32.xlu0 %v5449, 125
        %v5468 = vpop.permute.xlu0 %5467
        %5469 = vrot.lane.b32.xlu0 %v5451, 125
        %v5470 = vpop.permute.xlu0 %5469
        %5471 = vrot.lane.b32.xlu0 %v5454, 125
        %v5472 = vpop.permute.xlu0 %5471
        %5473 = vrot.lane.b32.xlu0 %v5456, 125
        %v5474 = vpop.permute.xlu0 %5473
        %5475 = vrot.lane.b32.xlu0 %v5459, 125
        %v5476 = vpop.permute.xlu0 %5475
        %5477 = vrot.lane.b32.xlu0 %v5461, 125
        %v5478 = vpop.permute.xlu0 %5477
        %5479 = vrot.lane.b32.xlu0 %v5464, 125
        %v5480 = vpop.permute.xlu0 %5479
        %5481 = vrot.lane.b32.xlu0 %v5466, 125
        %v5482 = vpop.permute.xlu0 %5481
        %v5491 = vadd.f32 %v5395, %v5468
        %v5492 = vadd.f32 %v5396, %v5470
        %v5493 = vadd.f32 %v5397, %v5472
        %v5494 = vadd.f32 %v5398, %v5474
        %v5495 = vadd.f32 %v5399, %v5476
        %v5496 = vadd.f32 %v5400, %v5478
        %v5497 = vadd.f32 %v5401, %v5480
        %v5498 = vadd.f32 %v5402, %v5482
        %5499 = vrot.lane.b32.xlu0 %v5131, 124
        %v5500 = vpop.permute.xlu0 %5499
        %5501 = vrot.lane.b32.xlu0 %v5132, 124
        %v5502 = vpop.permute.xlu0 %5501
        %5503 = vrot.lane.b32.xlu0 %v5133, 124
        %v5504 = vpop.permute.xlu0 %5503
        %5505 = vrot.lane.b32.xlu0 %v5134, 124
        %v5506 = vpop.permute.xlu0 %5505
        %s5507 = vtos %v5500
        %v5508 = vstv %s5507
        %s5510 = vtos %v5502
        %v5511 = vstv %s5510
        %s5513 = vtos %v5504
        %v5514 = vstv %s5513
        %s5516 = vtos %v5506
        %v5517 = vstv %s5516
        %v5519 = vmul.f32 %v296, %v5508
        %v5520 = vmul.f32 %v297, %v5508
        %v5521 = vmul.f32 %v298, %v5508
        %v5522 = vmul.f32 %v299, %v5511
        %v5523 = vmul.f32 %v300, %v5511
        %v5524 = vmul.f32 %v301, %v5511
        %v5525 = vmul.f32 %v302, %v5514
        %v5526 = vmul.f32 %v303, %v5514
        %v5527 = vmul.f32 %v304, %v5514
        %v5528 = vmul.f32 %v305, %v5517
        %v5529 = vmul.f32 %v306, %v5517
        %v5530 = vmul.f32 %v307, %v5517
        %v5543 = vrot.slane %v5519, 2
        %v5544 = vrot.slane %v5520, 2
        %v5545 = vsel %vm893, %v5543, %v5544
        %v5546 = vrot.slane %v5521, 2
        %v5547 = vsel %vm893, %v5544, %v5546
        %v5548 = vrot.slane %v5522, 2
        %v5549 = vrot.slane %v5523, 2
        %v5550 = vsel %vm893, %v5548, %v5549
        %v5551 = vrot.slane %v5524, 2
        %v5552 = vsel %vm893, %v5549, %v5551
        %v5553 = vrot.slane %v5525, 2
        %v5554 = vrot.slane %v5526, 2
        %v5555 = vsel %vm893, %v5553, %v5554
        %v5556 = vrot.slane %v5527, 2
        %v5557 = vsel %vm893, %v5554, %v5556
        %v5558 = vrot.slane %v5528, 2
        %v5559 = vrot.slane %v5529, 2
        %v5560 = vsel %vm893, %v5558, %v5559
        %v5561 = vrot.slane %v5530, 2
        %v5562 = vsel %vm893, %v5559, %v5561
        %5563 = vrot.lane.b32.xlu0 %v5545, 124
        %v5564 = vpop.permute.xlu0 %5563
        %5565 = vrot.lane.b32.xlu0 %v5547, 124
        %v5566 = vpop.permute.xlu0 %5565
        %5567 = vrot.lane.b32.xlu0 %v5550, 124
        %v5568 = vpop.permute.xlu0 %5567
        %5569 = vrot.lane.b32.xlu0 %v5552, 124
        %v5570 = vpop.permute.xlu0 %5569
        %5571 = vrot.lane.b32.xlu0 %v5555, 124
        %v5572 = vpop.permute.xlu0 %5571
        %5573 = vrot.lane.b32.xlu0 %v5557, 124
        %v5574 = vpop.permute.xlu0 %5573
        %5575 = vrot.lane.b32.xlu0 %v5560, 124
        %v5576 = vpop.permute.xlu0 %5575
        %5577 = vrot.lane.b32.xlu0 %v5562, 124
        %v5578 = vpop.permute.xlu0 %5577
        %v5587 = vadd.f32 %v5491, %v5564
        %v5588 = vadd.f32 %v5492, %v5566
        %v5589 = vadd.f32 %v5493, %v5568
        %v5590 = vadd.f32 %v5494, %v5570
        %v5591 = vadd.f32 %v5495, %v5572
        %v5592 = vadd.f32 %v5496, %v5574
        %v5593 = vadd.f32 %v5497, %v5576
        %v5594 = vadd.f32 %v5498, %v5578
        %5595 = vrot.lane.b32.xlu0 %v5131, 123
        %v5596 = vpop.permute.xlu0 %5595
        %5597 = vrot.lane.b32.xlu0 %v5132, 123
        %v5598 = vpop.permute.xlu0 %5597
        %5599 = vrot.lane.b32.xlu0 %v5133, 123
        %v5600 = vpop.permute.xlu0 %5599
        %5601 = vrot.lane.b32.xlu0 %v5134, 123
        %v5602 = vpop.permute.xlu0 %5601
        %s5603 = vtos %v5596
        %v5604 = vstv %s5603
        %s5606 = vtos %v5598
        %v5607 = vstv %s5606
        %s5609 = vtos %v5600
        %v5610 = vstv %s5609
        %s5612 = vtos %v5602
        %v5613 = vstv %s5612
        %v5615 = vmul.f32 %v296, %v5604
        %v5616 = vmul.f32 %v297, %v5604
        %v5617 = vmul.f32 %v298, %v5604
        %v5618 = vmul.f32 %v299, %v5607
        %v5619 = vmul.f32 %v300, %v5607
        %v5620 = vmul.f32 %v301, %v5607
        %v5621 = vmul.f32 %v302, %v5610
        %v5622 = vmul.f32 %v303, %v5610
        %v5623 = vmul.f32 %v304, %v5610
        %v5624 = vmul.f32 %v305, %v5613
        %v5625 = vmul.f32 %v306, %v5613
        %v5626 = vmul.f32 %v307, %v5613
        %v5639 = vrot.slane %v5615, 2
        %v5640 = vrot.slane %v5616, 2
        %v5641 = vsel %vm893, %v5639, %v5640
        %v5642 = vrot.slane %v5617, 2
        %v5643 = vsel %vm893, %v5640, %v5642
        %v5644 = vrot.slane %v5618, 2
        %v5645 = vrot.slane %v5619, 2
        %v5646 = vsel %vm893, %v5644, %v5645
        %v5647 = vrot.slane %v5620, 2
        %v5648 = vsel %vm893, %v5645, %v5647
        %v5649 = vrot.slane %v5621, 2
        %v5650 = vrot.slane %v5622, 2
        %v5651 = vsel %vm893, %v5649, %v5650
        %v5652 = vrot.slane %v5623, 2
        %v5653 = vsel %vm893, %v5650, %v5652
        %v5654 = vrot.slane %v5624, 2
        %v5655 = vrot.slane %v5625, 2
        %v5656 = vsel %vm893, %v5654, %v5655
        %v5657 = vrot.slane %v5626, 2
        %v5658 = vsel %vm893, %v5655, %v5657
        %5659 = vrot.lane.b32.xlu0 %v5641, 123
        %v5660 = vpop.permute.xlu0 %5659
        %5661 = vrot.lane.b32.xlu0 %v5643, 123
        %v5662 = vpop.permute.xlu0 %5661
        %5663 = vrot.lane.b32.xlu0 %v5646, 123
        %v5664 = vpop.permute.xlu0 %5663
        %5665 = vrot.lane.b32.xlu0 %v5648, 123
        %v5666 = vpop.permute.xlu0 %5665
        %5667 = vrot.lane.b32.xlu0 %v5651, 123
        %v5668 = vpop.permute.xlu0 %5667
        %5669 = vrot.lane.b32.xlu0 %v5653, 123
        %v5670 = vpop.permute.xlu0 %5669
        %5671 = vrot.lane.b32.xlu0 %v5656, 123
        %v5672 = vpop.permute.xlu0 %5671
        %5673 = vrot.lane.b32.xlu0 %v5658, 123
        %v5674 = vpop.permute.xlu0 %5673
        %v5683 = vadd.f32 %v5587, %v5660
        %v5684 = vadd.f32 %v5588, %v5662
        %v5685 = vadd.f32 %v5589, %v5664
        %v5686 = vadd.f32 %v5590, %v5666
        %v5687 = vadd.f32 %v5591, %v5668
        %v5688 = vadd.f32 %v5592, %v5670
        %v5689 = vadd.f32 %v5593, %v5672
        %v5690 = vadd.f32 %v5594, %v5674
        %5691 = vrot.lane.b32.xlu0 %v5131, 122
        %v5692 = vpop.permute.xlu0 %5691
        %5693 = vrot.lane.b32.xlu0 %v5132, 122
        %v5694 = vpop.permute.xlu0 %5693
        %5695 = vrot.lane.b32.xlu0 %v5133, 122
        %v5696 = vpop.permute.xlu0 %5695
        %5697 = vrot.lane.b32.xlu0 %v5134, 122
        %v5698 = vpop.permute.xlu0 %5697
        %s5699 = vtos %v5692
        %v5700 = vstv %s5699
        %s5702 = vtos %v5694
        %v5703 = vstv %s5702
        %s5705 = vtos %v5696
        %v5706 = vstv %s5705
        %s5708 = vtos %v5698
        %v5709 = vstv %s5708
        %v5711 = vmul.f32 %v296, %v5700
        %v5712 = vmul.f32 %v297, %v5700
        %v5713 = vmul.f32 %v298, %v5700
        %v5714 = vmul.f32 %v299, %v5703
        %v5715 = vmul.f32 %v300, %v5703
        %v5716 = vmul.f32 %v301, %v5703
        %v5717 = vmul.f32 %v302, %v5706
        %v5718 = vmul.f32 %v303, %v5706
        %v5719 = vmul.f32 %v304, %v5706
        %v5720 = vmul.f32 %v305, %v5709
        %v5721 = vmul.f32 %v306, %v5709
        %v5722 = vmul.f32 %v307, %v5709
        %v5735 = vrot.slane %v5711, 2
        %v5736 = vrot.slane %v5712, 2
        %v5737 = vsel %vm893, %v5735, %v5736
        %v5738 = vrot.slane %v5713, 2
        %v5739 = vsel %vm893, %v5736, %v5738
        %v5740 = vrot.slane %v5714, 2
        %v5741 = vrot.slane %v5715, 2
        %v5742 = vsel %vm893, %v5740, %v5741
        %v5743 = vrot.slane %v5716, 2
        %v5744 = vsel %vm893, %v5741, %v5743
        %v5745 = vrot.slane %v5717, 2
        %v5746 = vrot.slane %v5718, 2
        %v5747 = vsel %vm893, %v5745, %v5746
        %v5748 = vrot.slane %v5719, 2
        %v5749 = vsel %vm893, %v5746, %v5748
        %v5750 = vrot.slane %v5720, 2
        %v5751 = vrot.slane %v5721, 2
        %v5752 = vsel %vm893, %v5750, %v5751
        %v5753 = vrot.slane %v5722, 2
        %v5754 = vsel %vm893, %v5751, %v5753
        %5755 = vrot.lane.b32.xlu0 %v5737, 122
        %v5756 = vpop.permute.xlu0 %5755
        %5757 = vrot.lane.b32.xlu0 %v5739, 122
        %v5758 = vpop.permute.xlu0 %5757
        %5759 = vrot.lane.b32.xlu0 %v5742, 122
        %v5760 = vpop.permute.xlu0 %5759
        %5761 = vrot.lane.b32.xlu0 %v5744, 122
        %v5762 = vpop.permute.xlu0 %5761
        %5763 = vrot.lane.b32.xlu0 %v5747, 122
        %v5764 = vpop.permute.xlu0 %5763
        %5765 = vrot.lane.b32.xlu0 %v5749, 122
        %v5766 = vpop.permute.xlu0 %5765
        %5767 = vrot.lane.b32.xlu0 %v5752, 122
        %v5768 = vpop.permute.xlu0 %5767
        %5769 = vrot.lane.b32.xlu0 %v5754, 122
        %v5770 = vpop.permute.xlu0 %5769
        %v5779 = vadd.f32 %v5683, %v5756
        %v5780 = vadd.f32 %v5684, %v5758
        %v5781 = vadd.f32 %v5685, %v5760
        %v5782 = vadd.f32 %v5686, %v5762
        %v5783 = vadd.f32 %v5687, %v5764
        %v5784 = vadd.f32 %v5688, %v5766
        %v5785 = vadd.f32 %v5689, %v5768
        %v5786 = vadd.f32 %v5690, %v5770
        %v5787 = vld [vmem:[%s293 + $0x3] sm:$0x1]
        %v5788 = vld [vmem:[%s293 + $0xb] sm:$0x1]
        %v5789 = vld [vmem:[%s293 + $0x13] sm:$0x1]
        %v5790 = vld [vmem:[%s293 + $0x1b] sm:$0x1]
        %s5792 = vtos %v5787
        %v5793 = vstv %s5792
        %s5796 = vtos %v5788
        %v5797 = vstv %s5796
        %s5800 = vtos %v5789
        %v5801 = vstv %s5800
        %s5804 = vtos %v5790
        %v5805 = vstv %s5804
        %v5807 = vmul.f32 %v296, %v5793
        %v5808 = vmul.f32 %v297, %v5793
        %v5809 = vmul.f32 %v298, %v5793
        %v5810 = vmul.f32 %v299, %v5797
        %v5811 = vmul.f32 %v300, %v5797
        %v5812 = vmul.f32 %v301, %v5797
        %v5813 = vmul.f32 %v302, %v5801
        %v5814 = vmul.f32 %v303, %v5801
        %v5815 = vmul.f32 %v304, %v5801
        %v5816 = vmul.f32 %v305, %v5805
        %v5817 = vmul.f32 %v306, %v5805
        %v5818 = vmul.f32 %v307, %v5805
        %v5831 = vrot.slane %v5807, 3
        %v5832 = vrot.slane %v5808, 3
        %v5833 = vsel %vm2846, %v5831, %v5832
        %v5834 = vrot.slane %v5809, 3
        %v5835 = vsel %vm2846, %v5832, %v5834
        %v5836 = vrot.slane %v5810, 3
        %v5837 = vrot.slane %v5811, 3
        %v5838 = vsel %vm2846, %v5836, %v5837
        %v5839 = vrot.slane %v5812, 3
        %v5840 = vsel %vm2846, %v5837, %v5839
        %v5841 = vrot.slane %v5813, 3
        %v5842 = vrot.slane %v5814, 3
        %v5843 = vsel %vm2846, %v5841, %v5842
        %v5844 = vrot.slane %v5815, 3
        %v5845 = vsel %vm2846, %v5842, %v5844
        %v5846 = vrot.slane %v5816, 3
        %v5847 = vrot.slane %v5817, 3
        %v5848 = vsel %vm2846, %v5846, %v5847
        %v5849 = vrot.slane %v5818, 3
        %v5850 = vsel %vm2846, %v5847, %v5849
        %v5859 = vadd.f32 %v5779, %v5833
        %v5860 = vadd.f32 %v5780, %v5835
        %v5861 = vadd.f32 %v5781, %v5838
        %v5862 = vadd.f32 %v5782, %v5840
        %v5863 = vadd.f32 %v5783, %v5843
        %v5864 = vadd.f32 %v5784, %v5845
        %v5865 = vadd.f32 %v5785, %v5848
        %v5866 = vadd.f32 %v5786, %v5850
        %5867 = vrot.lane.b32.xlu0 %v5787, 127
        %v5868 = vpop.permute.xlu0 %5867
        %5869 = vrot.lane.b32.xlu0 %v5788, 127
        %v5870 = vpop.permute.xlu0 %5869
        %5871 = vrot.lane.b32.xlu0 %v5789, 127
        %v5872 = vpop.permute.xlu0 %5871
        %5873 = vrot.lane.b32.xlu0 %v5790, 127
        %v5874 = vpop.permute.xlu0 %5873
        %s5875 = vtos %v5868
        %v5876 = vstv %s5875
        %s5878 = vtos %v5870
        %v5879 = vstv %s5878
        %s5881 = vtos %v5872
        %v5882 = vstv %s5881
        %s5884 = vtos %v5874
        %v5885 = vstv %s5884
        %v5887 = vmul.f32 %v296, %v5876
        %v5888 = vmul.f32 %v297, %v5876
        %v5889 = vmul.f32 %v298, %v5876
        %v5890 = vmul.f32 %v299, %v5879
        %v5891 = vmul.f32 %v300, %v5879
        %v5892 = vmul.f32 %v301, %v5879
        %v5893 = vmul.f32 %v302, %v5882
        %v5894 = vmul.f32 %v303, %v5882
        %v5895 = vmul.f32 %v304, %v5882
        %v5896 = vmul.f32 %v305, %v5885
        %v5897 = vmul.f32 %v306, %v5885
        %v5898 = vmul.f32 %v307, %v5885
        %v5911 = vrot.slane %v5887, 3
        %v5912 = vrot.slane %v5888, 3
        %v5913 = vsel %vm2846, %v5911, %v5912
        %v5914 = vrot.slane %v5889, 3
        %v5915 = vsel %vm2846, %v5912, %v5914
        %v5916 = vrot.slane %v5890, 3
        %v5917 = vrot.slane %v5891, 3
        %v5918 = vsel %vm2846, %v5916, %v5917
        %v5919 = vrot.slane %v5892, 3
        %v5920 = vsel %vm2846, %v5917, %v5919
        %v5921 = vrot.slane %v5893, 3
        %v5922 = vrot.slane %v5894, 3
        %v5923 = vsel %vm2846, %v5921, %v5922
        %v5924 = vrot.slane %v5895, 3
        %v5925 = vsel %vm2846, %v5922, %v5924
        %v5926 = vrot.slane %v5896, 3
        %v5927 = vrot.slane %v5897, 3
        %v5928 = vsel %vm2846, %v5926, %v5927
        %v5929 = vrot.slane %v5898, 3
        %v5930 = vsel %vm2846, %v5927, %v5929
        %5931 = vrot.lane.b32.xlu0 %v5913, 127
        %v5932 = vpop.permute.xlu0 %5931
        %5933 = vrot.lane.b32.xlu0 %v5915, 127
        %v5934 = vpop.permute.xlu0 %5933
        %5935 = vrot.lane.b32.xlu0 %v5918, 127
        %v5936 = vpop.permute.xlu0 %5935
        %5937 = vrot.lane.b32.xlu0 %v5920, 127
        %v5938 = vpop.permute.xlu0 %5937
        %5939 = vrot.lane.b32.xlu0 %v5923, 127
        %v5940 = vpop.permute.xlu0 %5939
        %5941 = vrot.lane.b32.xlu0 %v5925, 127
        %v5942 = vpop.permute.xlu0 %5941
        %5943 = vrot.lane.b32.xlu0 %v5928, 127
        %v5944 = vpop.permute.xlu0 %5943
        %5945 = vrot.lane.b32.xlu0 %v5930, 127
        %v5946 = vpop.permute.xlu0 %5945
        %v5955 = vadd.f32 %v5859, %v5932
        %v5956 = vadd.f32 %v5860, %v5934
        %v5957 = vadd.f32 %v5861, %v5936
        %v5958 = vadd.f32 %v5862, %v5938
        %v5959 = vadd.f32 %v5863, %v5940
        %v5960 = vadd.f32 %v5864, %v5942
        %v5961 = vadd.f32 %v5865, %v5944
        %v5962 = vadd.f32 %v5866, %v5946
        %5963 = vrot.lane.b32.xlu0 %v5787, 126
        %v5964 = vpop.permute.xlu0 %5963
        %5965 = vrot.lane.b32.xlu0 %v5788, 126
        %v5966 = vpop.permute.xlu0 %5965
        %5967 = vrot.lane.b32.xlu0 %v5789, 126
        %v5968 = vpop.permute.xlu0 %5967
        %5969 = vrot.lane.b32.xlu0 %v5790, 126
        %v5970 = vpop.permute.xlu0 %5969
        %s5971 = vtos %v5964
        %v5972 = vstv %s5971
        %s5974 = vtos %v5966
        %v5975 = vstv %s5974
        %s5977 = vtos %v5968
        %v5978 = vstv %s5977
        %s5980 = vtos %v5970
        %v5981 = vstv %s5980
        %v5983 = vmul.f32 %v296, %v5972
        %v5984 = vmul.f32 %v297, %v5972
        %v5985 = vmul.f32 %v298, %v5972
        %v5986 = vmul.f32 %v299, %v5975
        %v5987 = vmul.f32 %v300, %v5975
        %v5988 = vmul.f32 %v301, %v5975
        %v5989 = vmul.f32 %v302, %v5978
        %v5990 = vmul.f32 %v303, %v5978
        %v5991 = vmul.f32 %v304, %v5978
        %v5992 = vmul.f32 %v305, %v5981
        %v5993 = vmul.f32 %v306, %v5981
        %v5994 = vmul.f32 %v307, %v5981
        %v6007 = vrot.slane %v5983, 3
        %v6008 = vrot.slane %v5984, 3
        %v6009 = vsel %vm2846, %v6007, %v6008
        %v6010 = vrot.slane %v5985, 3
        %v6011 = vsel %vm2846, %v6008, %v6010
        %v6012 = vrot.slane %v5986, 3
        %v6013 = vrot.slane %v5987, 3
        %v6014 = vsel %vm2846, %v6012, %v6013
        %v6015 = vrot.slane %v5988, 3
        %v6016 = vsel %vm2846, %v6013, %v6015
        %v6017 = vrot.slane %v5989, 3
        %v6018 = vrot.slane %v5990, 3
        %v6019 = vsel %vm2846, %v6017, %v6018
        %v6020 = vrot.slane %v5991, 3
        %v6021 = vsel %vm2846, %v6018, %v6020
        %v6022 = vrot.slane %v5992, 3
        %v6023 = vrot.slane %v5993, 3
        %v6024 = vsel %vm2846, %v6022, %v6023
        %v6025 = vrot.slane %v5994, 3
        %v6026 = vsel %vm2846, %v6023, %v6025
        %6027 = vrot.lane.b32.xlu0 %v6009, 126
        %v6028 = vpop.permute.xlu0 %6027
        %6029 = vrot.lane.b32.xlu0 %v6011, 126
        %v6030 = vpop.permute.xlu0 %6029
        %6031 = vrot.lane.b32.xlu0 %v6014, 126
        %v6032 = vpop.permute.xlu0 %6031
        %6033 = vrot.lane.b32.xlu0 %v6016, 126
        %v6034 = vpop.permute.xlu0 %6033
        %6035 = vrot.lane.b32.xlu0 %v6019, 126
        %v6036 = vpop.permute.xlu0 %6035
        %6037 = vrot.lane.b32.xlu0 %v6021, 126
        %v6038 = vpop.permute.xlu0 %6037
        %6039 = vrot.lane.b32.xlu0 %v6024, 126
        %v6040 = vpop.permute.xlu0 %6039
        %6041 = vrot.lane.b32.xlu0 %v6026, 126
        %v6042 = vpop.permute.xlu0 %6041
        %v6051 = vadd.f32 %v5955, %v6028
        %v6052 = vadd.f32 %v5956, %v6030
        %v6053 = vadd.f32 %v5957, %v6032
        %v6054 = vadd.f32 %v5958, %v6034
        %v6055 = vadd.f32 %v5959, %v6036
        %v6056 = vadd.f32 %v5960, %v6038
        %v6057 = vadd.f32 %v5961, %v6040
        %v6058 = vadd.f32 %v5962, %v6042
        %6059 = vrot.lane.b32.xlu0 %v5787, 125
        %v6060 = vpop.permute.xlu0 %6059
        %6061 = vrot.lane.b32.xlu0 %v5788, 125
        %v6062 = vpop.permute.xlu0 %6061
        %6063 = vrot.lane.b32.xlu0 %v5789, 125
        %v6064 = vpop.permute.xlu0 %6063
        %6065 = vrot.lane.b32.xlu0 %v5790, 125
        %v6066 = vpop.permute.xlu0 %6065
        %s6067 = vtos %v6060
        %v6068 = vstv %s6067
        %s6070 = vtos %v6062
        %v6071 = vstv %s6070
        %s6073 = vtos %v6064
        %v6074 = vstv %s6073
        %s6076 = vtos %v6066
        %v6077 = vstv %s6076
        %v6079 = vmul.f32 %v296, %v6068
        %v6080 = vmul.f32 %v297, %v6068
        %v6081 = vmul.f32 %v298, %v6068
        %v6082 = vmul.f32 %v299, %v6071
        %v6083 = vmul.f32 %v300, %v6071
        %v6084 = vmul.f32 %v301, %v6071
        %v6085 = vmul.f32 %v302, %v6074
        %v6086 = vmul.f32 %v303, %v6074
        %v6087 = vmul.f32 %v304, %v6074
        %v6088 = vmul.f32 %v305, %v6077
        %v6089 = vmul.f32 %v306, %v6077
        %v6090 = vmul.f32 %v307, %v6077
        %v6103 = vrot.slane %v6079, 3
        %v6104 = vrot.slane %v6080, 3
        %v6105 = vsel %vm2846, %v6103, %v6104
        %v6106 = vrot.slane %v6081, 3
        %v6107 = vsel %vm2846, %v6104, %v6106
        %v6108 = vrot.slane %v6082, 3
        %v6109 = vrot.slane %v6083, 3
        %v6110 = vsel %vm2846, %v6108, %v6109
        %v6111 = vrot.slane %v6084, 3
        %v6112 = vsel %vm2846, %v6109, %v6111
        %v6113 = vrot.slane %v6085, 3
        %v6114 = vrot.slane %v6086, 3
        %v6115 = vsel %vm2846, %v6113, %v6114
        %v6116 = vrot.slane %v6087, 3
        %v6117 = vsel %vm2846, %v6114, %v6116
        %v6118 = vrot.slane %v6088, 3
        %v6119 = vrot.slane %v6089, 3
        %v6120 = vsel %vm2846, %v6118, %v6119
        %v6121 = vrot.slane %v6090, 3
        %v6122 = vsel %vm2846, %v6119, %v6121
        %6123 = vrot.lane.b32.xlu0 %v6105, 125
        %v6124 = vpop.permute.xlu0 %6123
        %6125 = vrot.lane.b32.xlu0 %v6107, 125
        %v6126 = vpop.permute.xlu0 %6125
        %6127 = vrot.lane.b32.xlu0 %v6110, 125
        %v6128 = vpop.permute.xlu0 %6127
        %6129 = vrot.lane.b32.xlu0 %v6112, 125
        %v6130 = vpop.permute.xlu0 %6129
        %6131 = vrot.lane.b32.xlu0 %v6115, 125
        %v6132 = vpop.permute.xlu0 %6131
        %6133 = vrot.lane.b32.xlu0 %v6117, 125
        %v6134 = vpop.permute.xlu0 %6133
        %6135 = vrot.lane.b32.xlu0 %v6120, 125
        %v6136 = vpop.permute.xlu0 %6135
        %6137 = vrot.lane.b32.xlu0 %v6122, 125
        %v6138 = vpop.permute.xlu0 %6137
        %v6147 = vadd.f32 %v6051, %v6124
        %v6148 = vadd.f32 %v6052, %v6126
        %v6149 = vadd.f32 %v6053, %v6128
        %v6150 = vadd.f32 %v6054, %v6130
        %v6151 = vadd.f32 %v6055, %v6132
        %v6152 = vadd.f32 %v6056, %v6134
        %v6153 = vadd.f32 %v6057, %v6136
        %v6154 = vadd.f32 %v6058, %v6138
        %6155 = vrot.lane.b32.xlu0 %v5787, 124
        %v6156 = vpop.permute.xlu0 %6155
        %6157 = vrot.lane.b32.xlu0 %v5788, 124
        %v6158 = vpop.permute.xlu0 %6157
        %6159 = vrot.lane.b32.xlu0 %v5789, 124
        %v6160 = vpop.permute.xlu0 %6159
        %6161 = vrot.lane.b32.xlu0 %v5790, 124
        %v6162 = vpop.permute.xlu0 %6161
        %s6163 = vtos %v6156
        %v6164 = vstv %s6163
        %s6166 = vtos %v6158
        %v6167 = vstv %s6166
        %s6169 = vtos %v6160
        %v6170 = vstv %s6169
        %s6172 = vtos %v6162
        %v6173 = vstv %s6172
        %v6175 = vmul.f32 %v296, %v6164
        %v6176 = vmul.f32 %v297, %v6164
        %v6177 = vmul.f32 %v298, %v6164
        %v6178 = vmul.f32 %v299, %v6167
        %v6179 = vmul.f32 %v300, %v6167
        %v6180 = vmul.f32 %v301, %v6167
        %v6181 = vmul.f32 %v302, %v6170
        %v6182 = vmul.f32 %v303, %v6170
        %v6183 = vmul.f32 %v304, %v6170
        %v6184 = vmul.f32 %v305, %v6173
        %v6185 = vmul.f32 %v306, %v6173
        %v6186 = vmul.f32 %v307, %v6173
        %v6199 = vrot.slane %v6175, 3
        %v6200 = vrot.slane %v6176, 3
        %v6201 = vsel %vm2846, %v6199, %v6200
        %v6202 = vrot.slane %v6177, 3
        %v6203 = vsel %vm2846, %v6200, %v6202
        %v6204 = vrot.slane %v6178, 3
        %v6205 = vrot.slane %v6179, 3
        %v6206 = vsel %vm2846, %v6204, %v6205
        %v6207 = vrot.slane %v6180, 3
        %v6208 = vsel %vm2846, %v6205, %v6207
        %v6209 = vrot.slane %v6181, 3
        %v6210 = vrot.slane %v6182, 3
        %v6211 = vsel %vm2846, %v6209, %v6210
        %v6212 = vrot.slane %v6183, 3
        %v6213 = vsel %vm2846, %v6210, %v6212
        %v6214 = vrot.slane %v6184, 3
        %v6215 = vrot.slane %v6185, 3
        %v6216 = vsel %vm2846, %v6214, %v6215
        %v6217 = vrot.slane %v6186, 3
        %v6218 = vsel %vm2846, %v6215, %v6217
        %6219 = vrot.lane.b32.xlu0 %v6201, 124
        %v6220 = vpop.permute.xlu0 %6219
        %6221 = vrot.lane.b32.xlu0 %v6203, 124
        %v6222 = vpop.permute.xlu0 %6221
        %6223 = vrot.lane.b32.xlu0 %v6206, 124
        %v6224 = vpop.permute.xlu0 %6223
        %6225 = vrot.lane.b32.xlu0 %v6208, 124
        %v6226 = vpop.permute.xlu0 %6225
        %6227 = vrot.lane.b32.xlu0 %v6211, 124
        %v6228 = vpop.permute.xlu0 %6227
        %6229 = vrot.lane.b32.xlu0 %v6213, 124
        %v6230 = vpop.permute.xlu0 %6229
        %6231 = vrot.lane.b32.xlu0 %v6216, 124
        %v6232 = vpop.permute.xlu0 %6231
        %6233 = vrot.lane.b32.xlu0 %v6218, 124
        %v6234 = vpop.permute.xlu0 %6233
        %v6243 = vadd.f32 %v6147, %v6220
        %v6244 = vadd.f32 %v6148, %v6222
        %v6245 = vadd.f32 %v6149, %v6224
        %v6246 = vadd.f32 %v6150, %v6226
        %v6247 = vadd.f32 %v6151, %v6228
        %v6248 = vadd.f32 %v6152, %v6230
        %v6249 = vadd.f32 %v6153, %v6232
        %v6250 = vadd.f32 %v6154, %v6234
        %6251 = vrot.lane.b32.xlu0 %v5787, 123
        %v6252 = vpop.permute.xlu0 %6251
        %6253 = vrot.lane.b32.xlu0 %v5788, 123
        %v6254 = vpop.permute.xlu0 %6253
        %6255 = vrot.lane.b32.xlu0 %v5789, 123
        %v6256 = vpop.permute.xlu0 %6255
        %6257 = vrot.lane.b32.xlu0 %v5790, 123
        %v6258 = vpop.permute.xlu0 %6257
        %s6259 = vtos %v6252
        %v6260 = vstv %s6259
        %s6262 = vtos %v6254
        %v6263 = vstv %s6262
        %s6265 = vtos %v6256
        %v6266 = vstv %s6265
        %s6268 = vtos %v6258
        %v6269 = vstv %s6268
        %v6271 = vmul.f32 %v296, %v6260
        %v6272 = vmul.f32 %v297, %v6260
        %v6273 = vmul.f32 %v298, %v6260
        %v6274 = vmul.f32 %v299, %v6263
        %v6275 = vmul.f32 %v300, %v6263
        %v6276 = vmul.f32 %v301, %v6263
        %v6277 = vmul.f32 %v302, %v6266
        %v6278 = vmul.f32 %v303, %v6266
        %v6279 = vmul.f32 %v304, %v6266
        %v6280 = vmul.f32 %v305, %v6269
        %v6281 = vmul.f32 %v306, %v6269
        %v6282 = vmul.f32 %v307, %v6269
        %v6295 = vrot.slane %v6271, 3
        %v6296 = vrot.slane %v6272, 3
        %v6297 = vsel %vm2846, %v6295, %v6296
        %v6298 = vrot.slane %v6273, 3
        %v6299 = vsel %vm2846, %v6296, %v6298
        %v6300 = vrot.slane %v6274, 3
        %v6301 = vrot.slane %v6275, 3
        %v6302 = vsel %vm2846, %v6300, %v6301
        %v6303 = vrot.slane %v6276, 3
        %v6304 = vsel %vm2846, %v6301, %v6303
        %v6305 = vrot.slane %v6277, 3
        %v6306 = vrot.slane %v6278, 3
        %v6307 = vsel %vm2846, %v6305, %v6306
        %v6308 = vrot.slane %v6279, 3
        %v6309 = vsel %vm2846, %v6306, %v6308
        %v6310 = vrot.slane %v6280, 3
        %v6311 = vrot.slane %v6281, 3
        %v6312 = vsel %vm2846, %v6310, %v6311
        %v6313 = vrot.slane %v6282, 3
        %v6314 = vsel %vm2846, %v6311, %v6313
        %6315 = vrot.lane.b32.xlu0 %v6297, 123
        %v6316 = vpop.permute.xlu0 %6315
        %6317 = vrot.lane.b32.xlu0 %v6299, 123
        %v6318 = vpop.permute.xlu0 %6317
        %6319 = vrot.lane.b32.xlu0 %v6302, 123
        %v6320 = vpop.permute.xlu0 %6319
        %6321 = vrot.lane.b32.xlu0 %v6304, 123
        %v6322 = vpop.permute.xlu0 %6321
        %6323 = vrot.lane.b32.xlu0 %v6307, 123
        %v6324 = vpop.permute.xlu0 %6323
        %6325 = vrot.lane.b32.xlu0 %v6309, 123
        %v6326 = vpop.permute.xlu0 %6325
        %6327 = vrot.lane.b32.xlu0 %v6312, 123
        %v6328 = vpop.permute.xlu0 %6327
        %6329 = vrot.lane.b32.xlu0 %v6314, 123
        %v6330 = vpop.permute.xlu0 %6329
        %v6339 = vadd.f32 %v6243, %v6316
        %v6340 = vadd.f32 %v6244, %v6318
        %v6341 = vadd.f32 %v6245, %v6320
        %v6342 = vadd.f32 %v6246, %v6322
        %v6343 = vadd.f32 %v6247, %v6324
        %v6344 = vadd.f32 %v6248, %v6326
        %v6345 = vadd.f32 %v6249, %v6328
        %v6346 = vadd.f32 %v6250, %v6330
        %6347 = vrot.lane.b32.xlu0 %v5787, 122
        %v6348 = vpop.permute.xlu0 %6347
        %6349 = vrot.lane.b32.xlu0 %v5788, 122
        %v6350 = vpop.permute.xlu0 %6349
        %6351 = vrot.lane.b32.xlu0 %v5789, 122
        %v6352 = vpop.permute.xlu0 %6351
        %6353 = vrot.lane.b32.xlu0 %v5790, 122
        %v6354 = vpop.permute.xlu0 %6353
        %s6355 = vtos %v6348
        %v6356 = vstv %s6355
        %s6358 = vtos %v6350
        %v6359 = vstv %s6358
        %s6361 = vtos %v6352
        %v6362 = vstv %s6361
        %s6364 = vtos %v6354
        %v6365 = vstv %s6364
        %v6367 = vmul.f32 %v296, %v6356
        %v6368 = vmul.f32 %v297, %v6356
        %v6369 = vmul.f32 %v298, %v6356
        %v6370 = vmul.f32 %v299, %v6359
        %v6371 = vmul.f32 %v300, %v6359
        %v6372 = vmul.f32 %v301, %v6359
        %v6373 = vmul.f32 %v302, %v6362
        %v6374 = vmul.f32 %v303, %v6362
        %v6375 = vmul.f32 %v304, %v6362
        %v6376 = vmul.f32 %v305, %v6365
        %v6377 = vmul.f32 %v306, %v6365
        %v6378 = vmul.f32 %v307, %v6365
        %v6391 = vrot.slane %v6367, 3
        %v6392 = vrot.slane %v6368, 3
        %v6393 = vsel %vm2846, %v6391, %v6392
        %v6394 = vrot.slane %v6369, 3
        %v6395 = vsel %vm2846, %v6392, %v6394
        %v6396 = vrot.slane %v6370, 3
        %v6397 = vrot.slane %v6371, 3
        %v6398 = vsel %vm2846, %v6396, %v6397
        %v6399 = vrot.slane %v6372, 3
        %v6400 = vsel %vm2846, %v6397, %v6399
        %v6401 = vrot.slane %v6373, 3
        %v6402 = vrot.slane %v6374, 3
        %v6403 = vsel %vm2846, %v6401, %v6402
        %v6404 = vrot.slane %v6375, 3
        %v6405 = vsel %vm2846, %v6402, %v6404
        %v6406 = vrot.slane %v6376, 3
        %v6407 = vrot.slane %v6377, 3
        %v6408 = vsel %vm2846, %v6406, %v6407
        %v6409 = vrot.slane %v6378, 3
        %v6410 = vsel %vm2846, %v6407, %v6409
        %6411 = vrot.lane.b32.xlu0 %v6393, 122
        %v6412 = vpop.permute.xlu0 %6411
        %6413 = vrot.lane.b32.xlu0 %v6395, 122
        %v6414 = vpop.permute.xlu0 %6413
        %6415 = vrot.lane.b32.xlu0 %v6398, 122
        %v6416 = vpop.permute.xlu0 %6415
        %6417 = vrot.lane.b32.xlu0 %v6400, 122
        %v6418 = vpop.permute.xlu0 %6417
        %6419 = vrot.lane.b32.xlu0 %v6403, 122
        %v6420 = vpop.permute.xlu0 %6419
        %6421 = vrot.lane.b32.xlu0 %v6405, 122
        %v6422 = vpop.permute.xlu0 %6421
        %6423 = vrot.lane.b32.xlu0 %v6408, 122
        %v6424 = vpop.permute.xlu0 %6423
        %6425 = vrot.lane.b32.xlu0 %v6410, 122
        %v6426 = vpop.permute.xlu0 %6425
        %v6435 = vadd.f32 %v6339, %v6412
        %v6436 = vadd.f32 %v6340, %v6414
        %v6437 = vadd.f32 %v6341, %v6416
        %v6438 = vadd.f32 %v6342, %v6418
        %v6439 = vadd.f32 %v6343, %v6420
        %v6440 = vadd.f32 %v6344, %v6422
        %v6441 = vadd.f32 %v6345, %v6424
        %v6442 = vadd.f32 %v6346, %v6426
        %v6443 = vld [vmem:[%s293 + $0x4] sm:$0x1]
        %v6444 = vld [vmem:[%s293 + $0xc] sm:$0x1]
        %v6445 = vld [vmem:[%s293 + $0x14] sm:$0x1]
        %v6446 = vld [vmem:[%s293 + $0x1c] sm:$0x1]
        %s6448 = vtos %v6443
        %v6449 = vstv %s6448
        %s6452 = vtos %v6444
        %v6453 = vstv %s6452
        %s6456 = vtos %v6445
        %v6457 = vstv %s6456
        %s6460 = vtos %v6446
        %v6461 = vstv %s6460
        %v6463 = vmul.f32 %v296, %v6449
        %v6464 = vmul.f32 %v297, %v6449
        %v6465 = vmul.f32 %v298, %v6449
        %v6466 = vmul.f32 %v299, %v6453
        %v6467 = vmul.f32 %v300, %v6453
        %v6468 = vmul.f32 %v301, %v6453
        %v6469 = vmul.f32 %v302, %v6457
        %v6470 = vmul.f32 %v303, %v6457
        %v6471 = vmul.f32 %v304, %v6457
        %v6472 = vmul.f32 %v305, %v6461
        %v6473 = vmul.f32 %v306, %v6461
        %v6474 = vmul.f32 %v307, %v6461
        %v6487 = vrot.slane %v6463, 4
        %v6488 = vrot.slane %v6464, 4
        %v6489 = vsel %vm3383, %v6487, %v6488
        %v6490 = vrot.slane %v6465, 4
        %v6491 = vsel %vm3383, %v6488, %v6490
        %v6492 = vrot.slane %v6466, 4
        %v6493 = vrot.slane %v6467, 4
        %v6494 = vsel %vm3383, %v6492, %v6493
        %v6495 = vrot.slane %v6468, 4
        %v6496 = vsel %vm3383, %v6493, %v6495
        %v6497 = vrot.slane %v6469, 4
        %v6498 = vrot.slane %v6470, 4
        %v6499 = vsel %vm3383, %v6497, %v6498
        %v6500 = vrot.slane %v6471, 4
        %v6501 = vsel %vm3383, %v6498, %v6500
        %v6502 = vrot.slane %v6472, 4
        %v6503 = vrot.slane %v6473, 4
        %v6504 = vsel %vm3383, %v6502, %v6503
        %v6505 = vrot.slane %v6474, 4
        %v6506 = vsel %vm3383, %v6503, %v6505
        %v6515 = vadd.f32 %v6435, %v6489
        %v6516 = vadd.f32 %v6436, %v6491
        %v6517 = vadd.f32 %v6437, %v6494
        %v6518 = vadd.f32 %v6438, %v6496
        %v6519 = vadd.f32 %v6439, %v6499
        %v6520 = vadd.f32 %v6440, %v6501
        %v6521 = vadd.f32 %v6441, %v6504
        %v6522 = vadd.f32 %v6442, %v6506
        %6523 = vrot.lane.b32.xlu0 %v6443, 127
        %v6524 = vpop.permute.xlu0 %6523
        %6525 = vrot.lane.b32.xlu0 %v6444, 127
        %v6526 = vpop.permute.xlu0 %6525
        %6527 = vrot.lane.b32.xlu0 %v6445, 127
        %v6528 = vpop.permute.xlu0 %6527
        %6529 = vrot.lane.b32.xlu0 %v6446, 127
        %v6530 = vpop.permute.xlu0 %6529
        %s6531 = vtos %v6524
        %v6532 = vstv %s6531
        %s6534 = vtos %v6526
        %v6535 = vstv %s6534
        %s6537 = vtos %v6528
        %v6538 = vstv %s6537
        %s6540 = vtos %v6530
        %v6541 = vstv %s6540
        %v6543 = vmul.f32 %v296, %v6532
        %v6544 = vmul.f32 %v297, %v6532
        %v6545 = vmul.f32 %v298, %v6532
        %v6546 = vmul.f32 %v299, %v6535
        %v6547 = vmul.f32 %v300, %v6535
        %v6548 = vmul.f32 %v301, %v6535
        %v6549 = vmul.f32 %v302, %v6538
        %v6550 = vmul.f32 %v303, %v6538
        %v6551 = vmul.f32 %v304, %v6538
        %v6552 = vmul.f32 %v305, %v6541
        %v6553 = vmul.f32 %v306, %v6541
        %v6554 = vmul.f32 %v307, %v6541
        %v6567 = vrot.slane %v6543, 4
        %v6568 = vrot.slane %v6544, 4
        %v6569 = vsel %vm3383, %v6567, %v6568
        %v6570 = vrot.slane %v6545, 4
        %v6571 = vsel %vm3383, %v6568, %v6570
        %v6572 = vrot.slane %v6546, 4
        %v6573 = vrot.slane %v6547, 4
        %v6574 = vsel %vm3383, %v6572, %v6573
        %v6575 = vrot.slane %v6548, 4
        %v6576 = vsel %vm3383, %v6573, %v6575
        %v6577 = vrot.slane %v6549, 4
        %v6578 = vrot.slane %v6550, 4
        %v6579 = vsel %vm3383, %v6577, %v6578
        %v6580 = vrot.slane %v6551, 4
        %v6581 = vsel %vm3383, %v6578, %v6580
        %v6582 = vrot.slane %v6552, 4
        %v6583 = vrot.slane %v6553, 4
        %v6584 = vsel %vm3383, %v6582, %v6583
        %v6585 = vrot.slane %v6554, 4
        %v6586 = vsel %vm3383, %v6583, %v6585
        %6587 = vrot.lane.b32.xlu0 %v6569, 127
        %v6588 = vpop.permute.xlu0 %6587
        %6589 = vrot.lane.b32.xlu0 %v6571, 127
        %v6590 = vpop.permute.xlu0 %6589
        %6591 = vrot.lane.b32.xlu0 %v6574, 127
        %v6592 = vpop.permute.xlu0 %6591
        %6593 = vrot.lane.b32.xlu0 %v6576, 127
        %v6594 = vpop.permute.xlu0 %6593
        %6595 = vrot.lane.b32.xlu0 %v6579, 127
        %v6596 = vpop.permute.xlu0 %6595
        %6597 = vrot.lane.b32.xlu0 %v6581, 127
        %v6598 = vpop.permute.xlu0 %6597
        %6599 = vrot.lane.b32.xlu0 %v6584, 127
        %v6600 = vpop.permute.xlu0 %6599
        %6601 = vrot.lane.b32.xlu0 %v6586, 127
        %v6602 = vpop.permute.xlu0 %6601
        %v6611 = vadd.f32 %v6515, %v6588
        %v6612 = vadd.f32 %v6516, %v6590
        %v6613 = vadd.f32 %v6517, %v6592
        %v6614 = vadd.f32 %v6518, %v6594
        %v6615 = vadd.f32 %v6519, %v6596
        %v6616 = vadd.f32 %v6520, %v6598
        %v6617 = vadd.f32 %v6521, %v6600
        %v6618 = vadd.f32 %v6522, %v6602
        %6619 = vrot.lane.b32.xlu0 %v6443, 126
        %v6620 = vpop.permute.xlu0 %6619
        %6621 = vrot.lane.b32.xlu0 %v6444, 126
        %v6622 = vpop.permute.xlu0 %6621
        %6623 = vrot.lane.b32.xlu0 %v6445, 126
        %v6624 = vpop.permute.xlu0 %6623
        %6625 = vrot.lane.b32.xlu0 %v6446, 126
        %v6626 = vpop.permute.xlu0 %6625
        %s6627 = vtos %v6620
        %v6628 = vstv %s6627
        %s6630 = vtos %v6622
        %v6631 = vstv %s6630
        %s6633 = vtos %v6624
        %v6634 = vstv %s6633
        %s6636 = vtos %v6626
        %v6637 = vstv %s6636
        %v6639 = vmul.f32 %v296, %v6628
        %v6640 = vmul.f32 %v297, %v6628
        %v6641 = vmul.f32 %v298, %v6628
        %v6642 = vmul.f32 %v299, %v6631
        %v6643 = vmul.f32 %v300, %v6631
        %v6644 = vmul.f32 %v301, %v6631
        %v6645 = vmul.f32 %v302, %v6634
        %v6646 = vmul.f32 %v303, %v6634
        %v6647 = vmul.f32 %v304, %v6634
        %v6648 = vmul.f32 %v305, %v6637
        %v6649 = vmul.f32 %v306, %v6637
        %v6650 = vmul.f32 %v307, %v6637
        %v6663 = vrot.slane %v6639, 4
        %v6664 = vrot.slane %v6640, 4
        %v6665 = vsel %vm3383, %v6663, %v6664
        %v6666 = vrot.slane %v6641, 4
        %v6667 = vsel %vm3383, %v6664, %v6666
        %v6668 = vrot.slane %v6642, 4
        %v6669 = vrot.slane %v6643, 4
        %v6670 = vsel %vm3383, %v6668, %v6669
        %v6671 = vrot.slane %v6644, 4
        %v6672 = vsel %vm3383, %v6669, %v6671
        %v6673 = vrot.slane %v6645, 4
        %v6674 = vrot.slane %v6646, 4
        %v6675 = vsel %vm3383, %v6673, %v6674
        %v6676 = vrot.slane %v6647, 4
        %v6677 = vsel %vm3383, %v6674, %v6676
        %v6678 = vrot.slane %v6648, 4
        %v6679 = vrot.slane %v6649, 4
        %v6680 = vsel %vm3383, %v6678, %v6679
        %v6681 = vrot.slane %v6650, 4
        %v6682 = vsel %vm3383, %v6679, %v6681
        %6683 = vrot.lane.b32.xlu0 %v6665, 126
        %v6684 = vpop.permute.xlu0 %6683
        %6685 = vrot.lane.b32.xlu0 %v6667, 126
        %v6686 = vpop.permute.xlu0 %6685
        %6687 = vrot.lane.b32.xlu0 %v6670, 126
        %v6688 = vpop.permute.xlu0 %6687
        %6689 = vrot.lane.b32.xlu0 %v6672, 126
        %v6690 = vpop.permute.xlu0 %6689
        %6691 = vrot.lane.b32.xlu0 %v6675, 126
        %v6692 = vpop.permute.xlu0 %6691
        %6693 = vrot.lane.b32.xlu0 %v6677, 126
        %v6694 = vpop.permute.xlu0 %6693
        %6695 = vrot.lane.b32.xlu0 %v6680, 126
        %v6696 = vpop.permute.xlu0 %6695
        %6697 = vrot.lane.b32.xlu0 %v6682, 126
        %v6698 = vpop.permute.xlu0 %6697
        %v6707 = vadd.f32 %v6611, %v6684
        %v6708 = vadd.f32 %v6612, %v6686
        %v6709 = vadd.f32 %v6613, %v6688
        %v6710 = vadd.f32 %v6614, %v6690
        %v6711 = vadd.f32 %v6615, %v6692
        %v6712 = vadd.f32 %v6616, %v6694
        %v6713 = vadd.f32 %v6617, %v6696
        %v6714 = vadd.f32 %v6618, %v6698
        %6715 = vrot.lane.b32.xlu0 %v6443, 125
        %v6716 = vpop.permute.xlu0 %6715
        %6717 = vrot.lane.b32.xlu0 %v6444, 125
        %v6718 = vpop.permute.xlu0 %6717
        %6719 = vrot.lane.b32.xlu0 %v6445, 125
        %v6720 = vpop.permute.xlu0 %6719
        %6721 = vrot.lane.b32.xlu0 %v6446, 125
        %v6722 = vpop.permute.xlu0 %6721
        %s6723 = vtos %v6716
        %v6724 = vstv %s6723
        %s6726 = vtos %v6718
        %v6727 = vstv %s6726
        %s6729 = vtos %v6720
        %v6730 = vstv %s6729
        %s6732 = vtos %v6722
        %v6733 = vstv %s6732
        %v6735 = vmul.f32 %v296, %v6724
        %v6736 = vmul.f32 %v297, %v6724
        %v6737 = vmul.f32 %v298, %v6724
        %v6738 = vmul.f32 %v299, %v6727
        %v6739 = vmul.f32 %v300, %v6727
        %v6740 = vmul.f32 %v301, %v6727
        %v6741 = vmul.f32 %v302, %v6730
        %v6742 = vmul.f32 %v303, %v6730
        %v6743 = vmul.f32 %v304, %v6730
        %v6744 = vmul.f32 %v305, %v6733
        %v6745 = vmul.f32 %v306, %v6733
        %v6746 = vmul.f32 %v307, %v6733
        %v6759 = vrot.slane %v6735, 4
        %v6760 = vrot.slane %v6736, 4
        %v6761 = vsel %vm3383, %v6759, %v6760
        %v6762 = vrot.slane %v6737, 4
        %v6763 = vsel %vm3383, %v6760, %v6762
        %v6764 = vrot.slane %v6738, 4
        %v6765 = vrot.slane %v6739, 4
        %v6766 = vsel %vm3383, %v6764, %v6765
        %v6767 = vrot.slane %v6740, 4
        %v6768 = vsel %vm3383, %v6765, %v6767
        %v6769 = vrot.slane %v6741, 4
        %v6770 = vrot.slane %v6742, 4
        %v6771 = vsel %vm3383, %v6769, %v6770
        %v6772 = vrot.slane %v6743, 4
        %v6773 = vsel %vm3383, %v6770, %v6772
        %v6774 = vrot.slane %v6744, 4
        %v6775 = vrot.slane %v6745, 4
        %v6776 = vsel %vm3383, %v6774, %v6775
        %v6777 = vrot.slane %v6746, 4
        %v6778 = vsel %vm3383, %v6775, %v6777
        %6779 = vrot.lane.b32.xlu0 %v6761, 125
        %v6780 = vpop.permute.xlu0 %6779
        %6781 = vrot.lane.b32.xlu0 %v6763, 125
        %v6782 = vpop.permute.xlu0 %6781
        %6783 = vrot.lane.b32.xlu0 %v6766, 125
        %v6784 = vpop.permute.xlu0 %6783
        %6785 = vrot.lane.b32.xlu0 %v6768, 125
        %v6786 = vpop.permute.xlu0 %6785
        %6787 = vrot.lane.b32.xlu0 %v6771, 125
        %v6788 = vpop.permute.xlu0 %6787
        %6789 = vrot.lane.b32.xlu0 %v6773, 125
        %v6790 = vpop.permute.xlu0 %6789
        %6791 = vrot.lane.b32.xlu0 %v6776, 125
        %v6792 = vpop.permute.xlu0 %6791
        %6793 = vrot.lane.b32.xlu0 %v6778, 125
        %v6794 = vpop.permute.xlu0 %6793
        %v6803 = vadd.f32 %v6707, %v6780
        %v6804 = vadd.f32 %v6708, %v6782
        %v6805 = vadd.f32 %v6709, %v6784
        %v6806 = vadd.f32 %v6710, %v6786
        %v6807 = vadd.f32 %v6711, %v6788
        %v6808 = vadd.f32 %v6712, %v6790
        %v6809 = vadd.f32 %v6713, %v6792
        %v6810 = vadd.f32 %v6714, %v6794
        %6811 = vrot.lane.b32.xlu0 %v6443, 124
        %v6812 = vpop.permute.xlu0 %6811
        %6813 = vrot.lane.b32.xlu0 %v6444, 124
        %v6814 = vpop.permute.xlu0 %6813
        %6815 = vrot.lane.b32.xlu0 %v6445, 124
        %v6816 = vpop.permute.xlu0 %6815
        %6817 = vrot.lane.b32.xlu0 %v6446, 124
        %v6818 = vpop.permute.xlu0 %6817
        %s6819 = vtos %v6812
        %v6820 = vstv %s6819
        %s6822 = vtos %v6814
        %v6823 = vstv %s6822
        %s6825 = vtos %v6816
        %v6826 = vstv %s6825
        %s6828 = vtos %v6818
        %v6829 = vstv %s6828
        %v6831 = vmul.f32 %v296, %v6820
        %v6832 = vmul.f32 %v297, %v6820
        %v6833 = vmul.f32 %v298, %v6820
        %v6834 = vmul.f32 %v299, %v6823
        %v6835 = vmul.f32 %v300, %v6823
        %v6836 = vmul.f32 %v301, %v6823
        %v6837 = vmul.f32 %v302, %v6826
        %v6838 = vmul.f32 %v303, %v6826
        %v6839 = vmul.f32 %v304, %v6826
        %v6840 = vmul.f32 %v305, %v6829
        %v6841 = vmul.f32 %v306, %v6829
        %v6842 = vmul.f32 %v307, %v6829
        %v6855 = vrot.slane %v6831, 4
        %v6856 = vrot.slane %v6832, 4
        %v6857 = vsel %vm3383, %v6855, %v6856
        %v6858 = vrot.slane %v6833, 4
        %v6859 = vsel %vm3383, %v6856, %v6858
        %v6860 = vrot.slane %v6834, 4
        %v6861 = vrot.slane %v6835, 4
        %v6862 = vsel %vm3383, %v6860, %v6861
        %v6863 = vrot.slane %v6836, 4
        %v6864 = vsel %vm3383, %v6861, %v6863
        %v6865 = vrot.slane %v6837, 4
        %v6866 = vrot.slane %v6838, 4
        %v6867 = vsel %vm3383, %v6865, %v6866
        %v6868 = vrot.slane %v6839, 4
        %v6869 = vsel %vm3383, %v6866, %v6868
        %v6870 = vrot.slane %v6840, 4
        %v6871 = vrot.slane %v6841, 4
        %v6872 = vsel %vm3383, %v6870, %v6871
        %v6873 = vrot.slane %v6842, 4
        %v6874 = vsel %vm3383, %v6871, %v6873
        %6875 = vrot.lane.b32.xlu0 %v6857, 124
        %v6876 = vpop.permute.xlu0 %6875
        %6877 = vrot.lane.b32.xlu0 %v6859, 124
        %v6878 = vpop.permute.xlu0 %6877
        %6879 = vrot.lane.b32.xlu0 %v6862, 124
        %v6880 = vpop.permute.xlu0 %6879
        %6881 = vrot.lane.b32.xlu0 %v6864, 124
        %v6882 = vpop.permute.xlu0 %6881
        %6883 = vrot.lane.b32.xlu0 %v6867, 124
        %v6884 = vpop.permute.xlu0 %6883
        %6885 = vrot.lane.b32.xlu0 %v6869, 124
        %v6886 = vpop.permute.xlu0 %6885
        %6887 = vrot.lane.b32.xlu0 %v6872, 124
        %v6888 = vpop.permute.xlu0 %6887
        %6889 = vrot.lane.b32.xlu0 %v6874, 124
        %v6890 = vpop.permute.xlu0 %6889
        %v6899 = vadd.f32 %v6803, %v6876
        %v6900 = vadd.f32 %v6804, %v6878
        %v6901 = vadd.f32 %v6805, %v6880
        %v6902 = vadd.f32 %v6806, %v6882
        %v6903 = vadd.f32 %v6807, %v6884
        %v6904 = vadd.f32 %v6808, %v6886
        %v6905 = vadd.f32 %v6809, %v6888
        %v6906 = vadd.f32 %v6810, %v6890
        %6907 = vrot.lane.b32.xlu0 %v6443, 123
        %v6908 = vpop.permute.xlu0 %6907
        %6909 = vrot.lane.b32.xlu0 %v6444, 123
        %v6910 = vpop.permute.xlu0 %6909
        %6911 = vrot.lane.b32.xlu0 %v6445, 123
        %v6912 = vpop.permute.xlu0 %6911
        %6913 = vrot.lane.b32.xlu0 %v6446, 123
        %v6914 = vpop.permute.xlu0 %6913
        %s6915 = vtos %v6908
        %v6916 = vstv %s6915
        %s6918 = vtos %v6910
        %v6919 = vstv %s6918
        %s6921 = vtos %v6912
        %v6922 = vstv %s6921
        %s6924 = vtos %v6914
        %v6925 = vstv %s6924
        %v6927 = vmul.f32 %v296, %v6916
        %v6928 = vmul.f32 %v297, %v6916
        %v6929 = vmul.f32 %v298, %v6916
        %v6930 = vmul.f32 %v299, %v6919
        %v6931 = vmul.f32 %v300, %v6919
        %v6932 = vmul.f32 %v301, %v6919
        %v6933 = vmul.f32 %v302, %v6922
        %v6934 = vmul.f32 %v303, %v6922
        %v6935 = vmul.f32 %v304, %v6922
        %v6936 = vmul.f32 %v305, %v6925
        %v6937 = vmul.f32 %v306, %v6925
        %v6938 = vmul.f32 %v307, %v6925
        %v6951 = vrot.slane %v6927, 4
        %v6952 = vrot.slane %v6928, 4
        %v6953 = vsel %vm3383, %v6951, %v6952
        %v6954 = vrot.slane %v6929, 4
        %v6955 = vsel %vm3383, %v6952, %v6954
        %v6956 = vrot.slane %v6930, 4
        %v6957 = vrot.slane %v6931, 4
        %v6958 = vsel %vm3383, %v6956, %v6957
        %v6959 = vrot.slane %v6932, 4
        %v6960 = vsel %vm3383, %v6957, %v6959
        %v6961 = vrot.slane %v6933, 4
        %v6962 = vrot.slane %v6934, 4
        %v6963 = vsel %vm3383, %v6961, %v6962
        %v6964 = vrot.slane %v6935, 4
        %v6965 = vsel %vm3383, %v6962, %v6964
        %v6966 = vrot.slane %v6936, 4
        %v6967 = vrot.slane %v6937, 4
        %v6968 = vsel %vm3383, %v6966, %v6967
        %v6969 = vrot.slane %v6938, 4
        %v6970 = vsel %vm3383, %v6967, %v6969
        %6971 = vrot.lane.b32.xlu0 %v6953, 123
        %v6972 = vpop.permute.xlu0 %6971
        %6973 = vrot.lane.b32.xlu0 %v6955, 123
        %v6974 = vpop.permute.xlu0 %6973
        %6975 = vrot.lane.b32.xlu0 %v6958, 123
        %v6976 = vpop.permute.xlu0 %6975
        %6977 = vrot.lane.b32.xlu0 %v6960, 123
        %v6978 = vpop.permute.xlu0 %6977
        %6979 = vrot.lane.b32.xlu0 %v6963, 123
        %v6980 = vpop.permute.xlu0 %6979
        %6981 = vrot.lane.b32.xlu0 %v6965, 123
        %v6982 = vpop.permute.xlu0 %6981
        %6983 = vrot.lane.b32.xlu0 %v6968, 123
        %v6984 = vpop.permute.xlu0 %6983
        %6985 = vrot.lane.b32.xlu0 %v6970, 123
        %v6986 = vpop.permute.xlu0 %6985
        %v6995 = vadd.f32 %v6899, %v6972
        %v6996 = vadd.f32 %v6900, %v6974
        %v6997 = vadd.f32 %v6901, %v6976
        %v6998 = vadd.f32 %v6902, %v6978
        %v6999 = vadd.f32 %v6903, %v6980
        %v7000 = vadd.f32 %v6904, %v6982
        %v7001 = vadd.f32 %v6905, %v6984
        %v7002 = vadd.f32 %v6906, %v6986
        %7003 = vrot.lane.b32.xlu0 %v6443, 122
        %v7004 = vpop.permute.xlu0 %7003
        %7005 = vrot.lane.b32.xlu0 %v6444, 122
        %v7006 = vpop.permute.xlu0 %7005
        %7007 = vrot.lane.b32.xlu0 %v6445, 122
        %v7008 = vpop.permute.xlu0 %7007
        %7009 = vrot.lane.b32.xlu0 %v6446, 122
        %v7010 = vpop.permute.xlu0 %7009
        %s7011 = vtos %v7004
        %v7012 = vstv %s7011
        %s7014 = vtos %v7006
        %v7015 = vstv %s7014
        %s7017 = vtos %v7008
        %v7018 = vstv %s7017
        %s7020 = vtos %v7010
        %v7021 = vstv %s7020
        %v7023 = vmul.f32 %v296, %v7012
        %v7024 = vmul.f32 %v297, %v7012
        %v7025 = vmul.f32 %v298, %v7012
        %v7026 = vmul.f32 %v299, %v7015
        %v7027 = vmul.f32 %v300, %v7015
        %v7028 = vmul.f32 %v301, %v7015
        %v7029 = vmul.f32 %v302, %v7018
        %v7030 = vmul.f32 %v303, %v7018
        %v7031 = vmul.f32 %v304, %v7018
        %v7032 = vmul.f32 %v305, %v7021
        %v7033 = vmul.f32 %v306, %v7021
        %v7034 = vmul.f32 %v307, %v7021
        %v7047 = vrot.slane %v7023, 4
        %v7048 = vrot.slane %v7024, 4
        %v7049 = vsel %vm3383, %v7047, %v7048
        %v7050 = vrot.slane %v7025, 4
        %v7051 = vsel %vm3383, %v7048, %v7050
        %v7052 = vrot.slane %v7026, 4
        %v7053 = vrot.slane %v7027, 4
        %v7054 = vsel %vm3383, %v7052, %v7053
        %v7055 = vrot.slane %v7028, 4
        %v7056 = vsel %vm3383, %v7053, %v7055
        %v7057 = vrot.slane %v7029, 4
        %v7058 = vrot.slane %v7030, 4
        %v7059 = vsel %vm3383, %v7057, %v7058
        %v7060 = vrot.slane %v7031, 4
        %v7061 = vsel %vm3383, %v7058, %v7060
        %v7062 = vrot.slane %v7032, 4
        %v7063 = vrot.slane %v7033, 4
        %v7064 = vsel %vm3383, %v7062, %v7063
        %v7065 = vrot.slane %v7034, 4
        %v7066 = vsel %vm3383, %v7063, %v7065
        %7067 = vrot.lane.b32.xlu0 %v7049, 122
        %v7068 = vpop.permute.xlu0 %7067
        %7069 = vrot.lane.b32.xlu0 %v7051, 122
        %v7070 = vpop.permute.xlu0 %7069
        %7071 = vrot.lane.b32.xlu0 %v7054, 122
        %v7072 = vpop.permute.xlu0 %7071
        %7073 = vrot.lane.b32.xlu0 %v7056, 122
        %v7074 = vpop.permute.xlu0 %7073
        %7075 = vrot.lane.b32.xlu0 %v7059, 122
        %v7076 = vpop.permute.xlu0 %7075
        %7077 = vrot.lane.b32.xlu0 %v7061, 122
        %v7078 = vpop.permute.xlu0 %7077
        %7079 = vrot.lane.b32.xlu0 %v7064, 122
        %v7080 = vpop.permute.xlu0 %7079
        %7081 = vrot.lane.b32.xlu0 %v7066, 122
        %v7082 = vpop.permute.xlu0 %7081
        %v7091 = vadd.f32 %v6995, %v7068
        %v7092 = vadd.f32 %v6996, %v7070
        %v7093 = vadd.f32 %v6997, %v7072
        %v7094 = vadd.f32 %v6998, %v7074
        %v7095 = vadd.f32 %v6999, %v7076
        %v7096 = vadd.f32 %v7000, %v7078
        %v7097 = vadd.f32 %v7001, %v7080
        %v7098 = vadd.f32 %v7002, %v7082
        %v7099 = vld [vmem:[%s293 + $0x5] sm:$0x1]
        %v7100 = vld [vmem:[%s293 + $0xd] sm:$0x1]
        %v7101 = vld [vmem:[%s293 + $0x15] sm:$0x1]
        %v7102 = vld [vmem:[%s293 + $0x1d] sm:$0x1]
        %s7104 = vtos %v7099
        %v7105 = vstv %s7104
        %s7108 = vtos %v7100
        %v7109 = vstv %s7108
        %s7112 = vtos %v7101
        %v7113 = vstv %s7112
        %s7116 = vtos %v7102
        %v7117 = vstv %s7116
        %v7119 = vmul.f32 %v296, %v7105
        %v7120 = vmul.f32 %v297, %v7105
        %v7121 = vmul.f32 %v298, %v7105
        %v7122 = vmul.f32 %v299, %v7109
        %v7123 = vmul.f32 %v300, %v7109
        %v7124 = vmul.f32 %v301, %v7109
        %v7125 = vmul.f32 %v302, %v7113
        %v7126 = vmul.f32 %v303, %v7113
        %v7127 = vmul.f32 %v304, %v7113
        %v7128 = vmul.f32 %v305, %v7117
        %v7129 = vmul.f32 %v306, %v7117
        %v7130 = vmul.f32 %v307, %v7117
        %vm7143 = vcmask 1042432
        %v7144 = vrot.slane %v7119, 5
        %v7145 = vrot.slane %v7120, 5
        %v7146 = vsel %vm7143, %v7144, %v7145
        %v7147 = vrot.slane %v7121, 5
        %v7148 = vsel %vm7143, %v7145, %v7147
        %v7149 = vrot.slane %v7122, 5
        %v7150 = vrot.slane %v7123, 5
        %v7151 = vsel %vm7143, %v7149, %v7150
        %v7152 = vrot.slane %v7124, 5
        %v7153 = vsel %vm7143, %v7150, %v7152
        %v7154 = vrot.slane %v7125, 5
        %v7155 = vrot.slane %v7126, 5
        %v7156 = vsel %vm7143, %v7154, %v7155
        %v7157 = vrot.slane %v7127, 5
        %v7158 = vsel %vm7143, %v7155, %v7157
        %v7159 = vrot.slane %v7128, 5
        %v7160 = vrot.slane %v7129, 5
        %v7161 = vsel %vm7143, %v7159, %v7160
        %v7162 = vrot.slane %v7130, 5
        %v7163 = vsel %vm7143, %v7160, %v7162
        %v7172 = vadd.f32 %v7091, %v7146
        %v7173 = vadd.f32 %v7092, %v7148
        %v7174 = vadd.f32 %v7093, %v7151
        %v7175 = vadd.f32 %v7094, %v7153
        %v7176 = vadd.f32 %v7095, %v7156
        %v7177 = vadd.f32 %v7096, %v7158
        %v7178 = vadd.f32 %v7097, %v7161
        %v7179 = vadd.f32 %v7098, %v7163
        %7180 = vrot.lane.b32.xlu0 %v7099, 127
        %v7181 = vpop.permute.xlu0 %7180
        %7182 = vrot.lane.b32.xlu0 %v7100, 127
        %v7183 = vpop.permute.xlu0 %7182
        %7184 = vrot.lane.b32.xlu0 %v7101, 127
        %v7185 = vpop.permute.xlu0 %7184
        %7186 = vrot.lane.b32.xlu0 %v7102, 127
        %v7187 = vpop.permute.xlu0 %7186
        %s7188 = vtos %v7181
        %v7189 = vstv %s7188
        %s7191 = vtos %v7183
        %v7192 = vstv %s7191
        %s7194 = vtos %v7185
        %v7195 = vstv %s7194
        %s7197 = vtos %v7187
        %v7198 = vstv %s7197
        %v7200 = vmul.f32 %v296, %v7189
        %v7201 = vmul.f32 %v297, %v7189
        %v7202 = vmul.f32 %v298, %v7189
        %v7203 = vmul.f32 %v299, %v7192
        %v7204 = vmul.f32 %v300, %v7192
        %v7205 = vmul.f32 %v301, %v7192
        %v7206 = vmul.f32 %v302, %v7195
        %v7207 = vmul.f32 %v303, %v7195
        %v7208 = vmul.f32 %v304, %v7195
        %v7209 = vmul.f32 %v305, %v7198
        %v7210 = vmul.f32 %v306, %v7198
        %v7211 = vmul.f32 %v307, %v7198
        %v7224 = vrot.slane %v7200, 5
        %v7225 = vrot.slane %v7201, 5
        %v7226 = vsel %vm7143, %v7224, %v7225
        %v7227 = vrot.slane %v7202, 5
        %v7228 = vsel %vm7143, %v7225, %v7227
        %v7229 = vrot.slane %v7203, 5
        %v7230 = vrot.slane %v7204, 5
        %v7231 = vsel %vm7143, %v7229, %v7230
        %v7232 = vrot.slane %v7205, 5
        %v7233 = vsel %vm7143, %v7230, %v7232
        %v7234 = vrot.slane %v7206, 5
        %v7235 = vrot.slane %v7207, 5
        %v7236 = vsel %vm7143, %v7234, %v7235
        %v7237 = vrot.slane %v7208, 5
        %v7238 = vsel %vm7143, %v7235, %v7237
        %v7239 = vrot.slane %v7209, 5
        %v7240 = vrot.slane %v7210, 5
        %v7241 = vsel %vm7143, %v7239, %v7240
        %v7242 = vrot.slane %v7211, 5
        %v7243 = vsel %vm7143, %v7240, %v7242
        %7244 = vrot.lane.b32.xlu0 %v7226, 127
        %v7245 = vpop.permute.xlu0 %7244
        %7246 = vrot.lane.b32.xlu0 %v7228, 127
        %v7247 = vpop.permute.xlu0 %7246
        %7248 = vrot.lane.b32.xlu0 %v7231, 127
        %v7249 = vpop.permute.xlu0 %7248
        %7250 = vrot.lane.b32.xlu0 %v7233, 127
        %v7251 = vpop.permute.xlu0 %7250
        %7252 = vrot.lane.b32.xlu0 %v7236, 127
        %v7253 = vpop.permute.xlu0 %7252
        %7254 = vrot.lane.b32.xlu0 %v7238, 127
        %v7255 = vpop.permute.xlu0 %7254
        %7256 = vrot.lane.b32.xlu0 %v7241, 127
        %v7257 = vpop.permute.xlu0 %7256
        %7258 = vrot.lane.b32.xlu0 %v7243, 127
        %v7259 = vpop.permute.xlu0 %7258
        %v7268 = vadd.f32 %v7172, %v7245
        %v7269 = vadd.f32 %v7173, %v7247
        %v7270 = vadd.f32 %v7174, %v7249
        %v7271 = vadd.f32 %v7175, %v7251
        %v7272 = vadd.f32 %v7176, %v7253
        %v7273 = vadd.f32 %v7177, %v7255
        %v7274 = vadd.f32 %v7178, %v7257
        %v7275 = vadd.f32 %v7179, %v7259
        %7276 = vrot.lane.b32.xlu0 %v7099, 126
        %v7277 = vpop.permute.xlu0 %7276
        %7278 = vrot.lane.b32.xlu0 %v7100, 126
        %v7279 = vpop.permute.xlu0 %7278
        %7280 = vrot.lane.b32.xlu0 %v7101, 126
        %v7281 = vpop.permute.xlu0 %7280
        %7282 = vrot.lane.b32.xlu0 %v7102, 126
        %v7283 = vpop.permute.xlu0 %7282
        %s7284 = vtos %v7277
        %v7285 = vstv %s7284
        %s7287 = vtos %v7279
        %v7288 = vstv %s7287
        %s7290 = vtos %v7281
        %v7291 = vstv %s7290
        %s7293 = vtos %v7283
        %v7294 = vstv %s7293
        %v7296 = vmul.f32 %v296, %v7285
        %v7297 = vmul.f32 %v297, %v7285
        %v7298 = vmul.f32 %v298, %v7285
        %v7299 = vmul.f32 %v299, %v7288
        %v7300 = vmul.f32 %v300, %v7288
        %v7301 = vmul.f32 %v301, %v7288
        %v7302 = vmul.f32 %v302, %v7291
        %v7303 = vmul.f32 %v303, %v7291
        %v7304 = vmul.f32 %v304, %v7291
        %v7305 = vmul.f32 %v305, %v7294
        %v7306 = vmul.f32 %v306, %v7294
        %v7307 = vmul.f32 %v307, %v7294
        %v7320 = vrot.slane %v7296, 5
        %v7321 = vrot.slane %v7297, 5
        %v7322 = vsel %vm7143, %v7320, %v7321
        %v7323 = vrot.slane %v7298, 5
        %v7324 = vsel %vm7143, %v7321, %v7323
        %v7325 = vrot.slane %v7299, 5
        %v7326 = vrot.slane %v7300, 5
        %v7327 = vsel %vm7143, %v7325, %v7326
        %v7328 = vrot.slane %v7301, 5
        %v7329 = vsel %vm7143, %v7326, %v7328
        %v7330 = vrot.slane %v7302, 5
        %v7331 = vrot.slane %v7303, 5
        %v7332 = vsel %vm7143, %v7330, %v7331
        %v7333 = vrot.slane %v7304, 5
        %v7334 = vsel %vm7143, %v7331, %v7333
        %v7335 = vrot.slane %v7305, 5
        %v7336 = vrot.slane %v7306, 5
        %v7337 = vsel %vm7143, %v7335, %v7336
        %v7338 = vrot.slane %v7307, 5
        %v7339 = vsel %vm7143, %v7336, %v7338
        %7340 = vrot.lane.b32.xlu0 %v7322, 126
        %v7341 = vpop.permute.xlu0 %7340
        %7342 = vrot.lane.b32.xlu0 %v7324, 126
        %v7343 = vpop.permute.xlu0 %7342
        %7344 = vrot.lane.b32.xlu0 %v7327, 126
        %v7345 = vpop.permute.xlu0 %7344
        %7346 = vrot.lane.b32.xlu0 %v7329, 126
        %v7347 = vpop.permute.xlu0 %7346
        %7348 = vrot.lane.b32.xlu0 %v7332, 126
        %v7349 = vpop.permute.xlu0 %7348
        %7350 = vrot.lane.b32.xlu0 %v7334, 126
        %v7351 = vpop.permute.xlu0 %7350
        %7352 = vrot.lane.b32.xlu0 %v7337, 126
        %v7353 = vpop.permute.xlu0 %7352
        %7354 = vrot.lane.b32.xlu0 %v7339, 126
        %v7355 = vpop.permute.xlu0 %7354
        %v7364 = vadd.f32 %v7268, %v7341
        %v7365 = vadd.f32 %v7269, %v7343
        %v7366 = vadd.f32 %v7270, %v7345
        %v7367 = vadd.f32 %v7271, %v7347
        %v7368 = vadd.f32 %v7272, %v7349
        %v7369 = vadd.f32 %v7273, %v7351
        %v7370 = vadd.f32 %v7274, %v7353
        %v7371 = vadd.f32 %v7275, %v7355
        %7372 = vrot.lane.b32.xlu0 %v7099, 125
        %v7373 = vpop.permute.xlu0 %7372
        %7374 = vrot.lane.b32.xlu0 %v7100, 125
        %v7375 = vpop.permute.xlu0 %7374
        %7376 = vrot.lane.b32.xlu0 %v7101, 125
        %v7377 = vpop.permute.xlu0 %7376
        %7378 = vrot.lane.b32.xlu0 %v7102, 125
        %v7379 = vpop.permute.xlu0 %7378
        %s7380 = vtos %v7373
        %v7381 = vstv %s7380
        %s7383 = vtos %v7375
        %v7384 = vstv %s7383
        %s7386 = vtos %v7377
        %v7387 = vstv %s7386
        %s7389 = vtos %v7379
        %v7390 = vstv %s7389
        %v7392 = vmul.f32 %v296, %v7381
        %v7393 = vmul.f32 %v297, %v7381
        %v7394 = vmul.f32 %v298, %v7381
        %v7395 = vmul.f32 %v299, %v7384
        %v7396 = vmul.f32 %v300, %v7384
        %v7397 = vmul.f32 %v301, %v7384
        %v7398 = vmul.f32 %v302, %v7387
        %v7399 = vmul.f32 %v303, %v7387
        %v7400 = vmul.f32 %v304, %v7387
        %v7401 = vmul.f32 %v305, %v7390
        %v7402 = vmul.f32 %v306, %v7390
        %v7403 = vmul.f32 %v307, %v7390
        %v7416 = vrot.slane %v7392, 5
        %v7417 = vrot.slane %v7393, 5
        %v7418 = vsel %vm7143, %v7416, %v7417
        %v7419 = vrot.slane %v7394, 5
        %v7420 = vsel %vm7143, %v7417, %v7419
        %v7421 = vrot.slane %v7395, 5
        %v7422 = vrot.slane %v7396, 5
        %v7423 = vsel %vm7143, %v7421, %v7422
        %v7424 = vrot.slane %v7397, 5
        %v7425 = vsel %vm7143, %v7422, %v7424
        %v7426 = vrot.slane %v7398, 5
        %v7427 = vrot.slane %v7399, 5
        %v7428 = vsel %vm7143, %v7426, %v7427
        %v7429 = vrot.slane %v7400, 5
        %v7430 = vsel %vm7143, %v7427, %v7429
        %v7431 = vrot.slane %v7401, 5
        %v7432 = vrot.slane %v7402, 5
        %v7433 = vsel %vm7143, %v7431, %v7432
        %v7434 = vrot.slane %v7403, 5
        %v7435 = vsel %vm7143, %v7432, %v7434
        %7436 = vrot.lane.b32.xlu0 %v7418, 125
        %v7437 = vpop.permute.xlu0 %7436
        %7438 = vrot.lane.b32.xlu0 %v7420, 125
        %v7439 = vpop.permute.xlu0 %7438
        %7440 = vrot.lane.b32.xlu0 %v7423, 125
        %v7441 = vpop.permute.xlu0 %7440
        %7442 = vrot.lane.b32.xlu0 %v7425, 125
        %v7443 = vpop.permute.xlu0 %7442
        %7444 = vrot.lane.b32.xlu0 %v7428, 125
        %v7445 = vpop.permute.xlu0 %7444
        %7446 = vrot.lane.b32.xlu0 %v7430, 125
        %v7447 = vpop.permute.xlu0 %7446
        %7448 = vrot.lane.b32.xlu0 %v7433, 125
        %v7449 = vpop.permute.xlu0 %7448
        %7450 = vrot.lane.b32.xlu0 %v7435, 125
        %v7451 = vpop.permute.xlu0 %7450
        %v7460 = vadd.f32 %v7364, %v7437
        %v7461 = vadd.f32 %v7365, %v7439
        %v7462 = vadd.f32 %v7366, %v7441
        %v7463 = vadd.f32 %v7367, %v7443
        %v7464 = vadd.f32 %v7368, %v7445
        %v7465 = vadd.f32 %v7369, %v7447
        %v7466 = vadd.f32 %v7370, %v7449
        %v7467 = vadd.f32 %v7371, %v7451
        %7468 = vrot.lane.b32.xlu0 %v7099, 124
        %v7469 = vpop.permute.xlu0 %7468
        %7470 = vrot.lane.b32.xlu0 %v7100, 124
        %v7471 = vpop.permute.xlu0 %7470
        %7472 = vrot.lane.b32.xlu0 %v7101, 124
        %v7473 = vpop.permute.xlu0 %7472
        %7474 = vrot.lane.b32.xlu0 %v7102, 124
        %v7475 = vpop.permute.xlu0 %7474
        %s7476 = vtos %v7469
        %v7477 = vstv %s7476
        %s7479 = vtos %v7471
        %v7480 = vstv %s7479
        %s7482 = vtos %v7473
        %v7483 = vstv %s7482
        %s7485 = vtos %v7475
        %v7486 = vstv %s7485
        %v7488 = vmul.f32 %v296, %v7477
        %v7489 = vmul.f32 %v297, %v7477
        %v7490 = vmul.f32 %v298, %v7477
        %v7491 = vmul.f32 %v299, %v7480
        %v7492 = vmul.f32 %v300, %v7480
        %v7493 = vmul.f32 %v301, %v7480
        %v7494 = vmul.f32 %v302, %v7483
        %v7495 = vmul.f32 %v303, %v7483
        %v7496 = vmul.f32 %v304, %v7483
        %v7497 = vmul.f32 %v305, %v7486
        %v7498 = vmul.f32 %v306, %v7486
        %v7499 = vmul.f32 %v307, %v7486
        %v7512 = vrot.slane %v7488, 5
        %v7513 = vrot.slane %v7489, 5
        %v7514 = vsel %vm7143, %v7512, %v7513
        %v7515 = vrot.slane %v7490, 5
        %v7516 = vsel %vm7143, %v7513, %v7515
        %v7517 = vrot.slane %v7491, 5
        %v7518 = vrot.slane %v7492, 5
        %v7519 = vsel %vm7143, %v7517, %v7518
        %v7520 = vrot.slane %v7493, 5
        %v7521 = vsel %vm7143, %v7518, %v7520
        %v7522 = vrot.slane %v7494, 5
        %v7523 = vrot.slane %v7495, 5
        %v7524 = vsel %vm7143, %v7522, %v7523
        %v7525 = vrot.slane %v7496, 5
        %v7526 = vsel %vm7143, %v7523, %v7525
        %v7527 = vrot.slane %v7497, 5
        %v7528 = vrot.slane %v7498, 5
        %v7529 = vsel %vm7143, %v7527, %v7528
        %v7530 = vrot.slane %v7499, 5
        %v7531 = vsel %vm7143, %v7528, %v7530
        %7532 = vrot.lane.b32.xlu0 %v7514, 124
        %v7533 = vpop.permute.xlu0 %7532
        %7534 = vrot.lane.b32.xlu0 %v7516, 124
        %v7535 = vpop.permute.xlu0 %7534
        %7536 = vrot.lane.b32.xlu0 %v7519, 124
        %v7537 = vpop.permute.xlu0 %7536
        %7538 = vrot.lane.b32.xlu0 %v7521, 124
        %v7539 = vpop.permute.xlu0 %7538
        %7540 = vrot.lane.b32.xlu0 %v7524, 124
        %v7541 = vpop.permute.xlu0 %7540
        %7542 = vrot.lane.b32.xlu0 %v7526, 124
        %v7543 = vpop.permute.xlu0 %7542
        %7544 = vrot.lane.b32.xlu0 %v7529, 124
        %v7545 = vpop.permute.xlu0 %7544
        %7546 = vrot.lane.b32.xlu0 %v7531, 124
        %v7547 = vpop.permute.xlu0 %7546
        %v7556 = vadd.f32 %v7460, %v7533
        %v7557 = vadd.f32 %v7461, %v7535
        %v7558 = vadd.f32 %v7462, %v7537
        %v7559 = vadd.f32 %v7463, %v7539
        %v7560 = vadd.f32 %v7464, %v7541
        %v7561 = vadd.f32 %v7465, %v7543
        %v7562 = vadd.f32 %v7466, %v7545
        %v7563 = vadd.f32 %v7467, %v7547
        %7564 = vrot.lane.b32.xlu0 %v7099, 123
        %v7565 = vpop.permute.xlu0 %7564
        %7566 = vrot.lane.b32.xlu0 %v7100, 123
        %v7567 = vpop.permute.xlu0 %7566
        %7568 = vrot.lane.b32.xlu0 %v7101, 123
        %v7569 = vpop.permute.xlu0 %7568
        %7570 = vrot.lane.b32.xlu0 %v7102, 123
        %v7571 = vpop.permute.xlu0 %7570
        %s7572 = vtos %v7565
        %v7573 = vstv %s7572
        %s7575 = vtos %v7567
        %v7576 = vstv %s7575
        %s7578 = vtos %v7569
        %v7579 = vstv %s7578
        %s7581 = vtos %v7571
        %v7582 = vstv %s7581
        %v7584 = vmul.f32 %v296, %v7573
        %v7585 = vmul.f32 %v297, %v7573
        %v7586 = vmul.f32 %v298, %v7573
        %v7587 = vmul.f32 %v299, %v7576
        %v7588 = vmul.f32 %v300, %v7576
        %v7589 = vmul.f32 %v301, %v7576
        %v7590 = vmul.f32 %v302, %v7579
        %v7591 = vmul.f32 %v303, %v7579
        %v7592 = vmul.f32 %v304, %v7579
        %v7593 = vmul.f32 %v305, %v7582
        %v7594 = vmul.f32 %v306, %v7582
        %v7595 = vmul.f32 %v307, %v7582
        %v7608 = vrot.slane %v7584, 5
        %v7609 = vrot.slane %v7585, 5
        %v7610 = vsel %vm7143, %v7608, %v7609
        %v7611 = vrot.slane %v7586, 5
        %v7612 = vsel %vm7143, %v7609, %v7611
        %v7613 = vrot.slane %v7587, 5
        %v7614 = vrot.slane %v7588, 5
        %v7615 = vsel %vm7143, %v7613, %v7614
        %v7616 = vrot.slane %v7589, 5
        %v7617 = vsel %vm7143, %v7614, %v7616
        %v7618 = vrot.slane %v7590, 5
        %v7619 = vrot.slane %v7591, 5
        %v7620 = vsel %vm7143, %v7618, %v7619
        %v7621 = vrot.slane %v7592, 5
        %v7622 = vsel %vm7143, %v7619, %v7621
        %v7623 = vrot.slane %v7593, 5
        %v7624 = vrot.slane %v7594, 5
        %v7625 = vsel %vm7143, %v7623, %v7624
        %v7626 = vrot.slane %v7595, 5
        %v7627 = vsel %vm7143, %v7624, %v7626
        %7628 = vrot.lane.b32.xlu0 %v7610, 123
        %v7629 = vpop.permute.xlu0 %7628
        %7630 = vrot.lane.b32.xlu0 %v7612, 123
        %v7631 = vpop.permute.xlu0 %7630
        %7632 = vrot.lane.b32.xlu0 %v7615, 123
        %v7633 = vpop.permute.xlu0 %7632
        %7634 = vrot.lane.b32.xlu0 %v7617, 123
        %v7635 = vpop.permute.xlu0 %7634
        %7636 = vrot.lane.b32.xlu0 %v7620, 123
        %v7637 = vpop.permute.xlu0 %7636
        %7638 = vrot.lane.b32.xlu0 %v7622, 123
        %v7639 = vpop.permute.xlu0 %7638
        %7640 = vrot.lane.b32.xlu0 %v7625, 123
        %v7641 = vpop.permute.xlu0 %7640
        %7642 = vrot.lane.b32.xlu0 %v7627, 123
        %v7643 = vpop.permute.xlu0 %7642
        %v7652 = vadd.f32 %v7556, %v7629
        %v7653 = vadd.f32 %v7557, %v7631
        %v7654 = vadd.f32 %v7558, %v7633
        %v7655 = vadd.f32 %v7559, %v7635
        %v7656 = vadd.f32 %v7560, %v7637
        %v7657 = vadd.f32 %v7561, %v7639
        %v7658 = vadd.f32 %v7562, %v7641
        %v7659 = vadd.f32 %v7563, %v7643
        %7660 = vrot.lane.b32.xlu0 %v7099, 122
        %v7661 = vpop.permute.xlu0 %7660
        %7662 = vrot.lane.b32.xlu0 %v7100, 122
        %v7663 = vpop.permute.xlu0 %7662
        %7664 = vrot.lane.b32.xlu0 %v7101, 122
        %v7665 = vpop.permute.xlu0 %7664
        %7666 = vrot.lane.b32.xlu0 %v7102, 122
        %v7667 = vpop.permute.xlu0 %7666
        %s7668 = vtos %v7661
        %v7669 = vstv %s7668
        %s7671 = vtos %v7663
        %v7672 = vstv %s7671
        %s7674 = vtos %v7665
        %v7675 = vstv %s7674
        %s7677 = vtos %v7667
        %v7678 = vstv %s7677
        %v7680 = vmul.f32 %v296, %v7669
        %v7681 = vmul.f32 %v297, %v7669
        %v7682 = vmul.f32 %v298, %v7669
        %v7683 = vmul.f32 %v299, %v7672
        %v7684 = vmul.f32 %v300, %v7672
        %v7685 = vmul.f32 %v301, %v7672
        %v7686 = vmul.f32 %v302, %v7675
        %v7687 = vmul.f32 %v303, %v7675
        %v7688 = vmul.f32 %v304, %v7675
        %v7689 = vmul.f32 %v305, %v7678
        %v7690 = vmul.f32 %v306, %v7678
        %v7691 = vmul.f32 %v307, %v7678
        %v7704 = vrot.slane %v7680, 5
        %v7705 = vrot.slane %v7681, 5
        %v7706 = vsel %vm7143, %v7704, %v7705
        %v7707 = vrot.slane %v7682, 5
        %v7708 = vsel %vm7143, %v7705, %v7707
        %v7709 = vrot.slane %v7683, 5
        %v7710 = vrot.slane %v7684, 5
        %v7711 = vsel %vm7143, %v7709, %v7710
        %v7712 = vrot.slane %v7685, 5
        %v7713 = vsel %vm7143, %v7710, %v7712
        %v7714 = vrot.slane %v7686, 5
        %v7715 = vrot.slane %v7687, 5
        %v7716 = vsel %vm7143, %v7714, %v7715
        %v7717 = vrot.slane %v7688, 5
        %v7718 = vsel %vm7143, %v7715, %v7717
        %v7719 = vrot.slane %v7689, 5
        %v7720 = vrot.slane %v7690, 5
        %v7721 = vsel %vm7143, %v7719, %v7720
        %v7722 = vrot.slane %v7691, 5
        %v7723 = vsel %vm7143, %v7720, %v7722
        %7724 = vrot.lane.b32.xlu0 %v7706, 122
        %v7725 = vpop.permute.xlu0 %7724
        %7726 = vrot.lane.b32.xlu0 %v7708, 122
        %v7727 = vpop.permute.xlu0 %7726
        %7728 = vrot.lane.b32.xlu0 %v7711, 122
        %v7729 = vpop.permute.xlu0 %7728
        %7730 = vrot.lane.b32.xlu0 %v7713, 122
        %v7731 = vpop.permute.xlu0 %7730
        %7732 = vrot.lane.b32.xlu0 %v7716, 122
        %v7733 = vpop.permute.xlu0 %7732
        %7734 = vrot.lane.b32.xlu0 %v7718, 122
        %v7735 = vpop.permute.xlu0 %7734
        %7736 = vrot.lane.b32.xlu0 %v7721, 122
        %v7737 = vpop.permute.xlu0 %7736
        %7738 = vrot.lane.b32.xlu0 %v7723, 122
        %v7739 = vpop.permute.xlu0 %7738
        %v7748 = vadd.f32 %v7652, %v7725
        %v7749 = vadd.f32 %v7653, %v7727
        %v7750 = vadd.f32 %v7654, %v7729
        %v7751 = vadd.f32 %v7655, %v7731
        %v7752 = vadd.f32 %v7656, %v7733
        %v7753 = vadd.f32 %v7657, %v7735
        %v7754 = vadd.f32 %v7658, %v7737
        %v7755 = vadd.f32 %v7659, %v7739
        %v7756 = vld [vmem:[%s293 + $0x6] sm:$0x1]
        %v7757 = vld [vmem:[%s293 + $0xe] sm:$0x1]
        %v7758 = vld [vmem:[%s293 + $0x16] sm:$0x1]
        %v7759 = vld [vmem:[%s293 + $0x1e] sm:$0x1]
        %s7761 = vtos %v7756
        %v7762 = vstv %s7761
        %s7765 = vtos %v7757
        %v7766 = vstv %s7765
        %s7769 = vtos %v7758
        %v7770 = vstv %s7769
        %s7773 = vtos %v7759
        %v7774 = vstv %s7773
        %v7776 = vmul.f32 %v296, %v7762
        %v7777 = vmul.f32 %v297, %v7762
        %v7778 = vmul.f32 %v298, %v7762
        %v7779 = vmul.f32 %v299, %v7766
        %v7780 = vmul.f32 %v300, %v7766
        %v7781 = vmul.f32 %v301, %v7766
        %v7782 = vmul.f32 %v302, %v7770
        %v7783 = vmul.f32 %v303, %v7770
        %v7784 = vmul.f32 %v304, %v7770
        %v7785 = vmul.f32 %v305, %v7774
        %v7786 = vmul.f32 %v306, %v7774
        %v7787 = vmul.f32 %v307, %v7774
        %vm7800 = vcmask 1041408
        %v7801 = vrot.slane %v7776, 6
        %v7802 = vrot.slane %v7777, 6
        %v7803 = vsel %vm7800, %v7801, %v7802
        %v7804 = vrot.slane %v7778, 6
        %v7805 = vsel %vm7800, %v7802, %v7804
        %v7806 = vrot.slane %v7779, 6
        %v7807 = vrot.slane %v7780, 6
        %v7808 = vsel %vm7800, %v7806, %v7807
        %v7809 = vrot.slane %v7781, 6
        %v7810 = vsel %vm7800, %v7807, %v7809
        %v7811 = vrot.slane %v7782, 6
        %v7812 = vrot.slane %v7783, 6
        %v7813 = vsel %vm7800, %v7811, %v7812
        %v7814 = vrot.slane %v7784, 6
        %v7815 = vsel %vm7800, %v7812, %v7814
        %v7816 = vrot.slane %v7785, 6
        %v7817 = vrot.slane %v7786, 6
        %v7818 = vsel %vm7800, %v7816, %v7817
        %v7819 = vrot.slane %v7787, 6
        %v7820 = vsel %vm7800, %v7817, %v7819
        %v7829 = vadd.f32 %v7748, %v7803
        %v7830 = vadd.f32 %v7749, %v7805
        %v7831 = vadd.f32 %v7750, %v7808
        %v7832 = vadd.f32 %v7751, %v7810
        %v7833 = vadd.f32 %v7752, %v7813
        %v7834 = vadd.f32 %v7753, %v7815
        %v7835 = vadd.f32 %v7754, %v7818
        %v7836 = vadd.f32 %v7755, %v7820
        %7837 = vrot.lane.b32.xlu0 %v7756, 127
        %v7838 = vpop.permute.xlu0 %7837
        %7839 = vrot.lane.b32.xlu0 %v7757, 127
        %v7840 = vpop.permute.xlu0 %7839
        %7841 = vrot.lane.b32.xlu0 %v7758, 127
        %v7842 = vpop.permute.xlu0 %7841
        %7843 = vrot.lane.b32.xlu0 %v7759, 127
        %v7844 = vpop.permute.xlu0 %7843
        %s7845 = vtos %v7838
        %v7846 = vstv %s7845
        %s7848 = vtos %v7840
        %v7849 = vstv %s7848
        %s7851 = vtos %v7842
        %v7852 = vstv %s7851
        %s7854 = vtos %v7844
        %v7855 = vstv %s7854
        %v7857 = vmul.f32 %v296, %v7846
        %v7858 = vmul.f32 %v297, %v7846
        %v7859 = vmul.f32 %v298, %v7846
        %v7860 = vmul.f32 %v299, %v7849
        %v7861 = vmul.f32 %v300, %v7849
        %v7862 = vmul.f32 %v301, %v7849
        %v7863 = vmul.f32 %v302, %v7852
        %v7864 = vmul.f32 %v303, %v7852
        %v7865 = vmul.f32 %v304, %v7852
        %v7866 = vmul.f32 %v305, %v7855
        %v7867 = vmul.f32 %v306, %v7855
        %v7868 = vmul.f32 %v307, %v7855
        %v7881 = vrot.slane %v7857, 6
        %v7882 = vrot.slane %v7858, 6
        %v7883 = vsel %vm7800, %v7881, %v7882
        %v7884 = vrot.slane %v7859, 6
        %v7885 = vsel %vm7800, %v7882, %v7884
        %v7886 = vrot.slane %v7860, 6
        %v7887 = vrot.slane %v7861, 6
        %v7888 = vsel %vm7800, %v7886, %v7887
        %v7889 = vrot.slane %v7862, 6
        %v7890 = vsel %vm7800, %v7887, %v7889
        %v7891 = vrot.slane %v7863, 6
        %v7892 = vrot.slane %v7864, 6
        %v7893 = vsel %vm7800, %v7891, %v7892
        %v7894 = vrot.slane %v7865, 6
        %v7895 = vsel %vm7800, %v7892, %v7894
        %v7896 = vrot.slane %v7866, 6
        %v7897 = vrot.slane %v7867, 6
        %v7898 = vsel %vm7800, %v7896, %v7897
        %v7899 = vrot.slane %v7868, 6
        %v7900 = vsel %vm7800, %v7897, %v7899
        %7901 = vrot.lane.b32.xlu0 %v7883, 127
        %v7902 = vpop.permute.xlu0 %7901
        %7903 = vrot.lane.b32.xlu0 %v7885, 127
        %v7904 = vpop.permute.xlu0 %7903
        %7905 = vrot.lane.b32.xlu0 %v7888, 127
        %v7906 = vpop.permute.xlu0 %7905
        %7907 = vrot.lane.b32.xlu0 %v7890, 127
        %v7908 = vpop.permute.xlu0 %7907
        %7909 = vrot.lane.b32.xlu0 %v7893, 127
        %v7910 = vpop.permute.xlu0 %7909
        %7911 = vrot.lane.b32.xlu0 %v7895, 127
        %v7912 = vpop.permute.xlu0 %7911
        %7913 = vrot.lane.b32.xlu0 %v7898, 127
        %v7914 = vpop.permute.xlu0 %7913
        %7915 = vrot.lane.b32.xlu0 %v7900, 127
        %v7916 = vpop.permute.xlu0 %7915
        %v7925 = vadd.f32 %v7829, %v7902
        %v7926 = vadd.f32 %v7830, %v7904
        %v7927 = vadd.f32 %v7831, %v7906
        %v7928 = vadd.f32 %v7832, %v7908
        %v7929 = vadd.f32 %v7833, %v7910
        %v7930 = vadd.f32 %v7834, %v7912
        %v7931 = vadd.f32 %v7835, %v7914
        %v7932 = vadd.f32 %v7836, %v7916
        %7933 = vrot.lane.b32.xlu0 %v7756, 126
        %v7934 = vpop.permute.xlu0 %7933
        %7935 = vrot.lane.b32.xlu0 %v7757, 126
        %v7936 = vpop.permute.xlu0 %7935
        %7937 = vrot.lane.b32.xlu0 %v7758, 126
        %v7938 = vpop.permute.xlu0 %7937
        %7939 = vrot.lane.b32.xlu0 %v7759, 126
        %v7940 = vpop.permute.xlu0 %7939
        %s7941 = vtos %v7934
        %v7942 = vstv %s7941
        %s7944 = vtos %v7936
        %v7945 = vstv %s7944
        %s7947 = vtos %v7938
        %v7948 = vstv %s7947
        %s7950 = vtos %v7940
        %v7951 = vstv %s7950
        %v7953 = vmul.f32 %v296, %v7942
        %v7954 = vmul.f32 %v297, %v7942
        %v7955 = vmul.f32 %v298, %v7942
        %v7956 = vmul.f32 %v299, %v7945
        %v7957 = vmul.f32 %v300, %v7945
        %v7958 = vmul.f32 %v301, %v7945
        %v7959 = vmul.f32 %v302, %v7948
        %v7960 = vmul.f32 %v303, %v7948
        %v7961 = vmul.f32 %v304, %v7948
        %v7962 = vmul.f32 %v305, %v7951
        %v7963 = vmul.f32 %v306, %v7951
        %v7964 = vmul.f32 %v307, %v7951
        %v7977 = vrot.slane %v7953, 6
        %v7978 = vrot.slane %v7954, 6
        %v7979 = vsel %vm7800, %v7977, %v7978
        %v7980 = vrot.slane %v7955, 6
        %v7981 = vsel %vm7800, %v7978, %v7980
        %v7982 = vrot.slane %v7956, 6
        %v7983 = vrot.slane %v7957, 6
        %v7984 = vsel %vm7800, %v7982, %v7983
        %v7985 = vrot.slane %v7958, 6
        %v7986 = vsel %vm7800, %v7983, %v7985
        %v7987 = vrot.slane %v7959, 6
        %v7988 = vrot.slane %v7960, 6
        %v7989 = vsel %vm7800, %v7987, %v7988
        %v7990 = vrot.slane %v7961, 6
        %v7991 = vsel %vm7800, %v7988, %v7990
        %v7992 = vrot.slane %v7962, 6
        %v7993 = vrot.slane %v7963, 6
        %v7994 = vsel %vm7800, %v7992, %v7993
        %v7995 = vrot.slane %v7964, 6
        %v7996 = vsel %vm7800, %v7993, %v7995
        %7997 = vrot.lane.b32.xlu0 %v7979, 126
        %v7998 = vpop.permute.xlu0 %7997
        %7999 = vrot.lane.b32.xlu0 %v7981, 126
        %v8000 = vpop.permute.xlu0 %7999
        %8001 = vrot.lane.b32.xlu0 %v7984, 126
        %v8002 = vpop.permute.xlu0 %8001
        %8003 = vrot.lane.b32.xlu0 %v7986, 126
        %v8004 = vpop.permute.xlu0 %8003
        %8005 = vrot.lane.b32.xlu0 %v7989, 126
        %v8006 = vpop.permute.xlu0 %8005
        %8007 = vrot.lane.b32.xlu0 %v7991, 126
        %v8008 = vpop.permute.xlu0 %8007
        %8009 = vrot.lane.b32.xlu0 %v7994, 126
        %v8010 = vpop.permute.xlu0 %8009
        %8011 = vrot.lane.b32.xlu0 %v7996, 126
        %v8012 = vpop.permute.xlu0 %8011
        %v8021 = vadd.f32 %v7925, %v7998
        %v8022 = vadd.f32 %v7926, %v8000
        %v8023 = vadd.f32 %v7927, %v8002
        %v8024 = vadd.f32 %v7928, %v8004
        %v8025 = vadd.f32 %v7929, %v8006
        %v8026 = vadd.f32 %v7930, %v8008
        %v8027 = vadd.f32 %v7931, %v8010
        %v8028 = vadd.f32 %v7932, %v8012
        %8029 = vrot.lane.b32.xlu0 %v7756, 125
        %v8030 = vpop.permute.xlu0 %8029
        %8031 = vrot.lane.b32.xlu0 %v7757, 125
        %v8032 = vpop.permute.xlu0 %8031
        %8033 = vrot.lane.b32.xlu0 %v7758, 125
        %v8034 = vpop.permute.xlu0 %8033
        %8035 = vrot.lane.b32.xlu0 %v7759, 125
        %v8036 = vpop.permute.xlu0 %8035
        %s8037 = vtos %v8030
        %v8038 = vstv %s8037
        %s8040 = vtos %v8032
        %v8041 = vstv %s8040
        %s8043 = vtos %v8034
        %v8044 = vstv %s8043
        %s8046 = vtos %v8036
        %v8047 = vstv %s8046
        %v8049 = vmul.f32 %v296, %v8038
        %v8050 = vmul.f32 %v297, %v8038
        %v8051 = vmul.f32 %v298, %v8038
        %v8052 = vmul.f32 %v299, %v8041
        %v8053 = vmul.f32 %v300, %v8041
        %v8054 = vmul.f32 %v301, %v8041
        %v8055 = vmul.f32 %v302, %v8044
        %v8056 = vmul.f32 %v303, %v8044
        %v8057 = vmul.f32 %v304, %v8044
        %v8058 = vmul.f32 %v305, %v8047
        %v8059 = vmul.f32 %v306, %v8047
        %v8060 = vmul.f32 %v307, %v8047
        %v8073 = vrot.slane %v8049, 6
        %v8074 = vrot.slane %v8050, 6
        %v8075 = vsel %vm7800, %v8073, %v8074
        %v8076 = vrot.slane %v8051, 6
        %v8077 = vsel %vm7800, %v8074, %v8076
        %v8078 = vrot.slane %v8052, 6
        %v8079 = vrot.slane %v8053, 6
        %v8080 = vsel %vm7800, %v8078, %v8079
        %v8081 = vrot.slane %v8054, 6
        %v8082 = vsel %vm7800, %v8079, %v8081
        %v8083 = vrot.slane %v8055, 6
        %v8084 = vrot.slane %v8056, 6
        %v8085 = vsel %vm7800, %v8083, %v8084
        %v8086 = vrot.slane %v8057, 6
        %v8087 = vsel %vm7800, %v8084, %v8086
        %v8088 = vrot.slane %v8058, 6
        %v8089 = vrot.slane %v8059, 6
        %v8090 = vsel %vm7800, %v8088, %v8089
        %v8091 = vrot.slane %v8060, 6
        %v8092 = vsel %vm7800, %v8089, %v8091
        %8093 = vrot.lane.b32.xlu0 %v8075, 125
        %v8094 = vpop.permute.xlu0 %8093
        %8095 = vrot.lane.b32.xlu0 %v8077, 125
        %v8096 = vpop.permute.xlu0 %8095
        %8097 = vrot.lane.b32.xlu0 %v8080, 125
        %v8098 = vpop.permute.xlu0 %8097
        %8099 = vrot.lane.b32.xlu0 %v8082, 125
        %v8100 = vpop.permute.xlu0 %8099
        %8101 = vrot.lane.b32.xlu0 %v8085, 125
        %v8102 = vpop.permute.xlu0 %8101
        %8103 = vrot.lane.b32.xlu0 %v8087, 125
        %v8104 = vpop.permute.xlu0 %8103
        %8105 = vrot.lane.b32.xlu0 %v8090, 125
        %v8106 = vpop.permute.xlu0 %8105
        %8107 = vrot.lane.b32.xlu0 %v8092, 125
        %v8108 = vpop.permute.xlu0 %8107
        %v8117 = vadd.f32 %v8021, %v8094
        %v8118 = vadd.f32 %v8022, %v8096
        %v8119 = vadd.f32 %v8023, %v8098
        %v8120 = vadd.f32 %v8024, %v8100
        %v8121 = vadd.f32 %v8025, %v8102
        %v8122 = vadd.f32 %v8026, %v8104
        %v8123 = vadd.f32 %v8027, %v8106
        %v8124 = vadd.f32 %v8028, %v8108
        %8125 = vrot.lane.b32.xlu0 %v7756, 124
        %v8126 = vpop.permute.xlu0 %8125
        %8127 = vrot.lane.b32.xlu0 %v7757, 124
        %v8128 = vpop.permute.xlu0 %8127
        %8129 = vrot.lane.b32.xlu0 %v7758, 124
        %v8130 = vpop.permute.xlu0 %8129
        %8131 = vrot.lane.b32.xlu0 %v7759, 124
        %v8132 = vpop.permute.xlu0 %8131
        %s8133 = vtos %v8126
        %v8134 = vstv %s8133
        %s8136 = vtos %v8128
        %v8137 = vstv %s8136
        %s8139 = vtos %v8130
        %v8140 = vstv %s8139
        %s8142 = vtos %v8132
        %v8143 = vstv %s8142
        %v8145 = vmul.f32 %v296, %v8134
        %v8146 = vmul.f32 %v297, %v8134
        %v8147 = vmul.f32 %v298, %v8134
        %v8148 = vmul.f32 %v299, %v8137
        %v8149 = vmul.f32 %v300, %v8137
        %v8150 = vmul.f32 %v301, %v8137
        %v8151 = vmul.f32 %v302, %v8140
        %v8152 = vmul.f32 %v303, %v8140
        %v8153 = vmul.f32 %v304, %v8140
        %v8154 = vmul.f32 %v305, %v8143
        %v8155 = vmul.f32 %v306, %v8143
        %v8156 = vmul.f32 %v307, %v8143
        %v8169 = vrot.slane %v8145, 6
        %v8170 = vrot.slane %v8146, 6
        %v8171 = vsel %vm7800, %v8169, %v8170
        %v8172 = vrot.slane %v8147, 6
        %v8173 = vsel %vm7800, %v8170, %v8172
        %v8174 = vrot.slane %v8148, 6
        %v8175 = vrot.slane %v8149, 6
        %v8176 = vsel %vm7800, %v8174, %v8175
        %v8177 = vrot.slane %v8150, 6
        %v8178 = vsel %vm7800, %v8175, %v8177
        %v8179 = vrot.slane %v8151, 6
        %v8180 = vrot.slane %v8152, 6
        %v8181 = vsel %vm7800, %v8179, %v8180
        %v8182 = vrot.slane %v8153, 6
        %v8183 = vsel %vm7800, %v8180, %v8182
        %v8184 = vrot.slane %v8154, 6
        %v8185 = vrot.slane %v8155, 6
        %v8186 = vsel %vm7800, %v8184, %v8185
        %v8187 = vrot.slane %v8156, 6
        %v8188 = vsel %vm7800, %v8185, %v8187
        %8189 = vrot.lane.b32.xlu0 %v8171, 124
        %v8190 = vpop.permute.xlu0 %8189
        %8191 = vrot.lane.b32.xlu0 %v8173, 124
        %v8192 = vpop.permute.xlu0 %8191
        %8193 = vrot.lane.b32.xlu0 %v8176, 124
        %v8194 = vpop.permute.xlu0 %8193
        %8195 = vrot.lane.b32.xlu0 %v8178, 124
        %v8196 = vpop.permute.xlu0 %8195
        %8197 = vrot.lane.b32.xlu0 %v8181, 124
        %v8198 = vpop.permute.xlu0 %8197
        %8199 = vrot.lane.b32.xlu0 %v8183, 124
        %v8200 = vpop.permute.xlu0 %8199
        %8201 = vrot.lane.b32.xlu0 %v8186, 124
        %v8202 = vpop.permute.xlu0 %8201
        %8203 = vrot.lane.b32.xlu0 %v8188, 124
        %v8204 = vpop.permute.xlu0 %8203
        %v8213 = vadd.f32 %v8117, %v8190
        %v8214 = vadd.f32 %v8118, %v8192
        %v8215 = vadd.f32 %v8119, %v8194
        %v8216 = vadd.f32 %v8120, %v8196
        %v8217 = vadd.f32 %v8121, %v8198
        %v8218 = vadd.f32 %v8122, %v8200
        %v8219 = vadd.f32 %v8123, %v8202
        %v8220 = vadd.f32 %v8124, %v8204
        %8221 = vrot.lane.b32.xlu0 %v7756, 123
        %v8222 = vpop.permute.xlu0 %8221
        %8223 = vrot.lane.b32.xlu0 %v7757, 123
        %v8224 = vpop.permute.xlu0 %8223
        %8225 = vrot.lane.b32.xlu0 %v7758, 123
        %v8226 = vpop.permute.xlu0 %8225
        %8227 = vrot.lane.b32.xlu0 %v7759, 123
        %v8228 = vpop.permute.xlu0 %8227
        %s8229 = vtos %v8222
        %v8230 = vstv %s8229
        %s8232 = vtos %v8224
        %v8233 = vstv %s8232
        %s8235 = vtos %v8226
        %v8236 = vstv %s8235
        %s8238 = vtos %v8228
        %v8239 = vstv %s8238
        %v8241 = vmul.f32 %v296, %v8230
        %v8242 = vmul.f32 %v297, %v8230
        %v8243 = vmul.f32 %v298, %v8230
        %v8244 = vmul.f32 %v299, %v8233
        %v8245 = vmul.f32 %v300, %v8233
        %v8246 = vmul.f32 %v301, %v8233
        %v8247 = vmul.f32 %v302, %v8236
        %v8248 = vmul.f32 %v303, %v8236
        %v8249 = vmul.f32 %v304, %v8236
        %v8250 = vmul.f32 %v305, %v8239
        %v8251 = vmul.f32 %v306, %v8239
        %v8252 = vmul.f32 %v307, %v8239
        %v8265 = vrot.slane %v8241, 6
        %v8266 = vrot.slane %v8242, 6
        %v8267 = vsel %vm7800, %v8265, %v8266
        %v8268 = vrot.slane %v8243, 6
        %v8269 = vsel %vm7800, %v8266, %v8268
        %v8270 = vrot.slane %v8244, 6
        %v8271 = vrot.slane %v8245, 6
        %v8272 = vsel %vm7800, %v8270, %v8271
        %v8273 = vrot.slane %v8246, 6
        %v8274 = vsel %vm7800, %v8271, %v8273
        %v8275 = vrot.slane %v8247, 6
        %v8276 = vrot.slane %v8248, 6
        %v8277 = vsel %vm7800, %v8275, %v8276
        %v8278 = vrot.slane %v8249, 6
        %v8279 = vsel %vm7800, %v8276, %v8278
        %v8280 = vrot.slane %v8250, 6
        %v8281 = vrot.slane %v8251, 6
        %v8282 = vsel %vm7800, %v8280, %v8281
        %v8283 = vrot.slane %v8252, 6
        %v8284 = vsel %vm7800, %v8281, %v8283
        %8285 = vrot.lane.b32.xlu0 %v8267, 123
        %v8286 = vpop.permute.xlu0 %8285
        %8287 = vrot.lane.b32.xlu0 %v8269, 123
        %v8288 = vpop.permute.xlu0 %8287
        %8289 = vrot.lane.b32.xlu0 %v8272, 123
        %v8290 = vpop.permute.xlu0 %8289
        %8291 = vrot.lane.b32.xlu0 %v8274, 123
        %v8292 = vpop.permute.xlu0 %8291
        %8293 = vrot.lane.b32.xlu0 %v8277, 123
        %v8294 = vpop.permute.xlu0 %8293
        %8295 = vrot.lane.b32.xlu0 %v8279, 123
        %v8296 = vpop.permute.xlu0 %8295
        %8297 = vrot.lane.b32.xlu0 %v8282, 123
        %v8298 = vpop.permute.xlu0 %8297
        %8299 = vrot.lane.b32.xlu0 %v8284, 123
        %v8300 = vpop.permute.xlu0 %8299
        %v8309 = vadd.f32 %v8213, %v8286
        %v8310 = vadd.f32 %v8214, %v8288
        %v8311 = vadd.f32 %v8215, %v8290
        %v8312 = vadd.f32 %v8216, %v8292
        %v8313 = vadd.f32 %v8217, %v8294
        %v8314 = vadd.f32 %v8218, %v8296
        %v8315 = vadd.f32 %v8219, %v8298
        %v8316 = vadd.f32 %v8220, %v8300
        %8317 = vrot.lane.b32.xlu0 %v7756, 122
        %v8318 = vpop.permute.xlu0 %8317
        %8319 = vrot.lane.b32.xlu0 %v7757, 122
        %v8320 = vpop.permute.xlu0 %8319
        %8321 = vrot.lane.b32.xlu0 %v7758, 122
        %v8322 = vpop.permute.xlu0 %8321
        %8323 = vrot.lane.b32.xlu0 %v7759, 122
        %v8324 = vpop.permute.xlu0 %8323
        %s8325 = vtos %v8318
        %v8326 = vstv %s8325
        %s8328 = vtos %v8320
        %v8329 = vstv %s8328
        %s8331 = vtos %v8322
        %v8332 = vstv %s8331
        %s8334 = vtos %v8324
        %v8335 = vstv %s8334
        %v8337 = vmul.f32 %v296, %v8326
        %v8338 = vmul.f32 %v297, %v8326
        %v8339 = vmul.f32 %v298, %v8326
        %v8340 = vmul.f32 %v299, %v8329
        %v8341 = vmul.f32 %v300, %v8329
        %v8342 = vmul.f32 %v301, %v8329
        %v8343 = vmul.f32 %v302, %v8332
        %v8344 = vmul.f32 %v303, %v8332
        %v8345 = vmul.f32 %v304, %v8332
        %v8346 = vmul.f32 %v305, %v8335
        %v8347 = vmul.f32 %v306, %v8335
        %v8348 = vmul.f32 %v307, %v8335
        %v8361 = vrot.slane %v8337, 6
        %v8362 = vrot.slane %v8338, 6
        %v8363 = vsel %vm7800, %v8361, %v8362
        %v8364 = vrot.slane %v8339, 6
        %v8365 = vsel %vm7800, %v8362, %v8364
        %v8366 = vrot.slane %v8340, 6
        %v8367 = vrot.slane %v8341, 6
        %v8368 = vsel %vm7800, %v8366, %v8367
        %v8369 = vrot.slane %v8342, 6
        %v8370 = vsel %vm7800, %v8367, %v8369
        %v8371 = vrot.slane %v8343, 6
        %v8372 = vrot.slane %v8344, 6
        %v8373 = vsel %vm7800, %v8371, %v8372
        %v8374 = vrot.slane %v8345, 6
        %v8375 = vsel %vm7800, %v8372, %v8374
        %v8376 = vrot.slane %v8346, 6
        %v8377 = vrot.slane %v8347, 6
        %v8378 = vsel %vm7800, %v8376, %v8377
        %v8379 = vrot.slane %v8348, 6
        %v8380 = vsel %vm7800, %v8377, %v8379
        %8381 = vrot.lane.b32.xlu0 %v8363, 122
        %v8382 = vpop.permute.xlu0 %8381
        %8383 = vrot.lane.b32.xlu0 %v8365, 122
        %v8384 = vpop.permute.xlu0 %8383
        %8385 = vrot.lane.b32.xlu0 %v8368, 122
        %v8386 = vpop.permute.xlu0 %8385
        %8387 = vrot.lane.b32.xlu0 %v8370, 122
        %v8388 = vpop.permute.xlu0 %8387
        %8389 = vrot.lane.b32.xlu0 %v8373, 122
        %v8390 = vpop.permute.xlu0 %8389
        %8391 = vrot.lane.b32.xlu0 %v8375, 122
        %v8392 = vpop.permute.xlu0 %8391
        %8393 = vrot.lane.b32.xlu0 %v8378, 122
        %v8394 = vpop.permute.xlu0 %8393
        %8395 = vrot.lane.b32.xlu0 %v8380, 122
        %v8396 = vpop.permute.xlu0 %8395
        %v8405 = vadd.f32 %v8309, %v8382
        %v8406 = vadd.f32 %v8310, %v8384
        %v8407 = vadd.f32 %v8311, %v8386
        %v8408 = vadd.f32 %v8312, %v8388
        %v8409 = vadd.f32 %v8313, %v8390
        %v8410 = vadd.f32 %v8314, %v8392
        %v8411 = vadd.f32 %v8315, %v8394
        %v8412 = vadd.f32 %v8316, %v8396
        %v8413 = vmax.f32 %v8405, 0.0
        %v8414 = vmax.f32 %v8406, 0.0
        %v8415 = vmax.f32 %v8407, 0.0
        %v8416 = vmax.f32 %v8408, 0.0
        %v8417 = vmax.f32 %v8409, 0.0
        %v8418 = vmax.f32 %v8410, 0.0
        %v8419 = vmax.f32 %v8411, 0.0
        %v8420 = vmax.f32 %v8412, 0.0
        %v8429 = vrot.slane %v8413, 7
        %v8430 = vrot.slane %v8414, 7
        %v8431 = vsel %vm1186, %v8429, %v8430
        %v8432 = vrot.slane %v8415, 7
        %v8433 = vrot.slane %v8416, 7
        %v8434 = vsel %vm1186, %v8432, %v8433
        %v8435 = vrot.slane %v8417, 7
        %v8436 = vrot.slane %v8418, 7
        %v8437 = vsel %vm1186, %v8435, %v8436
        %v8438 = vrot.slane %v8419, 7
        %v8439 = vrot.slane %v8420, 7
        %v8440 = vsel %vm1186, %v8438, %v8439
        %8441 = vrot.lane.b32.xlu0 %v8429, 1
        %v8442 = vpop.permute.xlu0 %8441
        %8443 = vrot.lane.b32.xlu0 %v8431, 1
        %v8444 = vpop.permute.xlu0 %8443
        %8445 = vrot.lane.b32.xlu0 %v8430, 1
        %v8446 = vpop.permute.xlu0 %8445
        %8447 = vrot.lane.b32.xlu0 %v8432, 1
        %v8448 = vpop.permute.xlu0 %8447
        %8449 = vrot.lane.b32.xlu0 %v8434, 1
        %v8450 = vpop.permute.xlu0 %8449
        %8451 = vrot.lane.b32.xlu0 %v8433, 1
        %v8452 = vpop.permute.xlu0 %8451
        %8453 = vrot.lane.b32.xlu0 %v8435, 1
        %v8454 = vpop.permute.xlu0 %8453
        %8455 = vrot.lane.b32.xlu0 %v8437, 1
        %v8456 = vpop.permute.xlu0 %8455
        %8457 = vrot.lane.b32.xlu0 %v8436, 1
        %v8458 = vpop.permute.xlu0 %8457
        %8459 = vrot.lane.b32.xlu0 %v8438, 1
        %v8460 = vpop.permute.xlu0 %8459
        %8461 = vrot.lane.b32.xlu0 %v8440, 1
        %v8462 = vpop.permute.xlu0 %8461
        %8463 = vrot.lane.b32.xlu0 %v8439, 1
        %v8464 = vpop.permute.xlu0 %8463
        %v8477 = vsub.f32 %v3876, %v8442
        %v8478 = vsub.f32 %v3877, %v8444
        %v8479 = vsub.f32 %v3878, %v8446
        %v8480 = vsub.f32 %v3879, %v8448
        %v8481 = vsub.f32 %v3880, %v8450
        %v8482 = vsub.f32 %v3881, %v8452
        %v8483 = vsub.f32 %v3882, %v8454
        %v8484 = vsub.f32 %v3883, %v8456
        %v8485 = vsub.f32 %v3884, %v8458
        %v8486 = vsub.f32 %v3885, %v8460
        %v8487 = vsub.f32 %v3886, %v8462
        %v8488 = vsub.f32 %v3887, %v8464
        %8501 = vrot.lane.b32.xlu0 %v8477, 127
        %v8502 = vpop.permute.xlu0 %8501
        %8503 = vrot.lane.b32.xlu0 %v8478, 127
        %v8504 = vpop.permute.xlu0 %8503
        %8505 = vrot.lane.b32.xlu0 %v8479, 127
        %v8506 = vpop.permute.xlu0 %8505
        %8507 = vrot.lane.b32.xlu0 %v8480, 127
        %v8508 = vpop.permute.xlu0 %8507
        %8509 = vrot.lane.b32.xlu0 %v8481, 127
        %v8510 = vpop.permute.xlu0 %8509
        %8511 = vrot.lane.b32.xlu0 %v8482, 127
        %v8512 = vpop.permute.xlu0 %8511
        %8513 = vrot.lane.b32.xlu0 %v8483, 127
        %v8514 = vpop.permute.xlu0 %8513
        %8515 = vrot.lane.b32.xlu0 %v8484, 127
        %v8516 = vpop.permute.xlu0 %8515
        %8517 = vrot.lane.b32.xlu0 %v8485, 127
        %v8518 = vpop.permute.xlu0 %8517
        %8519 = vrot.lane.b32.xlu0 %v8486, 127
        %v8520 = vpop.permute.xlu0 %8519
        %8521 = vrot.lane.b32.xlu0 %v8487, 127
        %v8522 = vpop.permute.xlu0 %8521
        %8523 = vrot.lane.b32.xlu0 %v8488, 127
        %v8524 = vpop.permute.xlu0 %8523
        %s8537 = scalar_lea.vmem %s265, 128 [#allocation2]
        %vm8538 = vcmask 130049
        %8539 = vst.msk [vmem:[%s8537 - $0x1] sm:$0xfe] %vm8538, %v8502
        %8540 = vst.msk [vmem:[%s8537 + $0x7] sm:$0xff] %vm1305, %v8504
        %vm8541 = vcmask 122880
        %8542 = vst.msk [vmem:[%s8537 + $0xf] sm:$0x1] %vm8541, %v8506
        %8543 = vst.msk [vmem:[%s8537 + $0xf] sm:$0xfe] %vm8538, %v8508
        %8544 = vst.msk [vmem:[%s8537 + $0x17] sm:$0xff] %vm1305, %v8510
        %8545 = vst.msk [vmem:[%s8537 + $0x1f] sm:$0x1] %vm8541, %v8512
        %8546 = vst.msk [vmem:[%s8537 + $0x1f] sm:$0xfe] %vm8538, %v8514
        %8547 = vst.msk [vmem:[%s8537 + $0x27] sm:$0xff] %vm1305, %v8516
        %8548 = vst.msk [vmem:[%s8537 + $0x2f] sm:$0x1] %vm8541, %v8518
        %8549 = vst.msk [vmem:[%s8537 + $0x2f] sm:$0xfe] %vm8538, %v8520
        %8550 = vst.msk [vmem:[%s8537 + $0x37] sm:$0xff] %vm1305, %v8522
        %8551 = vst.msk [vmem:[%s8537 + $0x3f] sm:$0x1] %vm8541, %v8524
        %s8552 = scalar_lea.vmem %s265, 192 [#allocation2]
        %8553 = vst.msk [vmem:[%s8552] sm:$0xff] %vm1305, %v8413
        %8554 = vst.msk [vmem:[%s8552 + $0x8] sm:$0xff] %vm1305, %v8414
        %8555 = vst.msk [vmem:[%s8552 + $0x10] sm:$0xff] %vm1305, %v8415
        %8556 = vst.msk [vmem:[%s8552 + $0x18] sm:$0xff] %vm1305, %v8416
        %8557 = vst.msk [vmem:[%s8552 + $0x20] sm:$0xff] %vm1305, %v8417
        %8558 = vst.msk [vmem:[%s8552 + $0x28] sm:$0xff] %vm1305, %v8418
        %8559 = vst.msk [vmem:[%s8552 + $0x30] sm:$0xff] %vm1305, %v8419
        %8560 = vst.msk [vmem:[%s8552 + $0x38] sm:$0xff] %vm1305, %v8420
        %s8561 = sand.u32 %s146, 1
        %s8562 = scalar_lea.sflag [#allocation3], %s8561
        %s8563 = sand.u32 %s146, 1
        %s8564 = smul.addr %s8563, 256
        %s8565 = scalar_lea.vmem [#allocation2], %s8564
        // Predicated region
        $region37: #{tpu_custom_call.1} parent=35 // pred_check
          %p8566 = pneg %p156
        $region38: #{tpu_custom_call.1} parent=35 // pred_check_branch
          %8568 = sbr.rel (%p8566) target = $region40
        $region39: #{tpu_custom_call.1} parent=35 // pred_region
          %s8569 = smul.u32 4, %s23
          %s8571 = ssub.s32 4096, 4096
          %8572 = vsyncadd %s8562, %s8571
          %s8573 = smul.addr %s8569, 2
          %s8574 = smul.addr %s22, 32
          %s8575 = sadd.s32 %s8573, %s8574
          %s8576 = smul.addr %s8575, 128
          %s8577 = scalar_lea.hbm %s4, %s8576
          %s8578 = sshll.u32 %s8565, 4
          %s8579 = int_to_ptr.vmem [resolvable:$true] %s8578
          %8584 = dma.vmem_to_hbm [thread:$0]  %s8579, 4096, %s8577, %s8562, 128, 128, 8
        $region40: #{tpu_custom_call.1} parent=35 // pred_fallthru
          _
      $region36: #{tpu_custom_call.1} parent=5 // pred_fallthru
        _
      %p8585 = scmp.le.s32.totalorder 2, %s13
      // Predicated region
      $region41: #{tpu_custom_call.1} parent=5 // pred_check
        %p8586 = pneg %p8585
      $region42: #{tpu_custom_call.1} parent=5 // pred_check_branch
        %8588 = sbr.rel (%p8586) target = $region44
      $region43: #{tpu_custom_call.1} parent=5 // pred_region
        %s8589 = ssub.s32 %s13, 2
        // Predicated region
        $region45: #{tpu_custom_call.1} parent=43 // pred_check
          %p8590 = pneg %p162
        $region46: #{tpu_custom_call.1} parent=43 // pred_check_branch
          %8592 = sbr.rel (%p8590) target = $region48
        $region47: #{tpu_custom_call.1} parent=43 // pred_region
          %s8593 = sand.u32 %s147, 1
          %s8594 = scalar_lea.sflag [#allocation3], %s8593
          %s8595 = sand.u32 %s147, 1
          %s8596 = smul.addr %s8595, 256
          %s8597 = scalar_lea.vmem [#allocation2], %s8596
          %8598 = dma.done %s8594, 4096
        $region48: #{tpu_custom_call.1} parent=43 // pred_fallthru
          _
      $region44: #{tpu_custom_call.1} parent=5 // pred_fallthru
        _
    $region6: #{tpu_custom_call.1} parent=1 // loop_footer
      %s17 = sadd.s32 1, %s13
    $region7: #{tpu_custom_call.1} parent=1 // loop_footer_branch
      %12 = sbr.rel target = $region3
    $region8: #{tpu_custom_call.1} parent=1 // loop_exit
      _
    %8599 = vsyncpa [#allocation3], 1
    %s8600 = scalar_lea.sflag [#allocation3], 1
    %8601 = vsyncpa %s8600, 1

</llo_original>
